<compile_context>
chip_gen: v5e
topology: v5e:2x2
jax: 0.10.0
libtpu: 0.0.40
codegen_flags: <defaults>
</compile_context>

<pallas_src>
import functools
import numpy as np
import jax
import jax.numpy as jnp
from jax.experimental import pallas as pl
from jax.experimental.pallas import tpu as pltpu

NOF_KERNELS = 4   # nof_kernels_param
REDUCE = 4        # reduce_param


def _round_up(x, m):
    return (x + m - 1) // m * m


# ---------------------------------------------------------------------------
# Pallas kernel: tiled batched matmul + bias + fused activation  (the hot path)
# ---------------------------------------------------------------------------
def _bmm_bias_act_kernel(a_ref, b_ref, bias_ref, o_ref, acc_ref, *, act, alpha):
    k = pl.program_id(3)

    @pl.when(k == 0)
    def _init():
        acc_ref[...] = jnp.zeros_like(acc_ref)

    acc_ref[...] += jnp.dot(a_ref[0, :, :], b_ref[0, :, :],
                            preferred_element_type=jnp.float32)

    @pl.when(k == pl.num_programs(3) - 1)
    def _finalize():
        acc = acc_ref[...] + bias_ref[0, :, :]
        if act == "relu":
            acc = jnp.maximum(acc, 0.0)
        elif act == "leaky":
            acc = jnp.where(acc > 0.0, acc, alpha * acc)
        elif act == "sigmoid":
            acc = jax.nn.sigmoid(acc)
        o_ref[0, :, :] = acc.astype(o_ref.dtype)


def bmm_bias_act(a, b, bias=None, act="none", alpha=0.2):
    """Batched (B,M,K) @ (B,K,N) + bias with fused activation in a tiled Pallas kernel.

    Operands are cast to bf16 (2x MXU throughput, half the DMA bytes); the
    accumulator stays f32 in VMEM scratch.  Returns f32 (B, M, N).
    """
    B, M, K = a.shape
    _, K2, N = b.shape
    assert K == K2
    if bias is None:
        bias = jnp.zeros((B, N), jnp.float32)

    # Tile sizes: 256/512-aligned K passes keep the 2x256^2 MXU (v6e/v7x) full,
    # lane-dense (>=128) N tiles avoid masked vst; worst-case tile footprint is
    # ~3.5 MiB, comfortably double-buffered inside v7x's 64 MiB VMEM.
    tm = min(512, _round_up(M, 8))
    Np = _round_up(N, 128)
    tn = Np if Np <= 256 else 128
    Kp256 = _round_up(K, 256)
    tk = 512 if (Kp256 >= 512 and Kp256 % 512 == 0) else 256
    Mp = _round_up(M, tm)
    Kp = _round_up(K, tk)

    a_p = jnp.pad(a.astype(jnp.bfloat16), ((0, 0), (0, Mp - M), (0, Kp - K)))
    b_p = jnp.pad(b.astype(jnp.bfloat16), ((0, 0), (0, Kp - K), (0, Np - N)))
    bias_p = jnp.pad(bias.astype(jnp.float32), ((0, 0), (0, Np - N))).reshape(B, 1, Np)

    grid = (B, Mp // tm, Np // tn, Kp // tk)

    out = pl.pallas_call(
        functools.partial(_bmm_bias_act_kernel, act=act, alpha=alpha),
        out_shape=jax.ShapeDtypeStruct((B, Mp, Np), jnp.float32),
        grid=grid,
        in_specs=[
            pl.BlockSpec((1, tm, tk), lambda b_, i, j, k: (b_, i, k)),
            pl.BlockSpec((1, tk, tn), lambda b_, i, j, k: (b_, k, j)),
            pl.BlockSpec((1, 1, tn), lambda b_, i, j, k: (b_, 0, j)),
        ],
        out_specs=pl.BlockSpec((1, tm, tn), lambda b_, i, j, k: (b_, i, j)),
        scratch_shapes=[pltpu.VMEM((tm, tn), jnp.float32)],
        compiler_params=pltpu.CompilerParams(
            dimension_semantics=("parallel", "parallel", "parallel", "arbitrary")),
    )(a_p, b_p, bias_p)
    # Padded rows/cols (garbage after bias/activation) are sliced off here; padded
    # K contributes exact zeros to the accumulation.
    return out[:, :M, :N]


# ---------------------------------------------------------------------------
# Conv wrappers (im2col is glue; the matmul runs in the Pallas kernel)
# ---------------------------------------------------------------------------
def _im2col(x, kh, kw, pad):
    """(N, C, H, W) -> (N, Ho*Wo, C*kh*kw) patch matrix (Cin-major, then ki,kj)."""
    N, C, H, W = x.shape
    xp = jnp.pad(x, ((0, 0), (0, 0), (pad, pad), (pad, pad)))
    Ho = H + 2 * pad - kh + 1
    Wo = W + 2 * pad - kw + 1
    slabs = []
    for i in range(kh):
        for j in range(kw):
            slabs.append(xp[:, :, i:i + Ho, j:j + Wo])
    pat = jnp.stack(slabs, axis=2)                           # (N, C, kh*kw, Ho, Wo)
    cols = pat.reshape(N, C * kh * kw, Ho * Wo).transpose(0, 2, 1)
    return cols, Ho, Wo                                      # (N, Ho*Wo, C*kh*kw)


def conv2d(x, w, b, pad, act="none", alpha=0.2):
    """Standard nn.Conv2d (stride 1) via im2col + Pallas matmul (batch folded into M)."""
    N, Cin, H, W = x.shape
    Cout, _, kh, kw = w.shape
    cols, Ho, Wo = _im2col(x, kh, kw, pad)
    cols = cols.reshape(1, N * Ho * Wo, Cin * kh * kw)
    wmat = w.reshape(Cout, -1).T[None]                       # (1, K, Cout)
    bias = None if b is None else b.reshape(1, Cout)
    y = bmm_bias_act(cols, wmat, bias, act=act, alpha=alpha)  # (1, N*Ho*Wo, Cout)
    return y.reshape(N, Ho, Wo, Cout).transpose(0, 3, 1, 2)


def dynamic_conv(x, p, pad, act="none", alpha=0.2):
    """DynamicConvolution: per-sample attention-weighted mixture of kernels.

    The whole batch runs in ONE Pallas launch: the attention-mixed weights are
    built with a single einsum and the kernel grid carries a leading batch axis
    whose index_map selects the per-sample (K, Cout) weight slab.
    """
    N, Cin, H, W = x.shape
    Kk, Cout, _, kh, kw = p["kernels"].shape
    gap = x.mean(axis=(2, 3))                                   # (N, Cin)
    hid = jax.nn.relu(gap @ p["w1"].T + p["b1"])                # (N, hidden)
    att = jax.nn.softmax(hid @ p["w2"].T + p["b2"], axis=-1)    # (N, Kk)
    wk = p["kernels"].reshape(Kk, Cout, Cin * kh * kw)
    w_all = jnp.einsum("nk,kof->nfo", att, wk)                  # (N, K, Cout)
    b_all = att @ p["kbias"] if p["kbias"] is not None else None
    cols, Ho, Wo = _im2col(x, kh, kw, pad)                      # (N, Ho*Wo, K)
    y = bmm_bias_act(cols, w_all, b_all, act=act, alpha=alpha)  # (N, Ho*Wo, Cout)
    return y.reshape(N, Ho, Wo, Cout).transpose(0, 3, 1, 2)


# ---------------------------------------------------------------------------
# Module forwards
# ---------------------------------------------------------------------------
def rdb_forward(p, x):
    """ResidualDenseBlock."""
    x1 = conv2d(x, p["c1"]["w"], p["c1"]["b"], 1, act="leaky")
    x2 = conv2d(jnp.concatenate([x, x1], 1), p["c2"]["w"], p["c2"]["b"], 1, act="leaky")
    x3 = conv2d(jnp.concatenate([x, x1, x2], 1), p["c3"]["w"], p["c3"]["b"], 1, act="leaky")
    x4 = conv2d(jnp.concatenate([x, x1, x2, x3], 1), p["c4"]["w"], p["c4"]["b"], 1, act="leaky")
    x5 = conv2d(jnp.concatenate([x, x1, x2, x3, x4], 1), p["c5"]["w"], p["c5"]["b"], 1)
    return x5 * 0.2 + x


def convnorm_forward(p, x, act="none"):
    # ConvNorm = ZeroPad2d(k//2) + DynamicConvolution(k, padding=0, bias=True)
    kh = p["conv"]["kernels"].shape[3]
    return dynamic_conv(x, p["conv"], pad=kh // 2, act=act)


def calayer_forward(p, x):
    y = x.mean(axis=(2, 3), keepdims=True)                 # AdaptiveAvgPool2d(1)
    y = dynamic_conv(y, p["du1"], pad=0, act="relu")       # 1x1, C -> C//16
    y = dynamic_conv(y, p["du2"], pad=0, act="sigmoid")    # 1x1, C//16 -> C
    return x * y


def rcab_forward(p, x):
    out = convnorm_forward(p["c1"], x, act="leaky")        # ConvNorm + LeakyReLU(0.2)
    out = convnorm_forward(p["c2"], out)
    out = calayer_forward(p["ca"], out)
    return out + x


# -- scan helpers: repeated identical blocks are folded into lax.scan so the
#    whole network fits in a single jit with a small graph / few Mosaic kernels.
def stack_params(plist):
    return jax.tree.map(lambda *xs: jnp.stack(xs), *plist)


def scan_blocks(fn, stacked_params, x):
    def body(carry, bp):
        return fn(bp, carry), None
    y, _ = jax.lax.scan(body, x, stacked_params)
    return y


def resgroup_forward(p, x):
    res = scan_blocks(rcab_forward, p["blocks"], x)
    res = convnorm_forward(p["tail"], res)
    return res + x


def interpolation_forward(p, x0, x1):
    x = jnp.concatenate([x0, x1], axis=1)
    x = dynamic_conv(x, p["head"], pad=1)
    res = scan_blocks(resgroup_forward, p["groups"], x)
    res = res + x
    return dynamic_conv(res, p["tail"], pad=1)


def pixel_unshuffle(x, r):
    N, C, H, W = x.shape
    x = x.reshape(N, C, H // r, r, W // r, r)
    x = x.transpose(0, 1, 3, 5, 2, 4)
    return x.reshape(N, C * r * r, H // r, W // r)


def pixel_shuffle(x, r):
    N, C, H, W = x.shape
    x = x.reshape(N, C // (r * r), r, r, H, W)
    x = x.transpose(0, 1, 4, 2, 5, 3)
    return x.reshape(N, C // (r * r), H * r, W * r)


def encoder_forward(p, x1, x2):
    f1 = pixel_unshuffle(x1, 8)
    f2 = pixel_unshuffle(x2, 8)
    f1 = scan_blocks(rdb_forward, p["f1_32"], f1)      # frdb11..frdb13 (gc=32)
    f1 = scan_blocks(rdb_forward, p["f1_64"], f1)      # frdb14..frdb15 (gc=64)
    f2 = scan_blocks(rdb_forward, p["f2_32"], f2)      # frdb21..frdb23
    f2 = scan_blocks(rdb_forward, p["f2_64"], f2)      # frdb24..frdb25
    feats = interpolation_forward(p["interpolate"], f1, f2)
    feats = scan_blocks(rdb_forward, p["post_32"], feats)   # rdb..rdb6 (gc=32)
    feats = scan_blocks(rdb_forward, p["post_64"], feats)   # rdb7..rdb9 (gc=64)
    return feats


def sub_mean(x):
    mean = x.mean(axis=(2, 3), keepdims=True)
    return x - mean, mean


def cain_forward(p, x):
    # torch.split(x, 3, dim=1) -> (first 3 chans, last 3 chans); assigned x2, x1
    x2 = x[:, :3]
    x1 = x[:, 3:6]
    width = x1.shape[3]
    x1, m1 = sub_mean(x1)
    x2, m2 = sub_mean(x2)
    feats = encoder_forward(p["encoder"], x1, x2)
    out = pixel_shuffle(feats, 8)                 # Decoder(depth=3)
    mi = (m1 + m2) / 2.0
    out = out + mi
    return out[:, :, :, :width]


# ---------------------------------------------------------------------------
# Deterministic parameter initialization (shapes from the module __init__)
# ---------------------------------------------------------------------------
class PG:
    def __init__(self, seed=1):
        self.key = jax.random.PRNGKey(seed)

    def normal(self, shape, scale):
        self.key, k = jax.random.split(self.key)
        return scale * jax.random.normal(k, shape, jnp.float32)


def init_conv(pg, cin, cout, k):
    s = 1.0 / np.sqrt(cin * k * k)
    return {"w": pg.normal((cout, cin, k, k), s), "b": pg.normal((cout,), s)}


def init_dynconv(pg, cin, cout, k, bias):
    hid = max(cin // REDUCE, 1)
    s = 1.0 / np.sqrt(cin * k * k)
    return {
        "kernels": pg.normal((NOF_KERNELS, cout, cin, k, k), s),
        "kbias": pg.normal((NOF_KERNELS, cout), s) if bias else None,
        "w1": pg.normal((hid, cin), 1.0 / np.sqrt(cin)),
        "b1": pg.normal((hid,), 0.01),
        "w2": pg.normal((NOF_KERNELS, hid), 1.0 / np.sqrt(hid)),
        "b2": pg.normal((NOF_KERNELS,), 0.01),
    }


def init_rdb(pg, nf, gc):
    return {
        "c1": init_conv(pg, nf, gc, 3),
        "c2": init_conv(pg, nf + gc, gc, 3),
        "c3": init_conv(pg, nf + 2 * gc, gc, 3),
        "c4": init_conv(pg, nf + 3 * gc, gc, 3),
        "c5": init_conv(pg, nf + 4 * gc, nf, 3),
    }


def init_convnorm(pg, cin, cout, k):
    return {"conv": init_dynconv(pg, cin, cout, k, bias=True)}


def init_calayer(pg, ch, red=16):
    return {
        "du1": init_dynconv(pg, ch, ch // red, 1, False),
        "du2": init_dynconv(pg, ch // red, ch, 1, False),
    }


def init_rcab(pg, nf, red=16):
    return {
        "c1": init_convnorm(pg, nf, nf, 3),
        "c2": init_convnorm(pg, nf, nf, 3),
        "ca": init_calayer(pg, nf, red),
    }


def init_resgroup(pg, nf, n_resblocks=12, red=16):
    return {
        "blocks": stack_params([init_rcab(pg, nf, red) for _ in range(n_resblocks)]),
        "tail": init_convnorm(pg, nf, nf, 3),
    }


def init_interpolation(pg, nf, red=16):
    return {
        "head": init_dynconv(pg, nf * 2, nf, 3, False),
        "groups": stack_params([init_resgroup(pg, nf, 12, red) for _ in range(2)]),
        "tail": init_dynconv(pg, nf, nf, 3, False),
    }


def init_encoder(pg, in_channels=3, depth=3):
    nf = in_channels * 4 ** depth  # 192
    p = {}
    p["f1_32"] = stack_params([init_rdb(pg, nf, 32) for _ in range(3)])
    p["f1_64"] = stack_params([init_rdb(pg, nf, 64) for _ in range(2)])
    p["f2_32"] = stack_params([init_rdb(pg, nf, 32) for _ in range(3)])
    p["f2_64"] = stack_params([init_rdb(pg, nf, 64) for _ in range(2)])
    p["interpolate"] = init_interpolation(pg, nf, red=16)
    p["post_32"] = stack_params([init_rdb(pg, nf, 32) for _ in range(6)])
    p["post_64"] = stack_params([init_rdb(pg, nf, 64) for _ in range(3)])
    return p


def init_cain(pg, depth=3):
    return {"encoder": init_encoder(pg, 3, depth)}


# ---------------------------------------------------------------------------
if __name__ == "__main__":
    H, W = 16, 16  # must be divisible by 2**depth = 8
    x = jax.random.uniform(jax.random.PRNGKey(0), (1, 6, H, W), jnp.float32)

    pg = PG(seed=1)
    params = init_cain(pg, depth=3)

    cain_jit = jax.jit(cain_forward)          # single jit over the whole forward
    out = jax.block_until_ready(cain_jit(params, x))

    assert out.shape == (1, 3, H, W), out.shape
    assert bool(jnp.all(jnp.isfinite(out)))
    print("KERNEL_OK")
</pallas_src>

<mosaic_0001>
module attributes {stable_mosaic.version = 11 : i64} {
  func.func @_bmm_bias_act_kernel(%arg0: i32, %arg1: i32, %arg2: i32, %arg3: i32, %arg4: memref<1x8x256xbf16, #tpu.memory_space<vmem>>, %arg5: memref<1x256x128xbf16, #tpu.memory_space<vmem>>, %arg6: memref<1x1x128xf32, #tpu.memory_space<vmem>>, %arg7: memref<1x8x128xf32, #tpu.memory_space<vmem>>, %arg8: memref<8x128xf32, #tpu.memory_space<vmem>>) attributes {dimension_semantics = [#tpu.dimension_semantics<parallel>, #tpu.dimension_semantics<parallel>, #tpu.dimension_semantics<parallel>, #tpu.dimension_semantics<arbitrary>], iteration_bounds = array<i64: 1, 1, 1, 7>, scalar_prefetch = 0 : i64, scratch_operands = 1 : i64, tpu.core_type = #tpu.core_type<tc>, window_params = [{transform_indices = @transform_0, window_bounds = array<i64: 1, 8, 256>}, {transform_indices = @transform_1, window_bounds = array<i64: 1, 256, 128>}, {transform_indices = @transform_2, window_bounds = array<i64: 1, 1, 128>}, {transform_indices = @transform_3, window_bounds = array<i64: 1, 8, 128>}]} {
    %c0_i32 = arith.constant 0 : i32
    %0 = arith.cmpi eq, %arg3, %c0_i32 : i32
    %1 = arith.extui %0 : i1 to i32
    %c0_i32_0 = arith.constant 0 : i32
    %2 = arith.cmpi ne, %1, %c0_i32_0 : i32
    scf.if %2 {
      %cst_11 = arith.constant 0.000000e+00 : f32
      %14 = vector.broadcast %cst_11 : f32 to vector<8x128xf32>
      %c0_12 = arith.constant 0 : index
      %c0_13 = arith.constant 0 : index
      %15 = vector.load %arg8[%c0_12, %c0_13] : memref<8x128xf32, #tpu.memory_space<vmem>>, vector<8x128xf32>
      tpu.vector_store %arg8[%c0_12, %c0_13], %14 {strides = array<i32>} : memref<8x128xf32, #tpu.memory_space<vmem>>, vector<8x128xf32>,
    } else {
    }
    %c0 = arith.constant 0 : index
    %c0_1 = arith.constant 0 : index
    %3 = vector.load %arg8[%c0, %c0_1] : memref<8x128xf32, #tpu.memory_space<vmem>>, vector<8x128xf32>
    %c0_2 = arith.constant 0 : index
    %c0_3 = arith.constant 0 : index
    %c0_4 = arith.constant 0 : index
    %4 = vector.load %arg4[%c0_2, %c0_3, %c0_4] : memref<1x8x256xbf16, #tpu.memory_space<vmem>>, vector<1x8x256xbf16>
    %5 = vector.shape_cast %4 : vector<1x8x256xbf16> to vector<8x256xbf16>
    %c0_5 = arith.constant 0 : index
    %c0_6 = arith.constant 0 : index
    %c0_7 = arith.constant 0 : index
    %6 = vector.load %arg5[%c0_5, %c0_6, %c0_7] : memref<1x256x128xbf16, #tpu.memory_space<vmem>>, vector<1x256x128xbf16>
    %7 = vector.shape_cast %6 : vector<1x256x128xbf16> to vector<256x128xbf16>
    %cst = arith.constant dense<0.000000e+00> : vector<8x128xf32>
    %8 = tpu.matmul %5, %7, %cst {dimension_numbers = #tpu.dot_dimension_numbers<[1], [0], [0], [1], [0, 0, 1, 1], [], []>} : vector<8x256xbf16>, vector<256x128xbf16>, vector<8x128xf32> -> vector<8x128xf32>
    %9 = arith.addf %3, %8 : vector<8x128xf32>
    %c0_8 = arith.constant 0 : index
    %c0_9 = arith.constant 0 : index
    %10 = vector.load %arg8[%c0_8, %c0_9] : memref<8x128xf32, #tpu.memory_space<vmem>>, vector<8x128xf32>
    tpu.vector_store %arg8[%c0_8, %c0_9], %9 {strides = array<i32>} : memref<8x128xf32, #tpu.memory_space<vmem>>, vector<8x128xf32>,
    %c6_i32 = arith.constant 6 : i32
    %11 = arith.cmpi eq, %arg3, %c6_i32 : i32
    %12 = arith.extui %11 : i1 to i32
    %c0_i32_10 = arith.constant 0 : i32
    %13 = arith.cmpi ne, %12, %c0_i32_10 : i32
    scf.if %13 {
      %c0_11 = arith.constant 0 : index
      %c0_12 = arith.constant 0 : index
      %14 = vector.load %arg8[%c0_11, %c0_12] : memref<8x128xf32, #tpu.memory_space<vmem>>, vector<8x128xf32>
      %c0_13 = arith.constant 0 : index
      %c0_14 = arith.constant 0 : index
      %c0_15 = arith.constant 0 : index
      %15 = vector.load %arg6[%c0_13, %c0_14, %c0_15] : memref<1x1x128xf32, #tpu.memory_space<vmem>>, vector<1x1x128xf32>
      %16 = vector.shape_cast %15 : vector<1x1x128xf32> to vector<1x128xf32>
      %17 = vector.broadcast %16 : vector<1x128xf32> to vector<8x128xf32>
      %18 = arith.addf %14, %17 : vector<8x128xf32>
      %cst_16 = arith.constant 0.000000e+00 : f32
      %19 = vector.broadcast %cst_16 : f32 to vector<8x128xf32>
      %20 = arith.cmpf ogt, %18, %19 : vector<8x128xf32>
      %cst_17 = arith.constant 2.000000e-01 : f32
      %21 = vector.broadcast %cst_17 : f32 to vector<8x128xf32>
      %22 = arith.mulf %21, %18 : vector<8x128xf32>
      %23 = arith.select %20, %18, %22 : vector<8x128xi1>, vector<8x128xf32>
      %c0_18 = arith.constant 0 : index
      %c0_19 = arith.constant 0 : index
      %c0_20 = arith.constant 0 : index
      %24 = vector.load %arg7[%c0_18, %c0_19, %c0_20] : memref<1x8x128xf32, #tpu.memory_space<vmem>>, vector<1x8x128xf32>
      %25 = vector.shape_cast %24 : vector<1x8x128xf32> to vector<8x128xf32>
      %26 = vector.shape_cast %23 : vector<8x128xf32> to vector<1x8x128xf32>
      tpu.vector_store %arg7[%c0_18, %c0_19, %c0_20], %26 {strides = array<i32>} : memref<1x8x128xf32, #tpu.memory_space<vmem>>, vector<1x8x128xf32>,
    } else {
    }
    return
  }
  func.func @transform_0(%arg0: i32, %arg1: i32, %arg2: i32, %arg3: i32) -> (i32, i32, i32) {
    %c0_i32 = arith.constant 0 : i32
    return %arg0, %arg1, %arg3 : i32, i32, i32
  }
  func.func @transform_1(%arg0: i32, %arg1: i32, %arg2: i32, %arg3: i32) -> (i32, i32, i32) {
    %c0_i32 = arith.constant 0 : i32
    return %arg0, %arg3, %arg2 : i32, i32, i32
  }
  func.func @transform_2(%arg0: i32, %arg1: i32, %arg2: i32, %arg3: i32) -> (i32, i32, i32) {
    %c0_i32 = arith.constant 0 : i32
    %c0_i32_0 = arith.constant 0 : i32
    return %arg0, %c0_i32, %arg2 : i32, i32, i32
  }
  func.func @transform_3(%arg0: i32, %arg1: i32, %arg2: i32, %arg3: i32) -> (i32, i32, i32) {
    %c0_i32 = arith.constant 0 : i32
    return %arg0, %arg1, %arg2 : i32, i32, i32
  }
}

module attributes {stable_mosaic.version = 11 : i64} {
  func.func @_bmm_bias_act_kernel(%arg0: i32, %arg1: i32, %arg2: i32, %arg3: i32, %arg4: memref<1x8x512xbf16, #tpu.memory_space<vmem>>, %arg5: memref<1x512x128xbf16, #tpu.memory_space<vmem>>, %arg6: memref<1x1x128xf32, #tpu.memory_space<vmem>>, %arg7: memref<1x8x128xf32, #tpu.memory_space<vmem>>, %arg8: memref<8x128xf32, #tpu.memory_space<vmem>>) attributes {dimension_semantics = [#tpu.dimension_semantics<parallel>, #tpu.dimension_semantics<parallel>, #tpu.dimension_semantics<parallel>, #tpu.dimension_semantics<arbitrary>], iteration_bounds = array<i64: 1, 1, 1, 4>, scalar_prefetch = 0 : i64, scratch_operands = 1 : i64, tpu.core_type = #tpu.core_type<tc>, window_params = [{transform_indices = @transform_0, window_bounds = array<i64: 1, 8, 512>}, {transform_indices = @transform_1, window_bounds = array<i64: 1, 512, 128>}, {transform_indices = @transform_2, window_bounds = array<i64: 1, 1, 128>}, {transform_indices = @transform_3, window_bounds = array<i64: 1, 8, 128>}]} {
    %c0_i32 = arith.constant 0 : i32
    %0 = arith.cmpi eq, %arg3, %c0_i32 : i32
    %1 = arith.extui %0 : i1 to i32
    %c0_i32_0 = arith.constant 0 : i32
    %2 = arith.cmpi ne, %1, %c0_i32_0 : i32
    scf.if %2 {
      %cst_11 = arith.constant 0.000000e+00 : f32
      %14 = vector.broadcast %cst_11 : f32 to vector<8x128xf32>
      %c0_12 = arith.constant 0 : index
      %c0_13 = arith.constant 0 : index
      %15 = vector.load %arg8[%c0_12, %c0_13] : memref<8x128xf32, #tpu.memory_space<vmem>>, vector<8x128xf32>
      tpu.vector_store %arg8[%c0_12, %c0_13], %14 {strides = array<i32>} : memref<8x128xf32, #tpu.memory_space<vmem>>, vector<8x128xf32>,
    } else {
    }
    %c0 = arith.constant 0 : index
    %c0_1 = arith.constant 0 : index
    %3 = vector.load %arg8[%c0, %c0_1] : memref<8x128xf32, #tpu.memory_space<vmem>>, vector<8x128xf32>
    %c0_2 = arith.constant 0 : index
    %c0_3 = arith.constant 0 : index
    %c0_4 = arith.constant 0 : index
    %4 = vector.load %arg4[%c0_2, %c0_3, %c0_4] : memref<1x8x512xbf16, #tpu.memory_space<vmem>>, vector<1x8x512xbf16>
    %5 = vector.shape_cast %4 : vector<1x8x512xbf16> to vector<8x512xbf16>
    %c0_5 = arith.constant 0 : index
    %c0_6 = arith.constant 0 : index
    %c0_7 = arith.constant 0 : index
    %6 = vector.load %arg5[%c0_5, %c0_6, %c0_7] : memref<1x512x128xbf16, #tpu.memory_space<vmem>>, vector<1x512x128xbf16>
    %7 = vector.shape_cast %6 : vector<1x512x128xbf16> to vector<512x128xbf16>
    %cst = arith.constant dense<0.000000e+00> : vector<8x128xf32>
    %8 = tpu.matmul %5, %7, %cst {dimension_numbers = #tpu.dot_dimension_numbers<[1], [0], [0], [1], [0, 0, 1, 1], [], []>} : vector<8x512xbf16>, vector<512x128xbf16>, vector<8x128xf32> -> vector<8x128xf32>
    %9 = arith.addf %3, %8 : vector<8x128xf32>
    %c0_8 = arith.constant 0 : index
    %c0_9 = arith.constant 0 : index
    %10 = vector.load %arg8[%c0_8, %c0_9] : memref<8x128xf32, #tpu.memory_space<vmem>>, vector<8x128xf32>
    tpu.vector_store %arg8[%c0_8, %c0_9], %9 {strides = array<i32>} : memref<8x128xf32, #tpu.memory_space<vmem>>, vector<8x128xf32>,
    %c3_i32 = arith.constant 3 : i32
    %11 = arith.cmpi eq, %arg3, %c3_i32 : i32
    %12 = arith.extui %11 : i1 to i32
    %c0_i32_10 = arith.constant 0 : i32
    %13 = arith.cmpi ne, %12, %c0_i32_10 : i32
    scf.if %13 {
      %c0_11 = arith.constant 0 : index
      %c0_12 = arith.constant 0 : index
      %14 = vector.load %arg8[%c0_11, %c0_12] : memref<8x128xf32, #tpu.memory_space<vmem>>, vector<8x128xf32>
      %c0_13 = arith.constant 0 : index
      %c0_14 = arith.constant 0 : index
      %c0_15 = arith.constant 0 : index
      %15 = vector.load %arg6[%c0_13, %c0_14, %c0_15] : memref<1x1x128xf32, #tpu.memory_space<vmem>>, vector<1x1x128xf32>
      %16 = vector.shape_cast %15 : vector<1x1x128xf32> to vector<1x128xf32>
      %17 = vector.broadcast %16 : vector<1x128xf32> to vector<8x128xf32>
      %18 = arith.addf %14, %17 : vector<8x128xf32>
      %cst_16 = arith.constant 0.000000e+00 : f32
      %19 = vector.broadcast %cst_16 : f32 to vector<8x128xf32>
      %20 = arith.cmpf ogt, %18, %19 : vector<8x128xf32>
      %cst_17 = arith.constant 2.000000e-01 : f32
      %21 = vector.broadcast %cst_17 : f32 to vector<8x128xf32>
      %22 = arith.mulf %21, %18 : vector<8x128xf32>
      %23 = arith.select %20, %18, %22 : vector<8x128xi1>, vector<8x128xf32>
      %c0_18 = arith.constant 0 : index
      %c0_19 = arith.constant 0 : index
      %c0_20 = arith.constant 0 : index
      %24 = vector.load %arg7[%c0_18, %c0_19, %c0_20] : memref<1x8x128xf32, #tpu.memory_space<vmem>>, vector<1x8x128xf32>
      %25 = vector.shape_cast %24 : vector<1x8x128xf32> to vector<8x128xf32>
      %26 = vector.shape_cast %23 : vector<8x128xf32> to vector<1x8x128xf32>
      tpu.vector_store %arg7[%c0_18, %c0_19, %c0_20], %26 {strides = array<i32>} : memref<1x8x128xf32, #tpu.memory_space<vmem>>, vector<1x8x128xf32>,
    } else {
    }
    return
  }
  func.func @transform_0(%arg0: i32, %arg1: i32, %arg2: i32, %arg3: i32) -> (i32, i32, i32) {
    %c0_i32 = arith.constant 0 : i32
    return %arg0, %arg1, %arg3 : i32, i32, i32
  }
  func.func @transform_1(%arg0: i32, %arg1: i32, %arg2: i32, %arg3: i32) -> (i32, i32, i32) {
    %c0_i32 = arith.constant 0 : i32
    return %arg0, %arg3, %arg2 : i32, i32, i32
  }
  func.func @transform_2(%arg0: i32, %arg1: i32, %arg2: i32, %arg3: i32) -> (i32, i32, i32) {
    %c0_i32 = arith.constant 0 : i32
    %c0_i32_0 = arith.constant 0 : i32
    return %arg0, %c0_i32, %arg2 : i32, i32, i32
  }
  func.func @transform_3(%arg0: i32, %arg1: i32, %arg2: i32, %arg3: i32) -> (i32, i32, i32) {
    %c0_i32 = arith.constant 0 : i32
    return %arg0, %arg1, %arg2 : i32, i32, i32
  }
}

module attributes {stable_mosaic.version = 11 : i64} {
  func.func @_bmm_bias_act_kernel(%arg0: i32, %arg1: i32, %arg2: i32, %arg3: i32, %arg4: memref<1x8x256xbf16, #tpu.memory_space<vmem>>, %arg5: memref<1x256x128xbf16, #tpu.memory_space<vmem>>, %arg6: memref<1x1x128xf32, #tpu.memory_space<vmem>>, %arg7: memref<1x8x128xf32, #tpu.memory_space<vmem>>, %arg8: memref<8x128xf32, #tpu.memory_space<vmem>>) attributes {dimension_semantics = [#tpu.dimension_semantics<parallel>, #tpu.dimension_semantics<parallel>, #tpu.dimension_semantics<parallel>, #tpu.dimension_semantics<arbitrary>], iteration_bounds = array<i64: 1, 1, 1, 9>, scalar_prefetch = 0 : i64, scratch_operands = 1 : i64, tpu.core_type = #tpu.core_type<tc>, window_params = [{transform_indices = @transform_0, window_bounds = array<i64: 1, 8, 256>}, {transform_indices = @transform_1, window_bounds = array<i64: 1, 256, 128>}, {transform_indices = @transform_2, window_bounds = array<i64: 1, 1, 128>}, {transform_indices = @transform_3, window_bounds = array<i64: 1, 8, 128>}]} {
    %c0_i32 = arith.constant 0 : i32
    %0 = arith.cmpi eq, %arg3, %c0_i32 : i32
    %1 = arith.extui %0 : i1 to i32
    %c0_i32_0 = arith.constant 0 : i32
    %2 = arith.cmpi ne, %1, %c0_i32_0 : i32
    scf.if %2 {
      %cst_11 = arith.constant 0.000000e+00 : f32
      %14 = vector.broadcast %cst_11 : f32 to vector<8x128xf32>
      %c0_12 = arith.constant 0 : index
      %c0_13 = arith.constant 0 : index
      %15 = vector.load %arg8[%c0_12, %c0_13] : memref<8x128xf32, #tpu.memory_space<vmem>>, vector<8x128xf32>
      tpu.vector_store %arg8[%c0_12, %c0_13], %14 {strides = array<i32>} : memref<8x128xf32, #tpu.memory_space<vmem>>, vector<8x128xf32>,
    } else {
    }
    %c0 = arith.constant 0 : index
    %c0_1 = arith.constant 0 : index
    %3 = vector.load %arg8[%c0, %c0_1] : memref<8x128xf32, #tpu.memory_space<vmem>>, vector<8x128xf32>
    %c0_2 = arith.constant 0 : index
    %c0_3 = arith.constant 0 : index
    %c0_4 = arith.constant 0 : index
    %4 = vector.load %arg4[%c0_2, %c0_3, %c0_4] : memref<1x8x256xbf16, #tpu.memory_space<vmem>>, vector<1x8x256xbf16>
    %5 = vector.shape_cast %4 : vector<1x8x256xbf16> to vector<8x256xbf16>
    %c0_5 = arith.constant 0 : index
    %c0_6 = arith.constant 0 : index
    %c0_7 = arith.constant 0 : index
    %6 = vector.load %arg5[%c0_5, %c0_6, %c0_7] : memref<1x256x128xbf16, #tpu.memory_space<vmem>>, vector<1x256x128xbf16>
    %7 = vector.shape_cast %6 : vector<1x256x128xbf16> to vector<256x128xbf16>
    %cst = arith.constant dense<0.000000e+00> : vector<8x128xf32>
    %8 = tpu.matmul %5, %7, %cst {dimension_numbers = #tpu.dot_dimension_numbers<[1], [0], [0], [1], [0, 0, 1, 1], [], []>} : vector<8x256xbf16>, vector<256x128xbf16>, vector<8x128xf32> -> vector<8x128xf32>
    %9 = arith.addf %3, %8 : vector<8x128xf32>
    %c0_8 = arith.constant 0 : index
    %c0_9 = arith.constant 0 : index
    %10 = vector.load %arg8[%c0_8, %c0_9] : memref<8x128xf32, #tpu.memory_space<vmem>>, vector<8x128xf32>
    tpu.vector_store %arg8[%c0_8, %c0_9], %9 {strides = array<i32>} : memref<8x128xf32, #tpu.memory_space<vmem>>, vector<8x128xf32>,
    %c8_i32 = arith.constant 8 : i32
    %11 = arith.cmpi eq, %arg3, %c8_i32 : i32
    %12 = arith.extui %11 : i1 to i32
    %c0_i32_10 = arith.constant 0 : i32
    %13 = arith.cmpi ne, %12, %c0_i32_10 : i32
    scf.if %13 {
      %c0_11 = arith.constant 0 : index
      %c0_12 = arith.constant 0 : index
      %14 = vector.load %arg8[%c0_11, %c0_12] : memref<8x128xf32, #tpu.memory_space<vmem>>, vector<8x128xf32>
      %c0_13 = arith.constant 0 : index
      %c0_14 = arith.constant 0 : index
      %c0_15 = arith.constant 0 : index
      %15 = vector.load %arg6[%c0_13, %c0_14, %c0_15] : memref<1x1x128xf32, #tpu.memory_space<vmem>>, vector<1x1x128xf32>
      %16 = vector.shape_cast %15 : vector<1x1x128xf32> to vector<1x128xf32>
      %17 = vector.broadcast %16 : vector<1x128xf32> to vector<8x128xf32>
      %18 = arith.addf %14, %17 : vector<8x128xf32>
      %cst_16 = arith.constant 0.000000e+00 : f32
      %19 = vector.broadcast %cst_16 : f32 to vector<8x128xf32>
      %20 = arith.cmpf ogt, %18, %19 : vector<8x128xf32>
      %cst_17 = arith.constant 2.000000e-01 : f32
      %21 = vector.broadcast %cst_17 : f32 to vector<8x128xf32>
      %22 = arith.mulf %21, %18 : vector<8x128xf32>
      %23 = arith.select %20, %18, %22 : vector<8x128xi1>, vector<8x128xf32>
      %c0_18 = arith.constant 0 : index
      %c0_19 = arith.constant 0 : index
      %c0_20 = arith.constant 0 : index
      %24 = vector.load %arg7[%c0_18, %c0_19, %c0_20] : memref<1x8x128xf32, #tpu.memory_space<vmem>>, vector<1x8x128xf32>
      %25 = vector.shape_cast %24 : vector<1x8x128xf32> to vector<8x128xf32>
      %26 = vector.shape_cast %23 : vector<8x128xf32> to vector<1x8x128xf32>
      tpu.vector_store %arg7[%c0_18, %c0_19, %c0_20], %26 {strides = array<i32>} : memref<1x8x128xf32, #tpu.memory_space<vmem>>, vector<1x8x128xf32>,
    } else {
    }
    return
  }
  func.func @transform_0(%arg0: i32, %arg1: i32, %arg2: i32, %arg3: i32) -> (i32, i32, i32) {
    %c0_i32 = arith.constant 0 : i32
    return %arg0, %arg1, %arg3 : i32, i32, i32
  }
  func.func @transform_1(%arg0: i32, %arg1: i32, %arg2: i32, %arg3: i32) -> (i32, i32, i32) {
    %c0_i32 = arith.constant 0 : i32
    return %arg0, %arg3, %arg2 : i32, i32, i32
  }
  func.func @transform_2(%arg0: i32, %arg1: i32, %arg2: i32, %arg3: i32) -> (i32, i32, i32) {
    %c0_i32 = arith.constant 0 : i32
    %c0_i32_0 = arith.constant 0 : i32
    return %arg0, %c0_i32, %arg2 : i32, i32, i32
  }
  func.func @transform_3(%arg0: i32, %arg1: i32, %arg2: i32, %arg3: i32) -> (i32, i32, i32) {
    %c0_i32 = arith.constant 0 : i32
    return %arg0, %arg1, %arg2 : i32, i32, i32
  }
}

module attributes {stable_mosaic.version = 11 : i64} {
  func.func @_bmm_bias_act_kernel(%arg0: i32, %arg1: i32, %arg2: i32, %arg3: i32, %arg4: memref<1x8x256xbf16, #tpu.memory_space<vmem>>, %arg5: memref<1x256x128xbf16, #tpu.memory_space<vmem>>, %arg6: memref<1x1x128xf32, #tpu.memory_space<vmem>>, %arg7: memref<1x8x128xf32, #tpu.memory_space<vmem>>, %arg8: memref<8x128xf32, #tpu.memory_space<vmem>>) attributes {dimension_semantics = [#tpu.dimension_semantics<parallel>, #tpu.dimension_semantics<parallel>, #tpu.dimension_semantics<parallel>, #tpu.dimension_semantics<arbitrary>], iteration_bounds = array<i64: 1, 1, 1, 11>, scalar_prefetch = 0 : i64, scratch_operands = 1 : i64, tpu.core_type = #tpu.core_type<tc>, window_params = [{transform_indices = @transform_0, window_bounds = array<i64: 1, 8, 256>}, {transform_indices = @transform_1, window_bounds = array<i64: 1, 256, 128>}, {transform_indices = @transform_2, window_bounds = array<i64: 1, 1, 128>}, {transform_indices = @transform_3, window_bounds = array<i64: 1, 8, 128>}]} {
    %c0_i32 = arith.constant 0 : i32
    %0 = arith.cmpi eq, %arg3, %c0_i32 : i32
    %1 = arith.extui %0 : i1 to i32
    %c0_i32_0 = arith.constant 0 : i32
    %2 = arith.cmpi ne, %1, %c0_i32_0 : i32
    scf.if %2 {
      %cst_11 = arith.constant 0.000000e+00 : f32
      %14 = vector.broadcast %cst_11 : f32 to vector<8x128xf32>
      %c0_12 = arith.constant 0 : index
      %c0_13 = arith.constant 0 : index
      %15 = vector.load %arg8[%c0_12, %c0_13] : memref<8x128xf32, #tpu.memory_space<vmem>>, vector<8x128xf32>
      tpu.vector_store %arg8[%c0_12, %c0_13], %14 {strides = array<i32>} : memref<8x128xf32, #tpu.memory_space<vmem>>, vector<8x128xf32>,
    } else {
    }
    %c0 = arith.constant 0 : index
    %c0_1 = arith.constant 0 : index
    %3 = vector.load %arg8[%c0, %c0_1] : memref<8x128xf32, #tpu.memory_space<vmem>>, vector<8x128xf32>
    %c0_2 = arith.constant 0 : index
    %c0_3 = arith.constant 0 : index
    %c0_4 = arith.constant 0 : index
    %4 = vector.load %arg4[%c0_2, %c0_3, %c0_4] : memref<1x8x256xbf16, #tpu.memory_space<vmem>>, vector<1x8x256xbf16>
    %5 = vector.shape_cast %4 : vector<1x8x256xbf16> to vector<8x256xbf16>
    %c0_5 = arith.constant 0 : index
    %c0_6 = arith.constant 0 : index
    %c0_7 = arith.constant 0 : index
    %6 = vector.load %arg5[%c0_5, %c0_6, %c0_7] : memref<1x256x128xbf16, #tpu.memory_space<vmem>>, vector<1x256x128xbf16>
    %7 = vector.shape_cast %6 : vector<1x256x128xbf16> to vector<256x128xbf16>
    %cst = arith.constant dense<0.000000e+00> : vector<8x128xf32>
    %8 = tpu.matmul %5, %7, %cst {dimension_numbers = #tpu.dot_dimension_numbers<[1], [0], [0], [1], [0, 0, 1, 1], [], []>} : vector<8x256xbf16>, vector<256x128xbf16>, vector<8x128xf32> -> vector<8x128xf32>
    %9 = arith.addf %3, %8 : vector<8x128xf32>
    %c0_8 = arith.constant 0 : index
    %c0_9 = arith.constant 0 : index
    %10 = vector.load %arg8[%c0_8, %c0_9] : memref<8x128xf32, #tpu.memory_space<vmem>>, vector<8x128xf32>
    tpu.vector_store %arg8[%c0_8, %c0_9], %9 {strides = array<i32>} : memref<8x128xf32, #tpu.memory_space<vmem>>, vector<8x128xf32>,
    %c10_i32 = arith.constant 10 : i32
    %11 = arith.cmpi eq, %arg3, %c10_i32 : i32
    %12 = arith.extui %11 : i1 to i32
    %c0_i32_10 = arith.constant 0 : i32
    %13 = arith.cmpi ne, %12, %c0_i32_10 : i32
    scf.if %13 {
      %c0_11 = arith.constant 0 : index
      %c0_12 = arith.constant 0 : index
      %14 = vector.load %arg8[%c0_11, %c0_12] : memref<8x128xf32, #tpu.memory_space<vmem>>, vector<8x128xf32>
      %c0_13 = arith.constant 0 : index
      %c0_14 = arith.constant 0 : index
      %c0_15 = arith.constant 0 : index
      %15 = vector.load %arg6[%c0_13, %c0_14, %c0_15] : memref<1x1x128xf32, #tpu.memory_space<vmem>>, vector<1x1x128xf32>
      %16 = vector.shape_cast %15 : vector<1x1x128xf32> to vector<1x128xf32>
      %17 = vector.broadcast %16 : vector<1x128xf32> to vector<8x128xf32>
      %18 = arith.addf %14, %17 : vector<8x128xf32>
      %cst_16 = arith.constant 0.000000e+00 : f32
      %19 = vector.broadcast %cst_16 : f32 to vector<8x128xf32>
      %20 = arith.cmpf ogt, %18, %19 : vector<8x128xf32>
      %cst_17 = arith.constant 2.000000e-01 : f32
      %21 = vector.broadcast %cst_17 : f32 to vector<8x128xf32>
      %22 = arith.mulf %21, %18 : vector<8x128xf32>
      %23 = arith.select %20, %18, %22 : vector<8x128xi1>, vector<8x128xf32>
      %c0_18 = arith.constant 0 : index
      %c0_19 = arith.constant 0 : index
      %c0_20 = arith.constant 0 : index
      %24 = vector.load %arg7[%c0_18, %c0_19, %c0_20] : memref<1x8x128xf32, #tpu.memory_space<vmem>>, vector<1x8x128xf32>
      %25 = vector.shape_cast %24 : vector<1x8x128xf32> to vector<8x128xf32>
      %26 = vector.shape_cast %23 : vector<8x128xf32> to vector<1x8x128xf32>
      tpu.vector_store %arg7[%c0_18, %c0_19, %c0_20], %26 {strides = array<i32>} : memref<1x8x128xf32, #tpu.memory_space<vmem>>, vector<1x8x128xf32>,
    } else {
    }
    return
  }
  func.func @transform_0(%arg0: i32, %arg1: i32, %arg2: i32, %arg3: i32) -> (i32, i32, i32) {
    %c0_i32 = arith.constant 0 : i32
    return %arg0, %arg1, %arg3 : i32, i32, i32
  }
  func.func @transform_1(%arg0: i32, %arg1: i32, %arg2: i32, %arg3: i32) -> (i32, i32, i32) {
    %c0_i32 = arith.constant 0 : i32
    return %arg0, %arg3, %arg2 : i32, i32, i32
  }
  func.func @transform_2(%arg0: i32, %arg1: i32, %arg2: i32, %arg3: i32) -> (i32, i32, i32) {
    %c0_i32 = arith.constant 0 : i32
    %c0_i32_0 = arith.constant 0 : i32
    return %arg0, %c0_i32, %arg2 : i32, i32, i32
  }
  func.func @transform_3(%arg0: i32, %arg1: i32, %arg2: i32, %arg3: i32) -> (i32, i32, i32) {
    %c0_i32 = arith.constant 0 : i32
    return %arg0, %arg1, %arg2 : i32, i32, i32
  }
}

module attributes {stable_mosaic.version = 11 : i64} {
  func.func @_bmm_bias_act_kernel(%arg0: i32, %arg1: i32, %arg2: i32, %arg3: i32, %arg4: memref<1x8x512xbf16, #tpu.memory_space<vmem>>, %arg5: memref<1x512x256xbf16, #tpu.memory_space<vmem>>, %arg6: memref<1x1x256xf32, #tpu.memory_space<vmem>>, %arg7: memref<1x8x256xf32, #tpu.memory_space<vmem>>, %arg8: memref<8x256xf32, #tpu.memory_space<vmem>>) attributes {dimension_semantics = [#tpu.dimension_semantics<parallel>, #tpu.dimension_semantics<parallel>, #tpu.dimension_semantics<parallel>, #tpu.dimension_semantics<arbitrary>], iteration_bounds = array<i64: 1, 1, 1, 6>, scalar_prefetch = 0 : i64, scratch_operands = 1 : i64, tpu.core_type = #tpu.core_type<tc>, window_params = [{transform_indices = @transform_0, window_bounds = array<i64: 1, 8, 512>}, {transform_indices = @transform_1, window_bounds = array<i64: 1, 512, 256>}, {transform_indices = @transform_2, window_bounds = array<i64: 1, 1, 256>}, {transform_indices = @transform_3, window_bounds = array<i64: 1, 8, 256>}]} {
    %c0_i32 = arith.constant 0 : i32
    %0 = arith.cmpi eq, %arg3, %c0_i32 : i32
    %1 = arith.extui %0 : i1 to i32
    %c0_i32_0 = arith.constant 0 : i32
    %2 = arith.cmpi ne, %1, %c0_i32_0 : i32
    scf.if %2 {
      %cst_11 = arith.constant 0.000000e+00 : f32
      %14 = vector.broadcast %cst_11 : f32 to vector<8x256xf32>
      %c0_12 = arith.constant 0 : index
      %c0_13 = arith.constant 0 : index
      %15 = vector.load %arg8[%c0_12, %c0_13] : memref<8x256xf32, #tpu.memory_space<vmem>>, vector<8x256xf32>
      tpu.vector_store %arg8[%c0_12, %c0_13], %14 {strides = array<i32>} : memref<8x256xf32, #tpu.memory_space<vmem>>, vector<8x256xf32>,
    } else {
    }
    %c0 = arith.constant 0 : index
    %c0_1 = arith.constant 0 : index
    %3 = vector.load %arg8[%c0, %c0_1] : memref<8x256xf32, #tpu.memory_space<vmem>>, vector<8x256xf32>
    %c0_2 = arith.constant 0 : index
    %c0_3 = arith.constant 0 : index
    %c0_4 = arith.constant 0 : index
    %4 = vector.load %arg4[%c0_2, %c0_3, %c0_4] : memref<1x8x512xbf16, #tpu.memory_space<vmem>>, vector<1x8x512xbf16>
    %5 = vector.shape_cast %4 : vector<1x8x512xbf16> to vector<8x512xbf16>
    %c0_5 = arith.constant 0 : index
    %c0_6 = arith.constant 0 : index
    %c0_7 = arith.constant 0 : index
    %6 = vector.load %arg5[%c0_5, %c0_6, %c0_7] : memref<1x512x256xbf16, #tpu.memory_space<vmem>>, vector<1x512x256xbf16>
    %7 = vector.shape_cast %6 : vector<1x512x256xbf16> to vector<512x256xbf16>
    %cst = arith.constant dense<0.000000e+00> : vector<8x256xf32>
    %8 = tpu.matmul %5, %7, %cst {dimension_numbers = #tpu.dot_dimension_numbers<[1], [0], [0], [1], [0, 0, 1, 1], [], []>} : vector<8x512xbf16>, vector<512x256xbf16>, vector<8x256xf32> -> vector<8x256xf32>
    %9 = arith.addf %3, %8 : vector<8x256xf32>
    %c0_8 = arith.constant 0 : index
    %c0_9 = arith.constant 0 : index
    %10 = vector.load %arg8[%c0_8, %c0_9] : memref<8x256xf32, #tpu.memory_space<vmem>>, vector<8x256xf32>
    tpu.vector_store %arg8[%c0_8, %c0_9], %9 {strides = array<i32>} : memref<8x256xf32, #tpu.memory_space<vmem>>, vector<8x256xf32>,
    %c5_i32 = arith.constant 5 : i32
    %11 = arith.cmpi eq, %arg3, %c5_i32 : i32
    %12 = arith.extui %11 : i1 to i32
    %c0_i32_10 = arith.constant 0 : i32
    %13 = arith.cmpi ne, %12, %c0_i32_10 : i32
    scf.if %13 {
      %c0_11 = arith.constant 0 : index
      %c0_12 = arith.constant 0 : index
      %14 = vector.load %arg8[%c0_11, %c0_12] : memref<8x256xf32, #tpu.memory_space<vmem>>, vector<8x256xf32>
      %c0_13 = arith.constant 0 : index
      %c0_14 = arith.constant 0 : index
      %c0_15 = arith.constant 0 : index
      %15 = vector.load %arg6[%c0_13, %c0_14, %c0_15] : memref<1x1x256xf32, #tpu.memory_space<vmem>>, vector<1x1x256xf32>
      %16 = vector.shape_cast %15 : vector<1x1x256xf32> to vector<1x256xf32>
      %17 = vector.broadcast %16 : vector<1x256xf32> to vector<8x256xf32>
      %18 = arith.addf %14, %17 : vector<8x256xf32>
      %c0_16 = arith.constant 0 : index
      %c0_17 = arith.constant 0 : index
      %c0_18 = arith.constant 0 : index
      %19 = vector.load %arg7[%c0_16, %c0_17, %c0_18] : memref<1x8x256xf32, #tpu.memory_space<vmem>>, vector<1x8x256xf32>
      %20 = vector.shape_cast %19 : vector<1x8x256xf32> to vector<8x256xf32>
      %21 = vector.shape_cast %18 : vector<8x256xf32> to vector<1x8x256xf32>
      tpu.vector_store %arg7[%c0_16, %c0_17, %c0_18], %21 {strides = array<i32>} : memref<1x8x256xf32, #tpu.memory_space<vmem>>, vector<1x8x256xf32>,
    } else {
    }
    return
  }
  func.func @transform_0(%arg0: i32, %arg1: i32, %arg2: i32, %arg3: i32) -> (i32, i32, i32) {
    %c0_i32 = arith.constant 0 : i32
    return %arg0, %arg1, %arg3 : i32, i32, i32
  }
  func.func @transform_1(%arg0: i32, %arg1: i32, %arg2: i32, %arg3: i32) -> (i32, i32, i32) {
    %c0_i32 = arith.constant 0 : i32
    return %arg0, %arg3, %arg2 : i32, i32, i32
  }
  func.func @transform_2(%arg0: i32, %arg1: i32, %arg2: i32, %arg3: i32) -> (i32, i32, i32) {
    %c0_i32 = arith.constant 0 : i32
    %c0_i32_0 = arith.constant 0 : i32
    return %arg0, %c0_i32, %arg2 : i32, i32, i32
  }
  func.func @transform_3(%arg0: i32, %arg1: i32, %arg2: i32, %arg3: i32) -> (i32, i32, i32) {
    %c0_i32 = arith.constant 0 : i32
    return %arg0, %arg1, %arg2 : i32, i32, i32
  }
}

module attributes {stable_mosaic.version = 11 : i64} {
  func.func @_bmm_bias_act_kernel(%arg0: i32, %arg1: i32, %arg2: i32, %arg3: i32, %arg4: memref<1x8x512xbf16, #tpu.memory_space<vmem>>, %arg5: memref<1x512x128xbf16, #tpu.memory_space<vmem>>, %arg6: memref<1x1x128xf32, #tpu.memory_space<vmem>>, %arg7: memref<1x8x128xf32, #tpu.memory_space<vmem>>, %arg8: memref<8x128xf32, #tpu.memory_space<vmem>>) attributes {dimension_semantics = [#tpu.dimension_semantics<parallel>, #tpu.dimension_semantics<parallel>, #tpu.dimension_semantics<parallel>, #tpu.dimension_semantics<arbitrary>], iteration_bounds = array<i64: 1, 1, 1, 6>, scalar_prefetch = 0 : i64, scratch_operands = 1 : i64, tpu.core_type = #tpu.core_type<tc>, window_params = [{transform_indices = @transform_0, window_bounds = array<i64: 1, 8, 512>}, {transform_indices = @transform_1, window_bounds = array<i64: 1, 512, 128>}, {transform_indices = @transform_2, window_bounds = array<i64: 1, 1, 128>}, {transform_indices = @transform_3, window_bounds = array<i64: 1, 8, 128>}]} {
    %c0_i32 = arith.constant 0 : i32
    %0 = arith.cmpi eq, %arg3, %c0_i32 : i32
    %1 = arith.extui %0 : i1 to i32
    %c0_i32_0 = arith.constant 0 : i32
    %2 = arith.cmpi ne, %1, %c0_i32_0 : i32
    scf.if %2 {
      %cst_11 = arith.constant 0.000000e+00 : f32
      %14 = vector.broadcast %cst_11 : f32 to vector<8x128xf32>
      %c0_12 = arith.constant 0 : index
      %c0_13 = arith.constant 0 : index
      %15 = vector.load %arg8[%c0_12, %c0_13] : memref<8x128xf32, #tpu.memory_space<vmem>>, vector<8x128xf32>
      tpu.vector_store %arg8[%c0_12, %c0_13], %14 {strides = array<i32>} : memref<8x128xf32, #tpu.memory_space<vmem>>, vector<8x128xf32>,
    } else {
    }
    %c0 = arith.constant 0 : index
    %c0_1 = arith.constant 0 : index
    %3 = vector.load %arg8[%c0, %c0_1] : memref<8x128xf32, #tpu.memory_space<vmem>>, vector<8x128xf32>
    %c0_2 = arith.constant 0 : index
    %c0_3 = arith.constant 0 : index
    %c0_4 = arith.constant 0 : index
    %4 = vector.load %arg4[%c0_2, %c0_3, %c0_4] : memref<1x8x512xbf16, #tpu.memory_space<vmem>>, vector<1x8x512xbf16>
    %5 = vector.shape_cast %4 : vector<1x8x512xbf16> to vector<8x512xbf16>
    %c0_5 = arith.constant 0 : index
    %c0_6 = arith.constant 0 : index
    %c0_7 = arith.constant 0 : index
    %6 = vector.load %arg5[%c0_5, %c0_6, %c0_7] : memref<1x512x128xbf16, #tpu.memory_space<vmem>>, vector<1x512x128xbf16>
    %7 = vector.shape_cast %6 : vector<1x512x128xbf16> to vector<512x128xbf16>
    %cst = arith.constant dense<0.000000e+00> : vector<8x128xf32>
    %8 = tpu.matmul %5, %7, %cst {dimension_numbers = #tpu.dot_dimension_numbers<[1], [0], [0], [1], [0, 0, 1, 1], [], []>} : vector<8x512xbf16>, vector<512x128xbf16>, vector<8x128xf32> -> vector<8x128xf32>
    %9 = arith.addf %3, %8 : vector<8x128xf32>
    %c0_8 = arith.constant 0 : index
    %c0_9 = arith.constant 0 : index
    %10 = vector.load %arg8[%c0_8, %c0_9] : memref<8x128xf32, #tpu.memory_space<vmem>>, vector<8x128xf32>
    tpu.vector_store %arg8[%c0_8, %c0_9], %9 {strides = array<i32>} : memref<8x128xf32, #tpu.memory_space<vmem>>, vector<8x128xf32>,
    %c5_i32 = arith.constant 5 : i32
    %11 = arith.cmpi eq, %arg3, %c5_i32 : i32
    %12 = arith.extui %11 : i1 to i32
    %c0_i32_10 = arith.constant 0 : i32
    %13 = arith.cmpi ne, %12, %c0_i32_10 : i32
    scf.if %13 {
      %c0_11 = arith.constant 0 : index
      %c0_12 = arith.constant 0 : index
      %14 = vector.load %arg8[%c0_11, %c0_12] : memref<8x128xf32, #tpu.memory_space<vmem>>, vector<8x128xf32>
      %c0_13 = arith.constant 0 : index
      %c0_14 = arith.constant 0 : index
      %c0_15 = arith.constant 0 : index
      %15 = vector.load %arg6[%c0_13, %c0_14, %c0_15] : memref<1x1x128xf32, #tpu.memory_space<vmem>>, vector<1x1x128xf32>
      %16 = vector.shape_cast %15 : vector<1x1x128xf32> to vector<1x128xf32>
      %17 = vector.broadcast %16 : vector<1x128xf32> to vector<8x128xf32>
      %18 = arith.addf %14, %17 : vector<8x128xf32>
      %cst_16 = arith.constant 0.000000e+00 : f32
      %19 = vector.broadcast %cst_16 : f32 to vector<8x128xf32>
      %20 = arith.cmpf ogt, %18, %19 : vector<8x128xf32>
      %cst_17 = arith.constant 2.000000e-01 : f32
      %21 = vector.broadcast %cst_17 : f32 to vector<8x128xf32>
      %22 = arith.mulf %21, %18 : vector<8x128xf32>
      %23 = arith.select %20, %18, %22 : vector<8x128xi1>, vector<8x128xf32>
      %c0_18 = arith.constant 0 : index
      %c0_19 = arith.constant 0 : index
      %c0_20 = arith.constant 0 : index
      %24 = vector.load %arg7[%c0_18, %c0_19, %c0_20] : memref<1x8x128xf32, #tpu.memory_space<vmem>>, vector<1x8x128xf32>
      %25 = vector.shape_cast %24 : vector<1x8x128xf32> to vector<8x128xf32>
      %26 = vector.shape_cast %23 : vector<8x128xf32> to vector<1x8x128xf32>
      tpu.vector_store %arg7[%c0_18, %c0_19, %c0_20], %26 {strides = array<i32>} : memref<1x8x128xf32, #tpu.memory_space<vmem>>, vector<1x8x128xf32>,
    } else {
    }
    return
  }
  func.func @transform_0(%arg0: i32, %arg1: i32, %arg2: i32, %arg3: i32) -> (i32, i32, i32) {
    %c0_i32 = arith.constant 0 : i32
    return %arg0, %arg1, %arg3 : i32, i32, i32
  }
  func.func @transform_1(%arg0: i32, %arg1: i32, %arg2: i32, %arg3: i32) -> (i32, i32, i32) {
    %c0_i32 = arith.constant 0 : i32
    return %arg0, %arg3, %arg2 : i32, i32, i32
  }
  func.func @transform_2(%arg0: i32, %arg1: i32, %arg2: i32, %arg3: i32) -> (i32, i32, i32) {
    %c0_i32 = arith.constant 0 : i32
    %c0_i32_0 = arith.constant 0 : i32
    return %arg0, %c0_i32, %arg2 : i32, i32, i32
  }
  func.func @transform_3(%arg0: i32, %arg1: i32, %arg2: i32, %arg3: i32) -> (i32, i32, i32) {
    %c0_i32 = arith.constant 0 : i32
    return %arg0, %arg1, %arg2 : i32, i32, i32
  }
}

module attributes {stable_mosaic.version = 11 : i64} {
  func.func @_bmm_bias_act_kernel(%arg0: i32, %arg1: i32, %arg2: i32, %arg3: i32, %arg4: memref<1x8x512xbf16, #tpu.memory_space<vmem>>, %arg5: memref<1x512x128xbf16, #tpu.memory_space<vmem>>, %arg6: memref<1x1x128xf32, #tpu.memory_space<vmem>>, %arg7: memref<1x8x128xf32, #tpu.memory_space<vmem>>, %arg8: memref<8x128xf32, #tpu.memory_space<vmem>>) attributes {dimension_semantics = [#tpu.dimension_semantics<parallel>, #tpu.dimension_semantics<parallel>, #tpu.dimension_semantics<parallel>, #tpu.dimension_semantics<arbitrary>], iteration_bounds = array<i64: 1, 1, 1, 7>, scalar_prefetch = 0 : i64, scratch_operands = 1 : i64, tpu.core_type = #tpu.core_type<tc>, window_params = [{transform_indices = @transform_0, window_bounds = array<i64: 1, 8, 512>}, {transform_indices = @transform_1, window_bounds = array<i64: 1, 512, 128>}, {transform_indices = @transform_2, window_bounds = array<i64: 1, 1, 128>}, {transform_indices = @transform_3, window_bounds = array<i64: 1, 8, 128>}]} {
    %c0_i32 = arith.constant 0 : i32
    %0 = arith.cmpi eq, %arg3, %c0_i32 : i32
    %1 = arith.extui %0 : i1 to i32
    %c0_i32_0 = arith.constant 0 : i32
    %2 = arith.cmpi ne, %1, %c0_i32_0 : i32
    scf.if %2 {
      %cst_11 = arith.constant 0.000000e+00 : f32
      %14 = vector.broadcast %cst_11 : f32 to vector<8x128xf32>
      %c0_12 = arith.constant 0 : index
      %c0_13 = arith.constant 0 : index
      %15 = vector.load %arg8[%c0_12, %c0_13] : memref<8x128xf32, #tpu.memory_space<vmem>>, vector<8x128xf32>
      tpu.vector_store %arg8[%c0_12, %c0_13], %14 {strides = array<i32>} : memref<8x128xf32, #tpu.memory_space<vmem>>, vector<8x128xf32>,
    } else {
    }
    %c0 = arith.constant 0 : index
    %c0_1 = arith.constant 0 : index
    %3 = vector.load %arg8[%c0, %c0_1] : memref<8x128xf32, #tpu.memory_space<vmem>>, vector<8x128xf32>
    %c0_2 = arith.constant 0 : index
    %c0_3 = arith.constant 0 : index
    %c0_4 = arith.constant 0 : index
    %4 = vector.load %arg4[%c0_2, %c0_3, %c0_4] : memref<1x8x512xbf16, #tpu.memory_space<vmem>>, vector<1x8x512xbf16>
    %5 = vector.shape_cast %4 : vector<1x8x512xbf16> to vector<8x512xbf16>
    %c0_5 = arith.constant 0 : index
    %c0_6 = arith.constant 0 : index
    %c0_7 = arith.constant 0 : index
    %6 = vector.load %arg5[%c0_5, %c0_6, %c0_7] : memref<1x512x128xbf16, #tpu.memory_space<vmem>>, vector<1x512x128xbf16>
    %7 = vector.shape_cast %6 : vector<1x512x128xbf16> to vector<512x128xbf16>
    %cst = arith.constant dense<0.000000e+00> : vector<8x128xf32>
    %8 = tpu.matmul %5, %7, %cst {dimension_numbers = #tpu.dot_dimension_numbers<[1], [0], [0], [1], [0, 0, 1, 1], [], []>} : vector<8x512xbf16>, vector<512x128xbf16>, vector<8x128xf32> -> vector<8x128xf32>
    %9 = arith.addf %3, %8 : vector<8x128xf32>
    %c0_8 = arith.constant 0 : index
    %c0_9 = arith.constant 0 : index
    %10 = vector.load %arg8[%c0_8, %c0_9] : memref<8x128xf32, #tpu.memory_space<vmem>>, vector<8x128xf32>
    tpu.vector_store %arg8[%c0_8, %c0_9], %9 {strides = array<i32>} : memref<8x128xf32, #tpu.memory_space<vmem>>, vector<8x128xf32>,
    %c6_i32 = arith.constant 6 : i32
    %11 = arith.cmpi eq, %arg3, %c6_i32 : i32
    %12 = arith.extui %11 : i1 to i32
    %c0_i32_10 = arith.constant 0 : i32
    %13 = arith.cmpi ne, %12, %c0_i32_10 : i32
    scf.if %13 {
      %c0_11 = arith.constant 0 : index
      %c0_12 = arith.constant 0 : index
      %14 = vector.load %arg8[%c0_11, %c0_12] : memref<8x128xf32, #tpu.memory_space<vmem>>, vector<8x128xf32>
      %c0_13 = arith.constant 0 : index
      %c0_14 = arith.constant 0 : index
      %c0_15 = arith.constant 0 : index
      %15 = vector.load %arg6[%c0_13, %c0_14, %c0_15] : memref<1x1x128xf32, #tpu.memory_space<vmem>>, vector<1x1x128xf32>
      %16 = vector.shape_cast %15 : vector<1x1x128xf32> to vector<1x128xf32>
      %17 = vector.broadcast %16 : vector<1x128xf32> to vector<8x128xf32>
      %18 = arith.addf %14, %17 : vector<8x128xf32>
      %cst_16 = arith.constant 0.000000e+00 : f32
      %19 = vector.broadcast %cst_16 : f32 to vector<8x128xf32>
      %20 = arith.cmpf ogt, %18, %19 : vector<8x128xf32>
      %cst_17 = arith.constant 2.000000e-01 : f32
      %21 = vector.broadcast %cst_17 : f32 to vector<8x128xf32>
      %22 = arith.mulf %21, %18 : vector<8x128xf32>
      %23 = arith.select %20, %18, %22 : vector<8x128xi1>, vector<8x128xf32>
      %c0_18 = arith.constant 0 : index
      %c0_19 = arith.constant 0 : index
      %c0_20 = arith.constant 0 : index
      %24 = vector.load %arg7[%c0_18, %c0_19, %c0_20] : memref<1x8x128xf32, #tpu.memory_space<vmem>>, vector<1x8x128xf32>
      %25 = vector.shape_cast %24 : vector<1x8x128xf32> to vector<8x128xf32>
      %26 = vector.shape_cast %23 : vector<8x128xf32> to vector<1x8x128xf32>
      tpu.vector_store %arg7[%c0_18, %c0_19, %c0_20], %26 {strides = array<i32>} : memref<1x8x128xf32, #tpu.memory_space<vmem>>, vector<1x8x128xf32>,
    } else {
    }
    return
  }
  func.func @transform_0(%arg0: i32, %arg1: i32, %arg2: i32, %arg3: i32) -> (i32, i32, i32) {
    %c0_i32 = arith.constant 0 : i32
    return %arg0, %arg1, %arg3 : i32, i32, i32
  }
  func.func @transform_1(%arg0: i32, %arg1: i32, %arg2: i32, %arg3: i32) -> (i32, i32, i32) {
    %c0_i32 = arith.constant 0 : i32
    return %arg0, %arg3, %arg2 : i32, i32, i32
  }
  func.func @transform_2(%arg0: i32, %arg1: i32, %arg2: i32, %arg3: i32) -> (i32, i32, i32) {
    %c0_i32 = arith.constant 0 : i32
    %c0_i32_0 = arith.constant 0 : i32
    return %arg0, %c0_i32, %arg2 : i32, i32, i32
  }
  func.func @transform_3(%arg0: i32, %arg1: i32, %arg2: i32, %arg3: i32) -> (i32, i32, i32) {
    %c0_i32 = arith.constant 0 : i32
    return %arg0, %arg1, %arg2 : i32, i32, i32
  }
}

module attributes {stable_mosaic.version = 11 : i64} {
  func.func @_bmm_bias_act_kernel(%arg0: i32, %arg1: i32, %arg2: i32, %arg3: i32, %arg4: memref<1x8x512xbf16, #tpu.memory_space<vmem>>, %arg5: memref<1x512x256xbf16, #tpu.memory_space<vmem>>, %arg6: memref<1x1x256xf32, #tpu.memory_space<vmem>>, %arg7: memref<1x8x256xf32, #tpu.memory_space<vmem>>, %arg8: memref<8x256xf32, #tpu.memory_space<vmem>>) attributes {dimension_semantics = [#tpu.dimension_semantics<parallel>, #tpu.dimension_semantics<parallel>, #tpu.dimension_semantics<parallel>, #tpu.dimension_semantics<arbitrary>], iteration_bounds = array<i64: 1, 1, 1, 8>, scalar_prefetch = 0 : i64, scratch_operands = 1 : i64, tpu.core_type = #tpu.core_type<tc>, window_params = [{transform_indices = @transform_0, window_bounds = array<i64: 1, 8, 512>}, {transform_indices = @transform_1, window_bounds = array<i64: 1, 512, 256>}, {transform_indices = @transform_2, window_bounds = array<i64: 1, 1, 256>}, {transform_indices = @transform_3, window_bounds = array<i64: 1, 8, 256>}]} {
    %c0_i32 = arith.constant 0 : i32
    %0 = arith.cmpi eq, %arg3, %c0_i32 : i32
    %1 = arith.extui %0 : i1 to i32
    %c0_i32_0 = arith.constant 0 : i32
    %2 = arith.cmpi ne, %1, %c0_i32_0 : i32
    scf.if %2 {
      %cst_11 = arith.constant 0.000000e+00 : f32
      %14 = vector.broadcast %cst_11 : f32 to vector<8x256xf32>
      %c0_12 = arith.constant 0 : index
      %c0_13 = arith.constant 0 : index
      %15 = vector.load %arg8[%c0_12, %c0_13] : memref<8x256xf32, #tpu.memory_space<vmem>>, vector<8x256xf32>
      tpu.vector_store %arg8[%c0_12, %c0_13], %14 {strides = array<i32>} : memref<8x256xf32, #tpu.memory_space<vmem>>, vector<8x256xf32>,
    } else {
    }
    %c0 = arith.constant 0 : index
    %c0_1 = arith.constant 0 : index
    %3 = vector.load %arg8[%c0, %c0_1] : memref<8x256xf32, #tpu.memory_space<vmem>>, vector<8x256xf32>
    %c0_2 = arith.constant 0 : index
    %c0_3 = arith.constant 0 : index
    %c0_4 = arith.constant 0 : index
    %4 = vector.load %arg4[%c0_2, %c0_3, %c0_4] : memref<1x8x512xbf16, #tpu.memory_space<vmem>>, vector<1x8x512xbf16>
    %5 = vector.shape_cast %4 : vector<1x8x512xbf16> to vector<8x512xbf16>
    %c0_5 = arith.constant 0 : index
    %c0_6 = arith.constant 0 : index
    %c0_7 = arith.constant 0 : index
    %6 = vector.load %arg5[%c0_5, %c0_6, %c0_7] : memref<1x512x256xbf16, #tpu.memory_space<vmem>>, vector<1x512x256xbf16>
    %7 = vector.shape_cast %6 : vector<1x512x256xbf16> to vector<512x256xbf16>
    %cst = arith.constant dense<0.000000e+00> : vector<8x256xf32>
    %8 = tpu.matmul %5, %7, %cst {dimension_numbers = #tpu.dot_dimension_numbers<[1], [0], [0], [1], [0, 0, 1, 1], [], []>} : vector<8x512xbf16>, vector<512x256xbf16>, vector<8x256xf32> -> vector<8x256xf32>
    %9 = arith.addf %3, %8 : vector<8x256xf32>
    %c0_8 = arith.constant 0 : index
    %c0_9 = arith.constant 0 : index
    %10 = vector.load %arg8[%c0_8, %c0_9] : memref<8x256xf32, #tpu.memory_space<vmem>>, vector<8x256xf32>
    tpu.vector_store %arg8[%c0_8, %c0_9], %9 {strides = array<i32>} : memref<8x256xf32, #tpu.memory_space<vmem>>, vector<8x256xf32>,
    %c7_i32 = arith.constant 7 : i32
    %11 = arith.cmpi eq, %arg3, %c7_i32 : i32
    %12 = arith.extui %11 : i1 to i32
    %c0_i32_10 = arith.constant 0 : i32
    %13 = arith.cmpi ne, %12, %c0_i32_10 : i32
    scf.if %13 {
      %c0_11 = arith.constant 0 : index
      %c0_12 = arith.constant 0 : index
      %14 = vector.load %arg8[%c0_11, %c0_12] : memref<8x256xf32, #tpu.memory_space<vmem>>, vector<8x256xf32>
      %c0_13 = arith.constant 0 : index
      %c0_14 = arith.constant 0 : index
      %c0_15 = arith.constant 0 : index
      %15 = vector.load %arg6[%c0_13, %c0_14, %c0_15] : memref<1x1x256xf32, #tpu.memory_space<vmem>>, vector<1x1x256xf32>
      %16 = vector.shape_cast %15 : vector<1x1x256xf32> to vector<1x256xf32>
      %17 = vector.broadcast %16 : vector<1x256xf32> to vector<8x256xf32>
      %18 = arith.addf %14, %17 : vector<8x256xf32>
      %c0_16 = arith.constant 0 : index
      %c0_17 = arith.constant 0 : index
      %c0_18 = arith.constant 0 : index
      %19 = vector.load %arg7[%c0_16, %c0_17, %c0_18] : memref<1x8x256xf32, #tpu.memory_space<vmem>>, vector<1x8x256xf32>
      %20 = vector.shape_cast %19 : vector<1x8x256xf32> to vector<8x256xf32>
      %21 = vector.shape_cast %18 : vector<8x256xf32> to vector<1x8x256xf32>
      tpu.vector_store %arg7[%c0_16, %c0_17, %c0_18], %21 {strides = array<i32>} : memref<1x8x256xf32, #tpu.memory_space<vmem>>, vector<1x8x256xf32>,
    } else {
    }
    return
  }
  func.func @transform_0(%arg0: i32, %arg1: i32, %arg2: i32, %arg3: i32) -> (i32, i32, i32) {
    %c0_i32 = arith.constant 0 : i32
    return %arg0, %arg1, %arg3 : i32, i32, i32
  }
  func.func @transform_1(%arg0: i32, %arg1: i32, %arg2: i32, %arg3: i32) -> (i32, i32, i32) {
    %c0_i32 = arith.constant 0 : i32
    return %arg0, %arg3, %arg2 : i32, i32, i32
  }
  func.func @transform_2(%arg0: i32, %arg1: i32, %arg2: i32, %arg3: i32) -> (i32, i32, i32) {
    %c0_i32 = arith.constant 0 : i32
    %c0_i32_0 = arith.constant 0 : i32
    return %arg0, %c0_i32, %arg2 : i32, i32, i32
  }
  func.func @transform_3(%arg0: i32, %arg1: i32, %arg2: i32, %arg3: i32) -> (i32, i32, i32) {
    %c0_i32 = arith.constant 0 : i32
    return %arg0, %arg1, %arg2 : i32, i32, i32
  }
}

module attributes {stable_mosaic.version = 11 : i64} {
  func.func @_bmm_bias_act_kernel(%arg0: i32, %arg1: i32, %arg2: i32, %arg3: i32, %arg4: memref<1x8x512xbf16, #tpu.memory_space<vmem>>, %arg5: memref<1x512x256xbf16, #tpu.memory_space<vmem>>, %arg6: memref<1x1x256xf32, #tpu.memory_space<vmem>>, %arg7: memref<1x8x256xf32, #tpu.memory_space<vmem>>, %arg8: memref<8x256xf32, #tpu.memory_space<vmem>>) attributes {dimension_semantics = [#tpu.dimension_semantics<parallel>, #tpu.dimension_semantics<parallel>, #tpu.dimension_semantics<parallel>, #tpu.dimension_semantics<arbitrary>], iteration_bounds = array<i64: 1, 1, 1, 7>, scalar_prefetch = 0 : i64, scratch_operands = 1 : i64, tpu.core_type = #tpu.core_type<tc>, window_params = [{transform_indices = @transform_0, window_bounds = array<i64: 1, 8, 512>}, {transform_indices = @transform_1, window_bounds = array<i64: 1, 512, 256>}, {transform_indices = @transform_2, window_bounds = array<i64: 1, 1, 256>}, {transform_indices = @transform_3, window_bounds = array<i64: 1, 8, 256>}]} {
    %c0_i32 = arith.constant 0 : i32
    %0 = arith.cmpi eq, %arg3, %c0_i32 : i32
    %1 = arith.extui %0 : i1 to i32
    %c0_i32_0 = arith.constant 0 : i32
    %2 = arith.cmpi ne, %1, %c0_i32_0 : i32
    scf.if %2 {
      %cst_11 = arith.constant 0.000000e+00 : f32
      %14 = vector.broadcast %cst_11 : f32 to vector<8x256xf32>
      %c0_12 = arith.constant 0 : index
      %c0_13 = arith.constant 0 : index
      %15 = vector.load %arg8[%c0_12, %c0_13] : memref<8x256xf32, #tpu.memory_space<vmem>>, vector<8x256xf32>
      tpu.vector_store %arg8[%c0_12, %c0_13], %14 {strides = array<i32>} : memref<8x256xf32, #tpu.memory_space<vmem>>, vector<8x256xf32>,
    } else {
    }
    %c0 = arith.constant 0 : index
    %c0_1 = arith.constant 0 : index
    %3 = vector.load %arg8[%c0, %c0_1] : memref<8x256xf32, #tpu.memory_space<vmem>>, vector<8x256xf32>
    %c0_2 = arith.constant 0 : index
    %c0_3 = arith.constant 0 : index
    %c0_4 = arith.constant 0 : index
    %4 = vector.load %arg4[%c0_2, %c0_3, %c0_4] : memref<1x8x512xbf16, #tpu.memory_space<vmem>>, vector<1x8x512xbf16>
    %5 = vector.shape_cast %4 : vector<1x8x512xbf16> to vector<8x512xbf16>
    %c0_5 = arith.constant 0 : index
    %c0_6 = arith.constant 0 : index
    %c0_7 = arith.constant 0 : index
    %6 = vector.load %arg5[%c0_5, %c0_6, %c0_7] : memref<1x512x256xbf16, #tpu.memory_space<vmem>>, vector<1x512x256xbf16>
    %7 = vector.shape_cast %6 : vector<1x512x256xbf16> to vector<512x256xbf16>
    %cst = arith.constant dense<0.000000e+00> : vector<8x256xf32>
    %8 = tpu.matmul %5, %7, %cst {dimension_numbers = #tpu.dot_dimension_numbers<[1], [0], [0], [1], [0, 0, 1, 1], [], []>} : vector<8x512xbf16>, vector<512x256xbf16>, vector<8x256xf32> -> vector<8x256xf32>
    %9 = arith.addf %3, %8 : vector<8x256xf32>
    %c0_8 = arith.constant 0 : index
    %c0_9 = arith.constant 0 : index
    %10 = vector.load %arg8[%c0_8, %c0_9] : memref<8x256xf32, #tpu.memory_space<vmem>>, vector<8x256xf32>
    tpu.vector_store %arg8[%c0_8, %c0_9], %9 {strides = array<i32>} : memref<8x256xf32, #tpu.memory_space<vmem>>, vector<8x256xf32>,
    %c6_i32 = arith.constant 6 : i32
    %11 = arith.cmpi eq, %arg3, %c6_i32 : i32
    %12 = arith.extui %11 : i1 to i32
    %c0_i32_10 = arith.constant 0 : i32
    %13 = arith.cmpi ne, %12, %c0_i32_10 : i32
    scf.if %13 {
      %c0_11 = arith.constant 0 : index
      %c0_12 = arith.constant 0 : index
      %14 = vector.load %arg8[%c0_11, %c0_12] : memref<8x256xf32, #tpu.memory_space<vmem>>, vector<8x256xf32>
      %c0_13 = arith.constant 0 : index
      %c0_14 = arith.constant 0 : index
      %c0_15 = arith.constant 0 : index
      %15 = vector.load %arg6[%c0_13, %c0_14, %c0_15] : memref<1x1x256xf32, #tpu.memory_space<vmem>>, vector<1x1x256xf32>
      %16 = vector.shape_cast %15 : vector<1x1x256xf32> to vector<1x256xf32>
      %17 = vector.broadcast %16 : vector<1x256xf32> to vector<8x256xf32>
      %18 = arith.addf %14, %17 : vector<8x256xf32>
      %c0_16 = arith.constant 0 : index
      %c0_17 = arith.constant 0 : index
      %c0_18 = arith.constant 0 : index
      %19 = vector.load %arg7[%c0_16, %c0_17, %c0_18] : memref<1x8x256xf32, #tpu.memory_space<vmem>>, vector<1x8x256xf32>
      %20 = vector.shape_cast %19 : vector<1x8x256xf32> to vector<8x256xf32>
      %21 = vector.shape_cast %18 : vector<8x256xf32> to vector<1x8x256xf32>
      tpu.vector_store %arg7[%c0_16, %c0_17, %c0_18], %21 {strides = array<i32>} : memref<1x8x256xf32, #tpu.memory_space<vmem>>, vector<1x8x256xf32>,
    } else {
    }
    return
  }
  func.func @transform_0(%arg0: i32, %arg1: i32, %arg2: i32, %arg3: i32) -> (i32, i32, i32) {
    %c0_i32 = arith.constant 0 : i32
    return %arg0, %arg1, %arg3 : i32, i32, i32
  }
  func.func @transform_1(%arg0: i32, %arg1: i32, %arg2: i32, %arg3: i32) -> (i32, i32, i32) {
    %c0_i32 = arith.constant 0 : i32
    return %arg0, %arg3, %arg2 : i32, i32, i32
  }
  func.func @transform_2(%arg0: i32, %arg1: i32, %arg2: i32, %arg3: i32) -> (i32, i32, i32) {
    %c0_i32 = arith.constant 0 : i32
    %c0_i32_0 = arith.constant 0 : i32
    return %arg0, %c0_i32, %arg2 : i32, i32, i32
  }
  func.func @transform_3(%arg0: i32, %arg1: i32, %arg2: i32, %arg3: i32) -> (i32, i32, i32) {
    %c0_i32 = arith.constant 0 : i32
    return %arg0, %arg1, %arg2 : i32, i32, i32
  }
}

module attributes {stable_mosaic.version = 11 : i64} {
  func.func @_bmm_bias_act_kernel(%arg0: i32, %arg1: i32, %arg2: i32, %arg3: i32, %arg4: memref<1x8x256xbf16, #tpu.memory_space<vmem>>, %arg5: memref<1x256x256xbf16, #tpu.memory_space<vmem>>, %arg6: memref<1x1x256xf32, #tpu.memory_space<vmem>>, %arg7: memref<1x8x256xf32, #tpu.memory_space<vmem>>, %arg8: memref<8x256xf32, #tpu.memory_space<vmem>>) attributes {dimension_semantics = [#tpu.dimension_semantics<parallel>, #tpu.dimension_semantics<parallel>, #tpu.dimension_semantics<parallel>, #tpu.dimension_semantics<arbitrary>], iteration_bounds = array<i64: 1, 1, 1, 7>, scalar_prefetch = 0 : i64, scratch_operands = 1 : i64, tpu.core_type = #tpu.core_type<tc>, window_params = [{transform_indices = @transform_0, window_bounds = array<i64: 1, 8, 256>}, {transform_indices = @transform_1, window_bounds = array<i64: 1, 256, 256>}, {transform_indices = @transform_2, window_bounds = array<i64: 1, 1, 256>}, {transform_indices = @transform_3, window_bounds = array<i64: 1, 8, 256>}]} {
    %c0_i32 = arith.constant 0 : i32
    %0 = arith.cmpi eq, %arg3, %c0_i32 : i32
    %1 = arith.extui %0 : i1 to i32
    %c0_i32_0 = arith.constant 0 : i32
    %2 = arith.cmpi ne, %1, %c0_i32_0 : i32
    scf.if %2 {
      %cst_11 = arith.constant 0.000000e+00 : f32
      %14 = vector.broadcast %cst_11 : f32 to vector<8x256xf32>
      %c0_12 = arith.constant 0 : index
      %c0_13 = arith.constant 0 : index
      %15 = vector.load %arg8[%c0_12, %c0_13] : memref<8x256xf32, #tpu.memory_space<vmem>>, vector<8x256xf32>
      tpu.vector_store %arg8[%c0_12, %c0_13], %14 {strides = array<i32>} : memref<8x256xf32, #tpu.memory_space<vmem>>, vector<8x256xf32>,
    } else {
    }
    %c0 = arith.constant 0 : index
    %c0_1 = arith.constant 0 : index
    %3 = vector.load %arg8[%c0, %c0_1] : memref<8x256xf32, #tpu.memory_space<vmem>>, vector<8x256xf32>
    %c0_2 = arith.constant 0 : index
    %c0_3 = arith.constant 0 : index
    %c0_4 = arith.constant 0 : index
    %4 = vector.load %arg4[%c0_2, %c0_3, %c0_4] : memref<1x8x256xbf16, #tpu.memory_space<vmem>>, vector<1x8x256xbf16>
    %5 = vector.shape_cast %4 : vector<1x8x256xbf16> to vector<8x256xbf16>
    %c0_5 = arith.constant 0 : index
    %c0_6 = arith.constant 0 : index
    %c0_7 = arith.constant 0 : index
    %6 = vector.load %arg5[%c0_5, %c0_6, %c0_7] : memref<1x256x256xbf16, #tpu.memory_space<vmem>>, vector<1x256x256xbf16>
    %7 = vector.shape_cast %6 : vector<1x256x256xbf16> to vector<256x256xbf16>
    %cst = arith.constant dense<0.000000e+00> : vector<8x256xf32>
    %8 = tpu.matmul %5, %7, %cst {dimension_numbers = #tpu.dot_dimension_numbers<[1], [0], [0], [1], [0, 0, 1, 1], [], []>} : vector<8x256xbf16>, vector<256x256xbf16>, vector<8x256xf32> -> vector<8x256xf32>
    %9 = arith.addf %3, %8 : vector<8x256xf32>
    %c0_8 = arith.constant 0 : index
    %c0_9 = arith.constant 0 : index
    %10 = vector.load %arg8[%c0_8, %c0_9] : memref<8x256xf32, #tpu.memory_space<vmem>>, vector<8x256xf32>
    tpu.vector_store %arg8[%c0_8, %c0_9], %9 {strides = array<i32>} : memref<8x256xf32, #tpu.memory_space<vmem>>, vector<8x256xf32>,
    %c6_i32 = arith.constant 6 : i32
    %11 = arith.cmpi eq, %arg3, %c6_i32 : i32
    %12 = arith.extui %11 : i1 to i32
    %c0_i32_10 = arith.constant 0 : i32
    %13 = arith.cmpi ne, %12, %c0_i32_10 : i32
    scf.if %13 {
      %c0_11 = arith.constant 0 : index
      %c0_12 = arith.constant 0 : index
      %14 = vector.load %arg8[%c0_11, %c0_12] : memref<8x256xf32, #tpu.memory_space<vmem>>, vector<8x256xf32>
      %c0_13 = arith.constant 0 : index
      %c0_14 = arith.constant 0 : index
      %c0_15 = arith.constant 0 : index
      %15 = vector.load %arg6[%c0_13, %c0_14, %c0_15] : memref<1x1x256xf32, #tpu.memory_space<vmem>>, vector<1x1x256xf32>
      %16 = vector.shape_cast %15 : vector<1x1x256xf32> to vector<1x256xf32>
      %17 = vector.broadcast %16 : vector<1x256xf32> to vector<8x256xf32>
      %18 = arith.addf %14, %17 : vector<8x256xf32>
      %cst_16 = arith.constant 0.000000e+00 : f32
      %19 = vector.broadcast %cst_16 : f32 to vector<8x256xf32>
      %20 = arith.cmpf ogt, %18, %19 : vector<8x256xf32>
      %cst_17 = arith.constant 2.000000e-01 : f32
      %21 = vector.broadcast %cst_17 : f32 to vector<8x256xf32>
      %22 = arith.mulf %21, %18 : vector<8x256xf32>
      %23 = arith.select %20, %18, %22 : vector<8x256xi1>, vector<8x256xf32>
      %c0_18 = arith.constant 0 : index
      %c0_19 = arith.constant 0 : index
      %c0_20 = arith.constant 0 : index
      %24 = vector.load %arg7[%c0_18, %c0_19, %c0_20] : memref<1x8x256xf32, #tpu.memory_space<vmem>>, vector<1x8x256xf32>
      %25 = vector.shape_cast %24 : vector<1x8x256xf32> to vector<8x256xf32>
      %26 = vector.shape_cast %23 : vector<8x256xf32> to vector<1x8x256xf32>
      tpu.vector_store %arg7[%c0_18, %c0_19, %c0_20], %26 {strides = array<i32>} : memref<1x8x256xf32, #tpu.memory_space<vmem>>, vector<1x8x256xf32>,
    } else {
    }
    return
  }
  func.func @transform_0(%arg0: i32, %arg1: i32, %arg2: i32, %arg3: i32) -> (i32, i32, i32) {
    %c0_i32 = arith.constant 0 : i32
    return %arg0, %arg1, %arg3 : i32, i32, i32
  }
  func.func @transform_1(%arg0: i32, %arg1: i32, %arg2: i32, %arg3: i32) -> (i32, i32, i32) {
    %c0_i32 = arith.constant 0 : i32
    return %arg0, %arg3, %arg2 : i32, i32, i32
  }
  func.func @transform_2(%arg0: i32, %arg1: i32, %arg2: i32, %arg3: i32) -> (i32, i32, i32) {
    %c0_i32 = arith.constant 0 : i32
    %c0_i32_0 = arith.constant 0 : i32
    return %arg0, %c0_i32, %arg2 : i32, i32, i32
  }
  func.func @transform_3(%arg0: i32, %arg1: i32, %arg2: i32, %arg3: i32) -> (i32, i32, i32) {
    %c0_i32 = arith.constant 0 : i32
    return %arg0, %arg1, %arg2 : i32, i32, i32
  }
}

module attributes {stable_mosaic.version = 11 : i64} {
  func.func @_bmm_bias_act_kernel(%arg0: i32, %arg1: i32, %arg2: i32, %arg3: i32, %arg4: memref<1x8x256xbf16, #tpu.memory_space<vmem>>, %arg5: memref<1x256x256xbf16, #tpu.memory_space<vmem>>, %arg6: memref<1x1x256xf32, #tpu.memory_space<vmem>>, %arg7: memref<1x8x256xf32, #tpu.memory_space<vmem>>, %arg8: memref<8x256xf32, #tpu.memory_space<vmem>>) attributes {dimension_semantics = [#tpu.dimension_semantics<parallel>, #tpu.dimension_semantics<parallel>, #tpu.dimension_semantics<parallel>, #tpu.dimension_semantics<arbitrary>], iteration_bounds = array<i64: 1, 1, 1, 7>, scalar_prefetch = 0 : i64, scratch_operands = 1 : i64, tpu.core_type = #tpu.core_type<tc>, window_params = [{transform_indices = @transform_0, window_bounds = array<i64: 1, 8, 256>}, {transform_indices = @transform_1, window_bounds = array<i64: 1, 256, 256>}, {transform_indices = @transform_2, window_bounds = array<i64: 1, 1, 256>}, {transform_indices = @transform_3, window_bounds = array<i64: 1, 8, 256>}]} {
    %c0_i32 = arith.constant 0 : i32
    %0 = arith.cmpi eq, %arg3, %c0_i32 : i32
    %1 = arith.extui %0 : i1 to i32
    %c0_i32_0 = arith.constant 0 : i32
    %2 = arith.cmpi ne, %1, %c0_i32_0 : i32
    scf.if %2 {
      %cst_11 = arith.constant 0.000000e+00 : f32
      %14 = vector.broadcast %cst_11 : f32 to vector<8x256xf32>
      %c0_12 = arith.constant 0 : index
      %c0_13 = arith.constant 0 : index
      %15 = vector.load %arg8[%c0_12, %c0_13] : memref<8x256xf32, #tpu.memory_space<vmem>>, vector<8x256xf32>
      tpu.vector_store %arg8[%c0_12, %c0_13], %14 {strides = array<i32>} : memref<8x256xf32, #tpu.memory_space<vmem>>, vector<8x256xf32>,
    } else {
    }
    %c0 = arith.constant 0 : index
    %c0_1 = arith.constant 0 : index
    %3 = vector.load %arg8[%c0, %c0_1] : memref<8x256xf32, #tpu.memory_space<vmem>>, vector<8x256xf32>
    %c0_2 = arith.constant 0 : index
    %c0_3 = arith.constant 0 : index
    %c0_4 = arith.constant 0 : index
    %4 = vector.load %arg4[%c0_2, %c0_3, %c0_4] : memref<1x8x256xbf16, #tpu.memory_space<vmem>>, vector<1x8x256xbf16>
    %5 = vector.shape_cast %4 : vector<1x8x256xbf16> to vector<8x256xbf16>
    %c0_5 = arith.constant 0 : index
    %c0_6 = arith.constant 0 : index
    %c0_7 = arith.constant 0 : index
    %6 = vector.load %arg5[%c0_5, %c0_6, %c0_7] : memref<1x256x256xbf16, #tpu.memory_space<vmem>>, vector<1x256x256xbf16>
    %7 = vector.shape_cast %6 : vector<1x256x256xbf16> to vector<256x256xbf16>
    %cst = arith.constant dense<0.000000e+00> : vector<8x256xf32>
    %8 = tpu.matmul %5, %7, %cst {dimension_numbers = #tpu.dot_dimension_numbers<[1], [0], [0], [1], [0, 0, 1, 1], [], []>} : vector<8x256xbf16>, vector<256x256xbf16>, vector<8x256xf32> -> vector<8x256xf32>
    %9 = arith.addf %3, %8 : vector<8x256xf32>
    %c0_8 = arith.constant 0 : index
    %c0_9 = arith.constant 0 : index
    %10 = vector.load %arg8[%c0_8, %c0_9] : memref<8x256xf32, #tpu.memory_space<vmem>>, vector<8x256xf32>
    tpu.vector_store %arg8[%c0_8, %c0_9], %9 {strides = array<i32>} : memref<8x256xf32, #tpu.memory_space<vmem>>, vector<8x256xf32>,
    %c6_i32 = arith.constant 6 : i32
    %11 = arith.cmpi eq, %arg3, %c6_i32 : i32
    %12 = arith.extui %11 : i1 to i32
    %c0_i32_10 = arith.constant 0 : i32
    %13 = arith.cmpi ne, %12, %c0_i32_10 : i32
    scf.if %13 {
      %c0_11 = arith.constant 0 : index
      %c0_12 = arith.constant 0 : index
      %14 = vector.load %arg8[%c0_11, %c0_12] : memref<8x256xf32, #tpu.memory_space<vmem>>, vector<8x256xf32>
      %c0_13 = arith.constant 0 : index
      %c0_14 = arith.constant 0 : index
      %c0_15 = arith.constant 0 : index
      %15 = vector.load %arg6[%c0_13, %c0_14, %c0_15] : memref<1x1x256xf32, #tpu.memory_space<vmem>>, vector<1x1x256xf32>
      %16 = vector.shape_cast %15 : vector<1x1x256xf32> to vector<1x256xf32>
      %17 = vector.broadcast %16 : vector<1x256xf32> to vector<8x256xf32>
      %18 = arith.addf %14, %17 : vector<8x256xf32>
      %c0_16 = arith.constant 0 : index
      %c0_17 = arith.constant 0 : index
      %c0_18 = arith.constant 0 : index
      %19 = vector.load %arg7[%c0_16, %c0_17, %c0_18] : memref<1x8x256xf32, #tpu.memory_space<vmem>>, vector<1x8x256xf32>
      %20 = vector.shape_cast %19 : vector<1x8x256xf32> to vector<8x256xf32>
      %21 = vector.shape_cast %18 : vector<8x256xf32> to vector<1x8x256xf32>
      tpu.vector_store %arg7[%c0_16, %c0_17, %c0_18], %21 {strides = array<i32>} : memref<1x8x256xf32, #tpu.memory_space<vmem>>, vector<1x8x256xf32>,
    } else {
    }
    return
  }
  func.func @transform_0(%arg0: i32, %arg1: i32, %arg2: i32, %arg3: i32) -> (i32, i32, i32) {
    %c0_i32 = arith.constant 0 : i32
    return %arg0, %arg1, %arg3 : i32, i32, i32
  }
  func.func @transform_1(%arg0: i32, %arg1: i32, %arg2: i32, %arg3: i32) -> (i32, i32, i32) {
    %c0_i32 = arith.constant 0 : i32
    return %arg0, %arg3, %arg2 : i32, i32, i32
  }
  func.func @transform_2(%arg0: i32, %arg1: i32, %arg2: i32, %arg3: i32) -> (i32, i32, i32) {
    %c0_i32 = arith.constant 0 : i32
    %c0_i32_0 = arith.constant 0 : i32
    return %arg0, %c0_i32, %arg2 : i32, i32, i32
  }
  func.func @transform_3(%arg0: i32, %arg1: i32, %arg2: i32, %arg3: i32) -> (i32, i32, i32) {
    %c0_i32 = arith.constant 0 : i32
    return %arg0, %arg1, %arg2 : i32, i32, i32
  }
}

module attributes {stable_mosaic.version = 11 : i64} {
  func.func @_bmm_bias_act_kernel(%arg0: i32, %arg1: i32, %arg2: i32, %arg3: i32, %arg4: memref<1x8x256xbf16, #tpu.memory_space<vmem>>, %arg5: memref<1x256x256xbf16, #tpu.memory_space<vmem>>, %arg6: memref<1x1x256xf32, #tpu.memory_space<vmem>>, %arg7: memref<1x8x256xf32, #tpu.memory_space<vmem>>, %arg8: memref<8x256xf32, #tpu.memory_space<vmem>>) attributes {dimension_semantics = [#tpu.dimension_semantics<parallel>, #tpu.dimension_semantics<parallel>, #tpu.dimension_semantics<parallel>, #tpu.dimension_semantics<arbitrary>], iteration_bounds = array<i64: 1, 1, 1, 1>, scalar_prefetch = 0 : i64, scratch_operands = 1 : i64, tpu.core_type = #tpu.core_type<tc>, window_params = [{transform_indices = @transform_0, window_bounds = array<i64: 1, 8, 256>}, {transform_indices = @transform_1, window_bounds = array<i64: 1, 256, 256>}, {transform_indices = @transform_2, window_bounds = array<i64: 1, 1, 256>}, {transform_indices = @transform_3, window_bounds = array<i64: 1, 8, 256>}]} {
    %c0_i32 = arith.constant 0 : i32
    %0 = arith.cmpi eq, %arg3, %c0_i32 : i32
    %1 = arith.extui %0 : i1 to i32
    %c0_i32_0 = arith.constant 0 : i32
    %2 = arith.cmpi ne, %1, %c0_i32_0 : i32
    scf.if %2 {
      %cst_12 = arith.constant 0.000000e+00 : f32
      %14 = vector.broadcast %cst_12 : f32 to vector<8x256xf32>
      %c0_13 = arith.constant 0 : index
      %c0_14 = arith.constant 0 : index
      %15 = vector.load %arg8[%c0_13, %c0_14] : memref<8x256xf32, #tpu.memory_space<vmem>>, vector<8x256xf32>
      tpu.vector_store %arg8[%c0_13, %c0_14], %14 {strides = array<i32>} : memref<8x256xf32, #tpu.memory_space<vmem>>, vector<8x256xf32>,
    } else {
    }
    %c0 = arith.constant 0 : index
    %c0_1 = arith.constant 0 : index
    %3 = vector.load %arg8[%c0, %c0_1] : memref<8x256xf32, #tpu.memory_space<vmem>>, vector<8x256xf32>
    %c0_2 = arith.constant 0 : index
    %c0_3 = arith.constant 0 : index
    %c0_4 = arith.constant 0 : index
    %4 = vector.load %arg4[%c0_2, %c0_3, %c0_4] : memref<1x8x256xbf16, #tpu.memory_space<vmem>>, vector<1x8x256xbf16>
    %5 = vector.shape_cast %4 : vector<1x8x256xbf16> to vector<8x256xbf16>
    %c0_5 = arith.constant 0 : index
    %c0_6 = arith.constant 0 : index
    %c0_7 = arith.constant 0 : index
    %6 = vector.load %arg5[%c0_5, %c0_6, %c0_7] : memref<1x256x256xbf16, #tpu.memory_space<vmem>>, vector<1x256x256xbf16>
    %7 = vector.shape_cast %6 : vector<1x256x256xbf16> to vector<256x256xbf16>
    %cst = arith.constant dense<0.000000e+00> : vector<8x256xf32>
    %8 = tpu.matmul %5, %7, %cst {dimension_numbers = #tpu.dot_dimension_numbers<[1], [0], [0], [1], [0, 0, 1, 1], [], []>} : vector<8x256xbf16>, vector<256x256xbf16>, vector<8x256xf32> -> vector<8x256xf32>
    %9 = arith.addf %3, %8 : vector<8x256xf32>
    %c0_8 = arith.constant 0 : index
    %c0_9 = arith.constant 0 : index
    %10 = vector.load %arg8[%c0_8, %c0_9] : memref<8x256xf32, #tpu.memory_space<vmem>>, vector<8x256xf32>
    tpu.vector_store %arg8[%c0_8, %c0_9], %9 {strides = array<i32>} : memref<8x256xf32, #tpu.memory_space<vmem>>, vector<8x256xf32>,
    %c0_i32_10 = arith.constant 0 : i32
    %11 = arith.cmpi eq, %arg3, %c0_i32_10 : i32
    %12 = arith.extui %11 : i1 to i32
    %c0_i32_11 = arith.constant 0 : i32
    %13 = arith.cmpi ne, %12, %c0_i32_11 : i32
    scf.if %13 {
      %c0_12 = arith.constant 0 : index
      %c0_13 = arith.constant 0 : index
      %14 = vector.load %arg8[%c0_12, %c0_13] : memref<8x256xf32, #tpu.memory_space<vmem>>, vector<8x256xf32>
      %c0_14 = arith.constant 0 : index
      %c0_15 = arith.constant 0 : index
      %c0_16 = arith.constant 0 : index
      %15 = vector.load %arg6[%c0_14, %c0_15, %c0_16] : memref<1x1x256xf32, #tpu.memory_space<vmem>>, vector<1x1x256xf32>
      %16 = vector.shape_cast %15 : vector<1x1x256xf32> to vector<1x256xf32>
      %17 = vector.broadcast %16 : vector<1x256xf32> to vector<8x256xf32>
      %18 = arith.addf %14, %17 : vector<8x256xf32>
      %19 = arith.negf %18 : vector<8x256xf32>
      %20 = math.exp %19 : vector<8x256xf32>
      %cst_17 = arith.constant 1.000000e+00 : f32
      %21 = vector.broadcast %cst_17 : f32 to vector<8x256xf32>
      %22 = arith.addf %21, %20 : vector<8x256xf32>
      %23 = arith.divf %21, %22 : vector<8x256xf32>
      %c0_18 = arith.constant 0 : index
      %c0_19 = arith.constant 0 : index
      %c0_20 = arith.constant 0 : index
      %24 = vector.load %arg7[%c0_18, %c0_19, %c0_20] : memref<1x8x256xf32, #tpu.memory_space<vmem>>, vector<1x8x256xf32>
      %25 = vector.shape_cast %24 : vector<1x8x256xf32> to vector<8x256xf32>
      %26 = vector.shape_cast %23 : vector<8x256xf32> to vector<1x8x256xf32>
      tpu.vector_store %arg7[%c0_18, %c0_19, %c0_20], %26 {strides = array<i32>} : memref<1x8x256xf32, #tpu.memory_space<vmem>>, vector<1x8x256xf32>,
    } else {
    }
    return
  }
  func.func @transform_0(%arg0: i32, %arg1: i32, %arg2: i32, %arg3: i32) -> (i32, i32, i32) {
    %c0_i32 = arith.constant 0 : i32
    return %arg0, %arg1, %arg3 : i32, i32, i32
  }
  func.func @transform_1(%arg0: i32, %arg1: i32, %arg2: i32, %arg3: i32) -> (i32, i32, i32) {
    %c0_i32 = arith.constant 0 : i32
    return %arg0, %arg3, %arg2 : i32, i32, i32
  }
  func.func @transform_2(%arg0: i32, %arg1: i32, %arg2: i32, %arg3: i32) -> (i32, i32, i32) {
    %c0_i32 = arith.constant 0 : i32
    %c0_i32_0 = arith.constant 0 : i32
    return %arg0, %c0_i32, %arg2 : i32, i32, i32
  }
  func.func @transform_3(%arg0: i32, %arg1: i32, %arg2: i32, %arg3: i32) -> (i32, i32, i32) {
    %c0_i32 = arith.constant 0 : i32
    return %arg0, %arg1, %arg2 : i32, i32, i32
  }
}

module attributes {stable_mosaic.version = 11 : i64} {
  func.func @_bmm_bias_act_kernel(%arg0: i32, %arg1: i32, %arg2: i32, %arg3: i32, %arg4: memref<1x8x256xbf16, #tpu.memory_space<vmem>>, %arg5: memref<1x256x128xbf16, #tpu.memory_space<vmem>>, %arg6: memref<1x1x128xf32, #tpu.memory_space<vmem>>, %arg7: memref<1x8x128xf32, #tpu.memory_space<vmem>>, %arg8: memref<8x128xf32, #tpu.memory_space<vmem>>) attributes {dimension_semantics = [#tpu.dimension_semantics<parallel>, #tpu.dimension_semantics<parallel>, #tpu.dimension_semantics<parallel>, #tpu.dimension_semantics<arbitrary>], iteration_bounds = array<i64: 1, 1, 1, 1>, scalar_prefetch = 0 : i64, scratch_operands = 1 : i64, tpu.core_type = #tpu.core_type<tc>, window_params = [{transform_indices = @transform_0, window_bounds = array<i64: 1, 8, 256>}, {transform_indices = @transform_1, window_bounds = array<i64: 1, 256, 128>}, {transform_indices = @transform_2, window_bounds = array<i64: 1, 1, 128>}, {transform_indices = @transform_3, window_bounds = array<i64: 1, 8, 128>}]} {
    %c0_i32 = arith.constant 0 : i32
    %0 = arith.cmpi eq, %arg3, %c0_i32 : i32
    %1 = arith.extui %0 : i1 to i32
    %c0_i32_0 = arith.constant 0 : i32
    %2 = arith.cmpi ne, %1, %c0_i32_0 : i32
    scf.if %2 {
      %cst_12 = arith.constant 0.000000e+00 : f32
      %14 = vector.broadcast %cst_12 : f32 to vector<8x128xf32>
      %c0_13 = arith.constant 0 : index
      %c0_14 = arith.constant 0 : index
      %15 = vector.load %arg8[%c0_13, %c0_14] : memref<8x128xf32, #tpu.memory_space<vmem>>, vector<8x128xf32>
      tpu.vector_store %arg8[%c0_13, %c0_14], %14 {strides = array<i32>} : memref<8x128xf32, #tpu.memory_space<vmem>>, vector<8x128xf32>,
    } else {
    }
    %c0 = arith.constant 0 : index
    %c0_1 = arith.constant 0 : index
    %3 = vector.load %arg8[%c0, %c0_1] : memref<8x128xf32, #tpu.memory_space<vmem>>, vector<8x128xf32>
    %c0_2 = arith.constant 0 : index
    %c0_3 = arith.constant 0 : index
    %c0_4 = arith.constant 0 : index
    %4 = vector.load %arg4[%c0_2, %c0_3, %c0_4] : memref<1x8x256xbf16, #tpu.memory_space<vmem>>, vector<1x8x256xbf16>
    %5 = vector.shape_cast %4 : vector<1x8x256xbf16> to vector<8x256xbf16>
    %c0_5 = arith.constant 0 : index
    %c0_6 = arith.constant 0 : index
    %c0_7 = arith.constant 0 : index
    %6 = vector.load %arg5[%c0_5, %c0_6, %c0_7] : memref<1x256x128xbf16, #tpu.memory_space<vmem>>, vector<1x256x128xbf16>
    %7 = vector.shape_cast %6 : vector<1x256x128xbf16> to vector<256x128xbf16>
    %cst = arith.constant dense<0.000000e+00> : vector<8x128xf32>
    %8 = tpu.matmul %5, %7, %cst {dimension_numbers = #tpu.dot_dimension_numbers<[1], [0], [0], [1], [0, 0, 1, 1], [], []>} : vector<8x256xbf16>, vector<256x128xbf16>, vector<8x128xf32> -> vector<8x128xf32>
    %9 = arith.addf %3, %8 : vector<8x128xf32>
    %c0_8 = arith.constant 0 : index
    %c0_9 = arith.constant 0 : index
    %10 = vector.load %arg8[%c0_8, %c0_9] : memref<8x128xf32, #tpu.memory_space<vmem>>, vector<8x128xf32>
    tpu.vector_store %arg8[%c0_8, %c0_9], %9 {strides = array<i32>} : memref<8x128xf32, #tpu.memory_space<vmem>>, vector<8x128xf32>,
    %c0_i32_10 = arith.constant 0 : i32
    %11 = arith.cmpi eq, %arg3, %c0_i32_10 : i32
    %12 = arith.extui %11 : i1 to i32
    %c0_i32_11 = arith.constant 0 : i32
    %13 = arith.cmpi ne, %12, %c0_i32_11 : i32
    scf.if %13 {
      %c0_12 = arith.constant 0 : index
      %c0_13 = arith.constant 0 : index
      %14 = vector.load %arg8[%c0_12, %c0_13] : memref<8x128xf32, #tpu.memory_space<vmem>>, vector<8x128xf32>
      %c0_14 = arith.constant 0 : index
      %c0_15 = arith.constant 0 : index
      %c0_16 = arith.constant 0 : index
      %15 = vector.load %arg6[%c0_14, %c0_15, %c0_16] : memref<1x1x128xf32, #tpu.memory_space<vmem>>, vector<1x1x128xf32>
      %16 = vector.shape_cast %15 : vector<1x1x128xf32> to vector<1x128xf32>
      %17 = vector.broadcast %16 : vector<1x128xf32> to vector<8x128xf32>
      %18 = arith.addf %14, %17 : vector<8x128xf32>
      %cst_17 = arith.constant 0.000000e+00 : f32
      %19 = vector.broadcast %cst_17 : f32 to vector<8x128xf32>
      %20 = arith.maximumf %18, %19 : vector<8x128xf32>
      %c0_18 = arith.constant 0 : index
      %c0_19 = arith.constant 0 : index
      %c0_20 = arith.constant 0 : index
      %21 = vector.load %arg7[%c0_18, %c0_19, %c0_20] : memref<1x8x128xf32, #tpu.memory_space<vmem>>, vector<1x8x128xf32>
      %22 = vector.shape_cast %21 : vector<1x8x128xf32> to vector<8x128xf32>
      %23 = vector.shape_cast %20 : vector<8x128xf32> to vector<1x8x128xf32>
      tpu.vector_store %arg7[%c0_18, %c0_19, %c0_20], %23 {strides = array<i32>} : memref<1x8x128xf32, #tpu.memory_space<vmem>>, vector<1x8x128xf32>,
    } else {
    }
    return
  }
  func.func @transform_0(%arg0: i32, %arg1: i32, %arg2: i32, %arg3: i32) -> (i32, i32, i32) {
    %c0_i32 = arith.constant 0 : i32
    return %arg0, %arg1, %arg3 : i32, i32, i32
  }
  func.func @transform_1(%arg0: i32, %arg1: i32, %arg2: i32, %arg3: i32) -> (i32, i32, i32) {
    %c0_i32 = arith.constant 0 : i32
    return %arg0, %arg3, %arg2 : i32, i32, i32
  }
  func.func @transform_2(%arg0: i32, %arg1: i32, %arg2: i32, %arg3: i32) -> (i32, i32, i32) {
    %c0_i32 = arith.constant 0 : i32
    %c0_i32_0 = arith.constant 0 : i32
    return %arg0, %c0_i32, %arg2 : i32, i32, i32
  }
  func.func @transform_3(%arg0: i32, %arg1: i32, %arg2: i32, %arg3: i32) -> (i32, i32, i32) {
    %c0_i32 = arith.constant 0 : i32
    return %arg0, %arg1, %arg2 : i32, i32, i32
  }
}

</mosaic_0001>

<llo_original>
// kernel: closed_call.219
$region0: #{closed_call.219}
  #allocation0 [shape = 'u32[]', space=smem, size = 0x4, offset = 0x4, fixed_abs, tag = 'smem constant byte address 0x4 - core index']
  #allocation1 [shape = 'u32[72,128]{1,0:T(1,128)}', space=vmem, size = 0x9000, scoped, tag = 'internal scratch']
  #allocation2 [shape = 'f32[8,128]{1,0:T(8,128)}', space=vmem, size = 0x1000, scoped, tag = 'scratch operand']
  %s0 = inlined_call_operand.vmem [shape: bf16[1,8,1792], index: 0, kind: input, shape index: {}]
  %s1 = inlined_call_operand.vmem [shape: bf16[1,1792,128], index: 1, kind: input, shape index: {}]
  %s2 = inlined_call_operand.vmem [shape: f32[1,1,128], index: 2, kind: input, shape index: {}]
  %s3 = inlined_call_operand.vmem [shape: f32[1,8,128], index: 3, kind: output, shape index: {}]
  %s4 = sld [smem:[#allocation0]]
  $region53: #{closed_call.219} parent=0
    _
  %s6 = ssub.s32 1, %s4
  %s7 = scalar_select 0, %s6, %s4
  loop: start=0, step=1, limit=9
  $region2: #{closed_call.219} parent=0 // loop_pre_header
    _
  $region3: #{closed_call.219} parent=0 // loop_header
    %s9 = sphi 0, %s13
    %p10 = scmp.ge.s32.totalorder %s9, 9
    %s16 = sphi 0, %s42
    %s17 = sphi 0, %s38
    %s18 = sphi 0, %s34
    %s19 = sphi 0, %s30
    %s20 = sphi 0, %s16
    %s21 = sphi 0, %s17
    %s22 = sphi 0, %s18
    %s23 = sphi 0, %s19
    %s24 = sphi 0, %s20
    %s25 = sphi 0, %s21
    %s26 = sphi 0, %s22
    %s27 = sphi 0, %s23
    %s49 = sphi 0, %s51
    %s52 = sphi 0, %s49
    %s53 = sphi 0, %s52
    %s69 = sphi 0, %s53
    %s79 = sphi 0, %s81
    %s82 = sphi 0, %s79
    %s83 = sphi 0, %s82
    %s99 = sphi 0, %s83
    %s107 = sphi 0, %s109
    %s110 = sphi 0, %s107
    %s111 = sphi 0, %s110
    %s127 = sphi 0, %s111
    %s137 = sphi 0, %s139
    %s140 = sphi 0, %s137
    %s141 = sphi 0, %s140
    %s157 = sphi 0, %s141
  $region4: #{closed_call.219} parent=0 // loop_header_branch
    %12 = sbr.rel (%p10) target = $region8
  $region5: #{closed_call.219} parent=0 // loop_body
    %s14 = ssub.s32 %s9, 1
    %s15 = ssub.s32 %s9, 2
    %s28 = sadd.s32 1, %s19
    %p29 = scmp.ge.s32.totalorder %s28, 7
    %s30 = scalar_select %p29, 0, %s28
    %s31 = sadd.s32 1, %s18
    %s32 = scalar_select %p29, %s31, %s18
    %p33 = scmp.ge.s32.totalorder %s32, 1
    %s34 = scalar_select %p33, 0, %s32
    %s35 = sadd.s32 1, %s17
    %s36 = scalar_select %p33, %s35, %s17
    %p37 = scmp.ge.s32.totalorder %s36, 1
    %s38 = scalar_select %p37, 0, %s36
    %s39 = sadd.s32 1, %s16
    %s40 = scalar_select %p37, %s39, %s16
    %p41 = scmp.ge.s32.totalorder %s40, 1
    %s42 = scalar_select %p41, 0, %s40
    %s43 = ssub.s32 %s16, %s42
    %s44 = ssub.s32 %s17, %s38
    %s45 = sor.u32 %s43, %s44
    %s46 = ssub.s32 %s19, %s30
    %s47 = sor.u32 %s45, %s46
    %p48 = scmp.eq.s32.totalorder %s47, 0
    %s50 = sadd.s32 %s49, 1
    %s51 = scalar_select %p48, %s49, %s50
    %p54 = pneg %p48
    %p55 = scmp.eq.s32.totalorder %s9, 6
    %p56 = por %p54, %p55
    %p57 = scmp.ne.s32.totalorder %s49, %s52
    %p58 = scmp.eq.s32.totalorder %s9, 0
    %p59 = por %p57, %p58
    %p60 = scmp.ne.s32.totalorder %s49, %s52
    %p61 = scmp.eq.s32.totalorder %s14, 6
    %p62 = por %p60, %p61
    %p63 = scmp.ne.s32.totalorder %s52, %s53
    %p64 = scmp.eq.s32.totalorder %s14, 0
    %p65 = por %p63, %p64
    %p66 = scmp.ne.s32.totalorder %s52, %s53
    %p67 = scmp.eq.s32.totalorder %s15, 6
    %p68 = por %p66, %p67
    %p70 = scmp.ne.s32.totalorder %s53, %s69
    %p71 = scmp.eq.s32.totalorder %s15, 0
    %p72 = por %p70, %p71
    %s73 = ssub.s32 %s16, %s42
    %s74 = ssub.s32 %s19, %s30
    %s75 = sor.u32 %s73, %s74
    %s76 = ssub.s32 %s18, %s34
    %s77 = sor.u32 %s75, %s76
    %p78 = scmp.eq.s32.totalorder %s77, 0
    %s80 = sadd.s32 %s79, 1
    %s81 = scalar_select %p78, %s79, %s80
    %p84 = pneg %p78
    %p85 = scmp.eq.s32.totalorder %s9, 6
    %p86 = por %p84, %p85
    %p87 = scmp.ne.s32.totalorder %s79, %s82
    %p88 = scmp.eq.s32.totalorder %s9, 0
    %p89 = por %p87, %p88
    %p90 = scmp.ne.s32.totalorder %s79, %s82
    %p91 = scmp.eq.s32.totalorder %s14, 6
    %p92 = por %p90, %p91
    %p93 = scmp.ne.s32.totalorder %s82, %s83
    %p94 = scmp.eq.s32.totalorder %s14, 0
    %p95 = por %p93, %p94
    %p96 = scmp.ne.s32.totalorder %s82, %s83
    %p97 = scmp.eq.s32.totalorder %s15, 6
    %p98 = por %p96, %p97
    %p100 = scmp.ne.s32.totalorder %s83, %s99
    %p101 = scmp.eq.s32.totalorder %s15, 0
    %p102 = por %p100, %p101
    %s103 = ssub.s32 %s16, %s42
    %s104 = ssub.s32 %s18, %s34
    %s105 = sor.u32 %s103, %s104
    %p106 = scmp.eq.s32.totalorder %s105, 0
    %s108 = sadd.s32 %s107, 1
    %s109 = scalar_select %p106, %s107, %s108
    %p112 = pneg %p106
    %p113 = scmp.eq.s32.totalorder %s9, 6
    %p114 = por %p112, %p113
    %p115 = scmp.ne.s32.totalorder %s107, %s110
    %p116 = scmp.eq.s32.totalorder %s9, 0
    %p117 = por %p115, %p116
    %p118 = scmp.ne.s32.totalorder %s107, %s110
    %p119 = scmp.eq.s32.totalorder %s14, 6
    %p120 = por %p118, %p119
    %p121 = scmp.ne.s32.totalorder %s110, %s111
    %p122 = scmp.eq.s32.totalorder %s14, 0
    %p123 = por %p121, %p122
    %p124 = scmp.ne.s32.totalorder %s110, %s111
    %p125 = scmp.eq.s32.totalorder %s15, 6
    %p126 = por %p124, %p125
    %p128 = scmp.ne.s32.totalorder %s111, %s127
    %p129 = scmp.eq.s32.totalorder %s15, 0
    %p130 = por %p128, %p129
    %s131 = ssub.s32 %s16, %s42
    %s132 = ssub.s32 %s17, %s38
    %s133 = sor.u32 %s131, %s132
    %s134 = ssub.s32 %s18, %s34
    %s135 = sor.u32 %s133, %s134
    %p136 = scmp.eq.s32.totalorder %s135, 0
    %s138 = sadd.s32 %s137, 1
    %s139 = scalar_select %p136, %s137, %s138
    %p142 = pneg %p136
    %p143 = scmp.eq.s32.totalorder %s9, 6
    %p144 = por %p142, %p143
    %p145 = scmp.ne.s32.totalorder %s137, %s140
    %p146 = scmp.eq.s32.totalorder %s9, 0
    %p147 = por %p145, %p146
    %p148 = scmp.ne.s32.totalorder %s137, %s140
    %p149 = scmp.eq.s32.totalorder %s14, 6
    %p150 = por %p148, %p149
    %p151 = scmp.ne.s32.totalorder %s140, %s141
    %p152 = scmp.eq.s32.totalorder %s14, 0
    %p153 = por %p151, %p152
    %p154 = scmp.ne.s32.totalorder %s140, %s141
    %p155 = scmp.eq.s32.totalorder %s15, 6
    %p156 = por %p154, %p155
    %p158 = scmp.ne.s32.totalorder %s141, %s157
    %p159 = scmp.eq.s32.totalorder %s15, 0
    %p160 = por %p158, %p159
    %p161 = scmp.le.s32.totalorder 1, %s9
    %p162 = scmp.lt.s32.totalorder %s9, 8
    %p163 = pnand %p161, %p162
    %p164 = pneg %p163
    // Predicated region
    $region9: #{closed_call.219} parent=5 // pred_check
      _
    $region10: #{closed_call.219} parent=5 // pred_check_branch
      %166 = sbr.rel (%p163) target = $region12
    $region11: #{closed_call.219} parent=5 // pred_region
      %s167 = ssub.s32 %s9, 1
      // Predicated region
      $region13: #{closed_call.219} parent=11 // pred_check
        %p168 = pneg %p123
      $region14: #{closed_call.219} parent=11 // pred_check_branch
        %170 = sbr.rel (%p168) target = $region16
      $region15: #{closed_call.219} parent=11 // pred_region
        %p171 = scmp.lt.s32.totalorder %s20, 0
        %s172 = scalar_select %p171, %s20, 0
        %p173 = scmp.lt.s32.totalorder %s22, 0
        %s174 = scalar_select %p173, %s22, 0
        %s175 = sadd.s32 %s174, %s172
        %s176 = scalar_lea.vmem %s2, %s175
      $region16: #{closed_call.219} parent=11 // pred_fallthru
        _
    $region12: #{closed_call.219} parent=5 // pred_fallthru
      _
    %p177 = scmp.lt.s32.totalorder %s9, 7
    // Predicated region
    $region17: #{closed_call.219} parent=5 // pred_check
      %p178 = pneg %p177
    $region18: #{closed_call.219} parent=5 // pred_check_branch
      %180 = sbr.rel (%p178) target = $region20
    $region19: #{closed_call.219} parent=5 // pred_region
      // Predicated region
      $region21: #{closed_call.219} parent=19 // pred_check
        %p181 = pneg %p59
      $region22: #{closed_call.219} parent=19 // pred_check_branch
        %183 = sbr.rel (%p181) target = $region24
      $region23: #{closed_call.219} parent=19 // pred_region
        %s184 = smul.u32 2, %s19
        %p185 = scmp.lt.s32.totalorder %s16, 0
        %s186 = scalar_select %p185, %s16, 0
        %p187 = scmp.lt.s32.totalorder %s17, 0
        %s188 = scalar_select %p187, %s17, 0
        %p189 = scmp.lt.s32.totalorder %s184, 13
        %s190 = scalar_select %p189, %s184, 13
        %s191 = smul.addr %s188, 14
        %s192 = sadd.s32 %s190, %s191
        %s193 = smul.addr %s186, 14
        %s194 = sadd.s32 %s192, %s193
        %s195 = smul.addr %s194, 4
        %s196 = scalar_lea.vmem %s0, %s195
        %s197 = smul.u32 2, %s19
      $region24: #{closed_call.219} parent=19 // pred_fallthru
        _
      // Predicated region
      $region25: #{closed_call.219} parent=19 // pred_check
        %p198 = pneg %p89
      $region26: #{closed_call.219} parent=19 // pred_check_branch
        %200 = sbr.rel (%p198) target = $region28
      $region27: #{closed_call.219} parent=19 // pred_region
        %s201 = smul.u32 32, %s19
        %p202 = scmp.lt.s32.totalorder %s16, 0
        %s203 = scalar_select %p202, %s16, 0
        %p204 = scmp.lt.s32.totalorder %s201, 223
        %s205 = scalar_select %p204, %s201, 223
        %p206 = scmp.lt.s32.totalorder %s18, 0
        %s207 = scalar_select %p206, %s18, 0
        %s208 = sadd.s32 %s207, %s205
        %s209 = smul.addr %s203, 224
        %s210 = sadd.s32 %s208, %s209
        %s211 = smul.addr %s210, 4
        %s212 = scalar_lea.vmem %s1, %s211
        %s213 = smul.u32 32, %s19
      $region28: #{closed_call.219} parent=19 // pred_fallthru
        _
    $region20: #{closed_call.219} parent=5 // pred_fallthru
      _
    %p214 = scmp.le.s32.totalorder 1, %s9
    %p215 = scmp.lt.s32.totalorder %s9, 8
    %p216 = pnand %p214, %p215
    %p217 = pneg %p216
    // Predicated region
    $region29: #{closed_call.219} parent=5 // pred_check
      _
    $region30: #{closed_call.219} parent=5 // pred_check_branch
      %219 = sbr.rel (%p216) target = $region32
    $region31: #{closed_call.219} parent=5 // pred_region
      %s220 = ssub.s32 %s9, 1
      %s221 = smul.u32 2, %s23
      %p222 = scmp.lt.s32.totalorder %s20, 0
      %s223 = scalar_select %p222, %s20, 0
      %p224 = scmp.lt.s32.totalorder %s21, 0
      %s225 = scalar_select %p224, %s21, 0
      %p226 = scmp.lt.s32.totalorder %s221, 13
      %s227 = scalar_select %p226, %s221, 13
      %s228 = smul.addr %s225, 14
      %s229 = sadd.s32 %s227, %s228
      %s230 = smul.addr %s223, 14
      %s231 = sadd.s32 %s229, %s230
      %s232 = smul.addr %s231, 4
      %s233 = scalar_lea.vmem %s0, %s232
      %p234 = pneg %p65
      %p235 = pneg %p62
      %s236 = smul.u32 32, %s23
      %p237 = scmp.lt.s32.totalorder %s20, 0
      %s238 = scalar_select %p237, %s20, 0
      %p239 = scmp.lt.s32.totalorder %s236, 223
      %s240 = scalar_select %p239, %s236, 223
      %p241 = scmp.lt.s32.totalorder %s22, 0
      %s242 = scalar_select %p241, %s22, 0
      %s243 = sadd.s32 %s242, %s240
      %s244 = smul.addr %s238, 224
      %s245 = sadd.s32 %s243, %s244
      %s246 = smul.addr %s245, 4
      %s247 = scalar_lea.vmem %s1, %s246
      %p248 = pneg %p95
      %p249 = pneg %p92
      %p250 = scmp.lt.s32.totalorder %s20, 0
      %s251 = scalar_select %p250, %s20, 0
      %p252 = scmp.lt.s32.totalorder %s22, 0
      %s253 = scalar_select %p252, %s22, 0
      %s254 = sadd.s32 %s253, %s251
      %s255 = scalar_lea.vmem %s2, %s254
      %p256 = pneg %p123
      %p257 = pneg %p120
      %p258 = pneg %p153
      %p259 = pneg %p150
      %p260 = scmp.lt.s32.totalorder %s20, 0
      %s261 = scalar_select %p260, %s20, 0
      %p262 = scmp.lt.s32.totalorder %s21, 0
      %s263 = scalar_select %p262, %s21, 0
      %p264 = scmp.lt.s32.totalorder %s22, 0
      %s265 = scalar_select %p264, %s22, 0
      %s266 = sadd.s32 %s265, %s263
      %s267 = sadd.s32 %s266, %s261
      %s268 = smul.addr %s267, 8
      %s269 = scalar_lea.vmem %s3, %s268
      %s270 = smul.u32 2, %s23
      %p271 = scmp.lt.s32.totalorder %s20, 0
      %s272 = scalar_select %p271, %s20, 0
      %p273 = scmp.lt.s32.totalorder %s21, 0
      %s274 = scalar_select %p273, %s21, 0
      %p275 = scmp.lt.s32.totalorder %s270, 13
      %s276 = scalar_select %p275, %s270, 13
      %s277 = smul.addr %s274, 14
      %s278 = sadd.s32 %s276, %s277
      %s279 = smul.addr %s272, 14
      %s280 = sadd.s32 %s278, %s279
      %s281 = smul.addr %s280, 4
      %s282 = scalar_lea.vmem %s0, %s281
      %s283 = smul.u32 2, %s23
      %s284 = smul.u32 32, %s23
      %p285 = scmp.lt.s32.totalorder %s20, 0
      %s286 = scalar_select %p285, %s20, 0
      %p287 = scmp.lt.s32.totalorder %s284, 223
      %s288 = scalar_select %p287, %s284, 223
      %p289 = scmp.lt.s32.totalorder %s22, 0
      %s290 = scalar_select %p289, %s22, 0
      %s291 = sadd.s32 %s290, %s288
      %s292 = smul.addr %s286, 224
      %s293 = sadd.s32 %s291, %s292
      %s294 = smul.addr %s293, 4
      %s295 = scalar_lea.vmem %s1, %s294
      %s296 = smul.u32 32, %s23
      %p297 = scmp.lt.s32.totalorder %s20, 0
      %s298 = scalar_select %p297, %s20, 0
      %p299 = scmp.lt.s32.totalorder %s22, 0
      %s300 = scalar_select %p299, %s22, 0
      %s301 = sadd.s32 %s300, %s298
      %s302 = scalar_lea.vmem %s2, %s301
      %p303 = scmp.lt.s32.totalorder %s20, 0
      %s304 = scalar_select %p303, %s20, 0
      %p305 = scmp.lt.s32.totalorder %s21, 0
      %s306 = scalar_select %p305, %s21, 0
      %p307 = scmp.lt.s32.totalorder %s22, 0
      %s308 = scalar_select %p307, %s22, 0
      %s309 = sadd.s32 %s308, %s306
      %s310 = sadd.s32 %s309, %s304
      %s311 = smul.addr %s310, 8
      %s312 = scalar_lea.vmem %s3, %s311
      %p313 = scmp.eq.s32.totalorder %s23, 0
      // Predicated region
      $region33: #{closed_call.219} parent=31 // pred_check
        %p314 = pneg %p313
      $region34: #{closed_call.219} parent=31 // pred_check_branch
        %316 = sbr.rel (%p314) target = $region36
      $region35: #{closed_call.219} parent=31 // pred_region
        %317 = vst [vmem:[#allocation2] sm:$0xff] 0.0
      $region36: #{closed_call.219} parent=31 // pred_fallthru
        _
      %v318 = vld [vmem:[#allocation2] sm:$0xff]
      %v319 = vld [vmem:[%s282] sm:$0xff]
      %v320 = vld [vmem:[%s295] sm:$0xf]
      %v321 = vld [vmem:[%s295 + $0x4] sm:$0xf]
      %v322 = vld [vmem:[%s295 + $0x8] sm:$0xf]
      %v323 = vld [vmem:[%s295 + $0xc] sm:$0xf]
      %v324 = vld [vmem:[%s295 + $0x10] sm:$0xf]
      %v325 = vld [vmem:[%s295 + $0x14] sm:$0xf]
      %v326 = vld [vmem:[%s295 + $0x18] sm:$0xf]
      %v327 = vld [vmem:[%s295 + $0x1c] sm:$0xf]
      %v328 = vld [vmem:[%s295 + $0x20] sm:$0xf]
      %v329 = vld [vmem:[%s295 + $0x24] sm:$0xf]
      %v330 = vld [vmem:[%s295 + $0x28] sm:$0xf]
      %v331 = vld [vmem:[%s295 + $0x2c] sm:$0xf]
      %v332 = vld [vmem:[%s295 + $0x30] sm:$0xf]
      %v333 = vld [vmem:[%s295 + $0x34] sm:$0xf]
      %v334 = vld [vmem:[%s295 + $0x38] sm:$0xf]
      %v335 = vld [vmem:[%s295 + $0x3c] sm:$0xf]
      %v336 = vld [vmem:[%s295 + $0x40] sm:$0xf]
      %v337 = vld [vmem:[%s295 + $0x44] sm:$0xf]
      %v338 = vld [vmem:[%s295 + $0x48] sm:$0xf]
      %v339 = vld [vmem:[%s295 + $0x4c] sm:$0xf]
      %v340 = vld [vmem:[%s295 + $0x50] sm:$0xf]
      %v341 = vld [vmem:[%s295 + $0x54] sm:$0xf]
      %v342 = vld [vmem:[%s295 + $0x58] sm:$0xf]
      %v343 = vld [vmem:[%s295 + $0x5c] sm:$0xf]
      %v344 = vld [vmem:[%s295 + $0x60] sm:$0xf]
      %v345 = vld [vmem:[%s295 + $0x64] sm:$0xf]
      %v346 = vld [vmem:[%s295 + $0x68] sm:$0xf]
      %v347 = vld [vmem:[%s295 + $0x6c] sm:$0xf]
      %v348 = vld [vmem:[%s295 + $0x70] sm:$0xf]
      %v349 = vld [vmem:[%s295 + $0x74] sm:$0xf]
      %v350 = vld [vmem:[%s295 + $0x78] sm:$0xf]
      %v351 = vld [vmem:[%s295 + $0x7c] sm:$0xf]
      %v353 = vunpack.c.l.b16 %v319
      %v354 = vunpack.c.h.b16 %v319
      %v355 = vpack.c.b16 %v353, %v353
      %v356 = vpack.c.b16 %v354, %v354
      %v391 = vunpack.c.l.b16 %v320
      %v392 = vunpack.c.l.b16 %v321
      %v393 = vunpack.c.l.b16 %v322
      %v394 = vunpack.c.l.b16 %v323
      %v395 = vunpack.c.l.b16 %v324
      %v396 = vunpack.c.l.b16 %v325
      %v397 = vunpack.c.l.b16 %v326
      %v398 = vunpack.c.l.b16 %v327
      %v399 = vunpack.c.l.b16 %v328
      %v400 = vunpack.c.l.b16 %v329
      %v401 = vunpack.c.l.b16 %v330
      %v402 = vunpack.c.l.b16 %v331
      %v403 = vunpack.c.l.b16 %v332
      %v404 = vunpack.c.l.b16 %v333
      %v405 = vunpack.c.l.b16 %v334
      %v406 = vunpack.c.l.b16 %v335
      %v407 = vunpack.c.l.b16 %v336
      %v408 = vunpack.c.l.b16 %v337
      %v409 = vunpack.c.l.b16 %v338
      %v410 = vunpack.c.l.b16 %v339
      %v411 = vunpack.c.l.b16 %v340
      %v412 = vunpack.c.l.b16 %v341
      %v413 = vunpack.c.l.b16 %v342
      %v414 = vunpack.c.l.b16 %v343
      %v415 = vunpack.c.l.b16 %v344
      %v416 = vunpack.c.l.b16 %v345
      %v417 = vunpack.c.l.b16 %v346
      %v418 = vunpack.c.l.b16 %v347
      %v419 = vunpack.c.l.b16 %v348
      %v420 = vunpack.c.l.b16 %v349
      %v421 = vunpack.c.l.b16 %v350
      %v422 = vunpack.c.l.b16 %v351
      %v423 = vpack.c.b16 %v392, %v391
      %v424 = vpack.c.b16 %v394, %v393
      %v425 = vpack.c.b16 %v396, %v395
      %v426 = vpack.c.b16 %v398, %v397
      %v427 = vpack.c.b16 %v400, %v399
      %v428 = vpack.c.b16 %v402, %v401
      %v429 = vpack.c.b16 %v404, %v403
      %v430 = vpack.c.b16 %v406, %v405
      %v431 = vpack.c.b16 %v408, %v407
      %v432 = vpack.c.b16 %v410, %v409
      %v433 = vpack.c.b16 %v412, %v411
      %v434 = vpack.c.b16 %v414, %v413
      %v435 = vpack.c.b16 %v416, %v415
      %v436 = vpack.c.b16 %v418, %v417
      %v437 = vpack.c.b16 %v420, %v419
      %v438 = vpack.c.b16 %v422, %v421
      %455 = vmatpush.bf16.msra.mxu0 %v430
      %456 = vmatpush.bf16.msra.mxu0 %v429
      %457 = vmatpush.bf16.msra.mxu0 %v428
      %458 = vmatpush.bf16.msra.mxu0 %v427
      %459 = vmatpush.bf16.msra.mxu0 %v426
      %460 = vmatpush.bf16.msra.mxu0 %v425
      %461 = vmatpush.bf16.msra.mxu0 %v424
      %462 = vmatpush.bf16.msra.mxu0 %v423
      %463 = vmatmul.bf16.gmra.mxu0 %v355
      %v464 = vpop.f32.mrf.mxu0
      %v465 = vadd.f32 0.0, %v464
      %v466 = vpop.f32.mrf.mxu0
      %467 = vdwg.mxu0
      %468 = vmatpush.bf16.msra.mxu0 %v438
      %469 = vmatpush.bf16.msra.mxu0 %v437
      %470 = vmatpush.bf16.msra.mxu0 %v436
      %471 = vmatpush.bf16.msra.mxu0 %v435
      %472 = vmatpush.bf16.msra.mxu0 %v434
      %473 = vmatpush.bf16.msra.mxu0 %v433
      %474 = vmatpush.bf16.msra.mxu0 %v432
      %475 = vmatpush.bf16.msra.mxu0 %v431
      %476 = vmatmul.bf16.gmra.mxu0 %v356
      %v477 = vpop.f32.mrf.mxu0
      %v478 = vadd.f32 %v465, %v477
      %v479 = vpop.f32.mrf.mxu0
      %480 = vdwg.mxu0
      %v481 = vadd.f32 %v318, %v478
      %482 = vst [vmem:[#allocation2] sm:$0xff] %v481
      %p483 = scmp.eq.s32.totalorder %s23, 6
      // Predicated region
      $region37: #{closed_call.219} parent=31 // pred_check
        %p484 = pneg %p483
      $region38: #{closed_call.219} parent=31 // pred_check_branch
        %486 = sbr.rel (%p484) target = $region40
      $region39: #{closed_call.219} parent=31 // pred_region
        %v487 = vld [vmem:[#allocation2] sm:$0xff]
        %v488 = vld [vmem:[%s302] sm:$0x1]
        %v490 = vperm.slane %v488, 0
        %v492 = vadd.f32 %v487, %v490
        %vm493 = vcmp.gt.f32.partialorder %v492, 0.0
        %v494 = vmul.f32 %v492, 0.2
        %v495 = vsel %vm493, %v492, %v494
        %496 = vst [vmem:[%s312] sm:$0xff] %v495
      $region40: #{closed_call.219} parent=31 // pred_fallthru
        _
      %p497 = scmp.lt.s32.totalorder %s20, 0
      %s498 = scalar_select %p497, %s20, 0
      %p499 = scmp.lt.s32.totalorder %s21, 0
      %s500 = scalar_select %p499, %s21, 0
      %p501 = scmp.lt.s32.totalorder %s22, 0
      %s502 = scalar_select %p501, %s22, 0
      %s503 = sadd.s32 %s502, %s500
      %s504 = sadd.s32 %s503, %s498
      %s505 = smul.addr %s504, 8
      %s506 = scalar_lea.vmem %s3, %s505
      // Predicated region
      $region41: #{closed_call.219} parent=31 // pred_check
        %p507 = pneg %p150
      $region42: #{closed_call.219} parent=31 // pred_check_branch
        %509 = sbr.rel (%p507) target = $region44
      $region43: #{closed_call.219} parent=31 // pred_region
        _
      $region44: #{closed_call.219} parent=31 // pred_fallthru
        _
      // Predicated region
      $region45: #{closed_call.219} parent=31 // pred_check
        %p510 = pneg %p150
      $region46: #{closed_call.219} parent=31 // pred_check_branch
        %512 = sbr.rel (%p510) target = $region48
      $region47: #{closed_call.219} parent=31 // pred_region
        %p513 = scmp.lt.s32.totalorder %s20, 0
        %s514 = scalar_select %p513, %s20, 0
        %p515 = scmp.lt.s32.totalorder %s21, 0
        %s516 = scalar_select %p515, %s21, 0
        %p517 = scmp.lt.s32.totalorder %s22, 0
        %s518 = scalar_select %p517, %s22, 0
        %s519 = sadd.s32 %s518, %s516
        %s520 = sadd.s32 %s519, %s514
        %s521 = smul.addr %s520, 8
        %s522 = scalar_lea.vmem %s3, %s521
      $region48: #{closed_call.219} parent=31 // pred_fallthru
        _
    $region32: #{closed_call.219} parent=5 // pred_fallthru
      _
    %p523 = scmp.le.s32.totalorder 2, %s9
    // Predicated region
    $region49: #{closed_call.219} parent=5 // pred_check
      %p524 = pneg %p523
    $region50: #{closed_call.219} parent=5 // pred_check_branch
      %526 = sbr.rel (%p524) target = $region52
    $region51: #{closed_call.219} parent=5 // pred_region
      %s527 = ssub.s32 %s9, 2
    $region52: #{closed_call.219} parent=5 // pred_fallthru
      _
  $region6: #{closed_call.219} parent=0 // loop_footer
    %s13 = sadd.s32 1, %s9
  $region7: #{closed_call.219} parent=0 // loop_footer_branch
    %8 = sbr.rel target = $region3
  $region8: #{closed_call.219} parent=0 // loop_exit
    _

// kernel: closed_call.220
$region0: #{closed_call.220}
  #allocation0 [shape = 'u32[]', space=smem, size = 0x4, offset = 0x4, fixed_abs, tag = 'smem constant byte address 0x4 - core index']
  #allocation1 [shape = 'u32[72,128]{1,0:T(1,128)}', space=vmem, size = 0x9000, scoped, tag = 'internal scratch']
  #allocation2 [shape = 'f32[8,128]{1,0:T(8,128)}', space=vmem, size = 0x1000, scoped, tag = 'scratch operand']
  %s0 = inlined_call_operand.vmem [shape: bf16[1,8,2048], index: 0, kind: input, shape index: {}]
  %s1 = inlined_call_operand.vmem [shape: bf16[1,2048,128], index: 1, kind: input, shape index: {}]
  %s2 = inlined_call_operand.vmem [shape: f32[1,1,128], index: 2, kind: input, shape index: {}]
  %s3 = inlined_call_operand.vmem [shape: f32[1,8,128], index: 3, kind: output, shape index: {}]
  %s4 = sld [smem:[#allocation0]]
  $region53: #{closed_call.220} parent=0
    _
  %s6 = ssub.s32 1, %s4
  %s7 = scalar_select 0, %s6, %s4
  loop: start=0, step=1, limit=6
  $region2: #{closed_call.220} parent=0 // loop_pre_header
    _
  $region3: #{closed_call.220} parent=0 // loop_header
    %s9 = sphi 0, %s13
    %p10 = scmp.ge.s32.totalorder %s9, 6
    %s16 = sphi 0, %s42
    %s17 = sphi 0, %s38
    %s18 = sphi 0, %s34
    %s19 = sphi 0, %s30
    %s20 = sphi 0, %s16
    %s21 = sphi 0, %s17
    %s22 = sphi 0, %s18
    %s23 = sphi 0, %s19
    %s24 = sphi 0, %s20
    %s25 = sphi 0, %s21
    %s26 = sphi 0, %s22
    %s27 = sphi 0, %s23
    %s49 = sphi 0, %s51
    %s52 = sphi 0, %s49
    %s53 = sphi 0, %s52
    %s69 = sphi 0, %s53
    %s79 = sphi 0, %s81
    %s82 = sphi 0, %s79
    %s83 = sphi 0, %s82
    %s99 = sphi 0, %s83
    %s107 = sphi 0, %s109
    %s110 = sphi 0, %s107
    %s111 = sphi 0, %s110
    %s127 = sphi 0, %s111
    %s137 = sphi 0, %s139
    %s140 = sphi 0, %s137
    %s141 = sphi 0, %s140
    %s157 = sphi 0, %s141
  $region4: #{closed_call.220} parent=0 // loop_header_branch
    %12 = sbr.rel (%p10) target = $region8
  $region5: #{closed_call.220} parent=0 // loop_body
    %s14 = ssub.s32 %s9, 1
    %s15 = ssub.s32 %s9, 2
    %s28 = sadd.s32 1, %s19
    %p29 = scmp.ge.s32.totalorder %s28, 4
    %s30 = scalar_select %p29, 0, %s28
    %s31 = sadd.s32 1, %s18
    %s32 = scalar_select %p29, %s31, %s18
    %p33 = scmp.ge.s32.totalorder %s32, 1
    %s34 = scalar_select %p33, 0, %s32
    %s35 = sadd.s32 1, %s17
    %s36 = scalar_select %p33, %s35, %s17
    %p37 = scmp.ge.s32.totalorder %s36, 1
    %s38 = scalar_select %p37, 0, %s36
    %s39 = sadd.s32 1, %s16
    %s40 = scalar_select %p37, %s39, %s16
    %p41 = scmp.ge.s32.totalorder %s40, 1
    %s42 = scalar_select %p41, 0, %s40
    %s43 = ssub.s32 %s16, %s42
    %s44 = ssub.s32 %s17, %s38
    %s45 = sor.u32 %s43, %s44
    %s46 = ssub.s32 %s19, %s30
    %s47 = sor.u32 %s45, %s46
    %p48 = scmp.eq.s32.totalorder %s47, 0
    %s50 = sadd.s32 %s49, 1
    %s51 = scalar_select %p48, %s49, %s50
    %p54 = pneg %p48
    %p55 = scmp.eq.s32.totalorder %s9, 3
    %p56 = por %p54, %p55
    %p57 = scmp.ne.s32.totalorder %s49, %s52
    %p58 = scmp.eq.s32.totalorder %s9, 0
    %p59 = por %p57, %p58
    %p60 = scmp.ne.s32.totalorder %s49, %s52
    %p61 = scmp.eq.s32.totalorder %s14, 3
    %p62 = por %p60, %p61
    %p63 = scmp.ne.s32.totalorder %s52, %s53
    %p64 = scmp.eq.s32.totalorder %s14, 0
    %p65 = por %p63, %p64
    %p66 = scmp.ne.s32.totalorder %s52, %s53
    %p67 = scmp.eq.s32.totalorder %s15, 3
    %p68 = por %p66, %p67
    %p70 = scmp.ne.s32.totalorder %s53, %s69
    %p71 = scmp.eq.s32.totalorder %s15, 0
    %p72 = por %p70, %p71
    %s73 = ssub.s32 %s16, %s42
    %s74 = ssub.s32 %s19, %s30
    %s75 = sor.u32 %s73, %s74
    %s76 = ssub.s32 %s18, %s34
    %s77 = sor.u32 %s75, %s76
    %p78 = scmp.eq.s32.totalorder %s77, 0
    %s80 = sadd.s32 %s79, 1
    %s81 = scalar_select %p78, %s79, %s80
    %p84 = pneg %p78
    %p85 = scmp.eq.s32.totalorder %s9, 3
    %p86 = por %p84, %p85
    %p87 = scmp.ne.s32.totalorder %s79, %s82
    %p88 = scmp.eq.s32.totalorder %s9, 0
    %p89 = por %p87, %p88
    %p90 = scmp.ne.s32.totalorder %s79, %s82
    %p91 = scmp.eq.s32.totalorder %s14, 3
    %p92 = por %p90, %p91
    %p93 = scmp.ne.s32.totalorder %s82, %s83
    %p94 = scmp.eq.s32.totalorder %s14, 0
    %p95 = por %p93, %p94
    %p96 = scmp.ne.s32.totalorder %s82, %s83
    %p97 = scmp.eq.s32.totalorder %s15, 3
    %p98 = por %p96, %p97
    %p100 = scmp.ne.s32.totalorder %s83, %s99
    %p101 = scmp.eq.s32.totalorder %s15, 0
    %p102 = por %p100, %p101
    %s103 = ssub.s32 %s16, %s42
    %s104 = ssub.s32 %s18, %s34
    %s105 = sor.u32 %s103, %s104
    %p106 = scmp.eq.s32.totalorder %s105, 0
    %s108 = sadd.s32 %s107, 1
    %s109 = scalar_select %p106, %s107, %s108
    %p112 = pneg %p106
    %p113 = scmp.eq.s32.totalorder %s9, 3
    %p114 = por %p112, %p113
    %p115 = scmp.ne.s32.totalorder %s107, %s110
    %p116 = scmp.eq.s32.totalorder %s9, 0
    %p117 = por %p115, %p116
    %p118 = scmp.ne.s32.totalorder %s107, %s110
    %p119 = scmp.eq.s32.totalorder %s14, 3
    %p120 = por %p118, %p119
    %p121 = scmp.ne.s32.totalorder %s110, %s111
    %p122 = scmp.eq.s32.totalorder %s14, 0
    %p123 = por %p121, %p122
    %p124 = scmp.ne.s32.totalorder %s110, %s111
    %p125 = scmp.eq.s32.totalorder %s15, 3
    %p126 = por %p124, %p125
    %p128 = scmp.ne.s32.totalorder %s111, %s127
    %p129 = scmp.eq.s32.totalorder %s15, 0
    %p130 = por %p128, %p129
    %s131 = ssub.s32 %s16, %s42
    %s132 = ssub.s32 %s17, %s38
    %s133 = sor.u32 %s131, %s132
    %s134 = ssub.s32 %s18, %s34
    %s135 = sor.u32 %s133, %s134
    %p136 = scmp.eq.s32.totalorder %s135, 0
    %s138 = sadd.s32 %s137, 1
    %s139 = scalar_select %p136, %s137, %s138
    %p142 = pneg %p136
    %p143 = scmp.eq.s32.totalorder %s9, 3
    %p144 = por %p142, %p143
    %p145 = scmp.ne.s32.totalorder %s137, %s140
    %p146 = scmp.eq.s32.totalorder %s9, 0
    %p147 = por %p145, %p146
    %p148 = scmp.ne.s32.totalorder %s137, %s140
    %p149 = scmp.eq.s32.totalorder %s14, 3
    %p150 = por %p148, %p149
    %p151 = scmp.ne.s32.totalorder %s140, %s141
    %p152 = scmp.eq.s32.totalorder %s14, 0
    %p153 = por %p151, %p152
    %p154 = scmp.ne.s32.totalorder %s140, %s141
    %p155 = scmp.eq.s32.totalorder %s15, 3
    %p156 = por %p154, %p155
    %p158 = scmp.ne.s32.totalorder %s141, %s157
    %p159 = scmp.eq.s32.totalorder %s15, 0
    %p160 = por %p158, %p159
    %p161 = scmp.le.s32.totalorder 1, %s9
    %p162 = scmp.lt.s32.totalorder %s9, 5
    %p163 = pnand %p161, %p162
    %p164 = pneg %p163
    // Predicated region
    $region9: #{closed_call.220} parent=5 // pred_check
      _
    $region10: #{closed_call.220} parent=5 // pred_check_branch
      %166 = sbr.rel (%p163) target = $region12
    $region11: #{closed_call.220} parent=5 // pred_region
      %s167 = ssub.s32 %s9, 1
      // Predicated region
      $region13: #{closed_call.220} parent=11 // pred_check
        %p168 = pneg %p123
      $region14: #{closed_call.220} parent=11 // pred_check_branch
        %170 = sbr.rel (%p168) target = $region16
      $region15: #{closed_call.220} parent=11 // pred_region
        %p171 = scmp.lt.s32.totalorder %s20, 0
        %s172 = scalar_select %p171, %s20, 0
        %p173 = scmp.lt.s32.totalorder %s22, 0
        %s174 = scalar_select %p173, %s22, 0
        %s175 = sadd.s32 %s174, %s172
        %s176 = scalar_lea.vmem %s2, %s175
      $region16: #{closed_call.220} parent=11 // pred_fallthru
        _
    $region12: #{closed_call.220} parent=5 // pred_fallthru
      _
    %p177 = scmp.lt.s32.totalorder %s9, 4
    // Predicated region
    $region17: #{closed_call.220} parent=5 // pred_check
      %p178 = pneg %p177
    $region18: #{closed_call.220} parent=5 // pred_check_branch
      %180 = sbr.rel (%p178) target = $region20
    $region19: #{closed_call.220} parent=5 // pred_region
      // Predicated region
      $region21: #{closed_call.220} parent=19 // pred_check
        %p181 = pneg %p59
      $region22: #{closed_call.220} parent=19 // pred_check_branch
        %183 = sbr.rel (%p181) target = $region24
      $region23: #{closed_call.220} parent=19 // pred_region
        %s184 = smul.u32 4, %s19
        %p185 = scmp.lt.s32.totalorder %s16, 0
        %s186 = scalar_select %p185, %s16, 0
        %p187 = scmp.lt.s32.totalorder %s17, 0
        %s188 = scalar_select %p187, %s17, 0
        %p189 = scmp.lt.s32.totalorder %s184, 15
        %s190 = scalar_select %p189, %s184, 15
        %s191 = smul.addr %s188, 16
        %s192 = sadd.s32 %s190, %s191
        %s193 = smul.addr %s186, 16
        %s194 = sadd.s32 %s192, %s193
        %s195 = smul.addr %s194, 4
        %s196 = scalar_lea.vmem %s0, %s195
        %s197 = smul.u32 4, %s19
      $region24: #{closed_call.220} parent=19 // pred_fallthru
        _
      // Predicated region
      $region25: #{closed_call.220} parent=19 // pred_check
        %p198 = pneg %p89
      $region26: #{closed_call.220} parent=19 // pred_check_branch
        %200 = sbr.rel (%p198) target = $region28
      $region27: #{closed_call.220} parent=19 // pred_region
        %s201 = smul.u32 64, %s19
        %p202 = scmp.lt.s32.totalorder %s16, 0
        %s203 = scalar_select %p202, %s16, 0
        %p204 = scmp.lt.s32.totalorder %s201, 255
        %s205 = scalar_select %p204, %s201, 255
        %p206 = scmp.lt.s32.totalorder %s18, 0
        %s207 = scalar_select %p206, %s18, 0
        %s208 = sadd.s32 %s207, %s205
        %s209 = smul.addr %s203, 256
        %s210 = sadd.s32 %s208, %s209
        %s211 = smul.addr %s210, 4
        %s212 = scalar_lea.vmem %s1, %s211
        %s213 = smul.u32 64, %s19
      $region28: #{closed_call.220} parent=19 // pred_fallthru
        _
    $region20: #{closed_call.220} parent=5 // pred_fallthru
      _
    %p214 = scmp.le.s32.totalorder 1, %s9
    %p215 = scmp.lt.s32.totalorder %s9, 5
    %p216 = pnand %p214, %p215
    %p217 = pneg %p216
    // Predicated region
    $region29: #{closed_call.220} parent=5 // pred_check
      _
    $region30: #{closed_call.220} parent=5 // pred_check_branch
      %219 = sbr.rel (%p216) target = $region32
    $region31: #{closed_call.220} parent=5 // pred_region
      %s220 = ssub.s32 %s9, 1
      %s221 = smul.u32 4, %s23
      %p222 = scmp.lt.s32.totalorder %s20, 0
      %s223 = scalar_select %p222, %s20, 0
      %p224 = scmp.lt.s32.totalorder %s21, 0
      %s225 = scalar_select %p224, %s21, 0
      %p226 = scmp.lt.s32.totalorder %s221, 15
      %s227 = scalar_select %p226, %s221, 15
      %s228 = smul.addr %s225, 16
      %s229 = sadd.s32 %s227, %s228
      %s230 = smul.addr %s223, 16
      %s231 = sadd.s32 %s229, %s230
      %s232 = smul.addr %s231, 4
      %s233 = scalar_lea.vmem %s0, %s232
      %p234 = pneg %p65
      %p235 = pneg %p62
      %s236 = smul.u32 64, %s23
      %p237 = scmp.lt.s32.totalorder %s20, 0
      %s238 = scalar_select %p237, %s20, 0
      %p239 = scmp.lt.s32.totalorder %s236, 255
      %s240 = scalar_select %p239, %s236, 255
      %p241 = scmp.lt.s32.totalorder %s22, 0
      %s242 = scalar_select %p241, %s22, 0
      %s243 = sadd.s32 %s242, %s240
      %s244 = smul.addr %s238, 256
      %s245 = sadd.s32 %s243, %s244
      %s246 = smul.addr %s245, 4
      %s247 = scalar_lea.vmem %s1, %s246
      %p248 = pneg %p95
      %p249 = pneg %p92
      %p250 = scmp.lt.s32.totalorder %s20, 0
      %s251 = scalar_select %p250, %s20, 0
      %p252 = scmp.lt.s32.totalorder %s22, 0
      %s253 = scalar_select %p252, %s22, 0
      %s254 = sadd.s32 %s253, %s251
      %s255 = scalar_lea.vmem %s2, %s254
      %p256 = pneg %p123
      %p257 = pneg %p120
      %p258 = pneg %p153
      %p259 = pneg %p150
      %p260 = scmp.lt.s32.totalorder %s20, 0
      %s261 = scalar_select %p260, %s20, 0
      %p262 = scmp.lt.s32.totalorder %s21, 0
      %s263 = scalar_select %p262, %s21, 0
      %p264 = scmp.lt.s32.totalorder %s22, 0
      %s265 = scalar_select %p264, %s22, 0
      %s266 = sadd.s32 %s265, %s263
      %s267 = sadd.s32 %s266, %s261
      %s268 = smul.addr %s267, 8
      %s269 = scalar_lea.vmem %s3, %s268
      %s270 = smul.u32 4, %s23
      %p271 = scmp.lt.s32.totalorder %s20, 0
      %s272 = scalar_select %p271, %s20, 0
      %p273 = scmp.lt.s32.totalorder %s21, 0
      %s274 = scalar_select %p273, %s21, 0
      %p275 = scmp.lt.s32.totalorder %s270, 15
      %s276 = scalar_select %p275, %s270, 15
      %s277 = smul.addr %s274, 16
      %s278 = sadd.s32 %s276, %s277
      %s279 = smul.addr %s272, 16
      %s280 = sadd.s32 %s278, %s279
      %s281 = smul.addr %s280, 4
      %s282 = scalar_lea.vmem %s0, %s281
      %s283 = smul.u32 4, %s23
      %s284 = smul.u32 64, %s23
      %p285 = scmp.lt.s32.totalorder %s20, 0
      %s286 = scalar_select %p285, %s20, 0
      %p287 = scmp.lt.s32.totalorder %s284, 255
      %s288 = scalar_select %p287, %s284, 255
      %p289 = scmp.lt.s32.totalorder %s22, 0
      %s290 = scalar_select %p289, %s22, 0
      %s291 = sadd.s32 %s290, %s288
      %s292 = smul.addr %s286, 256
      %s293 = sadd.s32 %s291, %s292
      %s294 = smul.addr %s293, 4
      %s295 = scalar_lea.vmem %s1, %s294
      %s296 = smul.u32 64, %s23
      %p297 = scmp.lt.s32.totalorder %s20, 0
      %s298 = scalar_select %p297, %s20, 0
      %p299 = scmp.lt.s32.totalorder %s22, 0
      %s300 = scalar_select %p299, %s22, 0
      %s301 = sadd.s32 %s300, %s298
      %s302 = scalar_lea.vmem %s2, %s301
      %p303 = scmp.lt.s32.totalorder %s20, 0
      %s304 = scalar_select %p303, %s20, 0
      %p305 = scmp.lt.s32.totalorder %s21, 0
      %s306 = scalar_select %p305, %s21, 0
      %p307 = scmp.lt.s32.totalorder %s22, 0
      %s308 = scalar_select %p307, %s22, 0
      %s309 = sadd.s32 %s308, %s306
      %s310 = sadd.s32 %s309, %s304
      %s311 = smul.addr %s310, 8
      %s312 = scalar_lea.vmem %s3, %s311
      %p313 = scmp.eq.s32.totalorder %s23, 0
      // Predicated region
      $region33: #{closed_call.220} parent=31 // pred_check
        %p314 = pneg %p313
      $region34: #{closed_call.220} parent=31 // pred_check_branch
        %316 = sbr.rel (%p314) target = $region36
      $region35: #{closed_call.220} parent=31 // pred_region
        %317 = vst [vmem:[#allocation2] sm:$0xff] 0.0
      $region36: #{closed_call.220} parent=31 // pred_fallthru
        _
      %v318 = vld [vmem:[#allocation2] sm:$0xff]
      %v319 = vld [vmem:[%s282] sm:$0xff]
      %v320 = vld [vmem:[%s282 + $0x8] sm:$0xff]
      %v321 = vld [vmem:[%s295] sm:$0xf]
      %v322 = vld [vmem:[%s295 + $0x4] sm:$0xf]
      %v323 = vld [vmem:[%s295 + $0x8] sm:$0xf]
      %v324 = vld [vmem:[%s295 + $0xc] sm:$0xf]
      %v325 = vld [vmem:[%s295 + $0x10] sm:$0xf]
      %v326 = vld [vmem:[%s295 + $0x14] sm:$0xf]
      %v327 = vld [vmem:[%s295 + $0x18] sm:$0xf]
      %v328 = vld [vmem:[%s295 + $0x1c] sm:$0xf]
      %v329 = vld [vmem:[%s295 + $0x20] sm:$0xf]
      %v330 = vld [vmem:[%s295 + $0x24] sm:$0xf]
      %v331 = vld [vmem:[%s295 + $0x28] sm:$0xf]
      %v332 = vld [vmem:[%s295 + $0x2c] sm:$0xf]
      %v333 = vld [vmem:[%s295 + $0x30] sm:$0xf]
      %v334 = vld [vmem:[%s295 + $0x34] sm:$0xf]
      %v335 = vld [vmem:[%s295 + $0x38] sm:$0xf]
      %v336 = vld [vmem:[%s295 + $0x3c] sm:$0xf]
      %v337 = vld [vmem:[%s295 + $0x40] sm:$0xf]
      %v338 = vld [vmem:[%s295 + $0x44] sm:$0xf]
      %v339 = vld [vmem:[%s295 + $0x48] sm:$0xf]
      %v340 = vld [vmem:[%s295 + $0x4c] sm:$0xf]
      %v341 = vld [vmem:[%s295 + $0x50] sm:$0xf]
      %v342 = vld [vmem:[%s295 + $0x54] sm:$0xf]
      %v343 = vld [vmem:[%s295 + $0x58] sm:$0xf]
      %v344 = vld [vmem:[%s295 + $0x5c] sm:$0xf]
      %v345 = vld [vmem:[%s295 + $0x60] sm:$0xf]
      %v346 = vld [vmem:[%s295 + $0x64] sm:$0xf]
      %v347 = vld [vmem:[%s295 + $0x68] sm:$0xf]
      %v348 = vld [vmem:[%s295 + $0x6c] sm:$0xf]
      %v349 = vld [vmem:[%s295 + $0x70] sm:$0xf]
      %v350 = vld [vmem:[%s295 + $0x74] sm:$0xf]
      %v351 = vld [vmem:[%s295 + $0x78] sm:$0xf]
      %v352 = vld [vmem:[%s295 + $0x7c] sm:$0xf]
      %v353 = vld [vmem:[%s295 + $0x80] sm:$0xf]
      %v354 = vld [vmem:[%s295 + $0x84] sm:$0xf]
      %v355 = vld [vmem:[%s295 + $0x88] sm:$0xf]
      %v356 = vld [vmem:[%s295 + $0x8c] sm:$0xf]
      %v357 = vld [vmem:[%s295 + $0x90] sm:$0xf]
      %v358 = vld [vmem:[%s295 + $0x94] sm:$0xf]
      %v359 = vld [vmem:[%s295 + $0x98] sm:$0xf]
      %v360 = vld [vmem:[%s295 + $0x9c] sm:$0xf]
      %v361 = vld [vmem:[%s295 + $0xa0] sm:$0xf]
      %v362 = vld [vmem:[%s295 + $0xa4] sm:$0xf]
      %v363 = vld [vmem:[%s295 + $0xa8] sm:$0xf]
      %v364 = vld [vmem:[%s295 + $0xac] sm:$0xf]
      %v365 = vld [vmem:[%s295 + $0xb0] sm:$0xf]
      %v366 = vld [vmem:[%s295 + $0xb4] sm:$0xf]
      %v367 = vld [vmem:[%s295 + $0xb8] sm:$0xf]
      %v368 = vld [vmem:[%s295 + $0xbc] sm:$0xf]
      %v369 = vld [vmem:[%s295 + $0xc0] sm:$0xf]
      %v370 = vld [vmem:[%s295 + $0xc4] sm:$0xf]
      %v371 = vld [vmem:[%s295 + $0xc8] sm:$0xf]
      %v372 = vld [vmem:[%s295 + $0xcc] sm:$0xf]
      %v373 = vld [vmem:[%s295 + $0xd0] sm:$0xf]
      %v374 = vld [vmem:[%s295 + $0xd4] sm:$0xf]
      %v375 = vld [vmem:[%s295 + $0xd8] sm:$0xf]
      %v376 = vld [vmem:[%s295 + $0xdc] sm:$0xf]
      %v377 = vld [vmem:[%s295 + $0xe0] sm:$0xf]
      %v378 = vld [vmem:[%s295 + $0xe4] sm:$0xf]
      %v379 = vld [vmem:[%s295 + $0xe8] sm:$0xf]
      %v380 = vld [vmem:[%s295 + $0xec] sm:$0xf]
      %v381 = vld [vmem:[%s295 + $0xf0] sm:$0xf]
      %v382 = vld [vmem:[%s295 + $0xf4] sm:$0xf]
      %v383 = vld [vmem:[%s295 + $0xf8] sm:$0xf]
      %v384 = vld [vmem:[%s295 + $0xfc] sm:$0xf]
      %v387 = vunpack.c.l.b16 %v319
      %v388 = vunpack.c.h.b16 %v319
      %v389 = vunpack.c.l.b16 %v320
      %v390 = vunpack.c.h.b16 %v320
      %v391 = vpack.c.b16 %v387, %v387
      %v392 = vpack.c.b16 %v388, %v388
      %v393 = vpack.c.b16 %v389, %v389
      %v394 = vpack.c.b16 %v390, %v390
      %v463 = vunpack.c.l.b16 %v321
      %v464 = vunpack.c.l.b16 %v322
      %v465 = vunpack.c.l.b16 %v323
      %v466 = vunpack.c.l.b16 %v324
      %v467 = vunpack.c.l.b16 %v325
      %v468 = vunpack.c.l.b16 %v326
      %v469 = vunpack.c.l.b16 %v327
      %v470 = vunpack.c.l.b16 %v328
      %v471 = vunpack.c.l.b16 %v329
      %v472 = vunpack.c.l.b16 %v330
      %v473 = vunpack.c.l.b16 %v331
      %v474 = vunpack.c.l.b16 %v332
      %v475 = vunpack.c.l.b16 %v333
      %v476 = vunpack.c.l.b16 %v334
      %v477 = vunpack.c.l.b16 %v335
      %v478 = vunpack.c.l.b16 %v336
      %v479 = vunpack.c.l.b16 %v337
      %v480 = vunpack.c.l.b16 %v338
      %v481 = vunpack.c.l.b16 %v339
      %v482 = vunpack.c.l.b16 %v340
      %v483 = vunpack.c.l.b16 %v341
      %v484 = vunpack.c.l.b16 %v342
      %v485 = vunpack.c.l.b16 %v343
      %v486 = vunpack.c.l.b16 %v344
      %v487 = vunpack.c.l.b16 %v345
      %v488 = vunpack.c.l.b16 %v346
      %v489 = vunpack.c.l.b16 %v347
      %v490 = vunpack.c.l.b16 %v348
      %v491 = vunpack.c.l.b16 %v349
      %v492 = vunpack.c.l.b16 %v350
      %v493 = vunpack.c.l.b16 %v351
      %v494 = vunpack.c.l.b16 %v352
      %v495 = vunpack.c.l.b16 %v353
      %v496 = vunpack.c.l.b16 %v354
      %v497 = vunpack.c.l.b16 %v355
      %v498 = vunpack.c.l.b16 %v356
      %v499 = vunpack.c.l.b16 %v357
      %v500 = vunpack.c.l.b16 %v358
      %v501 = vunpack.c.l.b16 %v359
      %v502 = vunpack.c.l.b16 %v360
      %v503 = vunpack.c.l.b16 %v361
      %v504 = vunpack.c.l.b16 %v362
      %v505 = vunpack.c.l.b16 %v363
      %v506 = vunpack.c.l.b16 %v364
      %v507 = vunpack.c.l.b16 %v365
      %v508 = vunpack.c.l.b16 %v366
      %v509 = vunpack.c.l.b16 %v367
      %v510 = vunpack.c.l.b16 %v368
      %v511 = vunpack.c.l.b16 %v369
      %v512 = vunpack.c.l.b16 %v370
      %v513 = vunpack.c.l.b16 %v371
      %v514 = vunpack.c.l.b16 %v372
      %v515 = vunpack.c.l.b16 %v373
      %v516 = vunpack.c.l.b16 %v374
      %v517 = vunpack.c.l.b16 %v375
      %v518 = vunpack.c.l.b16 %v376
      %v519 = vunpack.c.l.b16 %v377
      %v520 = vunpack.c.l.b16 %v378
      %v521 = vunpack.c.l.b16 %v379
      %v522 = vunpack.c.l.b16 %v380
      %v523 = vunpack.c.l.b16 %v381
      %v524 = vunpack.c.l.b16 %v382
      %v525 = vunpack.c.l.b16 %v383
      %v526 = vunpack.c.l.b16 %v384
      %v527 = vpack.c.b16 %v464, %v463
      %v528 = vpack.c.b16 %v466, %v465
      %v529 = vpack.c.b16 %v468, %v467
      %v530 = vpack.c.b16 %v470, %v469
      %v531 = vpack.c.b16 %v472, %v471
      %v532 = vpack.c.b16 %v474, %v473
      %v533 = vpack.c.b16 %v476, %v475
      %v534 = vpack.c.b16 %v478, %v477
      %v535 = vpack.c.b16 %v480, %v479
      %v536 = vpack.c.b16 %v482, %v481
      %v537 = vpack.c.b16 %v484, %v483
      %v538 = vpack.c.b16 %v486, %v485
      %v539 = vpack.c.b16 %v488, %v487
      %v540 = vpack.c.b16 %v490, %v489
      %v541 = vpack.c.b16 %v492, %v491
      %v542 = vpack.c.b16 %v494, %v493
      %v543 = vpack.c.b16 %v496, %v495
      %v544 = vpack.c.b16 %v498, %v497
      %v545 = vpack.c.b16 %v500, %v499
      %v546 = vpack.c.b16 %v502, %v501
      %v547 = vpack.c.b16 %v504, %v503
      %v548 = vpack.c.b16 %v506, %v505
      %v549 = vpack.c.b16 %v508, %v507
      %v550 = vpack.c.b16 %v510, %v509
      %v551 = vpack.c.b16 %v512, %v511
      %v552 = vpack.c.b16 %v514, %v513
      %v553 = vpack.c.b16 %v516, %v515
      %v554 = vpack.c.b16 %v518, %v517
      %v555 = vpack.c.b16 %v520, %v519
      %v556 = vpack.c.b16 %v522, %v521
      %v557 = vpack.c.b16 %v524, %v523
      %v558 = vpack.c.b16 %v526, %v525
      %591 = vmatpush.bf16.msra.mxu0 %v534
      %592 = vmatpush.bf16.msra.mxu0 %v533
      %593 = vmatpush.bf16.msra.mxu0 %v532
      %594 = vmatpush.bf16.msra.mxu0 %v531
      %595 = vmatpush.bf16.msra.mxu0 %v530
      %596 = vmatpush.bf16.msra.mxu0 %v529
      %597 = vmatpush.bf16.msra.mxu0 %v528
      %598 = vmatpush.bf16.msra.mxu0 %v527
      %599 = vmatmul.bf16.gmra.mxu0 %v391
      %v600 = vpop.f32.mrf.mxu0
      %v601 = vadd.f32 0.0, %v600
      %v602 = vpop.f32.mrf.mxu0
      %603 = vdwg.mxu0
      %604 = vmatpush.bf16.msra.mxu0 %v542
      %605 = vmatpush.bf16.msra.mxu0 %v541
      %606 = vmatpush.bf16.msra.mxu0 %v540
      %607 = vmatpush.bf16.msra.mxu0 %v539
      %608 = vmatpush.bf16.msra.mxu0 %v538
      %609 = vmatpush.bf16.msra.mxu0 %v537
      %610 = vmatpush.bf16.msra.mxu0 %v536
      %611 = vmatpush.bf16.msra.mxu0 %v535
      %612 = vmatmul.bf16.gmra.mxu0 %v392
      %v613 = vpop.f32.mrf.mxu0
      %v614 = vadd.f32 %v601, %v613
      %v615 = vpop.f32.mrf.mxu0
      %616 = vdwg.mxu0
      %617 = vmatpush.bf16.msra.mxu0 %v550
      %618 = vmatpush.bf16.msra.mxu0 %v549
      %619 = vmatpush.bf16.msra.mxu0 %v548
      %620 = vmatpush.bf16.msra.mxu0 %v547
      %621 = vmatpush.bf16.msra.mxu0 %v546
      %622 = vmatpush.bf16.msra.mxu0 %v545
      %623 = vmatpush.bf16.msra.mxu0 %v544
      %624 = vmatpush.bf16.msra.mxu0 %v543
      %625 = vmatmul.bf16.gmra.mxu0 %v393
      %v626 = vpop.f32.mrf.mxu0
      %v627 = vadd.f32 %v614, %v626
      %v628 = vpop.f32.mrf.mxu0
      %629 = vdwg.mxu0
      %630 = vmatpush.bf16.msra.mxu0 %v558
      %631 = vmatpush.bf16.msra.mxu0 %v557
      %632 = vmatpush.bf16.msra.mxu0 %v556
      %633 = vmatpush.bf16.msra.mxu0 %v555
      %634 = vmatpush.bf16.msra.mxu0 %v554
      %635 = vmatpush.bf16.msra.mxu0 %v553
      %636 = vmatpush.bf16.msra.mxu0 %v552
      %637 = vmatpush.bf16.msra.mxu0 %v551
      %638 = vmatmul.bf16.gmra.mxu0 %v394
      %v639 = vpop.f32.mrf.mxu0
      %v640 = vadd.f32 %v627, %v639
      %v641 = vpop.f32.mrf.mxu0
      %642 = vdwg.mxu0
      %v643 = vadd.f32 %v318, %v640
      %644 = vst [vmem:[#allocation2] sm:$0xff] %v643
      %p645 = scmp.eq.s32.totalorder %s23, 3
      // Predicated region
      $region37: #{closed_call.220} parent=31 // pred_check
        %p646 = pneg %p645
      $region38: #{closed_call.220} parent=31 // pred_check_branch
        %648 = sbr.rel (%p646) target = $region40
      $region39: #{closed_call.220} parent=31 // pred_region
        %v649 = vld [vmem:[#allocation2] sm:$0xff]
        %v650 = vld [vmem:[%s302] sm:$0x1]
        %v652 = vperm.slane %v650, 0
        %v654 = vadd.f32 %v649, %v652
        %vm655 = vcmp.gt.f32.partialorder %v654, 0.0
        %v656 = vmul.f32 %v654, 0.2
        %v657 = vsel %vm655, %v654, %v656
        %658 = vst [vmem:[%s312] sm:$0xff] %v657
      $region40: #{closed_call.220} parent=31 // pred_fallthru
        _
      %p659 = scmp.lt.s32.totalorder %s20, 0
      %s660 = scalar_select %p659, %s20, 0
      %p661 = scmp.lt.s32.totalorder %s21, 0
      %s662 = scalar_select %p661, %s21, 0
      %p663 = scmp.lt.s32.totalorder %s22, 0
      %s664 = scalar_select %p663, %s22, 0
      %s665 = sadd.s32 %s664, %s662
      %s666 = sadd.s32 %s665, %s660
      %s667 = smul.addr %s666, 8
      %s668 = scalar_lea.vmem %s3, %s667
      // Predicated region
      $region41: #{closed_call.220} parent=31 // pred_check
        %p669 = pneg %p150
      $region42: #{closed_call.220} parent=31 // pred_check_branch
        %671 = sbr.rel (%p669) target = $region44
      $region43: #{closed_call.220} parent=31 // pred_region
        _
      $region44: #{closed_call.220} parent=31 // pred_fallthru
        _
      // Predicated region
      $region45: #{closed_call.220} parent=31 // pred_check
        %p672 = pneg %p150
      $region46: #{closed_call.220} parent=31 // pred_check_branch
        %674 = sbr.rel (%p672) target = $region48
      $region47: #{closed_call.220} parent=31 // pred_region
        %p675 = scmp.lt.s32.totalorder %s20, 0
        %s676 = scalar_select %p675, %s20, 0
        %p677 = scmp.lt.s32.totalorder %s21, 0
        %s678 = scalar_select %p677, %s21, 0
        %p679 = scmp.lt.s32.totalorder %s22, 0
        %s680 = scalar_select %p679, %s22, 0
        %s681 = sadd.s32 %s680, %s678
        %s682 = sadd.s32 %s681, %s676
        %s683 = smul.addr %s682, 8
        %s684 = scalar_lea.vmem %s3, %s683
      $region48: #{closed_call.220} parent=31 // pred_fallthru
        _
    $region32: #{closed_call.220} parent=5 // pred_fallthru
      _
    %p685 = scmp.le.s32.totalorder 2, %s9
    // Predicated region
    $region49: #{closed_call.220} parent=5 // pred_check
      %p686 = pneg %p685
    $region50: #{closed_call.220} parent=5 // pred_check_branch
      %688 = sbr.rel (%p686) target = $region52
    $region51: #{closed_call.220} parent=5 // pred_region
      %s689 = ssub.s32 %s9, 2
    $region52: #{closed_call.220} parent=5 // pred_fallthru
      _
  $region6: #{closed_call.220} parent=0 // loop_footer
    %s13 = sadd.s32 1, %s9
  $region7: #{closed_call.220} parent=0 // loop_footer_branch
    %8 = sbr.rel target = $region3
  $region8: #{closed_call.220} parent=0 // loop_exit
    _

// kernel: closed_call.221
$region0: #{closed_call.221}
  #allocation0 [shape = 'u32[]', space=smem, size = 0x4, offset = 0x4, fixed_abs, tag = 'smem constant byte address 0x4 - core index']
  #allocation1 [shape = 'u32[72,128]{1,0:T(1,128)}', space=vmem, size = 0x9000, scoped, tag = 'internal scratch']
  #allocation2 [shape = 'f32[8,128]{1,0:T(8,128)}', space=vmem, size = 0x1000, scoped, tag = 'scratch operand']
  %s0 = inlined_call_operand.vmem [shape: bf16[1,8,2304], index: 0, kind: input, shape index: {}]
  %s1 = inlined_call_operand.vmem [shape: bf16[1,2304,128], index: 1, kind: input, shape index: {}]
  %s2 = inlined_call_operand.vmem [shape: f32[1,1,128], index: 2, kind: input, shape index: {}]
  %s3 = inlined_call_operand.vmem [shape: f32[1,8,128], index: 3, kind: output, shape index: {}]
  %s4 = sld [smem:[#allocation0]]
  $region53: #{closed_call.221} parent=0
    _
  %s6 = ssub.s32 1, %s4
  %s7 = scalar_select 0, %s6, %s4
  loop: start=0, step=1, limit=11
  $region2: #{closed_call.221} parent=0 // loop_pre_header
    _
  $region3: #{closed_call.221} parent=0 // loop_header
    %s9 = sphi 0, %s13
    %p10 = scmp.ge.s32.totalorder %s9, 11
    %s16 = sphi 0, %s42
    %s17 = sphi 0, %s38
    %s18 = sphi 0, %s34
    %s19 = sphi 0, %s30
    %s20 = sphi 0, %s16
    %s21 = sphi 0, %s17
    %s22 = sphi 0, %s18
    %s23 = sphi 0, %s19
    %s24 = sphi 0, %s20
    %s25 = sphi 0, %s21
    %s26 = sphi 0, %s22
    %s27 = sphi 0, %s23
    %s49 = sphi 0, %s51
    %s52 = sphi 0, %s49
    %s53 = sphi 0, %s52
    %s69 = sphi 0, %s53
    %s79 = sphi 0, %s81
    %s82 = sphi 0, %s79
    %s83 = sphi 0, %s82
    %s99 = sphi 0, %s83
    %s107 = sphi 0, %s109
    %s110 = sphi 0, %s107
    %s111 = sphi 0, %s110
    %s127 = sphi 0, %s111
    %s137 = sphi 0, %s139
    %s140 = sphi 0, %s137
    %s141 = sphi 0, %s140
    %s157 = sphi 0, %s141
  $region4: #{closed_call.221} parent=0 // loop_header_branch
    %12 = sbr.rel (%p10) target = $region8
  $region5: #{closed_call.221} parent=0 // loop_body
    %s14 = ssub.s32 %s9, 1
    %s15 = ssub.s32 %s9, 2
    %s28 = sadd.s32 1, %s19
    %p29 = scmp.ge.s32.totalorder %s28, 9
    %s30 = scalar_select %p29, 0, %s28
    %s31 = sadd.s32 1, %s18
    %s32 = scalar_select %p29, %s31, %s18
    %p33 = scmp.ge.s32.totalorder %s32, 1
    %s34 = scalar_select %p33, 0, %s32
    %s35 = sadd.s32 1, %s17
    %s36 = scalar_select %p33, %s35, %s17
    %p37 = scmp.ge.s32.totalorder %s36, 1
    %s38 = scalar_select %p37, 0, %s36
    %s39 = sadd.s32 1, %s16
    %s40 = scalar_select %p37, %s39, %s16
    %p41 = scmp.ge.s32.totalorder %s40, 1
    %s42 = scalar_select %p41, 0, %s40
    %s43 = ssub.s32 %s16, %s42
    %s44 = ssub.s32 %s17, %s38
    %s45 = sor.u32 %s43, %s44
    %s46 = ssub.s32 %s19, %s30
    %s47 = sor.u32 %s45, %s46
    %p48 = scmp.eq.s32.totalorder %s47, 0
    %s50 = sadd.s32 %s49, 1
    %s51 = scalar_select %p48, %s49, %s50
    %p54 = pneg %p48
    %p55 = scmp.eq.s32.totalorder %s9, 8
    %p56 = por %p54, %p55
    %p57 = scmp.ne.s32.totalorder %s49, %s52
    %p58 = scmp.eq.s32.totalorder %s9, 0
    %p59 = por %p57, %p58
    %p60 = scmp.ne.s32.totalorder %s49, %s52
    %p61 = scmp.eq.s32.totalorder %s14, 8
    %p62 = por %p60, %p61
    %p63 = scmp.ne.s32.totalorder %s52, %s53
    %p64 = scmp.eq.s32.totalorder %s14, 0
    %p65 = por %p63, %p64
    %p66 = scmp.ne.s32.totalorder %s52, %s53
    %p67 = scmp.eq.s32.totalorder %s15, 8
    %p68 = por %p66, %p67
    %p70 = scmp.ne.s32.totalorder %s53, %s69
    %p71 = scmp.eq.s32.totalorder %s15, 0
    %p72 = por %p70, %p71
    %s73 = ssub.s32 %s16, %s42
    %s74 = ssub.s32 %s19, %s30
    %s75 = sor.u32 %s73, %s74
    %s76 = ssub.s32 %s18, %s34
    %s77 = sor.u32 %s75, %s76
    %p78 = scmp.eq.s32.totalorder %s77, 0
    %s80 = sadd.s32 %s79, 1
    %s81 = scalar_select %p78, %s79, %s80
    %p84 = pneg %p78
    %p85 = scmp.eq.s32.totalorder %s9, 8
    %p86 = por %p84, %p85
    %p87 = scmp.ne.s32.totalorder %s79, %s82
    %p88 = scmp.eq.s32.totalorder %s9, 0
    %p89 = por %p87, %p88
    %p90 = scmp.ne.s32.totalorder %s79, %s82
    %p91 = scmp.eq.s32.totalorder %s14, 8
    %p92 = por %p90, %p91
    %p93 = scmp.ne.s32.totalorder %s82, %s83
    %p94 = scmp.eq.s32.totalorder %s14, 0
    %p95 = por %p93, %p94
    %p96 = scmp.ne.s32.totalorder %s82, %s83
    %p97 = scmp.eq.s32.totalorder %s15, 8
    %p98 = por %p96, %p97
    %p100 = scmp.ne.s32.totalorder %s83, %s99
    %p101 = scmp.eq.s32.totalorder %s15, 0
    %p102 = por %p100, %p101
    %s103 = ssub.s32 %s16, %s42
    %s104 = ssub.s32 %s18, %s34
    %s105 = sor.u32 %s103, %s104
    %p106 = scmp.eq.s32.totalorder %s105, 0
    %s108 = sadd.s32 %s107, 1
    %s109 = scalar_select %p106, %s107, %s108
    %p112 = pneg %p106
    %p113 = scmp.eq.s32.totalorder %s9, 8
    %p114 = por %p112, %p113
    %p115 = scmp.ne.s32.totalorder %s107, %s110
    %p116 = scmp.eq.s32.totalorder %s9, 0
    %p117 = por %p115, %p116
    %p118 = scmp.ne.s32.totalorder %s107, %s110
    %p119 = scmp.eq.s32.totalorder %s14, 8
    %p120 = por %p118, %p119
    %p121 = scmp.ne.s32.totalorder %s110, %s111
    %p122 = scmp.eq.s32.totalorder %s14, 0
    %p123 = por %p121, %p122
    %p124 = scmp.ne.s32.totalorder %s110, %s111
    %p125 = scmp.eq.s32.totalorder %s15, 8
    %p126 = por %p124, %p125
    %p128 = scmp.ne.s32.totalorder %s111, %s127
    %p129 = scmp.eq.s32.totalorder %s15, 0
    %p130 = por %p128, %p129
    %s131 = ssub.s32 %s16, %s42
    %s132 = ssub.s32 %s17, %s38
    %s133 = sor.u32 %s131, %s132
    %s134 = ssub.s32 %s18, %s34
    %s135 = sor.u32 %s133, %s134
    %p136 = scmp.eq.s32.totalorder %s135, 0
    %s138 = sadd.s32 %s137, 1
    %s139 = scalar_select %p136, %s137, %s138
    %p142 = pneg %p136
    %p143 = scmp.eq.s32.totalorder %s9, 8
    %p144 = por %p142, %p143
    %p145 = scmp.ne.s32.totalorder %s137, %s140
    %p146 = scmp.eq.s32.totalorder %s9, 0
    %p147 = por %p145, %p146
    %p148 = scmp.ne.s32.totalorder %s137, %s140
    %p149 = scmp.eq.s32.totalorder %s14, 8
    %p150 = por %p148, %p149
    %p151 = scmp.ne.s32.totalorder %s140, %s141
    %p152 = scmp.eq.s32.totalorder %s14, 0
    %p153 = por %p151, %p152
    %p154 = scmp.ne.s32.totalorder %s140, %s141
    %p155 = scmp.eq.s32.totalorder %s15, 8
    %p156 = por %p154, %p155
    %p158 = scmp.ne.s32.totalorder %s141, %s157
    %p159 = scmp.eq.s32.totalorder %s15, 0
    %p160 = por %p158, %p159
    %p161 = scmp.le.s32.totalorder 1, %s9
    %p162 = scmp.lt.s32.totalorder %s9, 10
    %p163 = pnand %p161, %p162
    %p164 = pneg %p163
    // Predicated region
    $region9: #{closed_call.221} parent=5 // pred_check
      _
    $region10: #{closed_call.221} parent=5 // pred_check_branch
      %166 = sbr.rel (%p163) target = $region12
    $region11: #{closed_call.221} parent=5 // pred_region
      %s167 = ssub.s32 %s9, 1
      // Predicated region
      $region13: #{closed_call.221} parent=11 // pred_check
        %p168 = pneg %p123
      $region14: #{closed_call.221} parent=11 // pred_check_branch
        %170 = sbr.rel (%p168) target = $region16
      $region15: #{closed_call.221} parent=11 // pred_region
        %p171 = scmp.lt.s32.totalorder %s20, 0
        %s172 = scalar_select %p171, %s20, 0
        %p173 = scmp.lt.s32.totalorder %s22, 0
        %s174 = scalar_select %p173, %s22, 0
        %s175 = sadd.s32 %s174, %s172
        %s176 = scalar_lea.vmem %s2, %s175
      $region16: #{closed_call.221} parent=11 // pred_fallthru
        _
    $region12: #{closed_call.221} parent=5 // pred_fallthru
      _
    %p177 = scmp.lt.s32.totalorder %s9, 9
    // Predicated region
    $region17: #{closed_call.221} parent=5 // pred_check
      %p178 = pneg %p177
    $region18: #{closed_call.221} parent=5 // pred_check_branch
      %180 = sbr.rel (%p178) target = $region20
    $region19: #{closed_call.221} parent=5 // pred_region
      // Predicated region
      $region21: #{closed_call.221} parent=19 // pred_check
        %p181 = pneg %p59
      $region22: #{closed_call.221} parent=19 // pred_check_branch
        %183 = sbr.rel (%p181) target = $region24
      $region23: #{closed_call.221} parent=19 // pred_region
        %s184 = smul.u32 2, %s19
        %p185 = scmp.lt.s32.totalorder %s16, 0
        %s186 = scalar_select %p185, %s16, 0
        %p187 = scmp.lt.s32.totalorder %s17, 0
        %s188 = scalar_select %p187, %s17, 0
        %p189 = scmp.lt.s32.totalorder %s184, 17
        %s190 = scalar_select %p189, %s184, 17
        %s191 = smul.addr %s188, 18
        %s192 = sadd.s32 %s190, %s191
        %s193 = smul.addr %s186, 18
        %s194 = sadd.s32 %s192, %s193
        %s195 = smul.addr %s194, 4
        %s196 = scalar_lea.vmem %s0, %s195
        %s197 = smul.u32 2, %s19
      $region24: #{closed_call.221} parent=19 // pred_fallthru
        _
      // Predicated region
      $region25: #{closed_call.221} parent=19 // pred_check
        %p198 = pneg %p89
      $region26: #{closed_call.221} parent=19 // pred_check_branch
        %200 = sbr.rel (%p198) target = $region28
      $region27: #{closed_call.221} parent=19 // pred_region
        %s201 = smul.u32 32, %s19
        %p202 = scmp.lt.s32.totalorder %s16, 0
        %s203 = scalar_select %p202, %s16, 0
        %p204 = scmp.lt.s32.totalorder %s201, 287
        %s205 = scalar_select %p204, %s201, 287
        %p206 = scmp.lt.s32.totalorder %s18, 0
        %s207 = scalar_select %p206, %s18, 0
        %s208 = sadd.s32 %s207, %s205
        %s209 = smul.addr %s203, 288
        %s210 = sadd.s32 %s208, %s209
        %s211 = smul.addr %s210, 4
        %s212 = scalar_lea.vmem %s1, %s211
        %s213 = smul.u32 32, %s19
      $region28: #{closed_call.221} parent=19 // pred_fallthru
        _
    $region20: #{closed_call.221} parent=5 // pred_fallthru
      _
    %p214 = scmp.le.s32.totalorder 1, %s9
    %p215 = scmp.lt.s32.totalorder %s9, 10
    %p216 = pnand %p214, %p215
    %p217 = pneg %p216
    // Predicated region
    $region29: #{closed_call.221} parent=5 // pred_check
      _
    $region30: #{closed_call.221} parent=5 // pred_check_branch
      %219 = sbr.rel (%p216) target = $region32
    $region31: #{closed_call.221} parent=5 // pred_region
      %s220 = ssub.s32 %s9, 1
      %s221 = smul.u32 2, %s23
      %p222 = scmp.lt.s32.totalorder %s20, 0
      %s223 = scalar_select %p222, %s20, 0
      %p224 = scmp.lt.s32.totalorder %s21, 0
      %s225 = scalar_select %p224, %s21, 0
      %p226 = scmp.lt.s32.totalorder %s221, 17
      %s227 = scalar_select %p226, %s221, 17
      %s228 = smul.addr %s225, 18
      %s229 = sadd.s32 %s227, %s228
      %s230 = smul.addr %s223, 18
      %s231 = sadd.s32 %s229, %s230
      %s232 = smul.addr %s231, 4
      %s233 = scalar_lea.vmem %s0, %s232
      %p234 = pneg %p65
      %p235 = pneg %p62
      %s236 = smul.u32 32, %s23
      %p237 = scmp.lt.s32.totalorder %s20, 0
      %s238 = scalar_select %p237, %s20, 0
      %p239 = scmp.lt.s32.totalorder %s236, 287
      %s240 = scalar_select %p239, %s236, 287
      %p241 = scmp.lt.s32.totalorder %s22, 0
      %s242 = scalar_select %p241, %s22, 0
      %s243 = sadd.s32 %s242, %s240
      %s244 = smul.addr %s238, 288
      %s245 = sadd.s32 %s243, %s244
      %s246 = smul.addr %s245, 4
      %s247 = scalar_lea.vmem %s1, %s246
      %p248 = pneg %p95
      %p249 = pneg %p92
      %p250 = scmp.lt.s32.totalorder %s20, 0
      %s251 = scalar_select %p250, %s20, 0
      %p252 = scmp.lt.s32.totalorder %s22, 0
      %s253 = scalar_select %p252, %s22, 0
      %s254 = sadd.s32 %s253, %s251
      %s255 = scalar_lea.vmem %s2, %s254
      %p256 = pneg %p123
      %p257 = pneg %p120
      %p258 = pneg %p153
      %p259 = pneg %p150
      %p260 = scmp.lt.s32.totalorder %s20, 0
      %s261 = scalar_select %p260, %s20, 0
      %p262 = scmp.lt.s32.totalorder %s21, 0
      %s263 = scalar_select %p262, %s21, 0
      %p264 = scmp.lt.s32.totalorder %s22, 0
      %s265 = scalar_select %p264, %s22, 0
      %s266 = sadd.s32 %s265, %s263
      %s267 = sadd.s32 %s266, %s261
      %s268 = smul.addr %s267, 8
      %s269 = scalar_lea.vmem %s3, %s268
      %s270 = smul.u32 2, %s23
      %p271 = scmp.lt.s32.totalorder %s20, 0
      %s272 = scalar_select %p271, %s20, 0
      %p273 = scmp.lt.s32.totalorder %s21, 0
      %s274 = scalar_select %p273, %s21, 0
      %p275 = scmp.lt.s32.totalorder %s270, 17
      %s276 = scalar_select %p275, %s270, 17
      %s277 = smul.addr %s274, 18
      %s278 = sadd.s32 %s276, %s277
      %s279 = smul.addr %s272, 18
      %s280 = sadd.s32 %s278, %s279
      %s281 = smul.addr %s280, 4
      %s282 = scalar_lea.vmem %s0, %s281
      %s283 = smul.u32 2, %s23
      %s284 = smul.u32 32, %s23
      %p285 = scmp.lt.s32.totalorder %s20, 0
      %s286 = scalar_select %p285, %s20, 0
      %p287 = scmp.lt.s32.totalorder %s284, 287
      %s288 = scalar_select %p287, %s284, 287
      %p289 = scmp.lt.s32.totalorder %s22, 0
      %s290 = scalar_select %p289, %s22, 0
      %s291 = sadd.s32 %s290, %s288
      %s292 = smul.addr %s286, 288
      %s293 = sadd.s32 %s291, %s292
      %s294 = smul.addr %s293, 4
      %s295 = scalar_lea.vmem %s1, %s294
      %s296 = smul.u32 32, %s23
      %p297 = scmp.lt.s32.totalorder %s20, 0
      %s298 = scalar_select %p297, %s20, 0
      %p299 = scmp.lt.s32.totalorder %s22, 0
      %s300 = scalar_select %p299, %s22, 0
      %s301 = sadd.s32 %s300, %s298
      %s302 = scalar_lea.vmem %s2, %s301
      %p303 = scmp.lt.s32.totalorder %s20, 0
      %s304 = scalar_select %p303, %s20, 0
      %p305 = scmp.lt.s32.totalorder %s21, 0
      %s306 = scalar_select %p305, %s21, 0
      %p307 = scmp.lt.s32.totalorder %s22, 0
      %s308 = scalar_select %p307, %s22, 0
      %s309 = sadd.s32 %s308, %s306
      %s310 = sadd.s32 %s309, %s304
      %s311 = smul.addr %s310, 8
      %s312 = scalar_lea.vmem %s3, %s311
      %p313 = scmp.eq.s32.totalorder %s23, 0
      // Predicated region
      $region33: #{closed_call.221} parent=31 // pred_check
        %p314 = pneg %p313
      $region34: #{closed_call.221} parent=31 // pred_check_branch
        %316 = sbr.rel (%p314) target = $region36
      $region35: #{closed_call.221} parent=31 // pred_region
        %317 = vst [vmem:[#allocation2] sm:$0xff] 0.0
      $region36: #{closed_call.221} parent=31 // pred_fallthru
        _
      %v318 = vld [vmem:[#allocation2] sm:$0xff]
      %v319 = vld [vmem:[%s282] sm:$0xff]
      %v320 = vld [vmem:[%s295] sm:$0xf]
      %v321 = vld [vmem:[%s295 + $0x4] sm:$0xf]
      %v322 = vld [vmem:[%s295 + $0x8] sm:$0xf]
      %v323 = vld [vmem:[%s295 + $0xc] sm:$0xf]
      %v324 = vld [vmem:[%s295 + $0x10] sm:$0xf]
      %v325 = vld [vmem:[%s295 + $0x14] sm:$0xf]
      %v326 = vld [vmem:[%s295 + $0x18] sm:$0xf]
      %v327 = vld [vmem:[%s295 + $0x1c] sm:$0xf]
      %v328 = vld [vmem:[%s295 + $0x20] sm:$0xf]
      %v329 = vld [vmem:[%s295 + $0x24] sm:$0xf]
      %v330 = vld [vmem:[%s295 + $0x28] sm:$0xf]
      %v331 = vld [vmem:[%s295 + $0x2c] sm:$0xf]
      %v332 = vld [vmem:[%s295 + $0x30] sm:$0xf]
      %v333 = vld [vmem:[%s295 + $0x34] sm:$0xf]
      %v334 = vld [vmem:[%s295 + $0x38] sm:$0xf]
      %v335 = vld [vmem:[%s295 + $0x3c] sm:$0xf]
      %v336 = vld [vmem:[%s295 + $0x40] sm:$0xf]
      %v337 = vld [vmem:[%s295 + $0x44] sm:$0xf]
      %v338 = vld [vmem:[%s295 + $0x48] sm:$0xf]
      %v339 = vld [vmem:[%s295 + $0x4c] sm:$0xf]
      %v340 = vld [vmem:[%s295 + $0x50] sm:$0xf]
      %v341 = vld [vmem:[%s295 + $0x54] sm:$0xf]
      %v342 = vld [vmem:[%s295 + $0x58] sm:$0xf]
      %v343 = vld [vmem:[%s295 + $0x5c] sm:$0xf]
      %v344 = vld [vmem:[%s295 + $0x60] sm:$0xf]
      %v345 = vld [vmem:[%s295 + $0x64] sm:$0xf]
      %v346 = vld [vmem:[%s295 + $0x68] sm:$0xf]
      %v347 = vld [vmem:[%s295 + $0x6c] sm:$0xf]
      %v348 = vld [vmem:[%s295 + $0x70] sm:$0xf]
      %v349 = vld [vmem:[%s295 + $0x74] sm:$0xf]
      %v350 = vld [vmem:[%s295 + $0x78] sm:$0xf]
      %v351 = vld [vmem:[%s295 + $0x7c] sm:$0xf]
      %v353 = vunpack.c.l.b16 %v319
      %v354 = vunpack.c.h.b16 %v319
      %v355 = vpack.c.b16 %v353, %v353
      %v356 = vpack.c.b16 %v354, %v354
      %v391 = vunpack.c.l.b16 %v320
      %v392 = vunpack.c.l.b16 %v321
      %v393 = vunpack.c.l.b16 %v322
      %v394 = vunpack.c.l.b16 %v323
      %v395 = vunpack.c.l.b16 %v324
      %v396 = vunpack.c.l.b16 %v325
      %v397 = vunpack.c.l.b16 %v326
      %v398 = vunpack.c.l.b16 %v327
      %v399 = vunpack.c.l.b16 %v328
      %v400 = vunpack.c.l.b16 %v329
      %v401 = vunpack.c.l.b16 %v330
      %v402 = vunpack.c.l.b16 %v331
      %v403 = vunpack.c.l.b16 %v332
      %v404 = vunpack.c.l.b16 %v333
      %v405 = vunpack.c.l.b16 %v334
      %v406 = vunpack.c.l.b16 %v335
      %v407 = vunpack.c.l.b16 %v336
      %v408 = vunpack.c.l.b16 %v337
      %v409 = vunpack.c.l.b16 %v338
      %v410 = vunpack.c.l.b16 %v339
      %v411 = vunpack.c.l.b16 %v340
      %v412 = vunpack.c.l.b16 %v341
      %v413 = vunpack.c.l.b16 %v342
      %v414 = vunpack.c.l.b16 %v343
      %v415 = vunpack.c.l.b16 %v344
      %v416 = vunpack.c.l.b16 %v345
      %v417 = vunpack.c.l.b16 %v346
      %v418 = vunpack.c.l.b16 %v347
      %v419 = vunpack.c.l.b16 %v348
      %v420 = vunpack.c.l.b16 %v349
      %v421 = vunpack.c.l.b16 %v350
      %v422 = vunpack.c.l.b16 %v351
      %v423 = vpack.c.b16 %v392, %v391
      %v424 = vpack.c.b16 %v394, %v393
      %v425 = vpack.c.b16 %v396, %v395
      %v426 = vpack.c.b16 %v398, %v397
      %v427 = vpack.c.b16 %v400, %v399
      %v428 = vpack.c.b16 %v402, %v401
      %v429 = vpack.c.b16 %v404, %v403
      %v430 = vpack.c.b16 %v406, %v405
      %v431 = vpack.c.b16 %v408, %v407
      %v432 = vpack.c.b16 %v410, %v409
      %v433 = vpack.c.b16 %v412, %v411
      %v434 = vpack.c.b16 %v414, %v413
      %v435 = vpack.c.b16 %v416, %v415
      %v436 = vpack.c.b16 %v418, %v417
      %v437 = vpack.c.b16 %v420, %v419
      %v438 = vpack.c.b16 %v422, %v421
      %455 = vmatpush.bf16.msra.mxu0 %v430
      %456 = vmatpush.bf16.msra.mxu0 %v429
      %457 = vmatpush.bf16.msra.mxu0 %v428
      %458 = vmatpush.bf16.msra.mxu0 %v427
      %459 = vmatpush.bf16.msra.mxu0 %v426
      %460 = vmatpush.bf16.msra.mxu0 %v425
      %461 = vmatpush.bf16.msra.mxu0 %v424
      %462 = vmatpush.bf16.msra.mxu0 %v423
      %463 = vmatmul.bf16.gmra.mxu0 %v355
      %v464 = vpop.f32.mrf.mxu0
      %v465 = vadd.f32 0.0, %v464
      %v466 = vpop.f32.mrf.mxu0
      %467 = vdwg.mxu0
      %468 = vmatpush.bf16.msra.mxu0 %v438
      %469 = vmatpush.bf16.msra.mxu0 %v437
      %470 = vmatpush.bf16.msra.mxu0 %v436
      %471 = vmatpush.bf16.msra.mxu0 %v435
      %472 = vmatpush.bf16.msra.mxu0 %v434
      %473 = vmatpush.bf16.msra.mxu0 %v433
      %474 = vmatpush.bf16.msra.mxu0 %v432
      %475 = vmatpush.bf16.msra.mxu0 %v431
      %476 = vmatmul.bf16.gmra.mxu0 %v356
      %v477 = vpop.f32.mrf.mxu0
      %v478 = vadd.f32 %v465, %v477
      %v479 = vpop.f32.mrf.mxu0
      %480 = vdwg.mxu0
      %v481 = vadd.f32 %v318, %v478
      %482 = vst [vmem:[#allocation2] sm:$0xff] %v481
      %p483 = scmp.eq.s32.totalorder %s23, 8
      // Predicated region
      $region37: #{closed_call.221} parent=31 // pred_check
        %p484 = pneg %p483
      $region38: #{closed_call.221} parent=31 // pred_check_branch
        %486 = sbr.rel (%p484) target = $region40
      $region39: #{closed_call.221} parent=31 // pred_region
        %v487 = vld [vmem:[#allocation2] sm:$0xff]
        %v488 = vld [vmem:[%s302] sm:$0x1]
        %v490 = vperm.slane %v488, 0
        %v492 = vadd.f32 %v487, %v490
        %vm493 = vcmp.gt.f32.partialorder %v492, 0.0
        %v494 = vmul.f32 %v492, 0.2
        %v495 = vsel %vm493, %v492, %v494
        %496 = vst [vmem:[%s312] sm:$0xff] %v495
      $region40: #{closed_call.221} parent=31 // pred_fallthru
        _
      %p497 = scmp.lt.s32.totalorder %s20, 0
      %s498 = scalar_select %p497, %s20, 0
      %p499 = scmp.lt.s32.totalorder %s21, 0
      %s500 = scalar_select %p499, %s21, 0
      %p501 = scmp.lt.s32.totalorder %s22, 0
      %s502 = scalar_select %p501, %s22, 0
      %s503 = sadd.s32 %s502, %s500
      %s504 = sadd.s32 %s503, %s498
      %s505 = smul.addr %s504, 8
      %s506 = scalar_lea.vmem %s3, %s505
      // Predicated region
      $region41: #{closed_call.221} parent=31 // pred_check
        %p507 = pneg %p150
      $region42: #{closed_call.221} parent=31 // pred_check_branch
        %509 = sbr.rel (%p507) target = $region44
      $region43: #{closed_call.221} parent=31 // pred_region
        _
      $region44: #{closed_call.221} parent=31 // pred_fallthru
        _
      // Predicated region
      $region45: #{closed_call.221} parent=31 // pred_check
        %p510 = pneg %p150
      $region46: #{closed_call.221} parent=31 // pred_check_branch
        %512 = sbr.rel (%p510) target = $region48
      $region47: #{closed_call.221} parent=31 // pred_region
        %p513 = scmp.lt.s32.totalorder %s20, 0
        %s514 = scalar_select %p513, %s20, 0
        %p515 = scmp.lt.s32.totalorder %s21, 0
        %s516 = scalar_select %p515, %s21, 0
        %p517 = scmp.lt.s32.totalorder %s22, 0
        %s518 = scalar_select %p517, %s22, 0
        %s519 = sadd.s32 %s518, %s516
        %s520 = sadd.s32 %s519, %s514
        %s521 = smul.addr %s520, 8
        %s522 = scalar_lea.vmem %s3, %s521
      $region48: #{closed_call.221} parent=31 // pred_fallthru
        _
    $region32: #{closed_call.221} parent=5 // pred_fallthru
      _
    %p523 = scmp.le.s32.totalorder 2, %s9
    // Predicated region
    $region49: #{closed_call.221} parent=5 // pred_check
      %p524 = pneg %p523
    $region50: #{closed_call.221} parent=5 // pred_check_branch
      %526 = sbr.rel (%p524) target = $region52
    $region51: #{closed_call.221} parent=5 // pred_region
      %s527 = ssub.s32 %s9, 2
    $region52: #{closed_call.221} parent=5 // pred_fallthru
      _
  $region6: #{closed_call.221} parent=0 // loop_footer
    %s13 = sadd.s32 1, %s9
  $region7: #{closed_call.221} parent=0 // loop_footer_branch
    %8 = sbr.rel target = $region3
  $region8: #{closed_call.221} parent=0 // loop_exit
    _

// kernel: closed_call.222
$region0: #{closed_call.222}
  #allocation0 [shape = 'u32[]', space=smem, size = 0x4, offset = 0x4, fixed_abs, tag = 'smem constant byte address 0x4 - core index']
  #allocation1 [shape = 'u32[72,128]{1,0:T(1,128)}', space=vmem, size = 0x9000, scoped, tag = 'internal scratch']
  #allocation2 [shape = 'f32[8,128]{1,0:T(8,128)}', space=vmem, size = 0x1000, scoped, tag = 'scratch operand']
  %s0 = inlined_call_operand.vmem [shape: bf16[1,8,2816], index: 0, kind: input, shape index: {}]
  %s1 = inlined_call_operand.vmem [shape: bf16[1,2816,128], index: 1, kind: input, shape index: {}]
  %s2 = inlined_call_operand.vmem [shape: f32[1,1,128], index: 2, kind: input, shape index: {}]
  %s3 = inlined_call_operand.vmem [shape: f32[1,8,128], index: 3, kind: output, shape index: {}]
  %s4 = sld [smem:[#allocation0]]
  $region53: #{closed_call.222} parent=0
    _
  %s6 = ssub.s32 1, %s4
  %s7 = scalar_select 0, %s6, %s4
  loop: start=0, step=1, limit=13
  $region2: #{closed_call.222} parent=0 // loop_pre_header
    _
  $region3: #{closed_call.222} parent=0 // loop_header
    %s9 = sphi 0, %s13
    %p10 = scmp.ge.s32.totalorder %s9, 13
    %s16 = sphi 0, %s42
    %s17 = sphi 0, %s38
    %s18 = sphi 0, %s34
    %s19 = sphi 0, %s30
    %s20 = sphi 0, %s16
    %s21 = sphi 0, %s17
    %s22 = sphi 0, %s18
    %s23 = sphi 0, %s19
    %s24 = sphi 0, %s20
    %s25 = sphi 0, %s21
    %s26 = sphi 0, %s22
    %s27 = sphi 0, %s23
    %s49 = sphi 0, %s51
    %s52 = sphi 0, %s49
    %s53 = sphi 0, %s52
    %s69 = sphi 0, %s53
    %s79 = sphi 0, %s81
    %s82 = sphi 0, %s79
    %s83 = sphi 0, %s82
    %s99 = sphi 0, %s83
    %s107 = sphi 0, %s109
    %s110 = sphi 0, %s107
    %s111 = sphi 0, %s110
    %s127 = sphi 0, %s111
    %s137 = sphi 0, %s139
    %s140 = sphi 0, %s137
    %s141 = sphi 0, %s140
    %s157 = sphi 0, %s141
  $region4: #{closed_call.222} parent=0 // loop_header_branch
    %12 = sbr.rel (%p10) target = $region8
  $region5: #{closed_call.222} parent=0 // loop_body
    %s14 = ssub.s32 %s9, 1
    %s15 = ssub.s32 %s9, 2
    %s28 = sadd.s32 1, %s19
    %p29 = scmp.ge.s32.totalorder %s28, 11
    %s30 = scalar_select %p29, 0, %s28
    %s31 = sadd.s32 1, %s18
    %s32 = scalar_select %p29, %s31, %s18
    %p33 = scmp.ge.s32.totalorder %s32, 1
    %s34 = scalar_select %p33, 0, %s32
    %s35 = sadd.s32 1, %s17
    %s36 = scalar_select %p33, %s35, %s17
    %p37 = scmp.ge.s32.totalorder %s36, 1
    %s38 = scalar_select %p37, 0, %s36
    %s39 = sadd.s32 1, %s16
    %s40 = scalar_select %p37, %s39, %s16
    %p41 = scmp.ge.s32.totalorder %s40, 1
    %s42 = scalar_select %p41, 0, %s40
    %s43 = ssub.s32 %s16, %s42
    %s44 = ssub.s32 %s17, %s38
    %s45 = sor.u32 %s43, %s44
    %s46 = ssub.s32 %s19, %s30
    %s47 = sor.u32 %s45, %s46
    %p48 = scmp.eq.s32.totalorder %s47, 0
    %s50 = sadd.s32 %s49, 1
    %s51 = scalar_select %p48, %s49, %s50
    %p54 = pneg %p48
    %p55 = scmp.eq.s32.totalorder %s9, 10
    %p56 = por %p54, %p55
    %p57 = scmp.ne.s32.totalorder %s49, %s52
    %p58 = scmp.eq.s32.totalorder %s9, 0
    %p59 = por %p57, %p58
    %p60 = scmp.ne.s32.totalorder %s49, %s52
    %p61 = scmp.eq.s32.totalorder %s14, 10
    %p62 = por %p60, %p61
    %p63 = scmp.ne.s32.totalorder %s52, %s53
    %p64 = scmp.eq.s32.totalorder %s14, 0
    %p65 = por %p63, %p64
    %p66 = scmp.ne.s32.totalorder %s52, %s53
    %p67 = scmp.eq.s32.totalorder %s15, 10
    %p68 = por %p66, %p67
    %p70 = scmp.ne.s32.totalorder %s53, %s69
    %p71 = scmp.eq.s32.totalorder %s15, 0
    %p72 = por %p70, %p71
    %s73 = ssub.s32 %s16, %s42
    %s74 = ssub.s32 %s19, %s30
    %s75 = sor.u32 %s73, %s74
    %s76 = ssub.s32 %s18, %s34
    %s77 = sor.u32 %s75, %s76
    %p78 = scmp.eq.s32.totalorder %s77, 0
    %s80 = sadd.s32 %s79, 1
    %s81 = scalar_select %p78, %s79, %s80
    %p84 = pneg %p78
    %p85 = scmp.eq.s32.totalorder %s9, 10
    %p86 = por %p84, %p85
    %p87 = scmp.ne.s32.totalorder %s79, %s82
    %p88 = scmp.eq.s32.totalorder %s9, 0
    %p89 = por %p87, %p88
    %p90 = scmp.ne.s32.totalorder %s79, %s82
    %p91 = scmp.eq.s32.totalorder %s14, 10
    %p92 = por %p90, %p91
    %p93 = scmp.ne.s32.totalorder %s82, %s83
    %p94 = scmp.eq.s32.totalorder %s14, 0
    %p95 = por %p93, %p94
    %p96 = scmp.ne.s32.totalorder %s82, %s83
    %p97 = scmp.eq.s32.totalorder %s15, 10
    %p98 = por %p96, %p97
    %p100 = scmp.ne.s32.totalorder %s83, %s99
    %p101 = scmp.eq.s32.totalorder %s15, 0
    %p102 = por %p100, %p101
    %s103 = ssub.s32 %s16, %s42
    %s104 = ssub.s32 %s18, %s34
    %s105 = sor.u32 %s103, %s104
    %p106 = scmp.eq.s32.totalorder %s105, 0
    %s108 = sadd.s32 %s107, 1
    %s109 = scalar_select %p106, %s107, %s108
    %p112 = pneg %p106
    %p113 = scmp.eq.s32.totalorder %s9, 10
    %p114 = por %p112, %p113
    %p115 = scmp.ne.s32.totalorder %s107, %s110
    %p116 = scmp.eq.s32.totalorder %s9, 0
    %p117 = por %p115, %p116
    %p118 = scmp.ne.s32.totalorder %s107, %s110
    %p119 = scmp.eq.s32.totalorder %s14, 10
    %p120 = por %p118, %p119
    %p121 = scmp.ne.s32.totalorder %s110, %s111
    %p122 = scmp.eq.s32.totalorder %s14, 0
    %p123 = por %p121, %p122
    %p124 = scmp.ne.s32.totalorder %s110, %s111
    %p125 = scmp.eq.s32.totalorder %s15, 10
    %p126 = por %p124, %p125
    %p128 = scmp.ne.s32.totalorder %s111, %s127
    %p129 = scmp.eq.s32.totalorder %s15, 0
    %p130 = por %p128, %p129
    %s131 = ssub.s32 %s16, %s42
    %s132 = ssub.s32 %s17, %s38
    %s133 = sor.u32 %s131, %s132
    %s134 = ssub.s32 %s18, %s34
    %s135 = sor.u32 %s133, %s134
    %p136 = scmp.eq.s32.totalorder %s135, 0
    %s138 = sadd.s32 %s137, 1
    %s139 = scalar_select %p136, %s137, %s138
    %p142 = pneg %p136
    %p143 = scmp.eq.s32.totalorder %s9, 10
    %p144 = por %p142, %p143
    %p145 = scmp.ne.s32.totalorder %s137, %s140
    %p146 = scmp.eq.s32.totalorder %s9, 0
    %p147 = por %p145, %p146
    %p148 = scmp.ne.s32.totalorder %s137, %s140
    %p149 = scmp.eq.s32.totalorder %s14, 10
    %p150 = por %p148, %p149
    %p151 = scmp.ne.s32.totalorder %s140, %s141
    %p152 = scmp.eq.s32.totalorder %s14, 0
    %p153 = por %p151, %p152
    %p154 = scmp.ne.s32.totalorder %s140, %s141
    %p155 = scmp.eq.s32.totalorder %s15, 10
    %p156 = por %p154, %p155
    %p158 = scmp.ne.s32.totalorder %s141, %s157
    %p159 = scmp.eq.s32.totalorder %s15, 0
    %p160 = por %p158, %p159
    %p161 = scmp.le.s32.totalorder 1, %s9
    %p162 = scmp.lt.s32.totalorder %s9, 12
    %p163 = pnand %p161, %p162
    %p164 = pneg %p163
    // Predicated region
    $region9: #{closed_call.222} parent=5 // pred_check
      _
    $region10: #{closed_call.222} parent=5 // pred_check_branch
      %166 = sbr.rel (%p163) target = $region12
    $region11: #{closed_call.222} parent=5 // pred_region
      %s167 = ssub.s32 %s9, 1
      // Predicated region
      $region13: #{closed_call.222} parent=11 // pred_check
        %p168 = pneg %p123
      $region14: #{closed_call.222} parent=11 // pred_check_branch
        %170 = sbr.rel (%p168) target = $region16
      $region15: #{closed_call.222} parent=11 // pred_region
        %p171 = scmp.lt.s32.totalorder %s20, 0
        %s172 = scalar_select %p171, %s20, 0
        %p173 = scmp.lt.s32.totalorder %s22, 0
        %s174 = scalar_select %p173, %s22, 0
        %s175 = sadd.s32 %s174, %s172
        %s176 = scalar_lea.vmem %s2, %s175
      $region16: #{closed_call.222} parent=11 // pred_fallthru
        _
    $region12: #{closed_call.222} parent=5 // pred_fallthru
      _
    %p177 = scmp.lt.s32.totalorder %s9, 11
    // Predicated region
    $region17: #{closed_call.222} parent=5 // pred_check
      %p178 = pneg %p177
    $region18: #{closed_call.222} parent=5 // pred_check_branch
      %180 = sbr.rel (%p178) target = $region20
    $region19: #{closed_call.222} parent=5 // pred_region
      // Predicated region
      $region21: #{closed_call.222} parent=19 // pred_check
        %p181 = pneg %p59
      $region22: #{closed_call.222} parent=19 // pred_check_branch
        %183 = sbr.rel (%p181) target = $region24
      $region23: #{closed_call.222} parent=19 // pred_region
        %s184 = smul.u32 2, %s19
        %p185 = scmp.lt.s32.totalorder %s16, 0
        %s186 = scalar_select %p185, %s16, 0
        %p187 = scmp.lt.s32.totalorder %s17, 0
        %s188 = scalar_select %p187, %s17, 0
        %p189 = scmp.lt.s32.totalorder %s184, 21
        %s190 = scalar_select %p189, %s184, 21
        %s191 = smul.addr %s188, 22
        %s192 = sadd.s32 %s190, %s191
        %s193 = smul.addr %s186, 22
        %s194 = sadd.s32 %s192, %s193
        %s195 = smul.addr %s194, 4
        %s196 = scalar_lea.vmem %s0, %s195
        %s197 = smul.u32 2, %s19
      $region24: #{closed_call.222} parent=19 // pred_fallthru
        _
      // Predicated region
      $region25: #{closed_call.222} parent=19 // pred_check
        %p198 = pneg %p89
      $region26: #{closed_call.222} parent=19 // pred_check_branch
        %200 = sbr.rel (%p198) target = $region28
      $region27: #{closed_call.222} parent=19 // pred_region
        %s201 = smul.u32 32, %s19
        %p202 = scmp.lt.s32.totalorder %s16, 0
        %s203 = scalar_select %p202, %s16, 0
        %p204 = scmp.lt.s32.totalorder %s201, 351
        %s205 = scalar_select %p204, %s201, 351
        %p206 = scmp.lt.s32.totalorder %s18, 0
        %s207 = scalar_select %p206, %s18, 0
        %s208 = sadd.s32 %s207, %s205
        %s209 = smul.addr %s203, 352
        %s210 = sadd.s32 %s208, %s209
        %s211 = smul.addr %s210, 4
        %s212 = scalar_lea.vmem %s1, %s211
        %s213 = smul.u32 32, %s19
      $region28: #{closed_call.222} parent=19 // pred_fallthru
        _
    $region20: #{closed_call.222} parent=5 // pred_fallthru
      _
    %p214 = scmp.le.s32.totalorder 1, %s9
    %p215 = scmp.lt.s32.totalorder %s9, 12
    %p216 = pnand %p214, %p215
    %p217 = pneg %p216
    // Predicated region
    $region29: #{closed_call.222} parent=5 // pred_check
      _
    $region30: #{closed_call.222} parent=5 // pred_check_branch
      %219 = sbr.rel (%p216) target = $region32
    $region31: #{closed_call.222} parent=5 // pred_region
      %s220 = ssub.s32 %s9, 1
      %s221 = smul.u32 2, %s23
      %p222 = scmp.lt.s32.totalorder %s20, 0
      %s223 = scalar_select %p222, %s20, 0
      %p224 = scmp.lt.s32.totalorder %s21, 0
      %s225 = scalar_select %p224, %s21, 0
      %p226 = scmp.lt.s32.totalorder %s221, 21
      %s227 = scalar_select %p226, %s221, 21
      %s228 = smul.addr %s225, 22
      %s229 = sadd.s32 %s227, %s228
      %s230 = smul.addr %s223, 22
      %s231 = sadd.s32 %s229, %s230
      %s232 = smul.addr %s231, 4
      %s233 = scalar_lea.vmem %s0, %s232
      %p234 = pneg %p65
      %p235 = pneg %p62
      %s236 = smul.u32 32, %s23
      %p237 = scmp.lt.s32.totalorder %s20, 0
      %s238 = scalar_select %p237, %s20, 0
      %p239 = scmp.lt.s32.totalorder %s236, 351
      %s240 = scalar_select %p239, %s236, 351
      %p241 = scmp.lt.s32.totalorder %s22, 0
      %s242 = scalar_select %p241, %s22, 0
      %s243 = sadd.s32 %s242, %s240
      %s244 = smul.addr %s238, 352
      %s245 = sadd.s32 %s243, %s244
      %s246 = smul.addr %s245, 4
      %s247 = scalar_lea.vmem %s1, %s246
      %p248 = pneg %p95
      %p249 = pneg %p92
      %p250 = scmp.lt.s32.totalorder %s20, 0
      %s251 = scalar_select %p250, %s20, 0
      %p252 = scmp.lt.s32.totalorder %s22, 0
      %s253 = scalar_select %p252, %s22, 0
      %s254 = sadd.s32 %s253, %s251
      %s255 = scalar_lea.vmem %s2, %s254
      %p256 = pneg %p123
      %p257 = pneg %p120
      %p258 = pneg %p153
      %p259 = pneg %p150
      %p260 = scmp.lt.s32.totalorder %s20, 0
      %s261 = scalar_select %p260, %s20, 0
      %p262 = scmp.lt.s32.totalorder %s21, 0
      %s263 = scalar_select %p262, %s21, 0
      %p264 = scmp.lt.s32.totalorder %s22, 0
      %s265 = scalar_select %p264, %s22, 0
      %s266 = sadd.s32 %s265, %s263
      %s267 = sadd.s32 %s266, %s261
      %s268 = smul.addr %s267, 8
      %s269 = scalar_lea.vmem %s3, %s268
      %s270 = smul.u32 2, %s23
      %p271 = scmp.lt.s32.totalorder %s20, 0
      %s272 = scalar_select %p271, %s20, 0
      %p273 = scmp.lt.s32.totalorder %s21, 0
      %s274 = scalar_select %p273, %s21, 0
      %p275 = scmp.lt.s32.totalorder %s270, 21
      %s276 = scalar_select %p275, %s270, 21
      %s277 = smul.addr %s274, 22
      %s278 = sadd.s32 %s276, %s277
      %s279 = smul.addr %s272, 22
      %s280 = sadd.s32 %s278, %s279
      %s281 = smul.addr %s280, 4
      %s282 = scalar_lea.vmem %s0, %s281
      %s283 = smul.u32 2, %s23
      %s284 = smul.u32 32, %s23
      %p285 = scmp.lt.s32.totalorder %s20, 0
      %s286 = scalar_select %p285, %s20, 0
      %p287 = scmp.lt.s32.totalorder %s284, 351
      %s288 = scalar_select %p287, %s284, 351
      %p289 = scmp.lt.s32.totalorder %s22, 0
      %s290 = scalar_select %p289, %s22, 0
      %s291 = sadd.s32 %s290, %s288
      %s292 = smul.addr %s286, 352
      %s293 = sadd.s32 %s291, %s292
      %s294 = smul.addr %s293, 4
      %s295 = scalar_lea.vmem %s1, %s294
      %s296 = smul.u32 32, %s23
      %p297 = scmp.lt.s32.totalorder %s20, 0
      %s298 = scalar_select %p297, %s20, 0
      %p299 = scmp.lt.s32.totalorder %s22, 0
      %s300 = scalar_select %p299, %s22, 0
      %s301 = sadd.s32 %s300, %s298
      %s302 = scalar_lea.vmem %s2, %s301
      %p303 = scmp.lt.s32.totalorder %s20, 0
      %s304 = scalar_select %p303, %s20, 0
      %p305 = scmp.lt.s32.totalorder %s21, 0
      %s306 = scalar_select %p305, %s21, 0
      %p307 = scmp.lt.s32.totalorder %s22, 0
      %s308 = scalar_select %p307, %s22, 0
      %s309 = sadd.s32 %s308, %s306
      %s310 = sadd.s32 %s309, %s304
      %s311 = smul.addr %s310, 8
      %s312 = scalar_lea.vmem %s3, %s311
      %p313 = scmp.eq.s32.totalorder %s23, 0
      // Predicated region
      $region33: #{closed_call.222} parent=31 // pred_check
        %p314 = pneg %p313
      $region34: #{closed_call.222} parent=31 // pred_check_branch
        %316 = sbr.rel (%p314) target = $region36
      $region35: #{closed_call.222} parent=31 // pred_region
        %317 = vst [vmem:[#allocation2] sm:$0xff] 0.0
      $region36: #{closed_call.222} parent=31 // pred_fallthru
        _
      %v318 = vld [vmem:[#allocation2] sm:$0xff]
      %v319 = vld [vmem:[%s282] sm:$0xff]
      %v320 = vld [vmem:[%s295] sm:$0xf]
      %v321 = vld [vmem:[%s295 + $0x4] sm:$0xf]
      %v322 = vld [vmem:[%s295 + $0x8] sm:$0xf]
      %v323 = vld [vmem:[%s295 + $0xc] sm:$0xf]
      %v324 = vld [vmem:[%s295 + $0x10] sm:$0xf]
      %v325 = vld [vmem:[%s295 + $0x14] sm:$0xf]
      %v326 = vld [vmem:[%s295 + $0x18] sm:$0xf]
      %v327 = vld [vmem:[%s295 + $0x1c] sm:$0xf]
      %v328 = vld [vmem:[%s295 + $0x20] sm:$0xf]
      %v329 = vld [vmem:[%s295 + $0x24] sm:$0xf]
      %v330 = vld [vmem:[%s295 + $0x28] sm:$0xf]
      %v331 = vld [vmem:[%s295 + $0x2c] sm:$0xf]
      %v332 = vld [vmem:[%s295 + $0x30] sm:$0xf]
      %v333 = vld [vmem:[%s295 + $0x34] sm:$0xf]
      %v334 = vld [vmem:[%s295 + $0x38] sm:$0xf]
      %v335 = vld [vmem:[%s295 + $0x3c] sm:$0xf]
      %v336 = vld [vmem:[%s295 + $0x40] sm:$0xf]
      %v337 = vld [vmem:[%s295 + $0x44] sm:$0xf]
      %v338 = vld [vmem:[%s295 + $0x48] sm:$0xf]
      %v339 = vld [vmem:[%s295 + $0x4c] sm:$0xf]
      %v340 = vld [vmem:[%s295 + $0x50] sm:$0xf]
      %v341 = vld [vmem:[%s295 + $0x54] sm:$0xf]
      %v342 = vld [vmem:[%s295 + $0x58] sm:$0xf]
      %v343 = vld [vmem:[%s295 + $0x5c] sm:$0xf]
      %v344 = vld [vmem:[%s295 + $0x60] sm:$0xf]
      %v345 = vld [vmem:[%s295 + $0x64] sm:$0xf]
      %v346 = vld [vmem:[%s295 + $0x68] sm:$0xf]
      %v347 = vld [vmem:[%s295 + $0x6c] sm:$0xf]
      %v348 = vld [vmem:[%s295 + $0x70] sm:$0xf]
      %v349 = vld [vmem:[%s295 + $0x74] sm:$0xf]
      %v350 = vld [vmem:[%s295 + $0x78] sm:$0xf]
      %v351 = vld [vmem:[%s295 + $0x7c] sm:$0xf]
      %v353 = vunpack.c.l.b16 %v319
      %v354 = vunpack.c.h.b16 %v319
      %v355 = vpack.c.b16 %v353, %v353
      %v356 = vpack.c.b16 %v354, %v354
      %v391 = vunpack.c.l.b16 %v320
      %v392 = vunpack.c.l.b16 %v321
      %v393 = vunpack.c.l.b16 %v322
      %v394 = vunpack.c.l.b16 %v323
      %v395 = vunpack.c.l.b16 %v324
      %v396 = vunpack.c.l.b16 %v325
      %v397 = vunpack.c.l.b16 %v326
      %v398 = vunpack.c.l.b16 %v327
      %v399 = vunpack.c.l.b16 %v328
      %v400 = vunpack.c.l.b16 %v329
      %v401 = vunpack.c.l.b16 %v330
      %v402 = vunpack.c.l.b16 %v331
      %v403 = vunpack.c.l.b16 %v332
      %v404 = vunpack.c.l.b16 %v333
      %v405 = vunpack.c.l.b16 %v334
      %v406 = vunpack.c.l.b16 %v335
      %v407 = vunpack.c.l.b16 %v336
      %v408 = vunpack.c.l.b16 %v337
      %v409 = vunpack.c.l.b16 %v338
      %v410 = vunpack.c.l.b16 %v339
      %v411 = vunpack.c.l.b16 %v340
      %v412 = vunpack.c.l.b16 %v341
      %v413 = vunpack.c.l.b16 %v342
      %v414 = vunpack.c.l.b16 %v343
      %v415 = vunpack.c.l.b16 %v344
      %v416 = vunpack.c.l.b16 %v345
      %v417 = vunpack.c.l.b16 %v346
      %v418 = vunpack.c.l.b16 %v347
      %v419 = vunpack.c.l.b16 %v348
      %v420 = vunpack.c.l.b16 %v349
      %v421 = vunpack.c.l.b16 %v350
      %v422 = vunpack.c.l.b16 %v351
      %v423 = vpack.c.b16 %v392, %v391
      %v424 = vpack.c.b16 %v394, %v393
      %v425 = vpack.c.b16 %v396, %v395
      %v426 = vpack.c.b16 %v398, %v397
      %v427 = vpack.c.b16 %v400, %v399
      %v428 = vpack.c.b16 %v402, %v401
      %v429 = vpack.c.b16 %v404, %v403
      %v430 = vpack.c.b16 %v406, %v405
      %v431 = vpack.c.b16 %v408, %v407
      %v432 = vpack.c.b16 %v410, %v409
      %v433 = vpack.c.b16 %v412, %v411
      %v434 = vpack.c.b16 %v414, %v413
      %v435 = vpack.c.b16 %v416, %v415
      %v436 = vpack.c.b16 %v418, %v417
      %v437 = vpack.c.b16 %v420, %v419
      %v438 = vpack.c.b16 %v422, %v421
      %455 = vmatpush.bf16.msra.mxu0 %v430
      %456 = vmatpush.bf16.msra.mxu0 %v429
      %457 = vmatpush.bf16.msra.mxu0 %v428
      %458 = vmatpush.bf16.msra.mxu0 %v427
      %459 = vmatpush.bf16.msra.mxu0 %v426
      %460 = vmatpush.bf16.msra.mxu0 %v425
      %461 = vmatpush.bf16.msra.mxu0 %v424
      %462 = vmatpush.bf16.msra.mxu0 %v423
      %463 = vmatmul.bf16.gmra.mxu0 %v355
      %v464 = vpop.f32.mrf.mxu0
      %v465 = vadd.f32 0.0, %v464
      %v466 = vpop.f32.mrf.mxu0
      %467 = vdwg.mxu0
      %468 = vmatpush.bf16.msra.mxu0 %v438
      %469 = vmatpush.bf16.msra.mxu0 %v437
      %470 = vmatpush.bf16.msra.mxu0 %v436
      %471 = vmatpush.bf16.msra.mxu0 %v435
      %472 = vmatpush.bf16.msra.mxu0 %v434
      %473 = vmatpush.bf16.msra.mxu0 %v433
      %474 = vmatpush.bf16.msra.mxu0 %v432
      %475 = vmatpush.bf16.msra.mxu0 %v431
      %476 = vmatmul.bf16.gmra.mxu0 %v356
      %v477 = vpop.f32.mrf.mxu0
      %v478 = vadd.f32 %v465, %v477
      %v479 = vpop.f32.mrf.mxu0
      %480 = vdwg.mxu0
      %v481 = vadd.f32 %v318, %v478
      %482 = vst [vmem:[#allocation2] sm:$0xff] %v481
      %p483 = scmp.eq.s32.totalorder %s23, 10
      // Predicated region
      $region37: #{closed_call.222} parent=31 // pred_check
        %p484 = pneg %p483
      $region38: #{closed_call.222} parent=31 // pred_check_branch
        %486 = sbr.rel (%p484) target = $region40
      $region39: #{closed_call.222} parent=31 // pred_region
        %v487 = vld [vmem:[#allocation2] sm:$0xff]
        %v488 = vld [vmem:[%s302] sm:$0x1]
        %v490 = vperm.slane %v488, 0
        %v492 = vadd.f32 %v487, %v490
        %vm493 = vcmp.gt.f32.partialorder %v492, 0.0
        %v494 = vmul.f32 %v492, 0.2
        %v495 = vsel %vm493, %v492, %v494
        %496 = vst [vmem:[%s312] sm:$0xff] %v495
      $region40: #{closed_call.222} parent=31 // pred_fallthru
        _
      %p497 = scmp.lt.s32.totalorder %s20, 0
      %s498 = scalar_select %p497, %s20, 0
      %p499 = scmp.lt.s32.totalorder %s21, 0
      %s500 = scalar_select %p499, %s21, 0
      %p501 = scmp.lt.s32.totalorder %s22, 0
      %s502 = scalar_select %p501, %s22, 0
      %s503 = sadd.s32 %s502, %s500
      %s504 = sadd.s32 %s503, %s498
      %s505 = smul.addr %s504, 8
      %s506 = scalar_lea.vmem %s3, %s505
      // Predicated region
      $region41: #{closed_call.222} parent=31 // pred_check
        %p507 = pneg %p150
      $region42: #{closed_call.222} parent=31 // pred_check_branch
        %509 = sbr.rel (%p507) target = $region44
      $region43: #{closed_call.222} parent=31 // pred_region
        _
      $region44: #{closed_call.222} parent=31 // pred_fallthru
        _
      // Predicated region
      $region45: #{closed_call.222} parent=31 // pred_check
        %p510 = pneg %p150
      $region46: #{closed_call.222} parent=31 // pred_check_branch
        %512 = sbr.rel (%p510) target = $region48
      $region47: #{closed_call.222} parent=31 // pred_region
        %p513 = scmp.lt.s32.totalorder %s20, 0
        %s514 = scalar_select %p513, %s20, 0
        %p515 = scmp.lt.s32.totalorder %s21, 0
        %s516 = scalar_select %p515, %s21, 0
        %p517 = scmp.lt.s32.totalorder %s22, 0
        %s518 = scalar_select %p517, %s22, 0
        %s519 = sadd.s32 %s518, %s516
        %s520 = sadd.s32 %s519, %s514
        %s521 = smul.addr %s520, 8
        %s522 = scalar_lea.vmem %s3, %s521
      $region48: #{closed_call.222} parent=31 // pred_fallthru
        _
    $region32: #{closed_call.222} parent=5 // pred_fallthru
      _
    %p523 = scmp.le.s32.totalorder 2, %s9
    // Predicated region
    $region49: #{closed_call.222} parent=5 // pred_check
      %p524 = pneg %p523
    $region50: #{closed_call.222} parent=5 // pred_check_branch
      %526 = sbr.rel (%p524) target = $region52
    $region51: #{closed_call.222} parent=5 // pred_region
      %s527 = ssub.s32 %s9, 2
    $region52: #{closed_call.222} parent=5 // pred_fallthru
      _
  $region6: #{closed_call.222} parent=0 // loop_footer
    %s13 = sadd.s32 1, %s9
  $region7: #{closed_call.222} parent=0 // loop_footer_branch
    %8 = sbr.rel target = $region3
  $region8: #{closed_call.222} parent=0 // loop_exit
    _

// kernel: closed_call.223
$region0: #{closed_call.223}
  #allocation0 [shape = 'u32[]', space=smem, size = 0x4, offset = 0x4, fixed_abs, tag = 'smem constant byte address 0x4 - core index']
  #allocation1 [shape = 'u32[72,128]{1,0:T(1,128)}', space=vmem, size = 0x9000, scoped, tag = 'internal scratch']
  #allocation2 [shape = 'f32[8,256]{1,0:T(8,128)}', space=vmem, size = 0x2000, scoped, tag = 'scratch operand']
  %s0 = inlined_call_operand.vmem [shape: bf16[1,8,3072], index: 0, kind: input, shape index: {}]
  %s1 = inlined_call_operand.vmem [shape: bf16[1,3072,256], index: 1, kind: input, shape index: {}]
  %s2 = inlined_call_operand.vmem [shape: f32[1,1,256], index: 2, kind: input, shape index: {}]
  %s3 = inlined_call_operand.vmem [shape: f32[1,8,256], index: 3, kind: output, shape index: {}]
  %s4 = sld [smem:[#allocation0]]
  $region53: #{closed_call.223} parent=0
    _
  %s6 = ssub.s32 1, %s4
  %s7 = scalar_select 0, %s6, %s4
  loop: start=0, step=1, limit=8
  $region2: #{closed_call.223} parent=0 // loop_pre_header
    _
  $region3: #{closed_call.223} parent=0 // loop_header
    %s9 = sphi 0, %s13
    %p10 = scmp.ge.s32.totalorder %s9, 8
    %s16 = sphi 0, %s42
    %s17 = sphi 0, %s38
    %s18 = sphi 0, %s34
    %s19 = sphi 0, %s30
    %s20 = sphi 0, %s16
    %s21 = sphi 0, %s17
    %s22 = sphi 0, %s18
    %s23 = sphi 0, %s19
    %s24 = sphi 0, %s20
    %s25 = sphi 0, %s21
    %s26 = sphi 0, %s22
    %s27 = sphi 0, %s23
    %s49 = sphi 0, %s51
    %s52 = sphi 0, %s49
    %s53 = sphi 0, %s52
    %s69 = sphi 0, %s53
    %s79 = sphi 0, %s81
    %s82 = sphi 0, %s79
    %s83 = sphi 0, %s82
    %s99 = sphi 0, %s83
    %s107 = sphi 0, %s109
    %s110 = sphi 0, %s107
    %s111 = sphi 0, %s110
    %s127 = sphi 0, %s111
    %s137 = sphi 0, %s139
    %s140 = sphi 0, %s137
    %s141 = sphi 0, %s140
    %s157 = sphi 0, %s141
  $region4: #{closed_call.223} parent=0 // loop_header_branch
    %12 = sbr.rel (%p10) target = $region8
  $region5: #{closed_call.223} parent=0 // loop_body
    %s14 = ssub.s32 %s9, 1
    %s15 = ssub.s32 %s9, 2
    %s28 = sadd.s32 1, %s19
    %p29 = scmp.ge.s32.totalorder %s28, 6
    %s30 = scalar_select %p29, 0, %s28
    %s31 = sadd.s32 1, %s18
    %s32 = scalar_select %p29, %s31, %s18
    %p33 = scmp.ge.s32.totalorder %s32, 1
    %s34 = scalar_select %p33, 0, %s32
    %s35 = sadd.s32 1, %s17
    %s36 = scalar_select %p33, %s35, %s17
    %p37 = scmp.ge.s32.totalorder %s36, 1
    %s38 = scalar_select %p37, 0, %s36
    %s39 = sadd.s32 1, %s16
    %s40 = scalar_select %p37, %s39, %s16
    %p41 = scmp.ge.s32.totalorder %s40, 1
    %s42 = scalar_select %p41, 0, %s40
    %s43 = ssub.s32 %s16, %s42
    %s44 = ssub.s32 %s17, %s38
    %s45 = sor.u32 %s43, %s44
    %s46 = ssub.s32 %s19, %s30
    %s47 = sor.u32 %s45, %s46
    %p48 = scmp.eq.s32.totalorder %s47, 0
    %s50 = sadd.s32 %s49, 1
    %s51 = scalar_select %p48, %s49, %s50
    %p54 = pneg %p48
    %p55 = scmp.eq.s32.totalorder %s9, 5
    %p56 = por %p54, %p55
    %p57 = scmp.ne.s32.totalorder %s49, %s52
    %p58 = scmp.eq.s32.totalorder %s9, 0
    %p59 = por %p57, %p58
    %p60 = scmp.ne.s32.totalorder %s49, %s52
    %p61 = scmp.eq.s32.totalorder %s14, 5
    %p62 = por %p60, %p61
    %p63 = scmp.ne.s32.totalorder %s52, %s53
    %p64 = scmp.eq.s32.totalorder %s14, 0
    %p65 = por %p63, %p64
    %p66 = scmp.ne.s32.totalorder %s52, %s53
    %p67 = scmp.eq.s32.totalorder %s15, 5
    %p68 = por %p66, %p67
    %p70 = scmp.ne.s32.totalorder %s53, %s69
    %p71 = scmp.eq.s32.totalorder %s15, 0
    %p72 = por %p70, %p71
    %s73 = ssub.s32 %s16, %s42
    %s74 = ssub.s32 %s19, %s30
    %s75 = sor.u32 %s73, %s74
    %s76 = ssub.s32 %s18, %s34
    %s77 = sor.u32 %s75, %s76
    %p78 = scmp.eq.s32.totalorder %s77, 0
    %s80 = sadd.s32 %s79, 1
    %s81 = scalar_select %p78, %s79, %s80
    %p84 = pneg %p78
    %p85 = scmp.eq.s32.totalorder %s9, 5
    %p86 = por %p84, %p85
    %p87 = scmp.ne.s32.totalorder %s79, %s82
    %p88 = scmp.eq.s32.totalorder %s9, 0
    %p89 = por %p87, %p88
    %p90 = scmp.ne.s32.totalorder %s79, %s82
    %p91 = scmp.eq.s32.totalorder %s14, 5
    %p92 = por %p90, %p91
    %p93 = scmp.ne.s32.totalorder %s82, %s83
    %p94 = scmp.eq.s32.totalorder %s14, 0
    %p95 = por %p93, %p94
    %p96 = scmp.ne.s32.totalorder %s82, %s83
    %p97 = scmp.eq.s32.totalorder %s15, 5
    %p98 = por %p96, %p97
    %p100 = scmp.ne.s32.totalorder %s83, %s99
    %p101 = scmp.eq.s32.totalorder %s15, 0
    %p102 = por %p100, %p101
    %s103 = ssub.s32 %s16, %s42
    %s104 = ssub.s32 %s18, %s34
    %s105 = sor.u32 %s103, %s104
    %p106 = scmp.eq.s32.totalorder %s105, 0
    %s108 = sadd.s32 %s107, 1
    %s109 = scalar_select %p106, %s107, %s108
    %p112 = pneg %p106
    %p113 = scmp.eq.s32.totalorder %s9, 5
    %p114 = por %p112, %p113
    %p115 = scmp.ne.s32.totalorder %s107, %s110
    %p116 = scmp.eq.s32.totalorder %s9, 0
    %p117 = por %p115, %p116
    %p118 = scmp.ne.s32.totalorder %s107, %s110
    %p119 = scmp.eq.s32.totalorder %s14, 5
    %p120 = por %p118, %p119
    %p121 = scmp.ne.s32.totalorder %s110, %s111
    %p122 = scmp.eq.s32.totalorder %s14, 0
    %p123 = por %p121, %p122
    %p124 = scmp.ne.s32.totalorder %s110, %s111
    %p125 = scmp.eq.s32.totalorder %s15, 5
    %p126 = por %p124, %p125
    %p128 = scmp.ne.s32.totalorder %s111, %s127
    %p129 = scmp.eq.s32.totalorder %s15, 0
    %p130 = por %p128, %p129
    %s131 = ssub.s32 %s16, %s42
    %s132 = ssub.s32 %s17, %s38
    %s133 = sor.u32 %s131, %s132
    %s134 = ssub.s32 %s18, %s34
    %s135 = sor.u32 %s133, %s134
    %p136 = scmp.eq.s32.totalorder %s135, 0
    %s138 = sadd.s32 %s137, 1
    %s139 = scalar_select %p136, %s137, %s138
    %p142 = pneg %p136
    %p143 = scmp.eq.s32.totalorder %s9, 5
    %p144 = por %p142, %p143
    %p145 = scmp.ne.s32.totalorder %s137, %s140
    %p146 = scmp.eq.s32.totalorder %s9, 0
    %p147 = por %p145, %p146
    %p148 = scmp.ne.s32.totalorder %s137, %s140
    %p149 = scmp.eq.s32.totalorder %s14, 5
    %p150 = por %p148, %p149
    %p151 = scmp.ne.s32.totalorder %s140, %s141
    %p152 = scmp.eq.s32.totalorder %s14, 0
    %p153 = por %p151, %p152
    %p154 = scmp.ne.s32.totalorder %s140, %s141
    %p155 = scmp.eq.s32.totalorder %s15, 5
    %p156 = por %p154, %p155
    %p158 = scmp.ne.s32.totalorder %s141, %s157
    %p159 = scmp.eq.s32.totalorder %s15, 0
    %p160 = por %p158, %p159
    %p161 = scmp.le.s32.totalorder 1, %s9
    %p162 = scmp.lt.s32.totalorder %s9, 7
    %p163 = pnand %p161, %p162
    %p164 = pneg %p163
    // Predicated region
    $region9: #{closed_call.223} parent=5 // pred_check
      _
    $region10: #{closed_call.223} parent=5 // pred_check_branch
      %166 = sbr.rel (%p163) target = $region12
    $region11: #{closed_call.223} parent=5 // pred_region
      %s167 = ssub.s32 %s9, 1
      // Predicated region
      $region13: #{closed_call.223} parent=11 // pred_check
        %p168 = pneg %p123
      $region14: #{closed_call.223} parent=11 // pred_check_branch
        %170 = sbr.rel (%p168) target = $region16
      $region15: #{closed_call.223} parent=11 // pred_region
        %s171 = smul.u32 2, %s22
        %p172 = scmp.lt.s32.totalorder %s20, 0
        %s173 = scalar_select %p172, %s20, 0
        %p174 = scmp.lt.s32.totalorder %s171, 1
        %s175 = scalar_select %p174, %s171, 1
        %s176 = smul.addr %s173, 2
        %s177 = sadd.s32 %s175, %s176
        %s178 = scalar_lea.vmem %s2, %s177
        %s179 = smul.u32 2, %s22
      $region16: #{closed_call.223} parent=11 // pred_fallthru
        _
    $region12: #{closed_call.223} parent=5 // pred_fallthru
      _
    %p180 = scmp.lt.s32.totalorder %s9, 6
    // Predicated region
    $region17: #{closed_call.223} parent=5 // pred_check
      %p181 = pneg %p180
    $region18: #{closed_call.223} parent=5 // pred_check_branch
      %183 = sbr.rel (%p181) target = $region20
    $region19: #{closed_call.223} parent=5 // pred_region
      // Predicated region
      $region21: #{closed_call.223} parent=19 // pred_check
        %p184 = pneg %p59
      $region22: #{closed_call.223} parent=19 // pred_check_branch
        %186 = sbr.rel (%p184) target = $region24
      $region23: #{closed_call.223} parent=19 // pred_region
        %s187 = smul.u32 4, %s19
        %p188 = scmp.lt.s32.totalorder %s16, 0
        %s189 = scalar_select %p188, %s16, 0
        %p190 = scmp.lt.s32.totalorder %s17, 0
        %s191 = scalar_select %p190, %s17, 0
        %p192 = scmp.lt.s32.totalorder %s187, 23
        %s193 = scalar_select %p192, %s187, 23
        %s194 = smul.addr %s191, 24
        %s195 = sadd.s32 %s193, %s194
        %s196 = smul.addr %s189, 24
        %s197 = sadd.s32 %s195, %s196
        %s198 = smul.addr %s197, 4
        %s199 = scalar_lea.vmem %s0, %s198
        %s200 = smul.u32 4, %s19
      $region24: #{closed_call.223} parent=19 // pred_fallthru
        _
      // Predicated region
      $region25: #{closed_call.223} parent=19 // pred_check
        %p201 = pneg %p89
      $region26: #{closed_call.223} parent=19 // pred_check_branch
        %203 = sbr.rel (%p201) target = $region28
      $region27: #{closed_call.223} parent=19 // pred_region
        %s204 = smul.u32 64, %s19
        %s205 = smul.u32 2, %s18
        %p206 = scmp.lt.s32.totalorder %s16, 0
        %s207 = scalar_select %p206, %s16, 0
        %p208 = scmp.lt.s32.totalorder %s204, 383
        %s209 = scalar_select %p208, %s204, 383
        %p210 = scmp.lt.s32.totalorder %s205, 1
        %s211 = scalar_select %p210, %s205, 1
        %s212 = smul.addr %s209, 2
        %s213 = sadd.s32 %s211, %s212
        %s214 = smul.addr %s207, 768
        %s215 = sadd.s32 %s213, %s214
        %s216 = smul.addr %s215, 4
        %s217 = scalar_lea.vmem %s1, %s216
        %s218 = smul.u32 64, %s19
        %s219 = smul.u32 2, %s18
      $region28: #{closed_call.223} parent=19 // pred_fallthru
        _
    $region20: #{closed_call.223} parent=5 // pred_fallthru
      _
    %p220 = scmp.le.s32.totalorder 1, %s9
    %p221 = scmp.lt.s32.totalorder %s9, 7
    %p222 = pnand %p220, %p221
    %p223 = pneg %p222
    // Predicated region
    $region29: #{closed_call.223} parent=5 // pred_check
      _
    $region30: #{closed_call.223} parent=5 // pred_check_branch
      %225 = sbr.rel (%p222) target = $region32
    $region31: #{closed_call.223} parent=5 // pred_region
      %s226 = ssub.s32 %s9, 1
      %s227 = smul.u32 4, %s23
      %p228 = scmp.lt.s32.totalorder %s20, 0
      %s229 = scalar_select %p228, %s20, 0
      %p230 = scmp.lt.s32.totalorder %s21, 0
      %s231 = scalar_select %p230, %s21, 0
      %p232 = scmp.lt.s32.totalorder %s227, 23
      %s233 = scalar_select %p232, %s227, 23
      %s234 = smul.addr %s231, 24
      %s235 = sadd.s32 %s233, %s234
      %s236 = smul.addr %s229, 24
      %s237 = sadd.s32 %s235, %s236
      %s238 = smul.addr %s237, 4
      %s239 = scalar_lea.vmem %s0, %s238
      %p240 = pneg %p65
      %p241 = pneg %p62
      %s242 = smul.u32 64, %s23
      %s243 = smul.u32 2, %s22
      %p244 = scmp.lt.s32.totalorder %s20, 0
      %s245 = scalar_select %p244, %s20, 0
      %p246 = scmp.lt.s32.totalorder %s242, 383
      %s247 = scalar_select %p246, %s242, 383
      %p248 = scmp.lt.s32.totalorder %s243, 1
      %s249 = scalar_select %p248, %s243, 1
      %s250 = smul.addr %s247, 2
      %s251 = sadd.s32 %s249, %s250
      %s252 = smul.addr %s245, 768
      %s253 = sadd.s32 %s251, %s252
      %s254 = smul.addr %s253, 4
      %s255 = scalar_lea.vmem %s1, %s254
      %p256 = pneg %p95
      %p257 = pneg %p92
      %s258 = smul.u32 2, %s22
      %p259 = scmp.lt.s32.totalorder %s20, 0
      %s260 = scalar_select %p259, %s20, 0
      %p261 = scmp.lt.s32.totalorder %s258, 1
      %s262 = scalar_select %p261, %s258, 1
      %s263 = smul.addr %s260, 2
      %s264 = sadd.s32 %s262, %s263
      %s265 = scalar_lea.vmem %s2, %s264
      %p266 = pneg %p123
      %p267 = pneg %p120
      %p268 = pneg %p153
      %p269 = pneg %p150
      %s270 = smul.u32 2, %s22
      %p271 = scmp.lt.s32.totalorder %s20, 0
      %s272 = scalar_select %p271, %s20, 0
      %p273 = scmp.lt.s32.totalorder %s21, 0
      %s274 = scalar_select %p273, %s21, 0
      %p275 = scmp.lt.s32.totalorder %s270, 1
      %s276 = scalar_select %p275, %s270, 1
      %s277 = smul.addr %s274, 2
      %s278 = sadd.s32 %s276, %s277
      %s279 = smul.addr %s272, 2
      %s280 = sadd.s32 %s278, %s279
      %s281 = smul.addr %s280, 8
      %s282 = scalar_lea.vmem %s3, %s281
      %s283 = smul.u32 4, %s23
      %p284 = scmp.lt.s32.totalorder %s20, 0
      %s285 = scalar_select %p284, %s20, 0
      %p286 = scmp.lt.s32.totalorder %s21, 0
      %s287 = scalar_select %p286, %s21, 0
      %p288 = scmp.lt.s32.totalorder %s283, 23
      %s289 = scalar_select %p288, %s283, 23
      %s290 = smul.addr %s287, 24
      %s291 = sadd.s32 %s289, %s290
      %s292 = smul.addr %s285, 24
      %s293 = sadd.s32 %s291, %s292
      %s294 = smul.addr %s293, 4
      %s295 = scalar_lea.vmem %s0, %s294
      %s296 = smul.u32 4, %s23
      %s297 = smul.u32 64, %s23
      %s298 = smul.u32 2, %s22
      %p299 = scmp.lt.s32.totalorder %s20, 0
      %s300 = scalar_select %p299, %s20, 0
      %p301 = scmp.lt.s32.totalorder %s297, 383
      %s302 = scalar_select %p301, %s297, 383
      %p303 = scmp.lt.s32.totalorder %s298, 1
      %s304 = scalar_select %p303, %s298, 1
      %s305 = smul.addr %s302, 2
      %s306 = sadd.s32 %s304, %s305
      %s307 = smul.addr %s300, 768
      %s308 = sadd.s32 %s306, %s307
      %s309 = smul.addr %s308, 4
      %s310 = scalar_lea.vmem %s1, %s309
      %s311 = smul.u32 64, %s23
      %s312 = smul.u32 2, %s22
      %s313 = smul.u32 2, %s22
      %p314 = scmp.lt.s32.totalorder %s20, 0
      %s315 = scalar_select %p314, %s20, 0
      %p316 = scmp.lt.s32.totalorder %s313, 1
      %s317 = scalar_select %p316, %s313, 1
      %s318 = smul.addr %s315, 2
      %s319 = sadd.s32 %s317, %s318
      %s320 = scalar_lea.vmem %s2, %s319
      %s321 = smul.u32 2, %s22
      %s322 = smul.u32 2, %s22
      %p323 = scmp.lt.s32.totalorder %s20, 0
      %s324 = scalar_select %p323, %s20, 0
      %p325 = scmp.lt.s32.totalorder %s21, 0
      %s326 = scalar_select %p325, %s21, 0
      %p327 = scmp.lt.s32.totalorder %s322, 1
      %s328 = scalar_select %p327, %s322, 1
      %s329 = smul.addr %s326, 2
      %s330 = sadd.s32 %s328, %s329
      %s331 = smul.addr %s324, 2
      %s332 = sadd.s32 %s330, %s331
      %s333 = smul.addr %s332, 8
      %s334 = scalar_lea.vmem %s3, %s333
      %s335 = smul.u32 2, %s22
      %p336 = scmp.eq.s32.totalorder %s23, 0
      // Predicated region
      $region33: #{closed_call.223} parent=31 // pred_check
        %p337 = pneg %p336
      $region34: #{closed_call.223} parent=31 // pred_check_branch
        %339 = sbr.rel (%p337) target = $region36
      $region35: #{closed_call.223} parent=31 // pred_region
        %340 = vst [vmem:[#allocation2] sm:$0xff] 0.0
        %341 = vst [vmem:[#allocation2 + $0x8] sm:$0xff] 0.0
      $region36: #{closed_call.223} parent=31 // pred_fallthru
        _
      %v342 = vld [vmem:[#allocation2] sm:$0xff]
      %v343 = vld [vmem:[#allocation2 + $0x8] sm:$0xff]
      %v344 = vld [vmem:[%s295] sm:$0xff]
      %v345 = vld [vmem:[%s295 + $0x8] sm:$0xff]
      %v346 = vld [vmem:[%s310] sm:$0xff]
      %v347 = vld [vmem:[%s310 + $0x8] sm:$0xff]
      %v348 = vld [vmem:[%s310 + $0x10] sm:$0xff]
      %v349 = vld [vmem:[%s310 + $0x18] sm:$0xff]
      %v350 = vld [vmem:[%s310 + $0x20] sm:$0xff]
      %v351 = vld [vmem:[%s310 + $0x28] sm:$0xff]
      %v352 = vld [vmem:[%s310 + $0x30] sm:$0xff]
      %v353 = vld [vmem:[%s310 + $0x38] sm:$0xff]
      %v354 = vld [vmem:[%s310 + $0x40] sm:$0xff]
      %v355 = vld [vmem:[%s310 + $0x48] sm:$0xff]
      %v356 = vld [vmem:[%s310 + $0x50] sm:$0xff]
      %v357 = vld [vmem:[%s310 + $0x58] sm:$0xff]
      %v358 = vld [vmem:[%s310 + $0x60] sm:$0xff]
      %v359 = vld [vmem:[%s310 + $0x68] sm:$0xff]
      %v360 = vld [vmem:[%s310 + $0x70] sm:$0xff]
      %v361 = vld [vmem:[%s310 + $0x78] sm:$0xff]
      %v362 = vld [vmem:[%s310 + $0x80] sm:$0xff]
      %v363 = vld [vmem:[%s310 + $0x88] sm:$0xff]
      %v364 = vld [vmem:[%s310 + $0x90] sm:$0xff]
      %v365 = vld [vmem:[%s310 + $0x98] sm:$0xff]
      %v366 = vld [vmem:[%s310 + $0xa0] sm:$0xff]
      %v367 = vld [vmem:[%s310 + $0xa8] sm:$0xff]
      %v368 = vld [vmem:[%s310 + $0xb0] sm:$0xff]
      %v369 = vld [vmem:[%s310 + $0xb8] sm:$0xff]
      %v370 = vld [vmem:[%s310 + $0xc0] sm:$0xff]
      %v371 = vld [vmem:[%s310 + $0xc8] sm:$0xff]
      %v372 = vld [vmem:[%s310 + $0xd0] sm:$0xff]
      %v373 = vld [vmem:[%s310 + $0xd8] sm:$0xff]
      %v374 = vld [vmem:[%s310 + $0xe0] sm:$0xff]
      %v375 = vld [vmem:[%s310 + $0xe8] sm:$0xff]
      %v376 = vld [vmem:[%s310 + $0xf0] sm:$0xff]
      %v377 = vld [vmem:[%s310 + $0xf8] sm:$0xff]
      %v378 = vld [vmem:[%s310 + $0x100] sm:$0xff]
      %v379 = vld [vmem:[%s310 + $0x108] sm:$0xff]
      %v380 = vld [vmem:[%s310 + $0x110] sm:$0xff]
      %v381 = vld [vmem:[%s310 + $0x118] sm:$0xff]
      %v382 = vld [vmem:[%s310 + $0x120] sm:$0xff]
      %v383 = vld [vmem:[%s310 + $0x128] sm:$0xff]
      %v384 = vld [vmem:[%s310 + $0x130] sm:$0xff]
      %v385 = vld [vmem:[%s310 + $0x138] sm:$0xff]
      %v386 = vld [vmem:[%s310 + $0x140] sm:$0xff]
      %v387 = vld [vmem:[%s310 + $0x148] sm:$0xff]
      %v388 = vld [vmem:[%s310 + $0x150] sm:$0xff]
      %v389 = vld [vmem:[%s310 + $0x158] sm:$0xff]
      %v390 = vld [vmem:[%s310 + $0x160] sm:$0xff]
      %v391 = vld [vmem:[%s310 + $0x168] sm:$0xff]
      %v392 = vld [vmem:[%s310 + $0x170] sm:$0xff]
      %v393 = vld [vmem:[%s310 + $0x178] sm:$0xff]
      %v394 = vld [vmem:[%s310 + $0x180] sm:$0xff]
      %v395 = vld [vmem:[%s310 + $0x188] sm:$0xff]
      %v396 = vld [vmem:[%s310 + $0x190] sm:$0xff]
      %v397 = vld [vmem:[%s310 + $0x198] sm:$0xff]
      %v398 = vld [vmem:[%s310 + $0x1a0] sm:$0xff]
      %v399 = vld [vmem:[%s310 + $0x1a8] sm:$0xff]
      %v400 = vld [vmem:[%s310 + $0x1b0] sm:$0xff]
      %v401 = vld [vmem:[%s310 + $0x1b8] sm:$0xff]
      %v402 = vld [vmem:[%s310 + $0x1c0] sm:$0xff]
      %v403 = vld [vmem:[%s310 + $0x1c8] sm:$0xff]
      %v404 = vld [vmem:[%s310 + $0x1d0] sm:$0xff]
      %v405 = vld [vmem:[%s310 + $0x1d8] sm:$0xff]
      %v406 = vld [vmem:[%s310 + $0x1e0] sm:$0xff]
      %v407 = vld [vmem:[%s310 + $0x1e8] sm:$0xff]
      %v408 = vld [vmem:[%s310 + $0x1f0] sm:$0xff]
      %v409 = vld [vmem:[%s310 + $0x1f8] sm:$0xff]
      %v412 = vunpack.c.l.b16 %v344
      %v413 = vunpack.c.h.b16 %v344
      %v414 = vunpack.c.l.b16 %v345
      %v415 = vunpack.c.h.b16 %v345
      %v416 = vpack.c.b16 %v412, %v412
      %v417 = vpack.c.b16 %v413, %v413
      %v418 = vpack.c.b16 %v414, %v414
      %v419 = vpack.c.b16 %v415, %v415
      %v488 = vunpack.c.l.b16 %v346
      %v489 = vunpack.c.h.b16 %v346
      %v490 = vunpack.c.l.b16 %v347
      %v491 = vunpack.c.h.b16 %v347
      %v492 = vunpack.c.l.b16 %v348
      %v493 = vunpack.c.h.b16 %v348
      %v494 = vunpack.c.l.b16 %v349
      %v495 = vunpack.c.h.b16 %v349
      %v496 = vunpack.c.l.b16 %v350
      %v497 = vunpack.c.h.b16 %v350
      %v498 = vunpack.c.l.b16 %v351
      %v499 = vunpack.c.h.b16 %v351
      %v500 = vunpack.c.l.b16 %v352
      %v501 = vunpack.c.h.b16 %v352
      %v502 = vunpack.c.l.b16 %v353
      %v503 = vunpack.c.h.b16 %v353
      %v504 = vunpack.c.l.b16 %v354
      %v505 = vunpack.c.h.b16 %v354
      %v506 = vunpack.c.l.b16 %v355
      %v507 = vunpack.c.h.b16 %v355
      %v508 = vunpack.c.l.b16 %v356
      %v509 = vunpack.c.h.b16 %v356
      %v510 = vunpack.c.l.b16 %v357
      %v511 = vunpack.c.h.b16 %v357
      %v512 = vunpack.c.l.b16 %v358
      %v513 = vunpack.c.h.b16 %v358
      %v514 = vunpack.c.l.b16 %v359
      %v515 = vunpack.c.h.b16 %v359
      %v516 = vunpack.c.l.b16 %v360
      %v517 = vunpack.c.h.b16 %v360
      %v518 = vunpack.c.l.b16 %v361
      %v519 = vunpack.c.h.b16 %v361
      %v520 = vunpack.c.l.b16 %v362
      %v521 = vunpack.c.h.b16 %v362
      %v522 = vunpack.c.l.b16 %v363
      %v523 = vunpack.c.h.b16 %v363
      %v524 = vunpack.c.l.b16 %v364
      %v525 = vunpack.c.h.b16 %v364
      %v526 = vunpack.c.l.b16 %v365
      %v527 = vunpack.c.h.b16 %v365
      %v528 = vunpack.c.l.b16 %v366
      %v529 = vunpack.c.h.b16 %v366
      %v530 = vunpack.c.l.b16 %v367
      %v531 = vunpack.c.h.b16 %v367
      %v532 = vunpack.c.l.b16 %v368
      %v533 = vunpack.c.h.b16 %v368
      %v534 = vunpack.c.l.b16 %v369
      %v535 = vunpack.c.h.b16 %v369
      %v536 = vunpack.c.l.b16 %v370
      %v537 = vunpack.c.h.b16 %v370
      %v538 = vunpack.c.l.b16 %v371
      %v539 = vunpack.c.h.b16 %v371
      %v540 = vunpack.c.l.b16 %v372
      %v541 = vunpack.c.h.b16 %v372
      %v542 = vunpack.c.l.b16 %v373
      %v543 = vunpack.c.h.b16 %v373
      %v544 = vunpack.c.l.b16 %v374
      %v545 = vunpack.c.h.b16 %v374
      %v546 = vunpack.c.l.b16 %v375
      %v547 = vunpack.c.h.b16 %v375
      %v548 = vunpack.c.l.b16 %v376
      %v549 = vunpack.c.h.b16 %v376
      %v550 = vunpack.c.l.b16 %v377
      %v551 = vunpack.c.h.b16 %v377
      %v552 = vunpack.c.l.b16 %v378
      %v553 = vunpack.c.h.b16 %v378
      %v554 = vunpack.c.l.b16 %v379
      %v555 = vunpack.c.h.b16 %v379
      %v556 = vunpack.c.l.b16 %v380
      %v557 = vunpack.c.h.b16 %v380
      %v558 = vunpack.c.l.b16 %v381
      %v559 = vunpack.c.h.b16 %v381
      %v560 = vunpack.c.l.b16 %v382
      %v561 = vunpack.c.h.b16 %v382
      %v562 = vunpack.c.l.b16 %v383
      %v563 = vunpack.c.h.b16 %v383
      %v564 = vunpack.c.l.b16 %v384
      %v565 = vunpack.c.h.b16 %v384
      %v566 = vunpack.c.l.b16 %v385
      %v567 = vunpack.c.h.b16 %v385
      %v568 = vunpack.c.l.b16 %v386
      %v569 = vunpack.c.h.b16 %v386
      %v570 = vunpack.c.l.b16 %v387
      %v571 = vunpack.c.h.b16 %v387
      %v572 = vunpack.c.l.b16 %v388
      %v573 = vunpack.c.h.b16 %v388
      %v574 = vunpack.c.l.b16 %v389
      %v575 = vunpack.c.h.b16 %v389
      %v576 = vunpack.c.l.b16 %v390
      %v577 = vunpack.c.h.b16 %v390
      %v578 = vunpack.c.l.b16 %v391
      %v579 = vunpack.c.h.b16 %v391
      %v580 = vunpack.c.l.b16 %v392
      %v581 = vunpack.c.h.b16 %v392
      %v582 = vunpack.c.l.b16 %v393
      %v583 = vunpack.c.h.b16 %v393
      %v584 = vunpack.c.l.b16 %v394
      %v585 = vunpack.c.h.b16 %v394
      %v586 = vunpack.c.l.b16 %v395
      %v587 = vunpack.c.h.b16 %v395
      %v588 = vunpack.c.l.b16 %v396
      %v589 = vunpack.c.h.b16 %v396
      %v590 = vunpack.c.l.b16 %v397
      %v591 = vunpack.c.h.b16 %v397
      %v592 = vunpack.c.l.b16 %v398
      %v593 = vunpack.c.h.b16 %v398
      %v594 = vunpack.c.l.b16 %v399
      %v595 = vunpack.c.h.b16 %v399
      %v596 = vunpack.c.l.b16 %v400
      %v597 = vunpack.c.h.b16 %v400
      %v598 = vunpack.c.l.b16 %v401
      %v599 = vunpack.c.h.b16 %v401
      %v600 = vunpack.c.l.b16 %v402
      %v601 = vunpack.c.h.b16 %v402
      %v602 = vunpack.c.l.b16 %v403
      %v603 = vunpack.c.h.b16 %v403
      %v604 = vunpack.c.l.b16 %v404
      %v605 = vunpack.c.h.b16 %v404
      %v606 = vunpack.c.l.b16 %v405
      %v607 = vunpack.c.h.b16 %v405
      %v608 = vunpack.c.l.b16 %v406
      %v609 = vunpack.c.h.b16 %v406
      %v610 = vunpack.c.l.b16 %v407
      %v611 = vunpack.c.h.b16 %v407
      %v612 = vunpack.c.l.b16 %v408
      %v613 = vunpack.c.h.b16 %v408
      %v614 = vunpack.c.l.b16 %v409
      %v615 = vunpack.c.h.b16 %v409
      %v616 = vpack.c.b16 %v490, %v488
      %v617 = vpack.c.b16 %v491, %v489
      %v618 = vpack.c.b16 %v494, %v492
      %v619 = vpack.c.b16 %v495, %v493
      %v620 = vpack.c.b16 %v498, %v496
      %v621 = vpack.c.b16 %v499, %v497
      %v622 = vpack.c.b16 %v502, %v500
      %v623 = vpack.c.b16 %v503, %v501
      %v624 = vpack.c.b16 %v506, %v504
      %v625 = vpack.c.b16 %v507, %v505
      %v626 = vpack.c.b16 %v510, %v508
      %v627 = vpack.c.b16 %v511, %v509
      %v628 = vpack.c.b16 %v514, %v512
      %v629 = vpack.c.b16 %v515, %v513
      %v630 = vpack.c.b16 %v518, %v516
      %v631 = vpack.c.b16 %v519, %v517
      %v632 = vpack.c.b16 %v522, %v520
      %v633 = vpack.c.b16 %v523, %v521
      %v634 = vpack.c.b16 %v526, %v524
      %v635 = vpack.c.b16 %v527, %v525
      %v636 = vpack.c.b16 %v530, %v528
      %v637 = vpack.c.b16 %v531, %v529
      %v638 = vpack.c.b16 %v534, %v532
      %v639 = vpack.c.b16 %v535, %v533
      %v640 = vpack.c.b16 %v538, %v536
      %v641 = vpack.c.b16 %v539, %v537
      %v642 = vpack.c.b16 %v542, %v540
      %v643 = vpack.c.b16 %v543, %v541
      %v644 = vpack.c.b16 %v546, %v544
      %v645 = vpack.c.b16 %v547, %v545
      %v646 = vpack.c.b16 %v550, %v548
      %v647 = vpack.c.b16 %v551, %v549
      %v648 = vpack.c.b16 %v554, %v552
      %v649 = vpack.c.b16 %v555, %v553
      %v650 = vpack.c.b16 %v558, %v556
      %v651 = vpack.c.b16 %v559, %v557
      %v652 = vpack.c.b16 %v562, %v560
      %v653 = vpack.c.b16 %v563, %v561
      %v654 = vpack.c.b16 %v566, %v564
      %v655 = vpack.c.b16 %v567, %v565
      %v656 = vpack.c.b16 %v570, %v568
      %v657 = vpack.c.b16 %v571, %v569
      %v658 = vpack.c.b16 %v574, %v572
      %v659 = vpack.c.b16 %v575, %v573
      %v660 = vpack.c.b16 %v578, %v576
      %v661 = vpack.c.b16 %v579, %v577
      %v662 = vpack.c.b16 %v582, %v580
      %v663 = vpack.c.b16 %v583, %v581
      %v664 = vpack.c.b16 %v586, %v584
      %v665 = vpack.c.b16 %v587, %v585
      %v666 = vpack.c.b16 %v590, %v588
      %v667 = vpack.c.b16 %v591, %v589
      %v668 = vpack.c.b16 %v594, %v592
      %v669 = vpack.c.b16 %v595, %v593
      %v670 = vpack.c.b16 %v598, %v596
      %v671 = vpack.c.b16 %v599, %v597
      %v672 = vpack.c.b16 %v602, %v600
      %v673 = vpack.c.b16 %v603, %v601
      %v674 = vpack.c.b16 %v606, %v604
      %v675 = vpack.c.b16 %v607, %v605
      %v676 = vpack.c.b16 %v610, %v608
      %v677 = vpack.c.b16 %v611, %v609
      %v678 = vpack.c.b16 %v614, %v612
      %v679 = vpack.c.b16 %v615, %v613
      %744 = vmatpush.bf16.msra.mxu0 %v630
      %745 = vmatpush.bf16.msra.mxu0 %v628
      %746 = vmatpush.bf16.msra.mxu0 %v626
      %747 = vmatpush.bf16.msra.mxu0 %v624
      %748 = vmatpush.bf16.msra.mxu0 %v622
      %749 = vmatpush.bf16.msra.mxu0 %v620
      %750 = vmatpush.bf16.msra.mxu0 %v618
      %751 = vmatpush.bf16.msra.mxu0 %v616
      %752 = vmatmul.bf16.gmra.mxu0 %v416
      %v753 = vpop.f32.mrf.mxu0
      %v754 = vadd.f32 0.0, %v753
      %v755 = vpop.f32.mrf.mxu0
      %756 = vdwg.mxu0
      %757 = vmatpush.bf16.msra.mxu0 %v646
      %758 = vmatpush.bf16.msra.mxu0 %v644
      %759 = vmatpush.bf16.msra.mxu0 %v642
      %760 = vmatpush.bf16.msra.mxu0 %v640
      %761 = vmatpush.bf16.msra.mxu0 %v638
      %762 = vmatpush.bf16.msra.mxu0 %v636
      %763 = vmatpush.bf16.msra.mxu0 %v634
      %764 = vmatpush.bf16.msra.mxu0 %v632
      %765 = vmatmul.bf16.gmra.mxu0 %v417
      %v766 = vpop.f32.mrf.mxu0
      %v767 = vadd.f32 %v754, %v766
      %v768 = vpop.f32.mrf.mxu0
      %769 = vdwg.mxu0
      %770 = vmatpush.bf16.msra.mxu0 %v662
      %771 = vmatpush.bf16.msra.mxu0 %v660
      %772 = vmatpush.bf16.msra.mxu0 %v658
      %773 = vmatpush.bf16.msra.mxu0 %v656
      %774 = vmatpush.bf16.msra.mxu0 %v654
      %775 = vmatpush.bf16.msra.mxu0 %v652
      %776 = vmatpush.bf16.msra.mxu0 %v650
      %777 = vmatpush.bf16.msra.mxu0 %v648
      %778 = vmatmul.bf16.gmra.mxu0 %v418
      %v779 = vpop.f32.mrf.mxu0
      %v780 = vadd.f32 %v767, %v779
      %v781 = vpop.f32.mrf.mxu0
      %782 = vdwg.mxu0
      %783 = vmatpush.bf16.msra.mxu0 %v678
      %784 = vmatpush.bf16.msra.mxu0 %v676
      %785 = vmatpush.bf16.msra.mxu0 %v674
      %786 = vmatpush.bf16.msra.mxu0 %v672
      %787 = vmatpush.bf16.msra.mxu0 %v670
      %788 = vmatpush.bf16.msra.mxu0 %v668
      %789 = vmatpush.bf16.msra.mxu0 %v666
      %790 = vmatpush.bf16.msra.mxu0 %v664
      %791 = vmatmul.bf16.gmra.mxu0 %v419
      %v792 = vpop.f32.mrf.mxu0
      %v793 = vadd.f32 %v780, %v792
      %v794 = vpop.f32.mrf.mxu0
      %795 = vdwg.mxu0
      %796 = vmatpush.bf16.msra.mxu0 %v631
      %797 = vmatpush.bf16.msra.mxu0 %v629
      %798 = vmatpush.bf16.msra.mxu0 %v627
      %799 = vmatpush.bf16.msra.mxu0 %v625
      %800 = vmatpush.bf16.msra.mxu0 %v623
      %801 = vmatpush.bf16.msra.mxu0 %v621
      %802 = vmatpush.bf16.msra.mxu0 %v619
      %803 = vmatpush.bf16.msra.mxu0 %v617
      %804 = vmatmul.bf16.gmra.mxu0 %v416
      %v805 = vpop.f32.mrf.mxu0
      %v806 = vadd.f32 0.0, %v805
      %v807 = vpop.f32.mrf.mxu0
      %808 = vdwg.mxu0
      %809 = vmatpush.bf16.msra.mxu0 %v647
      %810 = vmatpush.bf16.msra.mxu0 %v645
      %811 = vmatpush.bf16.msra.mxu0 %v643
      %812 = vmatpush.bf16.msra.mxu0 %v641
      %813 = vmatpush.bf16.msra.mxu0 %v639
      %814 = vmatpush.bf16.msra.mxu0 %v637
      %815 = vmatpush.bf16.msra.mxu0 %v635
      %816 = vmatpush.bf16.msra.mxu0 %v633
      %817 = vmatmul.bf16.gmra.mxu0 %v417
      %v818 = vpop.f32.mrf.mxu0
      %v819 = vadd.f32 %v806, %v818
      %v820 = vpop.f32.mrf.mxu0
      %821 = vdwg.mxu0
      %822 = vmatpush.bf16.msra.mxu0 %v663
      %823 = vmatpush.bf16.msra.mxu0 %v661
      %824 = vmatpush.bf16.msra.mxu0 %v659
      %825 = vmatpush.bf16.msra.mxu0 %v657
      %826 = vmatpush.bf16.msra.mxu0 %v655
      %827 = vmatpush.bf16.msra.mxu0 %v653
      %828 = vmatpush.bf16.msra.mxu0 %v651
      %829 = vmatpush.bf16.msra.mxu0 %v649
      %830 = vmatmul.bf16.gmra.mxu0 %v418
      %v831 = vpop.f32.mrf.mxu0
      %v832 = vadd.f32 %v819, %v831
      %v833 = vpop.f32.mrf.mxu0
      %834 = vdwg.mxu0
      %835 = vmatpush.bf16.msra.mxu0 %v679
      %836 = vmatpush.bf16.msra.mxu0 %v677
      %837 = vmatpush.bf16.msra.mxu0 %v675
      %838 = vmatpush.bf16.msra.mxu0 %v673
      %839 = vmatpush.bf16.msra.mxu0 %v671
      %840 = vmatpush.bf16.msra.mxu0 %v669
      %841 = vmatpush.bf16.msra.mxu0 %v667
      %842 = vmatpush.bf16.msra.mxu0 %v665
      %843 = vmatmul.bf16.gmra.mxu0 %v419
      %v844 = vpop.f32.mrf.mxu0
      %v845 = vadd.f32 %v832, %v844
      %v846 = vpop.f32.mrf.mxu0
      %847 = vdwg.mxu0
      %v848 = vadd.f32 %v342, %v793
      %v849 = vadd.f32 %v343, %v845
      %850 = vst [vmem:[#allocation2] sm:$0xff] %v848
      %851 = vst [vmem:[#allocation2 + $0x8] sm:$0xff] %v849
      %p852 = scmp.eq.s32.totalorder %s23, 5
      // Predicated region
      $region37: #{closed_call.223} parent=31 // pred_check
        %p853 = pneg %p852
      $region38: #{closed_call.223} parent=31 // pred_check_branch
        %855 = sbr.rel (%p853) target = $region40
      $region39: #{closed_call.223} parent=31 // pred_region
        %v856 = vld [vmem:[#allocation2] sm:$0xff]
        %v857 = vld [vmem:[#allocation2 + $0x8] sm:$0xff]
        %v858 = vld [vmem:[%s320] sm:$0x3]
        %v860 = vperm.slane %v858, 0
        %v861 = vperm.slane %v858, 1
        %v864 = vadd.f32 %v856, %v860
        %v865 = vadd.f32 %v857, %v861
        %866 = vst [vmem:[%s334] sm:$0xff] %v864
        %867 = vst [vmem:[%s334 + $0x8] sm:$0xff] %v865
      $region40: #{closed_call.223} parent=31 // pred_fallthru
        _
      %s868 = smul.u32 2, %s22
      %p869 = scmp.lt.s32.totalorder %s20, 0
      %s870 = scalar_select %p869, %s20, 0
      %p871 = scmp.lt.s32.totalorder %s21, 0
      %s872 = scalar_select %p871, %s21, 0
      %p873 = scmp.lt.s32.totalorder %s868, 1
      %s874 = scalar_select %p873, %s868, 1
      %s875 = smul.addr %s872, 2
      %s876 = sadd.s32 %s874, %s875
      %s877 = smul.addr %s870, 2
      %s878 = sadd.s32 %s876, %s877
      %s879 = smul.addr %s878, 8
      %s880 = scalar_lea.vmem %s3, %s879
      // Predicated region
      $region41: #{closed_call.223} parent=31 // pred_check
        %p881 = pneg %p150
      $region42: #{closed_call.223} parent=31 // pred_check_branch
        %883 = sbr.rel (%p881) target = $region44
      $region43: #{closed_call.223} parent=31 // pred_region
        %s884 = smul.u32 2, %s22
      $region44: #{closed_call.223} parent=31 // pred_fallthru
        _
      // Predicated region
      $region45: #{closed_call.223} parent=31 // pred_check
        %p885 = pneg %p150
      $region46: #{closed_call.223} parent=31 // pred_check_branch
        %887 = sbr.rel (%p885) target = $region48
      $region47: #{closed_call.223} parent=31 // pred_region
        %s888 = smul.u32 2, %s22
        %p889 = scmp.lt.s32.totalorder %s20, 0
        %s890 = scalar_select %p889, %s20, 0
        %p891 = scmp.lt.s32.totalorder %s21, 0
        %s892 = scalar_select %p891, %s21, 0
        %p893 = scmp.lt.s32.totalorder %s888, 1
        %s894 = scalar_select %p893, %s888, 1
        %s895 = smul.addr %s892, 2
        %s896 = sadd.s32 %s894, %s895
        %s897 = smul.addr %s890, 2
        %s898 = sadd.s32 %s896, %s897
        %s899 = smul.addr %s898, 8
        %s900 = scalar_lea.vmem %s3, %s899
      $region48: #{closed_call.223} parent=31 // pred_fallthru
        _
    $region32: #{closed_call.223} parent=5 // pred_fallthru
      _
    %p901 = scmp.le.s32.totalorder 2, %s9
    // Predicated region
    $region49: #{closed_call.223} parent=5 // pred_check
      %p902 = pneg %p901
    $region50: #{closed_call.223} parent=5 // pred_check_branch
      %904 = sbr.rel (%p902) target = $region52
    $region51: #{closed_call.223} parent=5 // pred_region
      %s905 = ssub.s32 %s9, 2
    $region52: #{closed_call.223} parent=5 // pred_fallthru
      _
  $region6: #{closed_call.223} parent=0 // loop_footer
    %s13 = sadd.s32 1, %s9
  $region7: #{closed_call.223} parent=0 // loop_footer_branch
    %8 = sbr.rel target = $region3
  $region8: #{closed_call.223} parent=0 // loop_exit
    _

// kernel: closed_call.226
$region0: #{closed_call.226}
  #allocation0 [shape = 'u32[]', space=smem, size = 0x4, offset = 0x4, fixed_abs, tag = 'smem constant byte address 0x4 - core index']
  #allocation1 [shape = 'u32[72,128]{1,0:T(1,128)}', space=vmem, size = 0x9000, scoped, tag = 'internal scratch']
  #allocation2 [shape = 'f32[8,128]{1,0:T(8,128)}', space=vmem, size = 0x1000, scoped, tag = 'scratch operand']
  %s0 = inlined_call_operand.vmem [shape: bf16[1,8,3072], index: 0, kind: input, shape index: {}]
  %s1 = inlined_call_operand.vmem [shape: bf16[1,3072,128], index: 1, kind: input, shape index: {}]
  %s2 = inlined_call_operand.vmem [shape: f32[1,1,128], index: 2, kind: input, shape index: {}]
  %s3 = inlined_call_operand.vmem [shape: f32[1,8,128], index: 3, kind: output, shape index: {}]
  %s4 = sld [smem:[#allocation0]]
  $region53: #{closed_call.226} parent=0
    _
  %s6 = ssub.s32 1, %s4
  %s7 = scalar_select 0, %s6, %s4
  loop: start=0, step=1, limit=8
  $region2: #{closed_call.226} parent=0 // loop_pre_header
    _
  $region3: #{closed_call.226} parent=0 // loop_header
    %s9 = sphi 0, %s13
    %p10 = scmp.ge.s32.totalorder %s9, 8
    %s16 = sphi 0, %s42
    %s17 = sphi 0, %s38
    %s18 = sphi 0, %s34
    %s19 = sphi 0, %s30
    %s20 = sphi 0, %s16
    %s21 = sphi 0, %s17
    %s22 = sphi 0, %s18
    %s23 = sphi 0, %s19
    %s24 = sphi 0, %s20
    %s25 = sphi 0, %s21
    %s26 = sphi 0, %s22
    %s27 = sphi 0, %s23
    %s49 = sphi 0, %s51
    %s52 = sphi 0, %s49
    %s53 = sphi 0, %s52
    %s69 = sphi 0, %s53
    %s79 = sphi 0, %s81
    %s82 = sphi 0, %s79
    %s83 = sphi 0, %s82
    %s99 = sphi 0, %s83
    %s107 = sphi 0, %s109
    %s110 = sphi 0, %s107
    %s111 = sphi 0, %s110
    %s127 = sphi 0, %s111
    %s137 = sphi 0, %s139
    %s140 = sphi 0, %s137
    %s141 = sphi 0, %s140
    %s157 = sphi 0, %s141
  $region4: #{closed_call.226} parent=0 // loop_header_branch
    %12 = sbr.rel (%p10) target = $region8
  $region5: #{closed_call.226} parent=0 // loop_body
    %s14 = ssub.s32 %s9, 1
    %s15 = ssub.s32 %s9, 2
    %s28 = sadd.s32 1, %s19
    %p29 = scmp.ge.s32.totalorder %s28, 6
    %s30 = scalar_select %p29, 0, %s28
    %s31 = sadd.s32 1, %s18
    %s32 = scalar_select %p29, %s31, %s18
    %p33 = scmp.ge.s32.totalorder %s32, 1
    %s34 = scalar_select %p33, 0, %s32
    %s35 = sadd.s32 1, %s17
    %s36 = scalar_select %p33, %s35, %s17
    %p37 = scmp.ge.s32.totalorder %s36, 1
    %s38 = scalar_select %p37, 0, %s36
    %s39 = sadd.s32 1, %s16
    %s40 = scalar_select %p37, %s39, %s16
    %p41 = scmp.ge.s32.totalorder %s40, 1
    %s42 = scalar_select %p41, 0, %s40
    %s43 = ssub.s32 %s16, %s42
    %s44 = ssub.s32 %s17, %s38
    %s45 = sor.u32 %s43, %s44
    %s46 = ssub.s32 %s19, %s30
    %s47 = sor.u32 %s45, %s46
    %p48 = scmp.eq.s32.totalorder %s47, 0
    %s50 = sadd.s32 %s49, 1
    %s51 = scalar_select %p48, %s49, %s50
    %p54 = pneg %p48
    %p55 = scmp.eq.s32.totalorder %s9, 5
    %p56 = por %p54, %p55
    %p57 = scmp.ne.s32.totalorder %s49, %s52
    %p58 = scmp.eq.s32.totalorder %s9, 0
    %p59 = por %p57, %p58
    %p60 = scmp.ne.s32.totalorder %s49, %s52
    %p61 = scmp.eq.s32.totalorder %s14, 5
    %p62 = por %p60, %p61
    %p63 = scmp.ne.s32.totalorder %s52, %s53
    %p64 = scmp.eq.s32.totalorder %s14, 0
    %p65 = por %p63, %p64
    %p66 = scmp.ne.s32.totalorder %s52, %s53
    %p67 = scmp.eq.s32.totalorder %s15, 5
    %p68 = por %p66, %p67
    %p70 = scmp.ne.s32.totalorder %s53, %s69
    %p71 = scmp.eq.s32.totalorder %s15, 0
    %p72 = por %p70, %p71
    %s73 = ssub.s32 %s16, %s42
    %s74 = ssub.s32 %s19, %s30
    %s75 = sor.u32 %s73, %s74
    %s76 = ssub.s32 %s18, %s34
    %s77 = sor.u32 %s75, %s76
    %p78 = scmp.eq.s32.totalorder %s77, 0
    %s80 = sadd.s32 %s79, 1
    %s81 = scalar_select %p78, %s79, %s80
    %p84 = pneg %p78
    %p85 = scmp.eq.s32.totalorder %s9, 5
    %p86 = por %p84, %p85
    %p87 = scmp.ne.s32.totalorder %s79, %s82
    %p88 = scmp.eq.s32.totalorder %s9, 0
    %p89 = por %p87, %p88
    %p90 = scmp.ne.s32.totalorder %s79, %s82
    %p91 = scmp.eq.s32.totalorder %s14, 5
    %p92 = por %p90, %p91
    %p93 = scmp.ne.s32.totalorder %s82, %s83
    %p94 = scmp.eq.s32.totalorder %s14, 0
    %p95 = por %p93, %p94
    %p96 = scmp.ne.s32.totalorder %s82, %s83
    %p97 = scmp.eq.s32.totalorder %s15, 5
    %p98 = por %p96, %p97
    %p100 = scmp.ne.s32.totalorder %s83, %s99
    %p101 = scmp.eq.s32.totalorder %s15, 0
    %p102 = por %p100, %p101
    %s103 = ssub.s32 %s16, %s42
    %s104 = ssub.s32 %s18, %s34
    %s105 = sor.u32 %s103, %s104
    %p106 = scmp.eq.s32.totalorder %s105, 0
    %s108 = sadd.s32 %s107, 1
    %s109 = scalar_select %p106, %s107, %s108
    %p112 = pneg %p106
    %p113 = scmp.eq.s32.totalorder %s9, 5
    %p114 = por %p112, %p113
    %p115 = scmp.ne.s32.totalorder %s107, %s110
    %p116 = scmp.eq.s32.totalorder %s9, 0
    %p117 = por %p115, %p116
    %p118 = scmp.ne.s32.totalorder %s107, %s110
    %p119 = scmp.eq.s32.totalorder %s14, 5
    %p120 = por %p118, %p119
    %p121 = scmp.ne.s32.totalorder %s110, %s111
    %p122 = scmp.eq.s32.totalorder %s14, 0
    %p123 = por %p121, %p122
    %p124 = scmp.ne.s32.totalorder %s110, %s111
    %p125 = scmp.eq.s32.totalorder %s15, 5
    %p126 = por %p124, %p125
    %p128 = scmp.ne.s32.totalorder %s111, %s127
    %p129 = scmp.eq.s32.totalorder %s15, 0
    %p130 = por %p128, %p129
    %s131 = ssub.s32 %s16, %s42
    %s132 = ssub.s32 %s17, %s38
    %s133 = sor.u32 %s131, %s132
    %s134 = ssub.s32 %s18, %s34
    %s135 = sor.u32 %s133, %s134
    %p136 = scmp.eq.s32.totalorder %s135, 0
    %s138 = sadd.s32 %s137, 1
    %s139 = scalar_select %p136, %s137, %s138
    %p142 = pneg %p136
    %p143 = scmp.eq.s32.totalorder %s9, 5
    %p144 = por %p142, %p143
    %p145 = scmp.ne.s32.totalorder %s137, %s140
    %p146 = scmp.eq.s32.totalorder %s9, 0
    %p147 = por %p145, %p146
    %p148 = scmp.ne.s32.totalorder %s137, %s140
    %p149 = scmp.eq.s32.totalorder %s14, 5
    %p150 = por %p148, %p149
    %p151 = scmp.ne.s32.totalorder %s140, %s141
    %p152 = scmp.eq.s32.totalorder %s14, 0
    %p153 = por %p151, %p152
    %p154 = scmp.ne.s32.totalorder %s140, %s141
    %p155 = scmp.eq.s32.totalorder %s15, 5
    %p156 = por %p154, %p155
    %p158 = scmp.ne.s32.totalorder %s141, %s157
    %p159 = scmp.eq.s32.totalorder %s15, 0
    %p160 = por %p158, %p159
    %p161 = scmp.le.s32.totalorder 1, %s9
    %p162 = scmp.lt.s32.totalorder %s9, 7
    %p163 = pnand %p161, %p162
    %p164 = pneg %p163
    // Predicated region
    $region9: #{closed_call.226} parent=5 // pred_check
      _
    $region10: #{closed_call.226} parent=5 // pred_check_branch
      %166 = sbr.rel (%p163) target = $region12
    $region11: #{closed_call.226} parent=5 // pred_region
      %s167 = ssub.s32 %s9, 1
      // Predicated region
      $region13: #{closed_call.226} parent=11 // pred_check
        %p168 = pneg %p123
      $region14: #{closed_call.226} parent=11 // pred_check_branch
        %170 = sbr.rel (%p168) target = $region16
      $region15: #{closed_call.226} parent=11 // pred_region
        %p171 = scmp.lt.s32.totalorder %s20, 0
        %s172 = scalar_select %p171, %s20, 0
        %p173 = scmp.lt.s32.totalorder %s22, 0
        %s174 = scalar_select %p173, %s22, 0
        %s175 = sadd.s32 %s174, %s172
        %s176 = scalar_lea.vmem %s2, %s175
      $region16: #{closed_call.226} parent=11 // pred_fallthru
        _
    $region12: #{closed_call.226} parent=5 // pred_fallthru
      _
    %p177 = scmp.lt.s32.totalorder %s9, 6
    // Predicated region
    $region17: #{closed_call.226} parent=5 // pred_check
      %p178 = pneg %p177
    $region18: #{closed_call.226} parent=5 // pred_check_branch
      %180 = sbr.rel (%p178) target = $region20
    $region19: #{closed_call.226} parent=5 // pred_region
      // Predicated region
      $region21: #{closed_call.226} parent=19 // pred_check
        %p181 = pneg %p59
      $region22: #{closed_call.226} parent=19 // pred_check_branch
        %183 = sbr.rel (%p181) target = $region24
      $region23: #{closed_call.226} parent=19 // pred_region
        %s184 = smul.u32 4, %s19
        %p185 = scmp.lt.s32.totalorder %s16, 0
        %s186 = scalar_select %p185, %s16, 0
        %p187 = scmp.lt.s32.totalorder %s17, 0
        %s188 = scalar_select %p187, %s17, 0
        %p189 = scmp.lt.s32.totalorder %s184, 23
        %s190 = scalar_select %p189, %s184, 23
        %s191 = smul.addr %s188, 24
        %s192 = sadd.s32 %s190, %s191
        %s193 = smul.addr %s186, 24
        %s194 = sadd.s32 %s192, %s193
        %s195 = smul.addr %s194, 4
        %s196 = scalar_lea.vmem %s0, %s195
        %s197 = smul.u32 4, %s19
      $region24: #{closed_call.226} parent=19 // pred_fallthru
        _
      // Predicated region
      $region25: #{closed_call.226} parent=19 // pred_check
        %p198 = pneg %p89
      $region26: #{closed_call.226} parent=19 // pred_check_branch
        %200 = sbr.rel (%p198) target = $region28
      $region27: #{closed_call.226} parent=19 // pred_region
        %s201 = smul.u32 64, %s19
        %p202 = scmp.lt.s32.totalorder %s16, 0
        %s203 = scalar_select %p202, %s16, 0
        %p204 = scmp.lt.s32.totalorder %s201, 383
        %s205 = scalar_select %p204, %s201, 383
        %p206 = scmp.lt.s32.totalorder %s18, 0
        %s207 = scalar_select %p206, %s18, 0
        %s208 = sadd.s32 %s207, %s205
        %s209 = smul.addr %s203, 384
        %s210 = sadd.s32 %s208, %s209
        %s211 = smul.addr %s210, 4
        %s212 = scalar_lea.vmem %s1, %s211
        %s213 = smul.u32 64, %s19
      $region28: #{closed_call.226} parent=19 // pred_fallthru
        _
    $region20: #{closed_call.226} parent=5 // pred_fallthru
      _
    %p214 = scmp.le.s32.totalorder 1, %s9
    %p215 = scmp.lt.s32.totalorder %s9, 7
    %p216 = pnand %p214, %p215
    %p217 = pneg %p216
    // Predicated region
    $region29: #{closed_call.226} parent=5 // pred_check
      _
    $region30: #{closed_call.226} parent=5 // pred_check_branch
      %219 = sbr.rel (%p216) target = $region32
    $region31: #{closed_call.226} parent=5 // pred_region
      %s220 = ssub.s32 %s9, 1
      %s221 = smul.u32 4, %s23
      %p222 = scmp.lt.s32.totalorder %s20, 0
      %s223 = scalar_select %p222, %s20, 0
      %p224 = scmp.lt.s32.totalorder %s21, 0
      %s225 = scalar_select %p224, %s21, 0
      %p226 = scmp.lt.s32.totalorder %s221, 23
      %s227 = scalar_select %p226, %s221, 23
      %s228 = smul.addr %s225, 24
      %s229 = sadd.s32 %s227, %s228
      %s230 = smul.addr %s223, 24
      %s231 = sadd.s32 %s229, %s230
      %s232 = smul.addr %s231, 4
      %s233 = scalar_lea.vmem %s0, %s232
      %p234 = pneg %p65
      %p235 = pneg %p62
      %s236 = smul.u32 64, %s23
      %p237 = scmp.lt.s32.totalorder %s20, 0
      %s238 = scalar_select %p237, %s20, 0
      %p239 = scmp.lt.s32.totalorder %s236, 383
      %s240 = scalar_select %p239, %s236, 383
      %p241 = scmp.lt.s32.totalorder %s22, 0
      %s242 = scalar_select %p241, %s22, 0
      %s243 = sadd.s32 %s242, %s240
      %s244 = smul.addr %s238, 384
      %s245 = sadd.s32 %s243, %s244
      %s246 = smul.addr %s245, 4
      %s247 = scalar_lea.vmem %s1, %s246
      %p248 = pneg %p95
      %p249 = pneg %p92
      %p250 = scmp.lt.s32.totalorder %s20, 0
      %s251 = scalar_select %p250, %s20, 0
      %p252 = scmp.lt.s32.totalorder %s22, 0
      %s253 = scalar_select %p252, %s22, 0
      %s254 = sadd.s32 %s253, %s251
      %s255 = scalar_lea.vmem %s2, %s254
      %p256 = pneg %p123
      %p257 = pneg %p120
      %p258 = pneg %p153
      %p259 = pneg %p150
      %p260 = scmp.lt.s32.totalorder %s20, 0
      %s261 = scalar_select %p260, %s20, 0
      %p262 = scmp.lt.s32.totalorder %s21, 0
      %s263 = scalar_select %p262, %s21, 0
      %p264 = scmp.lt.s32.totalorder %s22, 0
      %s265 = scalar_select %p264, %s22, 0
      %s266 = sadd.s32 %s265, %s263
      %s267 = sadd.s32 %s266, %s261
      %s268 = smul.addr %s267, 8
      %s269 = scalar_lea.vmem %s3, %s268
      %s270 = smul.u32 4, %s23
      %p271 = scmp.lt.s32.totalorder %s20, 0
      %s272 = scalar_select %p271, %s20, 0
      %p273 = scmp.lt.s32.totalorder %s21, 0
      %s274 = scalar_select %p273, %s21, 0
      %p275 = scmp.lt.s32.totalorder %s270, 23
      %s276 = scalar_select %p275, %s270, 23
      %s277 = smul.addr %s274, 24
      %s278 = sadd.s32 %s276, %s277
      %s279 = smul.addr %s272, 24
      %s280 = sadd.s32 %s278, %s279
      %s281 = smul.addr %s280, 4
      %s282 = scalar_lea.vmem %s0, %s281
      %s283 = smul.u32 4, %s23
      %s284 = smul.u32 64, %s23
      %p285 = scmp.lt.s32.totalorder %s20, 0
      %s286 = scalar_select %p285, %s20, 0
      %p287 = scmp.lt.s32.totalorder %s284, 383
      %s288 = scalar_select %p287, %s284, 383
      %p289 = scmp.lt.s32.totalorder %s22, 0
      %s290 = scalar_select %p289, %s22, 0
      %s291 = sadd.s32 %s290, %s288
      %s292 = smul.addr %s286, 384
      %s293 = sadd.s32 %s291, %s292
      %s294 = smul.addr %s293, 4
      %s295 = scalar_lea.vmem %s1, %s294
      %s296 = smul.u32 64, %s23
      %p297 = scmp.lt.s32.totalorder %s20, 0
      %s298 = scalar_select %p297, %s20, 0
      %p299 = scmp.lt.s32.totalorder %s22, 0
      %s300 = scalar_select %p299, %s22, 0
      %s301 = sadd.s32 %s300, %s298
      %s302 = scalar_lea.vmem %s2, %s301
      %p303 = scmp.lt.s32.totalorder %s20, 0
      %s304 = scalar_select %p303, %s20, 0
      %p305 = scmp.lt.s32.totalorder %s21, 0
      %s306 = scalar_select %p305, %s21, 0
      %p307 = scmp.lt.s32.totalorder %s22, 0
      %s308 = scalar_select %p307, %s22, 0
      %s309 = sadd.s32 %s308, %s306
      %s310 = sadd.s32 %s309, %s304
      %s311 = smul.addr %s310, 8
      %s312 = scalar_lea.vmem %s3, %s311
      %p313 = scmp.eq.s32.totalorder %s23, 0
      // Predicated region
      $region33: #{closed_call.226} parent=31 // pred_check
        %p314 = pneg %p313
      $region34: #{closed_call.226} parent=31 // pred_check_branch
        %316 = sbr.rel (%p314) target = $region36
      $region35: #{closed_call.226} parent=31 // pred_region
        %317 = vst [vmem:[#allocation2] sm:$0xff] 0.0
      $region36: #{closed_call.226} parent=31 // pred_fallthru
        _
      %v318 = vld [vmem:[#allocation2] sm:$0xff]
      %v319 = vld [vmem:[%s282] sm:$0xff]
      %v320 = vld [vmem:[%s282 + $0x8] sm:$0xff]
      %v321 = vld [vmem:[%s295] sm:$0xf]
      %v322 = vld [vmem:[%s295 + $0x4] sm:$0xf]
      %v323 = vld [vmem:[%s295 + $0x8] sm:$0xf]
      %v324 = vld [vmem:[%s295 + $0xc] sm:$0xf]
      %v325 = vld [vmem:[%s295 + $0x10] sm:$0xf]
      %v326 = vld [vmem:[%s295 + $0x14] sm:$0xf]
      %v327 = vld [vmem:[%s295 + $0x18] sm:$0xf]
      %v328 = vld [vmem:[%s295 + $0x1c] sm:$0xf]
      %v329 = vld [vmem:[%s295 + $0x20] sm:$0xf]
      %v330 = vld [vmem:[%s295 + $0x24] sm:$0xf]
      %v331 = vld [vmem:[%s295 + $0x28] sm:$0xf]
      %v332 = vld [vmem:[%s295 + $0x2c] sm:$0xf]
      %v333 = vld [vmem:[%s295 + $0x30] sm:$0xf]
      %v334 = vld [vmem:[%s295 + $0x34] sm:$0xf]
      %v335 = vld [vmem:[%s295 + $0x38] sm:$0xf]
      %v336 = vld [vmem:[%s295 + $0x3c] sm:$0xf]
      %v337 = vld [vmem:[%s295 + $0x40] sm:$0xf]
      %v338 = vld [vmem:[%s295 + $0x44] sm:$0xf]
      %v339 = vld [vmem:[%s295 + $0x48] sm:$0xf]
      %v340 = vld [vmem:[%s295 + $0x4c] sm:$0xf]
      %v341 = vld [vmem:[%s295 + $0x50] sm:$0xf]
      %v342 = vld [vmem:[%s295 + $0x54] sm:$0xf]
      %v343 = vld [vmem:[%s295 + $0x58] sm:$0xf]
      %v344 = vld [vmem:[%s295 + $0x5c] sm:$0xf]
      %v345 = vld [vmem:[%s295 + $0x60] sm:$0xf]
      %v346 = vld [vmem:[%s295 + $0x64] sm:$0xf]
      %v347 = vld [vmem:[%s295 + $0x68] sm:$0xf]
      %v348 = vld [vmem:[%s295 + $0x6c] sm:$0xf]
      %v349 = vld [vmem:[%s295 + $0x70] sm:$0xf]
      %v350 = vld [vmem:[%s295 + $0x74] sm:$0xf]
      %v351 = vld [vmem:[%s295 + $0x78] sm:$0xf]
      %v352 = vld [vmem:[%s295 + $0x7c] sm:$0xf]
      %v353 = vld [vmem:[%s295 + $0x80] sm:$0xf]
      %v354 = vld [vmem:[%s295 + $0x84] sm:$0xf]
      %v355 = vld [vmem:[%s295 + $0x88] sm:$0xf]
      %v356 = vld [vmem:[%s295 + $0x8c] sm:$0xf]
      %v357 = vld [vmem:[%s295 + $0x90] sm:$0xf]
      %v358 = vld [vmem:[%s295 + $0x94] sm:$0xf]
      %v359 = vld [vmem:[%s295 + $0x98] sm:$0xf]
      %v360 = vld [vmem:[%s295 + $0x9c] sm:$0xf]
      %v361 = vld [vmem:[%s295 + $0xa0] sm:$0xf]
      %v362 = vld [vmem:[%s295 + $0xa4] sm:$0xf]
      %v363 = vld [vmem:[%s295 + $0xa8] sm:$0xf]
      %v364 = vld [vmem:[%s295 + $0xac] sm:$0xf]
      %v365 = vld [vmem:[%s295 + $0xb0] sm:$0xf]
      %v366 = vld [vmem:[%s295 + $0xb4] sm:$0xf]
      %v367 = vld [vmem:[%s295 + $0xb8] sm:$0xf]
      %v368 = vld [vmem:[%s295 + $0xbc] sm:$0xf]
      %v369 = vld [vmem:[%s295 + $0xc0] sm:$0xf]
      %v370 = vld [vmem:[%s295 + $0xc4] sm:$0xf]
      %v371 = vld [vmem:[%s295 + $0xc8] sm:$0xf]
      %v372 = vld [vmem:[%s295 + $0xcc] sm:$0xf]
      %v373 = vld [vmem:[%s295 + $0xd0] sm:$0xf]
      %v374 = vld [vmem:[%s295 + $0xd4] sm:$0xf]
      %v375 = vld [vmem:[%s295 + $0xd8] sm:$0xf]
      %v376 = vld [vmem:[%s295 + $0xdc] sm:$0xf]
      %v377 = vld [vmem:[%s295 + $0xe0] sm:$0xf]
      %v378 = vld [vmem:[%s295 + $0xe4] sm:$0xf]
      %v379 = vld [vmem:[%s295 + $0xe8] sm:$0xf]
      %v380 = vld [vmem:[%s295 + $0xec] sm:$0xf]
      %v381 = vld [vmem:[%s295 + $0xf0] sm:$0xf]
      %v382 = vld [vmem:[%s295 + $0xf4] sm:$0xf]
      %v383 = vld [vmem:[%s295 + $0xf8] sm:$0xf]
      %v384 = vld [vmem:[%s295 + $0xfc] sm:$0xf]
      %v387 = vunpack.c.l.b16 %v319
      %v388 = vunpack.c.h.b16 %v319
      %v389 = vunpack.c.l.b16 %v320
      %v390 = vunpack.c.h.b16 %v320
      %v391 = vpack.c.b16 %v387, %v387
      %v392 = vpack.c.b16 %v388, %v388
      %v393 = vpack.c.b16 %v389, %v389
      %v394 = vpack.c.b16 %v390, %v390
      %v463 = vunpack.c.l.b16 %v321
      %v464 = vunpack.c.l.b16 %v322
      %v465 = vunpack.c.l.b16 %v323
      %v466 = vunpack.c.l.b16 %v324
      %v467 = vunpack.c.l.b16 %v325
      %v468 = vunpack.c.l.b16 %v326
      %v469 = vunpack.c.l.b16 %v327
      %v470 = vunpack.c.l.b16 %v328
      %v471 = vunpack.c.l.b16 %v329
      %v472 = vunpack.c.l.b16 %v330
      %v473 = vunpack.c.l.b16 %v331
      %v474 = vunpack.c.l.b16 %v332
      %v475 = vunpack.c.l.b16 %v333
      %v476 = vunpack.c.l.b16 %v334
      %v477 = vunpack.c.l.b16 %v335
      %v478 = vunpack.c.l.b16 %v336
      %v479 = vunpack.c.l.b16 %v337
      %v480 = vunpack.c.l.b16 %v338
      %v481 = vunpack.c.l.b16 %v339
      %v482 = vunpack.c.l.b16 %v340
      %v483 = vunpack.c.l.b16 %v341
      %v484 = vunpack.c.l.b16 %v342
      %v485 = vunpack.c.l.b16 %v343
      %v486 = vunpack.c.l.b16 %v344
      %v487 = vunpack.c.l.b16 %v345
      %v488 = vunpack.c.l.b16 %v346
      %v489 = vunpack.c.l.b16 %v347
      %v490 = vunpack.c.l.b16 %v348
      %v491 = vunpack.c.l.b16 %v349
      %v492 = vunpack.c.l.b16 %v350
      %v493 = vunpack.c.l.b16 %v351
      %v494 = vunpack.c.l.b16 %v352
      %v495 = vunpack.c.l.b16 %v353
      %v496 = vunpack.c.l.b16 %v354
      %v497 = vunpack.c.l.b16 %v355
      %v498 = vunpack.c.l.b16 %v356
      %v499 = vunpack.c.l.b16 %v357
      %v500 = vunpack.c.l.b16 %v358
      %v501 = vunpack.c.l.b16 %v359
      %v502 = vunpack.c.l.b16 %v360
      %v503 = vunpack.c.l.b16 %v361
      %v504 = vunpack.c.l.b16 %v362
      %v505 = vunpack.c.l.b16 %v363
      %v506 = vunpack.c.l.b16 %v364
      %v507 = vunpack.c.l.b16 %v365
      %v508 = vunpack.c.l.b16 %v366
      %v509 = vunpack.c.l.b16 %v367
      %v510 = vunpack.c.l.b16 %v368
      %v511 = vunpack.c.l.b16 %v369
      %v512 = vunpack.c.l.b16 %v370
      %v513 = vunpack.c.l.b16 %v371
      %v514 = vunpack.c.l.b16 %v372
      %v515 = vunpack.c.l.b16 %v373
      %v516 = vunpack.c.l.b16 %v374
      %v517 = vunpack.c.l.b16 %v375
      %v518 = vunpack.c.l.b16 %v376
      %v519 = vunpack.c.l.b16 %v377
      %v520 = vunpack.c.l.b16 %v378
      %v521 = vunpack.c.l.b16 %v379
      %v522 = vunpack.c.l.b16 %v380
      %v523 = vunpack.c.l.b16 %v381
      %v524 = vunpack.c.l.b16 %v382
      %v525 = vunpack.c.l.b16 %v383
      %v526 = vunpack.c.l.b16 %v384
      %v527 = vpack.c.b16 %v464, %v463
      %v528 = vpack.c.b16 %v466, %v465
      %v529 = vpack.c.b16 %v468, %v467
      %v530 = vpack.c.b16 %v470, %v469
      %v531 = vpack.c.b16 %v472, %v471
      %v532 = vpack.c.b16 %v474, %v473
      %v533 = vpack.c.b16 %v476, %v475
      %v534 = vpack.c.b16 %v478, %v477
      %v535 = vpack.c.b16 %v480, %v479
      %v536 = vpack.c.b16 %v482, %v481
      %v537 = vpack.c.b16 %v484, %v483
      %v538 = vpack.c.b16 %v486, %v485
      %v539 = vpack.c.b16 %v488, %v487
      %v540 = vpack.c.b16 %v490, %v489
      %v541 = vpack.c.b16 %v492, %v491
      %v542 = vpack.c.b16 %v494, %v493
      %v543 = vpack.c.b16 %v496, %v495
      %v544 = vpack.c.b16 %v498, %v497
      %v545 = vpack.c.b16 %v500, %v499
      %v546 = vpack.c.b16 %v502, %v501
      %v547 = vpack.c.b16 %v504, %v503
      %v548 = vpack.c.b16 %v506, %v505
      %v549 = vpack.c.b16 %v508, %v507
      %v550 = vpack.c.b16 %v510, %v509
      %v551 = vpack.c.b16 %v512, %v511
      %v552 = vpack.c.b16 %v514, %v513
      %v553 = vpack.c.b16 %v516, %v515
      %v554 = vpack.c.b16 %v518, %v517
      %v555 = vpack.c.b16 %v520, %v519
      %v556 = vpack.c.b16 %v522, %v521
      %v557 = vpack.c.b16 %v524, %v523
      %v558 = vpack.c.b16 %v526, %v525
      %591 = vmatpush.bf16.msra.mxu0 %v534
      %592 = vmatpush.bf16.msra.mxu0 %v533
      %593 = vmatpush.bf16.msra.mxu0 %v532
      %594 = vmatpush.bf16.msra.mxu0 %v531
      %595 = vmatpush.bf16.msra.mxu0 %v530
      %596 = vmatpush.bf16.msra.mxu0 %v529
      %597 = vmatpush.bf16.msra.mxu0 %v528
      %598 = vmatpush.bf16.msra.mxu0 %v527
      %599 = vmatmul.bf16.gmra.mxu0 %v391
      %v600 = vpop.f32.mrf.mxu0
      %v601 = vadd.f32 0.0, %v600
      %v602 = vpop.f32.mrf.mxu0
      %603 = vdwg.mxu0
      %604 = vmatpush.bf16.msra.mxu0 %v542
      %605 = vmatpush.bf16.msra.mxu0 %v541
      %606 = vmatpush.bf16.msra.mxu0 %v540
      %607 = vmatpush.bf16.msra.mxu0 %v539
      %608 = vmatpush.bf16.msra.mxu0 %v538
      %609 = vmatpush.bf16.msra.mxu0 %v537
      %610 = vmatpush.bf16.msra.mxu0 %v536
      %611 = vmatpush.bf16.msra.mxu0 %v535
      %612 = vmatmul.bf16.gmra.mxu0 %v392
      %v613 = vpop.f32.mrf.mxu0
      %v614 = vadd.f32 %v601, %v613
      %v615 = vpop.f32.mrf.mxu0
      %616 = vdwg.mxu0
      %617 = vmatpush.bf16.msra.mxu0 %v550
      %618 = vmatpush.bf16.msra.mxu0 %v549
      %619 = vmatpush.bf16.msra.mxu0 %v548
      %620 = vmatpush.bf16.msra.mxu0 %v547
      %621 = vmatpush.bf16.msra.mxu0 %v546
      %622 = vmatpush.bf16.msra.mxu0 %v545
      %623 = vmatpush.bf16.msra.mxu0 %v544
      %624 = vmatpush.bf16.msra.mxu0 %v543
      %625 = vmatmul.bf16.gmra.mxu0 %v393
      %v626 = vpop.f32.mrf.mxu0
      %v627 = vadd.f32 %v614, %v626
      %v628 = vpop.f32.mrf.mxu0
      %629 = vdwg.mxu0
      %630 = vmatpush.bf16.msra.mxu0 %v558
      %631 = vmatpush.bf16.msra.mxu0 %v557
      %632 = vmatpush.bf16.msra.mxu0 %v556
      %633 = vmatpush.bf16.msra.mxu0 %v555
      %634 = vmatpush.bf16.msra.mxu0 %v554
      %635 = vmatpush.bf16.msra.mxu0 %v553
      %636 = vmatpush.bf16.msra.mxu0 %v552
      %637 = vmatpush.bf16.msra.mxu0 %v551
      %638 = vmatmul.bf16.gmra.mxu0 %v394
      %v639 = vpop.f32.mrf.mxu0
      %v640 = vadd.f32 %v627, %v639
      %v641 = vpop.f32.mrf.mxu0
      %642 = vdwg.mxu0
      %v643 = vadd.f32 %v318, %v640
      %644 = vst [vmem:[#allocation2] sm:$0xff] %v643
      %p645 = scmp.eq.s32.totalorder %s23, 5
      // Predicated region
      $region37: #{closed_call.226} parent=31 // pred_check
        %p646 = pneg %p645
      $region38: #{closed_call.226} parent=31 // pred_check_branch
        %648 = sbr.rel (%p646) target = $region40
      $region39: #{closed_call.226} parent=31 // pred_region
        %v649 = vld [vmem:[#allocation2] sm:$0xff]
        %v650 = vld [vmem:[%s302] sm:$0x1]
        %v652 = vperm.slane %v650, 0
        %v654 = vadd.f32 %v649, %v652
        %vm655 = vcmp.gt.f32.partialorder %v654, 0.0
        %v656 = vmul.f32 %v654, 0.2
        %v657 = vsel %vm655, %v654, %v656
        %658 = vst [vmem:[%s312] sm:$0xff] %v657
      $region40: #{closed_call.226} parent=31 // pred_fallthru
        _
      %p659 = scmp.lt.s32.totalorder %s20, 0
      %s660 = scalar_select %p659, %s20, 0
      %p661 = scmp.lt.s32.totalorder %s21, 0
      %s662 = scalar_select %p661, %s21, 0
      %p663 = scmp.lt.s32.totalorder %s22, 0
      %s664 = scalar_select %p663, %s22, 0
      %s665 = sadd.s32 %s664, %s662
      %s666 = sadd.s32 %s665, %s660
      %s667 = smul.addr %s666, 8
      %s668 = scalar_lea.vmem %s3, %s667
      // Predicated region
      $region41: #{closed_call.226} parent=31 // pred_check
        %p669 = pneg %p150
      $region42: #{closed_call.226} parent=31 // pred_check_branch
        %671 = sbr.rel (%p669) target = $region44
      $region43: #{closed_call.226} parent=31 // pred_region
        _
      $region44: #{closed_call.226} parent=31 // pred_fallthru
        _
      // Predicated region
      $region45: #{closed_call.226} parent=31 // pred_check
        %p672 = pneg %p150
      $region46: #{closed_call.226} parent=31 // pred_check_branch
        %674 = sbr.rel (%p672) target = $region48
      $region47: #{closed_call.226} parent=31 // pred_region
        %p675 = scmp.lt.s32.totalorder %s20, 0
        %s676 = scalar_select %p675, %s20, 0
        %p677 = scmp.lt.s32.totalorder %s21, 0
        %s678 = scalar_select %p677, %s21, 0
        %p679 = scmp.lt.s32.totalorder %s22, 0
        %s680 = scalar_select %p679, %s22, 0
        %s681 = sadd.s32 %s680, %s678
        %s682 = sadd.s32 %s681, %s676
        %s683 = smul.addr %s682, 8
        %s684 = scalar_lea.vmem %s3, %s683
      $region48: #{closed_call.226} parent=31 // pred_fallthru
        _
    $region32: #{closed_call.226} parent=5 // pred_fallthru
      _
    %p685 = scmp.le.s32.totalorder 2, %s9
    // Predicated region
    $region49: #{closed_call.226} parent=5 // pred_check
      %p686 = pneg %p685
    $region50: #{closed_call.226} parent=5 // pred_check_branch
      %688 = sbr.rel (%p686) target = $region52
    $region51: #{closed_call.226} parent=5 // pred_region
      %s689 = ssub.s32 %s9, 2
    $region52: #{closed_call.226} parent=5 // pred_fallthru
      _
  $region6: #{closed_call.226} parent=0 // loop_footer
    %s13 = sadd.s32 1, %s9
  $region7: #{closed_call.226} parent=0 // loop_footer_branch
    %8 = sbr.rel target = $region3
  $region8: #{closed_call.226} parent=0 // loop_exit
    _

// kernel: closed_call.227
$region0: #{closed_call.227}
  #allocation0 [shape = 'u32[]', space=smem, size = 0x4, offset = 0x4, fixed_abs, tag = 'smem constant byte address 0x4 - core index']
  #allocation1 [shape = 'u32[72,128]{1,0:T(1,128)}', space=vmem, size = 0x9000, scoped, tag = 'internal scratch']
  #allocation2 [shape = 'f32[8,128]{1,0:T(8,128)}', space=vmem, size = 0x1000, scoped, tag = 'scratch operand']
  %s0 = inlined_call_operand.vmem [shape: bf16[1,8,3584], index: 0, kind: input, shape index: {}]
  %s1 = inlined_call_operand.vmem [shape: bf16[1,3584,128], index: 1, kind: input, shape index: {}]
  %s2 = inlined_call_operand.vmem [shape: f32[1,1,128], index: 2, kind: input, shape index: {}]
  %s3 = inlined_call_operand.vmem [shape: f32[1,8,128], index: 3, kind: output, shape index: {}]
  %s4 = sld [smem:[#allocation0]]
  $region53: #{closed_call.227} parent=0
    _
  %s6 = ssub.s32 1, %s4
  %s7 = scalar_select 0, %s6, %s4
  loop: start=0, step=1, limit=9
  $region2: #{closed_call.227} parent=0 // loop_pre_header
    _
  $region3: #{closed_call.227} parent=0 // loop_header
    %s9 = sphi 0, %s13
    %p10 = scmp.ge.s32.totalorder %s9, 9
    %s16 = sphi 0, %s42
    %s17 = sphi 0, %s38
    %s18 = sphi 0, %s34
    %s19 = sphi 0, %s30
    %s20 = sphi 0, %s16
    %s21 = sphi 0, %s17
    %s22 = sphi 0, %s18
    %s23 = sphi 0, %s19
    %s24 = sphi 0, %s20
    %s25 = sphi 0, %s21
    %s26 = sphi 0, %s22
    %s27 = sphi 0, %s23
    %s49 = sphi 0, %s51
    %s52 = sphi 0, %s49
    %s53 = sphi 0, %s52
    %s69 = sphi 0, %s53
    %s79 = sphi 0, %s81
    %s82 = sphi 0, %s79
    %s83 = sphi 0, %s82
    %s99 = sphi 0, %s83
    %s107 = sphi 0, %s109
    %s110 = sphi 0, %s107
    %s111 = sphi 0, %s110
    %s127 = sphi 0, %s111
    %s137 = sphi 0, %s139
    %s140 = sphi 0, %s137
    %s141 = sphi 0, %s140
    %s157 = sphi 0, %s141
  $region4: #{closed_call.227} parent=0 // loop_header_branch
    %12 = sbr.rel (%p10) target = $region8
  $region5: #{closed_call.227} parent=0 // loop_body
    %s14 = ssub.s32 %s9, 1
    %s15 = ssub.s32 %s9, 2
    %s28 = sadd.s32 1, %s19
    %p29 = scmp.ge.s32.totalorder %s28, 7
    %s30 = scalar_select %p29, 0, %s28
    %s31 = sadd.s32 1, %s18
    %s32 = scalar_select %p29, %s31, %s18
    %p33 = scmp.ge.s32.totalorder %s32, 1
    %s34 = scalar_select %p33, 0, %s32
    %s35 = sadd.s32 1, %s17
    %s36 = scalar_select %p33, %s35, %s17
    %p37 = scmp.ge.s32.totalorder %s36, 1
    %s38 = scalar_select %p37, 0, %s36
    %s39 = sadd.s32 1, %s16
    %s40 = scalar_select %p37, %s39, %s16
    %p41 = scmp.ge.s32.totalorder %s40, 1
    %s42 = scalar_select %p41, 0, %s40
    %s43 = ssub.s32 %s16, %s42
    %s44 = ssub.s32 %s17, %s38
    %s45 = sor.u32 %s43, %s44
    %s46 = ssub.s32 %s19, %s30
    %s47 = sor.u32 %s45, %s46
    %p48 = scmp.eq.s32.totalorder %s47, 0
    %s50 = sadd.s32 %s49, 1
    %s51 = scalar_select %p48, %s49, %s50
    %p54 = pneg %p48
    %p55 = scmp.eq.s32.totalorder %s9, 6
    %p56 = por %p54, %p55
    %p57 = scmp.ne.s32.totalorder %s49, %s52
    %p58 = scmp.eq.s32.totalorder %s9, 0
    %p59 = por %p57, %p58
    %p60 = scmp.ne.s32.totalorder %s49, %s52
    %p61 = scmp.eq.s32.totalorder %s14, 6
    %p62 = por %p60, %p61
    %p63 = scmp.ne.s32.totalorder %s52, %s53
    %p64 = scmp.eq.s32.totalorder %s14, 0
    %p65 = por %p63, %p64
    %p66 = scmp.ne.s32.totalorder %s52, %s53
    %p67 = scmp.eq.s32.totalorder %s15, 6
    %p68 = por %p66, %p67
    %p70 = scmp.ne.s32.totalorder %s53, %s69
    %p71 = scmp.eq.s32.totalorder %s15, 0
    %p72 = por %p70, %p71
    %s73 = ssub.s32 %s16, %s42
    %s74 = ssub.s32 %s19, %s30
    %s75 = sor.u32 %s73, %s74
    %s76 = ssub.s32 %s18, %s34
    %s77 = sor.u32 %s75, %s76
    %p78 = scmp.eq.s32.totalorder %s77, 0
    %s80 = sadd.s32 %s79, 1
    %s81 = scalar_select %p78, %s79, %s80
    %p84 = pneg %p78
    %p85 = scmp.eq.s32.totalorder %s9, 6
    %p86 = por %p84, %p85
    %p87 = scmp.ne.s32.totalorder %s79, %s82
    %p88 = scmp.eq.s32.totalorder %s9, 0
    %p89 = por %p87, %p88
    %p90 = scmp.ne.s32.totalorder %s79, %s82
    %p91 = scmp.eq.s32.totalorder %s14, 6
    %p92 = por %p90, %p91
    %p93 = scmp.ne.s32.totalorder %s82, %s83
    %p94 = scmp.eq.s32.totalorder %s14, 0
    %p95 = por %p93, %p94
    %p96 = scmp.ne.s32.totalorder %s82, %s83
    %p97 = scmp.eq.s32.totalorder %s15, 6
    %p98 = por %p96, %p97
    %p100 = scmp.ne.s32.totalorder %s83, %s99
    %p101 = scmp.eq.s32.totalorder %s15, 0
    %p102 = por %p100, %p101
    %s103 = ssub.s32 %s16, %s42
    %s104 = ssub.s32 %s18, %s34
    %s105 = sor.u32 %s103, %s104
    %p106 = scmp.eq.s32.totalorder %s105, 0
    %s108 = sadd.s32 %s107, 1
    %s109 = scalar_select %p106, %s107, %s108
    %p112 = pneg %p106
    %p113 = scmp.eq.s32.totalorder %s9, 6
    %p114 = por %p112, %p113
    %p115 = scmp.ne.s32.totalorder %s107, %s110
    %p116 = scmp.eq.s32.totalorder %s9, 0
    %p117 = por %p115, %p116
    %p118 = scmp.ne.s32.totalorder %s107, %s110
    %p119 = scmp.eq.s32.totalorder %s14, 6
    %p120 = por %p118, %p119
    %p121 = scmp.ne.s32.totalorder %s110, %s111
    %p122 = scmp.eq.s32.totalorder %s14, 0
    %p123 = por %p121, %p122
    %p124 = scmp.ne.s32.totalorder %s110, %s111
    %p125 = scmp.eq.s32.totalorder %s15, 6
    %p126 = por %p124, %p125
    %p128 = scmp.ne.s32.totalorder %s111, %s127
    %p129 = scmp.eq.s32.totalorder %s15, 0
    %p130 = por %p128, %p129
    %s131 = ssub.s32 %s16, %s42
    %s132 = ssub.s32 %s17, %s38
    %s133 = sor.u32 %s131, %s132
    %s134 = ssub.s32 %s18, %s34
    %s135 = sor.u32 %s133, %s134
    %p136 = scmp.eq.s32.totalorder %s135, 0
    %s138 = sadd.s32 %s137, 1
    %s139 = scalar_select %p136, %s137, %s138
    %p142 = pneg %p136
    %p143 = scmp.eq.s32.totalorder %s9, 6
    %p144 = por %p142, %p143
    %p145 = scmp.ne.s32.totalorder %s137, %s140
    %p146 = scmp.eq.s32.totalorder %s9, 0
    %p147 = por %p145, %p146
    %p148 = scmp.ne.s32.totalorder %s137, %s140
    %p149 = scmp.eq.s32.totalorder %s14, 6
    %p150 = por %p148, %p149
    %p151 = scmp.ne.s32.totalorder %s140, %s141
    %p152 = scmp.eq.s32.totalorder %s14, 0
    %p153 = por %p151, %p152
    %p154 = scmp.ne.s32.totalorder %s140, %s141
    %p155 = scmp.eq.s32.totalorder %s15, 6
    %p156 = por %p154, %p155
    %p158 = scmp.ne.s32.totalorder %s141, %s157
    %p159 = scmp.eq.s32.totalorder %s15, 0
    %p160 = por %p158, %p159
    %p161 = scmp.le.s32.totalorder 1, %s9
    %p162 = scmp.lt.s32.totalorder %s9, 8
    %p163 = pnand %p161, %p162
    %p164 = pneg %p163
    // Predicated region
    $region9: #{closed_call.227} parent=5 // pred_check
      _
    $region10: #{closed_call.227} parent=5 // pred_check_branch
      %166 = sbr.rel (%p163) target = $region12
    $region11: #{closed_call.227} parent=5 // pred_region
      %s167 = ssub.s32 %s9, 1
      // Predicated region
      $region13: #{closed_call.227} parent=11 // pred_check
        %p168 = pneg %p123
      $region14: #{closed_call.227} parent=11 // pred_check_branch
        %170 = sbr.rel (%p168) target = $region16
      $region15: #{closed_call.227} parent=11 // pred_region
        %p171 = scmp.lt.s32.totalorder %s20, 0
        %s172 = scalar_select %p171, %s20, 0
        %p173 = scmp.lt.s32.totalorder %s22, 0
        %s174 = scalar_select %p173, %s22, 0
        %s175 = sadd.s32 %s174, %s172
        %s176 = scalar_lea.vmem %s2, %s175
      $region16: #{closed_call.227} parent=11 // pred_fallthru
        _
    $region12: #{closed_call.227} parent=5 // pred_fallthru
      _
    %p177 = scmp.lt.s32.totalorder %s9, 7
    // Predicated region
    $region17: #{closed_call.227} parent=5 // pred_check
      %p178 = pneg %p177
    $region18: #{closed_call.227} parent=5 // pred_check_branch
      %180 = sbr.rel (%p178) target = $region20
    $region19: #{closed_call.227} parent=5 // pred_region
      // Predicated region
      $region21: #{closed_call.227} parent=19 // pred_check
        %p181 = pneg %p59
      $region22: #{closed_call.227} parent=19 // pred_check_branch
        %183 = sbr.rel (%p181) target = $region24
      $region23: #{closed_call.227} parent=19 // pred_region
        %s184 = smul.u32 4, %s19
        %p185 = scmp.lt.s32.totalorder %s16, 0
        %s186 = scalar_select %p185, %s16, 0
        %p187 = scmp.lt.s32.totalorder %s17, 0
        %s188 = scalar_select %p187, %s17, 0
        %p189 = scmp.lt.s32.totalorder %s184, 27
        %s190 = scalar_select %p189, %s184, 27
        %s191 = smul.addr %s188, 28
        %s192 = sadd.s32 %s190, %s191
        %s193 = smul.addr %s186, 28
        %s194 = sadd.s32 %s192, %s193
        %s195 = smul.addr %s194, 4
        %s196 = scalar_lea.vmem %s0, %s195
        %s197 = smul.u32 4, %s19
      $region24: #{closed_call.227} parent=19 // pred_fallthru
        _
      // Predicated region
      $region25: #{closed_call.227} parent=19 // pred_check
        %p198 = pneg %p89
      $region26: #{closed_call.227} parent=19 // pred_check_branch
        %200 = sbr.rel (%p198) target = $region28
      $region27: #{closed_call.227} parent=19 // pred_region
        %s201 = smul.u32 64, %s19
        %p202 = scmp.lt.s32.totalorder %s16, 0
        %s203 = scalar_select %p202, %s16, 0
        %p204 = scmp.lt.s32.totalorder %s201, 447
        %s205 = scalar_select %p204, %s201, 447
        %p206 = scmp.lt.s32.totalorder %s18, 0
        %s207 = scalar_select %p206, %s18, 0
        %s208 = sadd.s32 %s207, %s205
        %s209 = smul.addr %s203, 448
        %s210 = sadd.s32 %s208, %s209
        %s211 = smul.addr %s210, 4
        %s212 = scalar_lea.vmem %s1, %s211
        %s213 = smul.u32 64, %s19
      $region28: #{closed_call.227} parent=19 // pred_fallthru
        _
    $region20: #{closed_call.227} parent=5 // pred_fallthru
      _
    %p214 = scmp.le.s32.totalorder 1, %s9
    %p215 = scmp.lt.s32.totalorder %s9, 8
    %p216 = pnand %p214, %p215
    %p217 = pneg %p216
    // Predicated region
    $region29: #{closed_call.227} parent=5 // pred_check
      _
    $region30: #{closed_call.227} parent=5 // pred_check_branch
      %219 = sbr.rel (%p216) target = $region32
    $region31: #{closed_call.227} parent=5 // pred_region
      %s220 = ssub.s32 %s9, 1
      %s221 = smul.u32 4, %s23
      %p222 = scmp.lt.s32.totalorder %s20, 0
      %s223 = scalar_select %p222, %s20, 0
      %p224 = scmp.lt.s32.totalorder %s21, 0
      %s225 = scalar_select %p224, %s21, 0
      %p226 = scmp.lt.s32.totalorder %s221, 27
      %s227 = scalar_select %p226, %s221, 27
      %s228 = smul.addr %s225, 28
      %s229 = sadd.s32 %s227, %s228
      %s230 = smul.addr %s223, 28
      %s231 = sadd.s32 %s229, %s230
      %s232 = smul.addr %s231, 4
      %s233 = scalar_lea.vmem %s0, %s232
      %p234 = pneg %p65
      %p235 = pneg %p62
      %s236 = smul.u32 64, %s23
      %p237 = scmp.lt.s32.totalorder %s20, 0
      %s238 = scalar_select %p237, %s20, 0
      %p239 = scmp.lt.s32.totalorder %s236, 447
      %s240 = scalar_select %p239, %s236, 447
      %p241 = scmp.lt.s32.totalorder %s22, 0
      %s242 = scalar_select %p241, %s22, 0
      %s243 = sadd.s32 %s242, %s240
      %s244 = smul.addr %s238, 448
      %s245 = sadd.s32 %s243, %s244
      %s246 = smul.addr %s245, 4
      %s247 = scalar_lea.vmem %s1, %s246
      %p248 = pneg %p95
      %p249 = pneg %p92
      %p250 = scmp.lt.s32.totalorder %s20, 0
      %s251 = scalar_select %p250, %s20, 0
      %p252 = scmp.lt.s32.totalorder %s22, 0
      %s253 = scalar_select %p252, %s22, 0
      %s254 = sadd.s32 %s253, %s251
      %s255 = scalar_lea.vmem %s2, %s254
      %p256 = pneg %p123
      %p257 = pneg %p120
      %p258 = pneg %p153
      %p259 = pneg %p150
      %p260 = scmp.lt.s32.totalorder %s20, 0
      %s261 = scalar_select %p260, %s20, 0
      %p262 = scmp.lt.s32.totalorder %s21, 0
      %s263 = scalar_select %p262, %s21, 0
      %p264 = scmp.lt.s32.totalorder %s22, 0
      %s265 = scalar_select %p264, %s22, 0
      %s266 = sadd.s32 %s265, %s263
      %s267 = sadd.s32 %s266, %s261
      %s268 = smul.addr %s267, 8
      %s269 = scalar_lea.vmem %s3, %s268
      %s270 = smul.u32 4, %s23
      %p271 = scmp.lt.s32.totalorder %s20, 0
      %s272 = scalar_select %p271, %s20, 0
      %p273 = scmp.lt.s32.totalorder %s21, 0
      %s274 = scalar_select %p273, %s21, 0
      %p275 = scmp.lt.s32.totalorder %s270, 27
      %s276 = scalar_select %p275, %s270, 27
      %s277 = smul.addr %s274, 28
      %s278 = sadd.s32 %s276, %s277
      %s279 = smul.addr %s272, 28
      %s280 = sadd.s32 %s278, %s279
      %s281 = smul.addr %s280, 4
      %s282 = scalar_lea.vmem %s0, %s281
      %s283 = smul.u32 4, %s23
      %s284 = smul.u32 64, %s23
      %p285 = scmp.lt.s32.totalorder %s20, 0
      %s286 = scalar_select %p285, %s20, 0
      %p287 = scmp.lt.s32.totalorder %s284, 447
      %s288 = scalar_select %p287, %s284, 447
      %p289 = scmp.lt.s32.totalorder %s22, 0
      %s290 = scalar_select %p289, %s22, 0
      %s291 = sadd.s32 %s290, %s288
      %s292 = smul.addr %s286, 448
      %s293 = sadd.s32 %s291, %s292
      %s294 = smul.addr %s293, 4
      %s295 = scalar_lea.vmem %s1, %s294
      %s296 = smul.u32 64, %s23
      %p297 = scmp.lt.s32.totalorder %s20, 0
      %s298 = scalar_select %p297, %s20, 0
      %p299 = scmp.lt.s32.totalorder %s22, 0
      %s300 = scalar_select %p299, %s22, 0
      %s301 = sadd.s32 %s300, %s298
      %s302 = scalar_lea.vmem %s2, %s301
      %p303 = scmp.lt.s32.totalorder %s20, 0
      %s304 = scalar_select %p303, %s20, 0
      %p305 = scmp.lt.s32.totalorder %s21, 0
      %s306 = scalar_select %p305, %s21, 0
      %p307 = scmp.lt.s32.totalorder %s22, 0
      %s308 = scalar_select %p307, %s22, 0
      %s309 = sadd.s32 %s308, %s306
      %s310 = sadd.s32 %s309, %s304
      %s311 = smul.addr %s310, 8
      %s312 = scalar_lea.vmem %s3, %s311
      %p313 = scmp.eq.s32.totalorder %s23, 0
      // Predicated region
      $region33: #{closed_call.227} parent=31 // pred_check
        %p314 = pneg %p313
      $region34: #{closed_call.227} parent=31 // pred_check_branch
        %316 = sbr.rel (%p314) target = $region36
      $region35: #{closed_call.227} parent=31 // pred_region
        %317 = vst [vmem:[#allocation2] sm:$0xff] 0.0
      $region36: #{closed_call.227} parent=31 // pred_fallthru
        _
      %v318 = vld [vmem:[#allocation2] sm:$0xff]
      %v319 = vld [vmem:[%s282] sm:$0xff]
      %v320 = vld [vmem:[%s282 + $0x8] sm:$0xff]
      %v321 = vld [vmem:[%s295] sm:$0xf]
      %v322 = vld [vmem:[%s295 + $0x4] sm:$0xf]
      %v323 = vld [vmem:[%s295 + $0x8] sm:$0xf]
      %v324 = vld [vmem:[%s295 + $0xc] sm:$0xf]
      %v325 = vld [vmem:[%s295 + $0x10] sm:$0xf]
      %v326 = vld [vmem:[%s295 + $0x14] sm:$0xf]
      %v327 = vld [vmem:[%s295 + $0x18] sm:$0xf]
      %v328 = vld [vmem:[%s295 + $0x1c] sm:$0xf]
      %v329 = vld [vmem:[%s295 + $0x20] sm:$0xf]
      %v330 = vld [vmem:[%s295 + $0x24] sm:$0xf]
      %v331 = vld [vmem:[%s295 + $0x28] sm:$0xf]
      %v332 = vld [vmem:[%s295 + $0x2c] sm:$0xf]
      %v333 = vld [vmem:[%s295 + $0x30] sm:$0xf]
      %v334 = vld [vmem:[%s295 + $0x34] sm:$0xf]
      %v335 = vld [vmem:[%s295 + $0x38] sm:$0xf]
      %v336 = vld [vmem:[%s295 + $0x3c] sm:$0xf]
      %v337 = vld [vmem:[%s295 + $0x40] sm:$0xf]
      %v338 = vld [vmem:[%s295 + $0x44] sm:$0xf]
      %v339 = vld [vmem:[%s295 + $0x48] sm:$0xf]
      %v340 = vld [vmem:[%s295 + $0x4c] sm:$0xf]
      %v341 = vld [vmem:[%s295 + $0x50] sm:$0xf]
      %v342 = vld [vmem:[%s295 + $0x54] sm:$0xf]
      %v343 = vld [vmem:[%s295 + $0x58] sm:$0xf]
      %v344 = vld [vmem:[%s295 + $0x5c] sm:$0xf]
      %v345 = vld [vmem:[%s295 + $0x60] sm:$0xf]
      %v346 = vld [vmem:[%s295 + $0x64] sm:$0xf]
      %v347 = vld [vmem:[%s295 + $0x68] sm:$0xf]
      %v348 = vld [vmem:[%s295 + $0x6c] sm:$0xf]
      %v349 = vld [vmem:[%s295 + $0x70] sm:$0xf]
      %v350 = vld [vmem:[%s295 + $0x74] sm:$0xf]
      %v351 = vld [vmem:[%s295 + $0x78] sm:$0xf]
      %v352 = vld [vmem:[%s295 + $0x7c] sm:$0xf]
      %v353 = vld [vmem:[%s295 + $0x80] sm:$0xf]
      %v354 = vld [vmem:[%s295 + $0x84] sm:$0xf]
      %v355 = vld [vmem:[%s295 + $0x88] sm:$0xf]
      %v356 = vld [vmem:[%s295 + $0x8c] sm:$0xf]
      %v357 = vld [vmem:[%s295 + $0x90] sm:$0xf]
      %v358 = vld [vmem:[%s295 + $0x94] sm:$0xf]
      %v359 = vld [vmem:[%s295 + $0x98] sm:$0xf]
      %v360 = vld [vmem:[%s295 + $0x9c] sm:$0xf]
      %v361 = vld [vmem:[%s295 + $0xa0] sm:$0xf]
      %v362 = vld [vmem:[%s295 + $0xa4] sm:$0xf]
      %v363 = vld [vmem:[%s295 + $0xa8] sm:$0xf]
      %v364 = vld [vmem:[%s295 + $0xac] sm:$0xf]
      %v365 = vld [vmem:[%s295 + $0xb0] sm:$0xf]
      %v366 = vld [vmem:[%s295 + $0xb4] sm:$0xf]
      %v367 = vld [vmem:[%s295 + $0xb8] sm:$0xf]
      %v368 = vld [vmem:[%s295 + $0xbc] sm:$0xf]
      %v369 = vld [vmem:[%s295 + $0xc0] sm:$0xf]
      %v370 = vld [vmem:[%s295 + $0xc4] sm:$0xf]
      %v371 = vld [vmem:[%s295 + $0xc8] sm:$0xf]
      %v372 = vld [vmem:[%s295 + $0xcc] sm:$0xf]
      %v373 = vld [vmem:[%s295 + $0xd0] sm:$0xf]
      %v374 = vld [vmem:[%s295 + $0xd4] sm:$0xf]
      %v375 = vld [vmem:[%s295 + $0xd8] sm:$0xf]
      %v376 = vld [vmem:[%s295 + $0xdc] sm:$0xf]
      %v377 = vld [vmem:[%s295 + $0xe0] sm:$0xf]
      %v378 = vld [vmem:[%s295 + $0xe4] sm:$0xf]
      %v379 = vld [vmem:[%s295 + $0xe8] sm:$0xf]
      %v380 = vld [vmem:[%s295 + $0xec] sm:$0xf]
      %v381 = vld [vmem:[%s295 + $0xf0] sm:$0xf]
      %v382 = vld [vmem:[%s295 + $0xf4] sm:$0xf]
      %v383 = vld [vmem:[%s295 + $0xf8] sm:$0xf]
      %v384 = vld [vmem:[%s295 + $0xfc] sm:$0xf]
      %v387 = vunpack.c.l.b16 %v319
      %v388 = vunpack.c.h.b16 %v319
      %v389 = vunpack.c.l.b16 %v320
      %v390 = vunpack.c.h.b16 %v320
      %v391 = vpack.c.b16 %v387, %v387
      %v392 = vpack.c.b16 %v388, %v388
      %v393 = vpack.c.b16 %v389, %v389
      %v394 = vpack.c.b16 %v390, %v390
      %v463 = vunpack.c.l.b16 %v321
      %v464 = vunpack.c.l.b16 %v322
      %v465 = vunpack.c.l.b16 %v323
      %v466 = vunpack.c.l.b16 %v324
      %v467 = vunpack.c.l.b16 %v325
      %v468 = vunpack.c.l.b16 %v326
      %v469 = vunpack.c.l.b16 %v327
      %v470 = vunpack.c.l.b16 %v328
      %v471 = vunpack.c.l.b16 %v329
      %v472 = vunpack.c.l.b16 %v330
      %v473 = vunpack.c.l.b16 %v331
      %v474 = vunpack.c.l.b16 %v332
      %v475 = vunpack.c.l.b16 %v333
      %v476 = vunpack.c.l.b16 %v334
      %v477 = vunpack.c.l.b16 %v335
      %v478 = vunpack.c.l.b16 %v336
      %v479 = vunpack.c.l.b16 %v337
      %v480 = vunpack.c.l.b16 %v338
      %v481 = vunpack.c.l.b16 %v339
      %v482 = vunpack.c.l.b16 %v340
      %v483 = vunpack.c.l.b16 %v341
      %v484 = vunpack.c.l.b16 %v342
      %v485 = vunpack.c.l.b16 %v343
      %v486 = vunpack.c.l.b16 %v344
      %v487 = vunpack.c.l.b16 %v345
      %v488 = vunpack.c.l.b16 %v346
      %v489 = vunpack.c.l.b16 %v347
      %v490 = vunpack.c.l.b16 %v348
      %v491 = vunpack.c.l.b16 %v349
      %v492 = vunpack.c.l.b16 %v350
      %v493 = vunpack.c.l.b16 %v351
      %v494 = vunpack.c.l.b16 %v352
      %v495 = vunpack.c.l.b16 %v353
      %v496 = vunpack.c.l.b16 %v354
      %v497 = vunpack.c.l.b16 %v355
      %v498 = vunpack.c.l.b16 %v356
      %v499 = vunpack.c.l.b16 %v357
      %v500 = vunpack.c.l.b16 %v358
      %v501 = vunpack.c.l.b16 %v359
      %v502 = vunpack.c.l.b16 %v360
      %v503 = vunpack.c.l.b16 %v361
      %v504 = vunpack.c.l.b16 %v362
      %v505 = vunpack.c.l.b16 %v363
      %v506 = vunpack.c.l.b16 %v364
      %v507 = vunpack.c.l.b16 %v365
      %v508 = vunpack.c.l.b16 %v366
      %v509 = vunpack.c.l.b16 %v367
      %v510 = vunpack.c.l.b16 %v368
      %v511 = vunpack.c.l.b16 %v369
      %v512 = vunpack.c.l.b16 %v370
      %v513 = vunpack.c.l.b16 %v371
      %v514 = vunpack.c.l.b16 %v372
      %v515 = vunpack.c.l.b16 %v373
      %v516 = vunpack.c.l.b16 %v374
      %v517 = vunpack.c.l.b16 %v375
      %v518 = vunpack.c.l.b16 %v376
      %v519 = vunpack.c.l.b16 %v377
      %v520 = vunpack.c.l.b16 %v378
      %v521 = vunpack.c.l.b16 %v379
      %v522 = vunpack.c.l.b16 %v380
      %v523 = vunpack.c.l.b16 %v381
      %v524 = vunpack.c.l.b16 %v382
      %v525 = vunpack.c.l.b16 %v383
      %v526 = vunpack.c.l.b16 %v384
      %v527 = vpack.c.b16 %v464, %v463
      %v528 = vpack.c.b16 %v466, %v465
      %v529 = vpack.c.b16 %v468, %v467
      %v530 = vpack.c.b16 %v470, %v469
      %v531 = vpack.c.b16 %v472, %v471
      %v532 = vpack.c.b16 %v474, %v473
      %v533 = vpack.c.b16 %v476, %v475
      %v534 = vpack.c.b16 %v478, %v477
      %v535 = vpack.c.b16 %v480, %v479
      %v536 = vpack.c.b16 %v482, %v481
      %v537 = vpack.c.b16 %v484, %v483
      %v538 = vpack.c.b16 %v486, %v485
      %v539 = vpack.c.b16 %v488, %v487
      %v540 = vpack.c.b16 %v490, %v489
      %v541 = vpack.c.b16 %v492, %v491
      %v542 = vpack.c.b16 %v494, %v493
      %v543 = vpack.c.b16 %v496, %v495
      %v544 = vpack.c.b16 %v498, %v497
      %v545 = vpack.c.b16 %v500, %v499
      %v546 = vpack.c.b16 %v502, %v501
      %v547 = vpack.c.b16 %v504, %v503
      %v548 = vpack.c.b16 %v506, %v505
      %v549 = vpack.c.b16 %v508, %v507
      %v550 = vpack.c.b16 %v510, %v509
      %v551 = vpack.c.b16 %v512, %v511
      %v552 = vpack.c.b16 %v514, %v513
      %v553 = vpack.c.b16 %v516, %v515
      %v554 = vpack.c.b16 %v518, %v517
      %v555 = vpack.c.b16 %v520, %v519
      %v556 = vpack.c.b16 %v522, %v521
      %v557 = vpack.c.b16 %v524, %v523
      %v558 = vpack.c.b16 %v526, %v525
      %591 = vmatpush.bf16.msra.mxu0 %v534
      %592 = vmatpush.bf16.msra.mxu0 %v533
      %593 = vmatpush.bf16.msra.mxu0 %v532
      %594 = vmatpush.bf16.msra.mxu0 %v531
      %595 = vmatpush.bf16.msra.mxu0 %v530
      %596 = vmatpush.bf16.msra.mxu0 %v529
      %597 = vmatpush.bf16.msra.mxu0 %v528
      %598 = vmatpush.bf16.msra.mxu0 %v527
      %599 = vmatmul.bf16.gmra.mxu0 %v391
      %v600 = vpop.f32.mrf.mxu0
      %v601 = vadd.f32 0.0, %v600
      %v602 = vpop.f32.mrf.mxu0
      %603 = vdwg.mxu0
      %604 = vmatpush.bf16.msra.mxu0 %v542
      %605 = vmatpush.bf16.msra.mxu0 %v541
      %606 = vmatpush.bf16.msra.mxu0 %v540
      %607 = vmatpush.bf16.msra.mxu0 %v539
      %608 = vmatpush.bf16.msra.mxu0 %v538
      %609 = vmatpush.bf16.msra.mxu0 %v537
      %610 = vmatpush.bf16.msra.mxu0 %v536
      %611 = vmatpush.bf16.msra.mxu0 %v535
      %612 = vmatmul.bf16.gmra.mxu0 %v392
      %v613 = vpop.f32.mrf.mxu0
      %v614 = vadd.f32 %v601, %v613
      %v615 = vpop.f32.mrf.mxu0
      %616 = vdwg.mxu0
      %617 = vmatpush.bf16.msra.mxu0 %v550
      %618 = vmatpush.bf16.msra.mxu0 %v549
      %619 = vmatpush.bf16.msra.mxu0 %v548
      %620 = vmatpush.bf16.msra.mxu0 %v547
      %621 = vmatpush.bf16.msra.mxu0 %v546
      %622 = vmatpush.bf16.msra.mxu0 %v545
      %623 = vmatpush.bf16.msra.mxu0 %v544
      %624 = vmatpush.bf16.msra.mxu0 %v543
      %625 = vmatmul.bf16.gmra.mxu0 %v393
      %v626 = vpop.f32.mrf.mxu0
      %v627 = vadd.f32 %v614, %v626
      %v628 = vpop.f32.mrf.mxu0
      %629 = vdwg.mxu0
      %630 = vmatpush.bf16.msra.mxu0 %v558
      %631 = vmatpush.bf16.msra.mxu0 %v557
      %632 = vmatpush.bf16.msra.mxu0 %v556
      %633 = vmatpush.bf16.msra.mxu0 %v555
      %634 = vmatpush.bf16.msra.mxu0 %v554
      %635 = vmatpush.bf16.msra.mxu0 %v553
      %636 = vmatpush.bf16.msra.mxu0 %v552
      %637 = vmatpush.bf16.msra.mxu0 %v551
      %638 = vmatmul.bf16.gmra.mxu0 %v394
      %v639 = vpop.f32.mrf.mxu0
      %v640 = vadd.f32 %v627, %v639
      %v641 = vpop.f32.mrf.mxu0
      %642 = vdwg.mxu0
      %v643 = vadd.f32 %v318, %v640
      %644 = vst [vmem:[#allocation2] sm:$0xff] %v643
      %p645 = scmp.eq.s32.totalorder %s23, 6
      // Predicated region
      $region37: #{closed_call.227} parent=31 // pred_check
        %p646 = pneg %p645
      $region38: #{closed_call.227} parent=31 // pred_check_branch
        %648 = sbr.rel (%p646) target = $region40
      $region39: #{closed_call.227} parent=31 // pred_region
        %v649 = vld [vmem:[#allocation2] sm:$0xff]
        %v650 = vld [vmem:[%s302] sm:$0x1]
        %v652 = vperm.slane %v650, 0
        %v654 = vadd.f32 %v649, %v652
        %vm655 = vcmp.gt.f32.partialorder %v654, 0.0
        %v656 = vmul.f32 %v654, 0.2
        %v657 = vsel %vm655, %v654, %v656
        %658 = vst [vmem:[%s312] sm:$0xff] %v657
      $region40: #{closed_call.227} parent=31 // pred_fallthru
        _
      %p659 = scmp.lt.s32.totalorder %s20, 0
      %s660 = scalar_select %p659, %s20, 0
      %p661 = scmp.lt.s32.totalorder %s21, 0
      %s662 = scalar_select %p661, %s21, 0
      %p663 = scmp.lt.s32.totalorder %s22, 0
      %s664 = scalar_select %p663, %s22, 0
      %s665 = sadd.s32 %s664, %s662
      %s666 = sadd.s32 %s665, %s660
      %s667 = smul.addr %s666, 8
      %s668 = scalar_lea.vmem %s3, %s667
      // Predicated region
      $region41: #{closed_call.227} parent=31 // pred_check
        %p669 = pneg %p150
      $region42: #{closed_call.227} parent=31 // pred_check_branch
        %671 = sbr.rel (%p669) target = $region44
      $region43: #{closed_call.227} parent=31 // pred_region
        _
      $region44: #{closed_call.227} parent=31 // pred_fallthru
        _
      // Predicated region
      $region45: #{closed_call.227} parent=31 // pred_check
        %p672 = pneg %p150
      $region46: #{closed_call.227} parent=31 // pred_check_branch
        %674 = sbr.rel (%p672) target = $region48
      $region47: #{closed_call.227} parent=31 // pred_region
        %p675 = scmp.lt.s32.totalorder %s20, 0
        %s676 = scalar_select %p675, %s20, 0
        %p677 = scmp.lt.s32.totalorder %s21, 0
        %s678 = scalar_select %p677, %s21, 0
        %p679 = scmp.lt.s32.totalorder %s22, 0
        %s680 = scalar_select %p679, %s22, 0
        %s681 = sadd.s32 %s680, %s678
        %s682 = sadd.s32 %s681, %s676
        %s683 = smul.addr %s682, 8
        %s684 = scalar_lea.vmem %s3, %s683
      $region48: #{closed_call.227} parent=31 // pred_fallthru
        _
    $region32: #{closed_call.227} parent=5 // pred_fallthru
      _
    %p685 = scmp.le.s32.totalorder 2, %s9
    // Predicated region
    $region49: #{closed_call.227} parent=5 // pred_check
      %p686 = pneg %p685
    $region50: #{closed_call.227} parent=5 // pred_check_branch
      %688 = sbr.rel (%p686) target = $region52
    $region51: #{closed_call.227} parent=5 // pred_region
      %s689 = ssub.s32 %s9, 2
    $region52: #{closed_call.227} parent=5 // pred_fallthru
      _
  $region6: #{closed_call.227} parent=0 // loop_footer
    %s13 = sadd.s32 1, %s9
  $region7: #{closed_call.227} parent=0 // loop_footer_branch
    %8 = sbr.rel target = $region3
  $region8: #{closed_call.227} parent=0 // loop_exit
    _

// kernel: closed_call.228
$region0: #{closed_call.228}
  #allocation0 [shape = 'u32[]', space=smem, size = 0x4, offset = 0x4, fixed_abs, tag = 'smem constant byte address 0x4 - core index']
  #allocation1 [shape = 'u32[72,128]{1,0:T(1,128)}', space=vmem, size = 0x9000, scoped, tag = 'internal scratch']
  #allocation2 [shape = 'f32[8,256]{1,0:T(8,128)}', space=vmem, size = 0x2000, scoped, tag = 'scratch operand']
  %s0 = inlined_call_operand.vmem [shape: bf16[1,8,4096], index: 0, kind: input, shape index: {}]
  %s1 = inlined_call_operand.vmem [shape: bf16[1,4096,256], index: 1, kind: input, shape index: {}]
  %s2 = inlined_call_operand.vmem [shape: f32[1,1,256], index: 2, kind: input, shape index: {}]
  %s3 = inlined_call_operand.vmem [shape: f32[1,8,256], index: 3, kind: output, shape index: {}]
  %s4 = sld [smem:[#allocation0]]
  $region53: #{closed_call.228} parent=0
    _
  %s6 = ssub.s32 1, %s4
  %s7 = scalar_select 0, %s6, %s4
  loop: start=0, step=1, limit=10
  $region2: #{closed_call.228} parent=0 // loop_pre_header
    _
  $region3: #{closed_call.228} parent=0 // loop_header
    %s9 = sphi 0, %s13
    %p10 = scmp.ge.s32.totalorder %s9, 10
    %s16 = sphi 0, %s42
    %s17 = sphi 0, %s38
    %s18 = sphi 0, %s34
    %s19 = sphi 0, %s30
    %s20 = sphi 0, %s16
    %s21 = sphi 0, %s17
    %s22 = sphi 0, %s18
    %s23 = sphi 0, %s19
    %s24 = sphi 0, %s20
    %s25 = sphi 0, %s21
    %s26 = sphi 0, %s22
    %s27 = sphi 0, %s23
    %s49 = sphi 0, %s51
    %s52 = sphi 0, %s49
    %s53 = sphi 0, %s52
    %s69 = sphi 0, %s53
    %s79 = sphi 0, %s81
    %s82 = sphi 0, %s79
    %s83 = sphi 0, %s82
    %s99 = sphi 0, %s83
    %s107 = sphi 0, %s109
    %s110 = sphi 0, %s107
    %s111 = sphi 0, %s110
    %s127 = sphi 0, %s111
    %s137 = sphi 0, %s139
    %s140 = sphi 0, %s137
    %s141 = sphi 0, %s140
    %s157 = sphi 0, %s141
  $region4: #{closed_call.228} parent=0 // loop_header_branch
    %12 = sbr.rel (%p10) target = $region8
  $region5: #{closed_call.228} parent=0 // loop_body
    %s14 = ssub.s32 %s9, 1
    %s15 = ssub.s32 %s9, 2
    %s28 = sadd.s32 1, %s19
    %p29 = scmp.ge.s32.totalorder %s28, 8
    %s30 = scalar_select %p29, 0, %s28
    %s31 = sadd.s32 1, %s18
    %s32 = scalar_select %p29, %s31, %s18
    %p33 = scmp.ge.s32.totalorder %s32, 1
    %s34 = scalar_select %p33, 0, %s32
    %s35 = sadd.s32 1, %s17
    %s36 = scalar_select %p33, %s35, %s17
    %p37 = scmp.ge.s32.totalorder %s36, 1
    %s38 = scalar_select %p37, 0, %s36
    %s39 = sadd.s32 1, %s16
    %s40 = scalar_select %p37, %s39, %s16
    %p41 = scmp.ge.s32.totalorder %s40, 1
    %s42 = scalar_select %p41, 0, %s40
    %s43 = ssub.s32 %s16, %s42
    %s44 = ssub.s32 %s17, %s38
    %s45 = sor.u32 %s43, %s44
    %s46 = ssub.s32 %s19, %s30
    %s47 = sor.u32 %s45, %s46
    %p48 = scmp.eq.s32.totalorder %s47, 0
    %s50 = sadd.s32 %s49, 1
    %s51 = scalar_select %p48, %s49, %s50
    %p54 = pneg %p48
    %p55 = scmp.eq.s32.totalorder %s9, 7
    %p56 = por %p54, %p55
    %p57 = scmp.ne.s32.totalorder %s49, %s52
    %p58 = scmp.eq.s32.totalorder %s9, 0
    %p59 = por %p57, %p58
    %p60 = scmp.ne.s32.totalorder %s49, %s52
    %p61 = scmp.eq.s32.totalorder %s14, 7
    %p62 = por %p60, %p61
    %p63 = scmp.ne.s32.totalorder %s52, %s53
    %p64 = scmp.eq.s32.totalorder %s14, 0
    %p65 = por %p63, %p64
    %p66 = scmp.ne.s32.totalorder %s52, %s53
    %p67 = scmp.eq.s32.totalorder %s15, 7
    %p68 = por %p66, %p67
    %p70 = scmp.ne.s32.totalorder %s53, %s69
    %p71 = scmp.eq.s32.totalorder %s15, 0
    %p72 = por %p70, %p71
    %s73 = ssub.s32 %s16, %s42
    %s74 = ssub.s32 %s19, %s30
    %s75 = sor.u32 %s73, %s74
    %s76 = ssub.s32 %s18, %s34
    %s77 = sor.u32 %s75, %s76
    %p78 = scmp.eq.s32.totalorder %s77, 0
    %s80 = sadd.s32 %s79, 1
    %s81 = scalar_select %p78, %s79, %s80
    %p84 = pneg %p78
    %p85 = scmp.eq.s32.totalorder %s9, 7
    %p86 = por %p84, %p85
    %p87 = scmp.ne.s32.totalorder %s79, %s82
    %p88 = scmp.eq.s32.totalorder %s9, 0
    %p89 = por %p87, %p88
    %p90 = scmp.ne.s32.totalorder %s79, %s82
    %p91 = scmp.eq.s32.totalorder %s14, 7
    %p92 = por %p90, %p91
    %p93 = scmp.ne.s32.totalorder %s82, %s83
    %p94 = scmp.eq.s32.totalorder %s14, 0
    %p95 = por %p93, %p94
    %p96 = scmp.ne.s32.totalorder %s82, %s83
    %p97 = scmp.eq.s32.totalorder %s15, 7
    %p98 = por %p96, %p97
    %p100 = scmp.ne.s32.totalorder %s83, %s99
    %p101 = scmp.eq.s32.totalorder %s15, 0
    %p102 = por %p100, %p101
    %s103 = ssub.s32 %s16, %s42
    %s104 = ssub.s32 %s18, %s34
    %s105 = sor.u32 %s103, %s104
    %p106 = scmp.eq.s32.totalorder %s105, 0
    %s108 = sadd.s32 %s107, 1
    %s109 = scalar_select %p106, %s107, %s108
    %p112 = pneg %p106
    %p113 = scmp.eq.s32.totalorder %s9, 7
    %p114 = por %p112, %p113
    %p115 = scmp.ne.s32.totalorder %s107, %s110
    %p116 = scmp.eq.s32.totalorder %s9, 0
    %p117 = por %p115, %p116
    %p118 = scmp.ne.s32.totalorder %s107, %s110
    %p119 = scmp.eq.s32.totalorder %s14, 7
    %p120 = por %p118, %p119
    %p121 = scmp.ne.s32.totalorder %s110, %s111
    %p122 = scmp.eq.s32.totalorder %s14, 0
    %p123 = por %p121, %p122
    %p124 = scmp.ne.s32.totalorder %s110, %s111
    %p125 = scmp.eq.s32.totalorder %s15, 7
    %p126 = por %p124, %p125
    %p128 = scmp.ne.s32.totalorder %s111, %s127
    %p129 = scmp.eq.s32.totalorder %s15, 0
    %p130 = por %p128, %p129
    %s131 = ssub.s32 %s16, %s42
    %s132 = ssub.s32 %s17, %s38
    %s133 = sor.u32 %s131, %s132
    %s134 = ssub.s32 %s18, %s34
    %s135 = sor.u32 %s133, %s134
    %p136 = scmp.eq.s32.totalorder %s135, 0
    %s138 = sadd.s32 %s137, 1
    %s139 = scalar_select %p136, %s137, %s138
    %p142 = pneg %p136
    %p143 = scmp.eq.s32.totalorder %s9, 7
    %p144 = por %p142, %p143
    %p145 = scmp.ne.s32.totalorder %s137, %s140
    %p146 = scmp.eq.s32.totalorder %s9, 0
    %p147 = por %p145, %p146
    %p148 = scmp.ne.s32.totalorder %s137, %s140
    %p149 = scmp.eq.s32.totalorder %s14, 7
    %p150 = por %p148, %p149
    %p151 = scmp.ne.s32.totalorder %s140, %s141
    %p152 = scmp.eq.s32.totalorder %s14, 0
    %p153 = por %p151, %p152
    %p154 = scmp.ne.s32.totalorder %s140, %s141
    %p155 = scmp.eq.s32.totalorder %s15, 7
    %p156 = por %p154, %p155
    %p158 = scmp.ne.s32.totalorder %s141, %s157
    %p159 = scmp.eq.s32.totalorder %s15, 0
    %p160 = por %p158, %p159
    %p161 = scmp.le.s32.totalorder 1, %s9
    %p162 = scmp.lt.s32.totalorder %s9, 9
    %p163 = pnand %p161, %p162
    %p164 = pneg %p163
    // Predicated region
    $region9: #{closed_call.228} parent=5 // pred_check
      _
    $region10: #{closed_call.228} parent=5 // pred_check_branch
      %166 = sbr.rel (%p163) target = $region12
    $region11: #{closed_call.228} parent=5 // pred_region
      %s167 = ssub.s32 %s9, 1
      // Predicated region
      $region13: #{closed_call.228} parent=11 // pred_check
        %p168 = pneg %p123
      $region14: #{closed_call.228} parent=11 // pred_check_branch
        %170 = sbr.rel (%p168) target = $region16
      $region15: #{closed_call.228} parent=11 // pred_region
        %s171 = smul.u32 2, %s22
        %p172 = scmp.lt.s32.totalorder %s20, 0
        %s173 = scalar_select %p172, %s20, 0
        %p174 = scmp.lt.s32.totalorder %s171, 1
        %s175 = scalar_select %p174, %s171, 1
        %s176 = smul.addr %s173, 2
        %s177 = sadd.s32 %s175, %s176
        %s178 = scalar_lea.vmem %s2, %s177
        %s179 = smul.u32 2, %s22
      $region16: #{closed_call.228} parent=11 // pred_fallthru
        _
    $region12: #{closed_call.228} parent=5 // pred_fallthru
      _
    %p180 = scmp.lt.s32.totalorder %s9, 8
    // Predicated region
    $region17: #{closed_call.228} parent=5 // pred_check
      %p181 = pneg %p180
    $region18: #{closed_call.228} parent=5 // pred_check_branch
      %183 = sbr.rel (%p181) target = $region20
    $region19: #{closed_call.228} parent=5 // pred_region
      // Predicated region
      $region21: #{closed_call.228} parent=19 // pred_check
        %p184 = pneg %p59
      $region22: #{closed_call.228} parent=19 // pred_check_branch
        %186 = sbr.rel (%p184) target = $region24
      $region23: #{closed_call.228} parent=19 // pred_region
        %s187 = smul.u32 4, %s19
        %p188 = scmp.lt.s32.totalorder %s16, 0
        %s189 = scalar_select %p188, %s16, 0
        %p190 = scmp.lt.s32.totalorder %s17, 0
        %s191 = scalar_select %p190, %s17, 0
        %p192 = scmp.lt.s32.totalorder %s187, 31
        %s193 = scalar_select %p192, %s187, 31
        %s194 = smul.addr %s191, 32
        %s195 = sadd.s32 %s193, %s194
        %s196 = smul.addr %s189, 32
        %s197 = sadd.s32 %s195, %s196
        %s198 = smul.addr %s197, 4
        %s199 = scalar_lea.vmem %s0, %s198
        %s200 = smul.u32 4, %s19
      $region24: #{closed_call.228} parent=19 // pred_fallthru
        _
      // Predicated region
      $region25: #{closed_call.228} parent=19 // pred_check
        %p201 = pneg %p89
      $region26: #{closed_call.228} parent=19 // pred_check_branch
        %203 = sbr.rel (%p201) target = $region28
      $region27: #{closed_call.228} parent=19 // pred_region
        %s204 = smul.u32 64, %s19
        %s205 = smul.u32 2, %s18
        %p206 = scmp.lt.s32.totalorder %s16, 0
        %s207 = scalar_select %p206, %s16, 0
        %p208 = scmp.lt.s32.totalorder %s204, 511
        %s209 = scalar_select %p208, %s204, 511
        %p210 = scmp.lt.s32.totalorder %s205, 1
        %s211 = scalar_select %p210, %s205, 1
        %s212 = smul.addr %s209, 2
        %s213 = sadd.s32 %s211, %s212
        %s214 = smul.addr %s207, 1024
        %s215 = sadd.s32 %s213, %s214
        %s216 = smul.addr %s215, 4
        %s217 = scalar_lea.vmem %s1, %s216
        %s218 = smul.u32 64, %s19
        %s219 = smul.u32 2, %s18
      $region28: #{closed_call.228} parent=19 // pred_fallthru
        _
    $region20: #{closed_call.228} parent=5 // pred_fallthru
      _
    %p220 = scmp.le.s32.totalorder 1, %s9
    %p221 = scmp.lt.s32.totalorder %s9, 9
    %p222 = pnand %p220, %p221
    %p223 = pneg %p222
    // Predicated region
    $region29: #{closed_call.228} parent=5 // pred_check
      _
    $region30: #{closed_call.228} parent=5 // pred_check_branch
      %225 = sbr.rel (%p222) target = $region32
    $region31: #{closed_call.228} parent=5 // pred_region
      %s226 = ssub.s32 %s9, 1
      %s227 = smul.u32 4, %s23
      %p228 = scmp.lt.s32.totalorder %s20, 0
      %s229 = scalar_select %p228, %s20, 0
      %p230 = scmp.lt.s32.totalorder %s21, 0
      %s231 = scalar_select %p230, %s21, 0
      %p232 = scmp.lt.s32.totalorder %s227, 31
      %s233 = scalar_select %p232, %s227, 31
      %s234 = smul.addr %s231, 32
      %s235 = sadd.s32 %s233, %s234
      %s236 = smul.addr %s229, 32
      %s237 = sadd.s32 %s235, %s236
      %s238 = smul.addr %s237, 4
      %s239 = scalar_lea.vmem %s0, %s238
      %p240 = pneg %p65
      %p241 = pneg %p62
      %s242 = smul.u32 64, %s23
      %s243 = smul.u32 2, %s22
      %p244 = scmp.lt.s32.totalorder %s20, 0
      %s245 = scalar_select %p244, %s20, 0
      %p246 = scmp.lt.s32.totalorder %s242, 511
      %s247 = scalar_select %p246, %s242, 511
      %p248 = scmp.lt.s32.totalorder %s243, 1
      %s249 = scalar_select %p248, %s243, 1
      %s250 = smul.addr %s247, 2
      %s251 = sadd.s32 %s249, %s250
      %s252 = smul.addr %s245, 1024
      %s253 = sadd.s32 %s251, %s252
      %s254 = smul.addr %s253, 4
      %s255 = scalar_lea.vmem %s1, %s254
      %p256 = pneg %p95
      %p257 = pneg %p92
      %s258 = smul.u32 2, %s22
      %p259 = scmp.lt.s32.totalorder %s20, 0
      %s260 = scalar_select %p259, %s20, 0
      %p261 = scmp.lt.s32.totalorder %s258, 1
      %s262 = scalar_select %p261, %s258, 1
      %s263 = smul.addr %s260, 2
      %s264 = sadd.s32 %s262, %s263
      %s265 = scalar_lea.vmem %s2, %s264
      %p266 = pneg %p123
      %p267 = pneg %p120
      %p268 = pneg %p153
      %p269 = pneg %p150
      %s270 = smul.u32 2, %s22
      %p271 = scmp.lt.s32.totalorder %s20, 0
      %s272 = scalar_select %p271, %s20, 0
      %p273 = scmp.lt.s32.totalorder %s21, 0
      %s274 = scalar_select %p273, %s21, 0
      %p275 = scmp.lt.s32.totalorder %s270, 1
      %s276 = scalar_select %p275, %s270, 1
      %s277 = smul.addr %s274, 2
      %s278 = sadd.s32 %s276, %s277
      %s279 = smul.addr %s272, 2
      %s280 = sadd.s32 %s278, %s279
      %s281 = smul.addr %s280, 8
      %s282 = scalar_lea.vmem %s3, %s281
      %s283 = smul.u32 4, %s23
      %p284 = scmp.lt.s32.totalorder %s20, 0
      %s285 = scalar_select %p284, %s20, 0
      %p286 = scmp.lt.s32.totalorder %s21, 0
      %s287 = scalar_select %p286, %s21, 0
      %p288 = scmp.lt.s32.totalorder %s283, 31
      %s289 = scalar_select %p288, %s283, 31
      %s290 = smul.addr %s287, 32
      %s291 = sadd.s32 %s289, %s290
      %s292 = smul.addr %s285, 32
      %s293 = sadd.s32 %s291, %s292
      %s294 = smul.addr %s293, 4
      %s295 = scalar_lea.vmem %s0, %s294
      %s296 = smul.u32 4, %s23
      %s297 = smul.u32 64, %s23
      %s298 = smul.u32 2, %s22
      %p299 = scmp.lt.s32.totalorder %s20, 0
      %s300 = scalar_select %p299, %s20, 0
      %p301 = scmp.lt.s32.totalorder %s297, 511
      %s302 = scalar_select %p301, %s297, 511
      %p303 = scmp.lt.s32.totalorder %s298, 1
      %s304 = scalar_select %p303, %s298, 1
      %s305 = smul.addr %s302, 2
      %s306 = sadd.s32 %s304, %s305
      %s307 = smul.addr %s300, 1024
      %s308 = sadd.s32 %s306, %s307
      %s309 = smul.addr %s308, 4
      %s310 = scalar_lea.vmem %s1, %s309
      %s311 = smul.u32 64, %s23
      %s312 = smul.u32 2, %s22
      %s313 = smul.u32 2, %s22
      %p314 = scmp.lt.s32.totalorder %s20, 0
      %s315 = scalar_select %p314, %s20, 0
      %p316 = scmp.lt.s32.totalorder %s313, 1
      %s317 = scalar_select %p316, %s313, 1
      %s318 = smul.addr %s315, 2
      %s319 = sadd.s32 %s317, %s318
      %s320 = scalar_lea.vmem %s2, %s319
      %s321 = smul.u32 2, %s22
      %s322 = smul.u32 2, %s22
      %p323 = scmp.lt.s32.totalorder %s20, 0
      %s324 = scalar_select %p323, %s20, 0
      %p325 = scmp.lt.s32.totalorder %s21, 0
      %s326 = scalar_select %p325, %s21, 0
      %p327 = scmp.lt.s32.totalorder %s322, 1
      %s328 = scalar_select %p327, %s322, 1
      %s329 = smul.addr %s326, 2
      %s330 = sadd.s32 %s328, %s329
      %s331 = smul.addr %s324, 2
      %s332 = sadd.s32 %s330, %s331
      %s333 = smul.addr %s332, 8
      %s334 = scalar_lea.vmem %s3, %s333
      %s335 = smul.u32 2, %s22
      %p336 = scmp.eq.s32.totalorder %s23, 0
      // Predicated region
      $region33: #{closed_call.228} parent=31 // pred_check
        %p337 = pneg %p336
      $region34: #{closed_call.228} parent=31 // pred_check_branch
        %339 = sbr.rel (%p337) target = $region36
      $region35: #{closed_call.228} parent=31 // pred_region
        %340 = vst [vmem:[#allocation2] sm:$0xff] 0.0
        %341 = vst [vmem:[#allocation2 + $0x8] sm:$0xff] 0.0
      $region36: #{closed_call.228} parent=31 // pred_fallthru
        _
      %v342 = vld [vmem:[#allocation2] sm:$0xff]
      %v343 = vld [vmem:[#allocation2 + $0x8] sm:$0xff]
      %v344 = vld [vmem:[%s295] sm:$0xff]
      %v345 = vld [vmem:[%s295 + $0x8] sm:$0xff]
      %v346 = vld [vmem:[%s310] sm:$0xff]
      %v347 = vld [vmem:[%s310 + $0x8] sm:$0xff]
      %v348 = vld [vmem:[%s310 + $0x10] sm:$0xff]
      %v349 = vld [vmem:[%s310 + $0x18] sm:$0xff]
      %v350 = vld [vmem:[%s310 + $0x20] sm:$0xff]
      %v351 = vld [vmem:[%s310 + $0x28] sm:$0xff]
      %v352 = vld [vmem:[%s310 + $0x30] sm:$0xff]
      %v353 = vld [vmem:[%s310 + $0x38] sm:$0xff]
      %v354 = vld [vmem:[%s310 + $0x40] sm:$0xff]
      %v355 = vld [vmem:[%s310 + $0x48] sm:$0xff]
      %v356 = vld [vmem:[%s310 + $0x50] sm:$0xff]
      %v357 = vld [vmem:[%s310 + $0x58] sm:$0xff]
      %v358 = vld [vmem:[%s310 + $0x60] sm:$0xff]
      %v359 = vld [vmem:[%s310 + $0x68] sm:$0xff]
      %v360 = vld [vmem:[%s310 + $0x70] sm:$0xff]
      %v361 = vld [vmem:[%s310 + $0x78] sm:$0xff]
      %v362 = vld [vmem:[%s310 + $0x80] sm:$0xff]
      %v363 = vld [vmem:[%s310 + $0x88] sm:$0xff]
      %v364 = vld [vmem:[%s310 + $0x90] sm:$0xff]
      %v365 = vld [vmem:[%s310 + $0x98] sm:$0xff]
      %v366 = vld [vmem:[%s310 + $0xa0] sm:$0xff]
      %v367 = vld [vmem:[%s310 + $0xa8] sm:$0xff]
      %v368 = vld [vmem:[%s310 + $0xb0] sm:$0xff]
      %v369 = vld [vmem:[%s310 + $0xb8] sm:$0xff]
      %v370 = vld [vmem:[%s310 + $0xc0] sm:$0xff]
      %v371 = vld [vmem:[%s310 + $0xc8] sm:$0xff]
      %v372 = vld [vmem:[%s310 + $0xd0] sm:$0xff]
      %v373 = vld [vmem:[%s310 + $0xd8] sm:$0xff]
      %v374 = vld [vmem:[%s310 + $0xe0] sm:$0xff]
      %v375 = vld [vmem:[%s310 + $0xe8] sm:$0xff]
      %v376 = vld [vmem:[%s310 + $0xf0] sm:$0xff]
      %v377 = vld [vmem:[%s310 + $0xf8] sm:$0xff]
      %v378 = vld [vmem:[%s310 + $0x100] sm:$0xff]
      %v379 = vld [vmem:[%s310 + $0x108] sm:$0xff]
      %v380 = vld [vmem:[%s310 + $0x110] sm:$0xff]
      %v381 = vld [vmem:[%s310 + $0x118] sm:$0xff]
      %v382 = vld [vmem:[%s310 + $0x120] sm:$0xff]
      %v383 = vld [vmem:[%s310 + $0x128] sm:$0xff]
      %v384 = vld [vmem:[%s310 + $0x130] sm:$0xff]
      %v385 = vld [vmem:[%s310 + $0x138] sm:$0xff]
      %v386 = vld [vmem:[%s310 + $0x140] sm:$0xff]
      %v387 = vld [vmem:[%s310 + $0x148] sm:$0xff]
      %v388 = vld [vmem:[%s310 + $0x150] sm:$0xff]
      %v389 = vld [vmem:[%s310 + $0x158] sm:$0xff]
      %v390 = vld [vmem:[%s310 + $0x160] sm:$0xff]
      %v391 = vld [vmem:[%s310 + $0x168] sm:$0xff]
      %v392 = vld [vmem:[%s310 + $0x170] sm:$0xff]
      %v393 = vld [vmem:[%s310 + $0x178] sm:$0xff]
      %v394 = vld [vmem:[%s310 + $0x180] sm:$0xff]
      %v395 = vld [vmem:[%s310 + $0x188] sm:$0xff]
      %v396 = vld [vmem:[%s310 + $0x190] sm:$0xff]
      %v397 = vld [vmem:[%s310 + $0x198] sm:$0xff]
      %v398 = vld [vmem:[%s310 + $0x1a0] sm:$0xff]
      %v399 = vld [vmem:[%s310 + $0x1a8] sm:$0xff]
      %v400 = vld [vmem:[%s310 + $0x1b0] sm:$0xff]
      %v401 = vld [vmem:[%s310 + $0x1b8] sm:$0xff]
      %v402 = vld [vmem:[%s310 + $0x1c0] sm:$0xff]
      %v403 = vld [vmem:[%s310 + $0x1c8] sm:$0xff]
      %v404 = vld [vmem:[%s310 + $0x1d0] sm:$0xff]
      %v405 = vld [vmem:[%s310 + $0x1d8] sm:$0xff]
      %v406 = vld [vmem:[%s310 + $0x1e0] sm:$0xff]
      %v407 = vld [vmem:[%s310 + $0x1e8] sm:$0xff]
      %v408 = vld [vmem:[%s310 + $0x1f0] sm:$0xff]
      %v409 = vld [vmem:[%s310 + $0x1f8] sm:$0xff]
      %v412 = vunpack.c.l.b16 %v344
      %v413 = vunpack.c.h.b16 %v344
      %v414 = vunpack.c.l.b16 %v345
      %v415 = vunpack.c.h.b16 %v345
      %v416 = vpack.c.b16 %v412, %v412
      %v417 = vpack.c.b16 %v413, %v413
      %v418 = vpack.c.b16 %v414, %v414
      %v419 = vpack.c.b16 %v415, %v415
      %v488 = vunpack.c.l.b16 %v346
      %v489 = vunpack.c.h.b16 %v346
      %v490 = vunpack.c.l.b16 %v347
      %v491 = vunpack.c.h.b16 %v347
      %v492 = vunpack.c.l.b16 %v348
      %v493 = vunpack.c.h.b16 %v348
      %v494 = vunpack.c.l.b16 %v349
      %v495 = vunpack.c.h.b16 %v349
      %v496 = vunpack.c.l.b16 %v350
      %v497 = vunpack.c.h.b16 %v350
      %v498 = vunpack.c.l.b16 %v351
      %v499 = vunpack.c.h.b16 %v351
      %v500 = vunpack.c.l.b16 %v352
      %v501 = vunpack.c.h.b16 %v352
      %v502 = vunpack.c.l.b16 %v353
      %v503 = vunpack.c.h.b16 %v353
      %v504 = vunpack.c.l.b16 %v354
      %v505 = vunpack.c.h.b16 %v354
      %v506 = vunpack.c.l.b16 %v355
      %v507 = vunpack.c.h.b16 %v355
      %v508 = vunpack.c.l.b16 %v356
      %v509 = vunpack.c.h.b16 %v356
      %v510 = vunpack.c.l.b16 %v357
      %v511 = vunpack.c.h.b16 %v357
      %v512 = vunpack.c.l.b16 %v358
      %v513 = vunpack.c.h.b16 %v358
      %v514 = vunpack.c.l.b16 %v359
      %v515 = vunpack.c.h.b16 %v359
      %v516 = vunpack.c.l.b16 %v360
      %v517 = vunpack.c.h.b16 %v360
      %v518 = vunpack.c.l.b16 %v361
      %v519 = vunpack.c.h.b16 %v361
      %v520 = vunpack.c.l.b16 %v362
      %v521 = vunpack.c.h.b16 %v362
      %v522 = vunpack.c.l.b16 %v363
      %v523 = vunpack.c.h.b16 %v363
      %v524 = vunpack.c.l.b16 %v364
      %v525 = vunpack.c.h.b16 %v364
      %v526 = vunpack.c.l.b16 %v365
      %v527 = vunpack.c.h.b16 %v365
      %v528 = vunpack.c.l.b16 %v366
      %v529 = vunpack.c.h.b16 %v366
      %v530 = vunpack.c.l.b16 %v367
      %v531 = vunpack.c.h.b16 %v367
      %v532 = vunpack.c.l.b16 %v368
      %v533 = vunpack.c.h.b16 %v368
      %v534 = vunpack.c.l.b16 %v369
      %v535 = vunpack.c.h.b16 %v369
      %v536 = vunpack.c.l.b16 %v370
      %v537 = vunpack.c.h.b16 %v370
      %v538 = vunpack.c.l.b16 %v371
      %v539 = vunpack.c.h.b16 %v371
      %v540 = vunpack.c.l.b16 %v372
      %v541 = vunpack.c.h.b16 %v372
      %v542 = vunpack.c.l.b16 %v373
      %v543 = vunpack.c.h.b16 %v373
      %v544 = vunpack.c.l.b16 %v374
      %v545 = vunpack.c.h.b16 %v374
      %v546 = vunpack.c.l.b16 %v375
      %v547 = vunpack.c.h.b16 %v375
      %v548 = vunpack.c.l.b16 %v376
      %v549 = vunpack.c.h.b16 %v376
      %v550 = vunpack.c.l.b16 %v377
      %v551 = vunpack.c.h.b16 %v377
      %v552 = vunpack.c.l.b16 %v378
      %v553 = vunpack.c.h.b16 %v378
      %v554 = vunpack.c.l.b16 %v379
      %v555 = vunpack.c.h.b16 %v379
      %v556 = vunpack.c.l.b16 %v380
      %v557 = vunpack.c.h.b16 %v380
      %v558 = vunpack.c.l.b16 %v381
      %v559 = vunpack.c.h.b16 %v381
      %v560 = vunpack.c.l.b16 %v382
      %v561 = vunpack.c.h.b16 %v382
      %v562 = vunpack.c.l.b16 %v383
      %v563 = vunpack.c.h.b16 %v383
      %v564 = vunpack.c.l.b16 %v384
      %v565 = vunpack.c.h.b16 %v384
      %v566 = vunpack.c.l.b16 %v385
      %v567 = vunpack.c.h.b16 %v385
      %v568 = vunpack.c.l.b16 %v386
      %v569 = vunpack.c.h.b16 %v386
      %v570 = vunpack.c.l.b16 %v387
      %v571 = vunpack.c.h.b16 %v387
      %v572 = vunpack.c.l.b16 %v388
      %v573 = vunpack.c.h.b16 %v388
      %v574 = vunpack.c.l.b16 %v389
      %v575 = vunpack.c.h.b16 %v389
      %v576 = vunpack.c.l.b16 %v390
      %v577 = vunpack.c.h.b16 %v390
      %v578 = vunpack.c.l.b16 %v391
      %v579 = vunpack.c.h.b16 %v391
      %v580 = vunpack.c.l.b16 %v392
      %v581 = vunpack.c.h.b16 %v392
      %v582 = vunpack.c.l.b16 %v393
      %v583 = vunpack.c.h.b16 %v393
      %v584 = vunpack.c.l.b16 %v394
      %v585 = vunpack.c.h.b16 %v394
      %v586 = vunpack.c.l.b16 %v395
      %v587 = vunpack.c.h.b16 %v395
      %v588 = vunpack.c.l.b16 %v396
      %v589 = vunpack.c.h.b16 %v396
      %v590 = vunpack.c.l.b16 %v397
      %v591 = vunpack.c.h.b16 %v397
      %v592 = vunpack.c.l.b16 %v398
      %v593 = vunpack.c.h.b16 %v398
      %v594 = vunpack.c.l.b16 %v399
      %v595 = vunpack.c.h.b16 %v399
      %v596 = vunpack.c.l.b16 %v400
      %v597 = vunpack.c.h.b16 %v400
      %v598 = vunpack.c.l.b16 %v401
      %v599 = vunpack.c.h.b16 %v401
      %v600 = vunpack.c.l.b16 %v402
      %v601 = vunpack.c.h.b16 %v402
      %v602 = vunpack.c.l.b16 %v403
      %v603 = vunpack.c.h.b16 %v403
      %v604 = vunpack.c.l.b16 %v404
      %v605 = vunpack.c.h.b16 %v404
      %v606 = vunpack.c.l.b16 %v405
      %v607 = vunpack.c.h.b16 %v405
      %v608 = vunpack.c.l.b16 %v406
      %v609 = vunpack.c.h.b16 %v406
      %v610 = vunpack.c.l.b16 %v407
      %v611 = vunpack.c.h.b16 %v407
      %v612 = vunpack.c.l.b16 %v408
      %v613 = vunpack.c.h.b16 %v408
      %v614 = vunpack.c.l.b16 %v409
      %v615 = vunpack.c.h.b16 %v409
      %v616 = vpack.c.b16 %v490, %v488
      %v617 = vpack.c.b16 %v491, %v489
      %v618 = vpack.c.b16 %v494, %v492
      %v619 = vpack.c.b16 %v495, %v493
      %v620 = vpack.c.b16 %v498, %v496
      %v621 = vpack.c.b16 %v499, %v497
      %v622 = vpack.c.b16 %v502, %v500
      %v623 = vpack.c.b16 %v503, %v501
      %v624 = vpack.c.b16 %v506, %v504
      %v625 = vpack.c.b16 %v507, %v505
      %v626 = vpack.c.b16 %v510, %v508
      %v627 = vpack.c.b16 %v511, %v509
      %v628 = vpack.c.b16 %v514, %v512
      %v629 = vpack.c.b16 %v515, %v513
      %v630 = vpack.c.b16 %v518, %v516
      %v631 = vpack.c.b16 %v519, %v517
      %v632 = vpack.c.b16 %v522, %v520
      %v633 = vpack.c.b16 %v523, %v521
      %v634 = vpack.c.b16 %v526, %v524
      %v635 = vpack.c.b16 %v527, %v525
      %v636 = vpack.c.b16 %v530, %v528
      %v637 = vpack.c.b16 %v531, %v529
      %v638 = vpack.c.b16 %v534, %v532
      %v639 = vpack.c.b16 %v535, %v533
      %v640 = vpack.c.b16 %v538, %v536
      %v641 = vpack.c.b16 %v539, %v537
      %v642 = vpack.c.b16 %v542, %v540
      %v643 = vpack.c.b16 %v543, %v541
      %v644 = vpack.c.b16 %v546, %v544
      %v645 = vpack.c.b16 %v547, %v545
      %v646 = vpack.c.b16 %v550, %v548
      %v647 = vpack.c.b16 %v551, %v549
      %v648 = vpack.c.b16 %v554, %v552
      %v649 = vpack.c.b16 %v555, %v553
      %v650 = vpack.c.b16 %v558, %v556
      %v651 = vpack.c.b16 %v559, %v557
      %v652 = vpack.c.b16 %v562, %v560
      %v653 = vpack.c.b16 %v563, %v561
      %v654 = vpack.c.b16 %v566, %v564
      %v655 = vpack.c.b16 %v567, %v565
      %v656 = vpack.c.b16 %v570, %v568
      %v657 = vpack.c.b16 %v571, %v569
      %v658 = vpack.c.b16 %v574, %v572
      %v659 = vpack.c.b16 %v575, %v573
      %v660 = vpack.c.b16 %v578, %v576
      %v661 = vpack.c.b16 %v579, %v577
      %v662 = vpack.c.b16 %v582, %v580
      %v663 = vpack.c.b16 %v583, %v581
      %v664 = vpack.c.b16 %v586, %v584
      %v665 = vpack.c.b16 %v587, %v585
      %v666 = vpack.c.b16 %v590, %v588
      %v667 = vpack.c.b16 %v591, %v589
      %v668 = vpack.c.b16 %v594, %v592
      %v669 = vpack.c.b16 %v595, %v593
      %v670 = vpack.c.b16 %v598, %v596
      %v671 = vpack.c.b16 %v599, %v597
      %v672 = vpack.c.b16 %v602, %v600
      %v673 = vpack.c.b16 %v603, %v601
      %v674 = vpack.c.b16 %v606, %v604
      %v675 = vpack.c.b16 %v607, %v605
      %v676 = vpack.c.b16 %v610, %v608
      %v677 = vpack.c.b16 %v611, %v609
      %v678 = vpack.c.b16 %v614, %v612
      %v679 = vpack.c.b16 %v615, %v613
      %744 = vmatpush.bf16.msra.mxu0 %v630
      %745 = vmatpush.bf16.msra.mxu0 %v628
      %746 = vmatpush.bf16.msra.mxu0 %v626
      %747 = vmatpush.bf16.msra.mxu0 %v624
      %748 = vmatpush.bf16.msra.mxu0 %v622
      %749 = vmatpush.bf16.msra.mxu0 %v620
      %750 = vmatpush.bf16.msra.mxu0 %v618
      %751 = vmatpush.bf16.msra.mxu0 %v616
      %752 = vmatmul.bf16.gmra.mxu0 %v416
      %v753 = vpop.f32.mrf.mxu0
      %v754 = vadd.f32 0.0, %v753
      %v755 = vpop.f32.mrf.mxu0
      %756 = vdwg.mxu0
      %757 = vmatpush.bf16.msra.mxu0 %v646
      %758 = vmatpush.bf16.msra.mxu0 %v644
      %759 = vmatpush.bf16.msra.mxu0 %v642
      %760 = vmatpush.bf16.msra.mxu0 %v640
      %761 = vmatpush.bf16.msra.mxu0 %v638
      %762 = vmatpush.bf16.msra.mxu0 %v636
      %763 = vmatpush.bf16.msra.mxu0 %v634
      %764 = vmatpush.bf16.msra.mxu0 %v632
      %765 = vmatmul.bf16.gmra.mxu0 %v417
      %v766 = vpop.f32.mrf.mxu0
      %v767 = vadd.f32 %v754, %v766
      %v768 = vpop.f32.mrf.mxu0
      %769 = vdwg.mxu0
      %770 = vmatpush.bf16.msra.mxu0 %v662
      %771 = vmatpush.bf16.msra.mxu0 %v660
      %772 = vmatpush.bf16.msra.mxu0 %v658
      %773 = vmatpush.bf16.msra.mxu0 %v656
      %774 = vmatpush.bf16.msra.mxu0 %v654
      %775 = vmatpush.bf16.msra.mxu0 %v652
      %776 = vmatpush.bf16.msra.mxu0 %v650
      %777 = vmatpush.bf16.msra.mxu0 %v648
      %778 = vmatmul.bf16.gmra.mxu0 %v418
      %v779 = vpop.f32.mrf.mxu0
      %v780 = vadd.f32 %v767, %v779
      %v781 = vpop.f32.mrf.mxu0
      %782 = vdwg.mxu0
      %783 = vmatpush.bf16.msra.mxu0 %v678
      %784 = vmatpush.bf16.msra.mxu0 %v676
      %785 = vmatpush.bf16.msra.mxu0 %v674
      %786 = vmatpush.bf16.msra.mxu0 %v672
      %787 = vmatpush.bf16.msra.mxu0 %v670
      %788 = vmatpush.bf16.msra.mxu0 %v668
      %789 = vmatpush.bf16.msra.mxu0 %v666
      %790 = vmatpush.bf16.msra.mxu0 %v664
      %791 = vmatmul.bf16.gmra.mxu0 %v419
      %v792 = vpop.f32.mrf.mxu0
      %v793 = vadd.f32 %v780, %v792
      %v794 = vpop.f32.mrf.mxu0
      %795 = vdwg.mxu0
      %796 = vmatpush.bf16.msra.mxu0 %v631
      %797 = vmatpush.bf16.msra.mxu0 %v629
      %798 = vmatpush.bf16.msra.mxu0 %v627
      %799 = vmatpush.bf16.msra.mxu0 %v625
      %800 = vmatpush.bf16.msra.mxu0 %v623
      %801 = vmatpush.bf16.msra.mxu0 %v621
      %802 = vmatpush.bf16.msra.mxu0 %v619
      %803 = vmatpush.bf16.msra.mxu0 %v617
      %804 = vmatmul.bf16.gmra.mxu0 %v416
      %v805 = vpop.f32.mrf.mxu0
      %v806 = vadd.f32 0.0, %v805
      %v807 = vpop.f32.mrf.mxu0
      %808 = vdwg.mxu0
      %809 = vmatpush.bf16.msra.mxu0 %v647
      %810 = vmatpush.bf16.msra.mxu0 %v645
      %811 = vmatpush.bf16.msra.mxu0 %v643
      %812 = vmatpush.bf16.msra.mxu0 %v641
      %813 = vmatpush.bf16.msra.mxu0 %v639
      %814 = vmatpush.bf16.msra.mxu0 %v637
      %815 = vmatpush.bf16.msra.mxu0 %v635
      %816 = vmatpush.bf16.msra.mxu0 %v633
      %817 = vmatmul.bf16.gmra.mxu0 %v417
      %v818 = vpop.f32.mrf.mxu0
      %v819 = vadd.f32 %v806, %v818
      %v820 = vpop.f32.mrf.mxu0
      %821 = vdwg.mxu0
      %822 = vmatpush.bf16.msra.mxu0 %v663
      %823 = vmatpush.bf16.msra.mxu0 %v661
      %824 = vmatpush.bf16.msra.mxu0 %v659
      %825 = vmatpush.bf16.msra.mxu0 %v657
      %826 = vmatpush.bf16.msra.mxu0 %v655
      %827 = vmatpush.bf16.msra.mxu0 %v653
      %828 = vmatpush.bf16.msra.mxu0 %v651
      %829 = vmatpush.bf16.msra.mxu0 %v649
      %830 = vmatmul.bf16.gmra.mxu0 %v418
      %v831 = vpop.f32.mrf.mxu0
      %v832 = vadd.f32 %v819, %v831
      %v833 = vpop.f32.mrf.mxu0
      %834 = vdwg.mxu0
      %835 = vmatpush.bf16.msra.mxu0 %v679
      %836 = vmatpush.bf16.msra.mxu0 %v677
      %837 = vmatpush.bf16.msra.mxu0 %v675
      %838 = vmatpush.bf16.msra.mxu0 %v673
      %839 = vmatpush.bf16.msra.mxu0 %v671
      %840 = vmatpush.bf16.msra.mxu0 %v669
      %841 = vmatpush.bf16.msra.mxu0 %v667
      %842 = vmatpush.bf16.msra.mxu0 %v665
      %843 = vmatmul.bf16.gmra.mxu0 %v419
      %v844 = vpop.f32.mrf.mxu0
      %v845 = vadd.f32 %v832, %v844
      %v846 = vpop.f32.mrf.mxu0
      %847 = vdwg.mxu0
      %v848 = vadd.f32 %v342, %v793
      %v849 = vadd.f32 %v343, %v845
      %850 = vst [vmem:[#allocation2] sm:$0xff] %v848
      %851 = vst [vmem:[#allocation2 + $0x8] sm:$0xff] %v849
      %p852 = scmp.eq.s32.totalorder %s23, 7
      // Predicated region
      $region37: #{closed_call.228} parent=31 // pred_check
        %p853 = pneg %p852
      $region38: #{closed_call.228} parent=31 // pred_check_branch
        %855 = sbr.rel (%p853) target = $region40
      $region39: #{closed_call.228} parent=31 // pred_region
        %v856 = vld [vmem:[#allocation2] sm:$0xff]
        %v857 = vld [vmem:[#allocation2 + $0x8] sm:$0xff]
        %v858 = vld [vmem:[%s320] sm:$0x3]
        %v860 = vperm.slane %v858, 0
        %v861 = vperm.slane %v858, 1
        %v864 = vadd.f32 %v856, %v860
        %v865 = vadd.f32 %v857, %v861
        %866 = vst [vmem:[%s334] sm:$0xff] %v864
        %867 = vst [vmem:[%s334 + $0x8] sm:$0xff] %v865
      $region40: #{closed_call.228} parent=31 // pred_fallthru
        _
      %s868 = smul.u32 2, %s22
      %p869 = scmp.lt.s32.totalorder %s20, 0
      %s870 = scalar_select %p869, %s20, 0
      %p871 = scmp.lt.s32.totalorder %s21, 0
      %s872 = scalar_select %p871, %s21, 0
      %p873 = scmp.lt.s32.totalorder %s868, 1
      %s874 = scalar_select %p873, %s868, 1
      %s875 = smul.addr %s872, 2
      %s876 = sadd.s32 %s874, %s875
      %s877 = smul.addr %s870, 2
      %s878 = sadd.s32 %s876, %s877
      %s879 = smul.addr %s878, 8
      %s880 = scalar_lea.vmem %s3, %s879
      // Predicated region
      $region41: #{closed_call.228} parent=31 // pred_check
        %p881 = pneg %p150
      $region42: #{closed_call.228} parent=31 // pred_check_branch
        %883 = sbr.rel (%p881) target = $region44
      $region43: #{closed_call.228} parent=31 // pred_region
        %s884 = smul.u32 2, %s22
      $region44: #{closed_call.228} parent=31 // pred_fallthru
        _
      // Predicated region
      $region45: #{closed_call.228} parent=31 // pred_check
        %p885 = pneg %p150
      $region46: #{closed_call.228} parent=31 // pred_check_branch
        %887 = sbr.rel (%p885) target = $region48
      $region47: #{closed_call.228} parent=31 // pred_region
        %s888 = smul.u32 2, %s22
        %p889 = scmp.lt.s32.totalorder %s20, 0
        %s890 = scalar_select %p889, %s20, 0
        %p891 = scmp.lt.s32.totalorder %s21, 0
        %s892 = scalar_select %p891, %s21, 0
        %p893 = scmp.lt.s32.totalorder %s888, 1
        %s894 = scalar_select %p893, %s888, 1
        %s895 = smul.addr %s892, 2
        %s896 = sadd.s32 %s894, %s895
        %s897 = smul.addr %s890, 2
        %s898 = sadd.s32 %s896, %s897
        %s899 = smul.addr %s898, 8
        %s900 = scalar_lea.vmem %s3, %s899
      $region48: #{closed_call.228} parent=31 // pred_fallthru
        _
    $region32: #{closed_call.228} parent=5 // pred_fallthru
      _
    %p901 = scmp.le.s32.totalorder 2, %s9
    // Predicated region
    $region49: #{closed_call.228} parent=5 // pred_check
      %p902 = pneg %p901
    $region50: #{closed_call.228} parent=5 // pred_check_branch
      %904 = sbr.rel (%p902) target = $region52
    $region51: #{closed_call.228} parent=5 // pred_region
      %s905 = ssub.s32 %s9, 2
    $region52: #{closed_call.228} parent=5 // pred_fallthru
      _
  $region6: #{closed_call.228} parent=0 // loop_footer
    %s13 = sadd.s32 1, %s9
  $region7: #{closed_call.228} parent=0 // loop_footer_branch
    %8 = sbr.rel target = $region3
  $region8: #{closed_call.228} parent=0 // loop_exit
    _

// kernel: cain_forward.2
$region0: #{cain_forward.2}
  #allocation0 [shape = 'u32[]', space=smem, size = 0x4, offset = 0x4, fixed_abs, tag = 'smem constant byte address 0x4 - core index']
  #allocation1 [shape = 'u32[72,128]{1,0:T(1,128)}', space=vmem, size = 0x9000, scoped, tag = 'internal scratch']
  #allocation2 [shape = 'f32[8,256]{1,0:T(8,128)}', space=vmem, size = 0x2000, scoped, tag = 'scratch operand']
  %s0 = inlined_call_operand.vmem [shape: bf16[1,8,3584], index: 0, kind: input, shape index: {}]
  %s1 = inlined_call_operand.vmem [shape: bf16[1,3584,256], index: 1, kind: input, shape index: {}]
  %s2 = inlined_call_operand.vmem [shape: f32[1,1,256], index: 2, kind: input, shape index: {}]
  %s3 = inlined_call_operand.vmem [shape: f32[1,8,256], index: 3, kind: output, shape index: {}]
  %s4 = sld [smem:[#allocation0]]
  $region53: #{cain_forward.2} parent=0
    _
  %s6 = ssub.s32 1, %s4
  %s7 = scalar_select 0, %s6, %s4
  loop: start=0, step=1, limit=9
  $region2: #{cain_forward.2} parent=0 // loop_pre_header
    _
  $region3: #{cain_forward.2} parent=0 // loop_header
    %s9 = sphi 0, %s13
    %p10 = scmp.ge.s32.totalorder %s9, 9
    %s16 = sphi 0, %s42
    %s17 = sphi 0, %s38
    %s18 = sphi 0, %s34
    %s19 = sphi 0, %s30
    %s20 = sphi 0, %s16
    %s21 = sphi 0, %s17
    %s22 = sphi 0, %s18
    %s23 = sphi 0, %s19
    %s24 = sphi 0, %s20
    %s25 = sphi 0, %s21
    %s26 = sphi 0, %s22
    %s27 = sphi 0, %s23
    %s49 = sphi 0, %s51
    %s52 = sphi 0, %s49
    %s53 = sphi 0, %s52
    %s69 = sphi 0, %s53
    %s79 = sphi 0, %s81
    %s82 = sphi 0, %s79
    %s83 = sphi 0, %s82
    %s99 = sphi 0, %s83
    %s107 = sphi 0, %s109
    %s110 = sphi 0, %s107
    %s111 = sphi 0, %s110
    %s127 = sphi 0, %s111
    %s137 = sphi 0, %s139
    %s140 = sphi 0, %s137
    %s141 = sphi 0, %s140
    %s157 = sphi 0, %s141
  $region4: #{cain_forward.2} parent=0 // loop_header_branch
    %12 = sbr.rel (%p10) target = $region8
  $region5: #{cain_forward.2} parent=0 // loop_body
    %s14 = ssub.s32 %s9, 1
    %s15 = ssub.s32 %s9, 2
    %s28 = sadd.s32 1, %s19
    %p29 = scmp.ge.s32.totalorder %s28, 7
    %s30 = scalar_select %p29, 0, %s28
    %s31 = sadd.s32 1, %s18
    %s32 = scalar_select %p29, %s31, %s18
    %p33 = scmp.ge.s32.totalorder %s32, 1
    %s34 = scalar_select %p33, 0, %s32
    %s35 = sadd.s32 1, %s17
    %s36 = scalar_select %p33, %s35, %s17
    %p37 = scmp.ge.s32.totalorder %s36, 1
    %s38 = scalar_select %p37, 0, %s36
    %s39 = sadd.s32 1, %s16
    %s40 = scalar_select %p37, %s39, %s16
    %p41 = scmp.ge.s32.totalorder %s40, 1
    %s42 = scalar_select %p41, 0, %s40
    %s43 = ssub.s32 %s16, %s42
    %s44 = ssub.s32 %s17, %s38
    %s45 = sor.u32 %s43, %s44
    %s46 = ssub.s32 %s19, %s30
    %s47 = sor.u32 %s45, %s46
    %p48 = scmp.eq.s32.totalorder %s47, 0
    %s50 = sadd.s32 %s49, 1
    %s51 = scalar_select %p48, %s49, %s50
    %p54 = pneg %p48
    %p55 = scmp.eq.s32.totalorder %s9, 6
    %p56 = por %p54, %p55
    %p57 = scmp.ne.s32.totalorder %s49, %s52
    %p58 = scmp.eq.s32.totalorder %s9, 0
    %p59 = por %p57, %p58
    %p60 = scmp.ne.s32.totalorder %s49, %s52
    %p61 = scmp.eq.s32.totalorder %s14, 6
    %p62 = por %p60, %p61
    %p63 = scmp.ne.s32.totalorder %s52, %s53
    %p64 = scmp.eq.s32.totalorder %s14, 0
    %p65 = por %p63, %p64
    %p66 = scmp.ne.s32.totalorder %s52, %s53
    %p67 = scmp.eq.s32.totalorder %s15, 6
    %p68 = por %p66, %p67
    %p70 = scmp.ne.s32.totalorder %s53, %s69
    %p71 = scmp.eq.s32.totalorder %s15, 0
    %p72 = por %p70, %p71
    %s73 = ssub.s32 %s16, %s42
    %s74 = ssub.s32 %s19, %s30
    %s75 = sor.u32 %s73, %s74
    %s76 = ssub.s32 %s18, %s34
    %s77 = sor.u32 %s75, %s76
    %p78 = scmp.eq.s32.totalorder %s77, 0
    %s80 = sadd.s32 %s79, 1
    %s81 = scalar_select %p78, %s79, %s80
    %p84 = pneg %p78
    %p85 = scmp.eq.s32.totalorder %s9, 6
    %p86 = por %p84, %p85
    %p87 = scmp.ne.s32.totalorder %s79, %s82
    %p88 = scmp.eq.s32.totalorder %s9, 0
    %p89 = por %p87, %p88
    %p90 = scmp.ne.s32.totalorder %s79, %s82
    %p91 = scmp.eq.s32.totalorder %s14, 6
    %p92 = por %p90, %p91
    %p93 = scmp.ne.s32.totalorder %s82, %s83
    %p94 = scmp.eq.s32.totalorder %s14, 0
    %p95 = por %p93, %p94
    %p96 = scmp.ne.s32.totalorder %s82, %s83
    %p97 = scmp.eq.s32.totalorder %s15, 6
    %p98 = por %p96, %p97
    %p100 = scmp.ne.s32.totalorder %s83, %s99
    %p101 = scmp.eq.s32.totalorder %s15, 0
    %p102 = por %p100, %p101
    %s103 = ssub.s32 %s16, %s42
    %s104 = ssub.s32 %s18, %s34
    %s105 = sor.u32 %s103, %s104
    %p106 = scmp.eq.s32.totalorder %s105, 0
    %s108 = sadd.s32 %s107, 1
    %s109 = scalar_select %p106, %s107, %s108
    %p112 = pneg %p106
    %p113 = scmp.eq.s32.totalorder %s9, 6
    %p114 = por %p112, %p113
    %p115 = scmp.ne.s32.totalorder %s107, %s110
    %p116 = scmp.eq.s32.totalorder %s9, 0
    %p117 = por %p115, %p116
    %p118 = scmp.ne.s32.totalorder %s107, %s110
    %p119 = scmp.eq.s32.totalorder %s14, 6
    %p120 = por %p118, %p119
    %p121 = scmp.ne.s32.totalorder %s110, %s111
    %p122 = scmp.eq.s32.totalorder %s14, 0
    %p123 = por %p121, %p122
    %p124 = scmp.ne.s32.totalorder %s110, %s111
    %p125 = scmp.eq.s32.totalorder %s15, 6
    %p126 = por %p124, %p125
    %p128 = scmp.ne.s32.totalorder %s111, %s127
    %p129 = scmp.eq.s32.totalorder %s15, 0
    %p130 = por %p128, %p129
    %s131 = ssub.s32 %s16, %s42
    %s132 = ssub.s32 %s17, %s38
    %s133 = sor.u32 %s131, %s132
    %s134 = ssub.s32 %s18, %s34
    %s135 = sor.u32 %s133, %s134
    %p136 = scmp.eq.s32.totalorder %s135, 0
    %s138 = sadd.s32 %s137, 1
    %s139 = scalar_select %p136, %s137, %s138
    %p142 = pneg %p136
    %p143 = scmp.eq.s32.totalorder %s9, 6
    %p144 = por %p142, %p143
    %p145 = scmp.ne.s32.totalorder %s137, %s140
    %p146 = scmp.eq.s32.totalorder %s9, 0
    %p147 = por %p145, %p146
    %p148 = scmp.ne.s32.totalorder %s137, %s140
    %p149 = scmp.eq.s32.totalorder %s14, 6
    %p150 = por %p148, %p149
    %p151 = scmp.ne.s32.totalorder %s140, %s141
    %p152 = scmp.eq.s32.totalorder %s14, 0
    %p153 = por %p151, %p152
    %p154 = scmp.ne.s32.totalorder %s140, %s141
    %p155 = scmp.eq.s32.totalorder %s15, 6
    %p156 = por %p154, %p155
    %p158 = scmp.ne.s32.totalorder %s141, %s157
    %p159 = scmp.eq.s32.totalorder %s15, 0
    %p160 = por %p158, %p159
    %p161 = scmp.le.s32.totalorder 1, %s9
    %p162 = scmp.lt.s32.totalorder %s9, 8
    %p163 = pnand %p161, %p162
    %p164 = pneg %p163
    // Predicated region
    $region9: #{cain_forward.2} parent=5 // pred_check
      _
    $region10: #{cain_forward.2} parent=5 // pred_check_branch
      %166 = sbr.rel (%p163) target = $region12
    $region11: #{cain_forward.2} parent=5 // pred_region
      %s167 = ssub.s32 %s9, 1
      // Predicated region
      $region13: #{cain_forward.2} parent=11 // pred_check
        %p168 = pneg %p123
      $region14: #{cain_forward.2} parent=11 // pred_check_branch
        %170 = sbr.rel (%p168) target = $region16
      $region15: #{cain_forward.2} parent=11 // pred_region
        %s171 = smul.u32 2, %s22
        %p172 = scmp.lt.s32.totalorder %s20, 0
        %s173 = scalar_select %p172, %s20, 0
        %p174 = scmp.lt.s32.totalorder %s171, 1
        %s175 = scalar_select %p174, %s171, 1
        %s176 = smul.addr %s173, 2
        %s177 = sadd.s32 %s175, %s176
        %s178 = scalar_lea.vmem %s2, %s177
        %s179 = smul.u32 2, %s22
      $region16: #{cain_forward.2} parent=11 // pred_fallthru
        _
    $region12: #{cain_forward.2} parent=5 // pred_fallthru
      _
    %p180 = scmp.lt.s32.totalorder %s9, 7
    // Predicated region
    $region17: #{cain_forward.2} parent=5 // pred_check
      %p181 = pneg %p180
    $region18: #{cain_forward.2} parent=5 // pred_check_branch
      %183 = sbr.rel (%p181) target = $region20
    $region19: #{cain_forward.2} parent=5 // pred_region
      // Predicated region
      $region21: #{cain_forward.2} parent=19 // pred_check
        %p184 = pneg %p59
      $region22: #{cain_forward.2} parent=19 // pred_check_branch
        %186 = sbr.rel (%p184) target = $region24
      $region23: #{cain_forward.2} parent=19 // pred_region
        %s187 = smul.u32 4, %s19
        %p188 = scmp.lt.s32.totalorder %s16, 0
        %s189 = scalar_select %p188, %s16, 0
        %p190 = scmp.lt.s32.totalorder %s17, 0
        %s191 = scalar_select %p190, %s17, 0
        %p192 = scmp.lt.s32.totalorder %s187, 27
        %s193 = scalar_select %p192, %s187, 27
        %s194 = smul.addr %s191, 28
        %s195 = sadd.s32 %s193, %s194
        %s196 = smul.addr %s189, 28
        %s197 = sadd.s32 %s195, %s196
        %s198 = smul.addr %s197, 4
        %s199 = scalar_lea.vmem %s0, %s198
        %s200 = smul.u32 4, %s19
      $region24: #{cain_forward.2} parent=19 // pred_fallthru
        _
      // Predicated region
      $region25: #{cain_forward.2} parent=19 // pred_check
        %p201 = pneg %p89
      $region26: #{cain_forward.2} parent=19 // pred_check_branch
        %203 = sbr.rel (%p201) target = $region28
      $region27: #{cain_forward.2} parent=19 // pred_region
        %s204 = smul.u32 64, %s19
        %s205 = smul.u32 2, %s18
        %p206 = scmp.lt.s32.totalorder %s16, 0
        %s207 = scalar_select %p206, %s16, 0
        %p208 = scmp.lt.s32.totalorder %s204, 447
        %s209 = scalar_select %p208, %s204, 447
        %p210 = scmp.lt.s32.totalorder %s205, 1
        %s211 = scalar_select %p210, %s205, 1
        %s212 = smul.addr %s209, 2
        %s213 = sadd.s32 %s211, %s212
        %s214 = smul.addr %s207, 896
        %s215 = sadd.s32 %s213, %s214
        %s216 = smul.addr %s215, 4
        %s217 = scalar_lea.vmem %s1, %s216
        %s218 = smul.u32 64, %s19
        %s219 = smul.u32 2, %s18
      $region28: #{cain_forward.2} parent=19 // pred_fallthru
        _
    $region20: #{cain_forward.2} parent=5 // pred_fallthru
      _
    %p220 = scmp.le.s32.totalorder 1, %s9
    %p221 = scmp.lt.s32.totalorder %s9, 8
    %p222 = pnand %p220, %p221
    %p223 = pneg %p222
    // Predicated region
    $region29: #{cain_forward.2} parent=5 // pred_check
      _
    $region30: #{cain_forward.2} parent=5 // pred_check_branch
      %225 = sbr.rel (%p222) target = $region32
    $region31: #{cain_forward.2} parent=5 // pred_region
      %s226 = ssub.s32 %s9, 1
      %s227 = smul.u32 4, %s23
      %p228 = scmp.lt.s32.totalorder %s20, 0
      %s229 = scalar_select %p228, %s20, 0
      %p230 = scmp.lt.s32.totalorder %s21, 0
      %s231 = scalar_select %p230, %s21, 0
      %p232 = scmp.lt.s32.totalorder %s227, 27
      %s233 = scalar_select %p232, %s227, 27
      %s234 = smul.addr %s231, 28
      %s235 = sadd.s32 %s233, %s234
      %s236 = smul.addr %s229, 28
      %s237 = sadd.s32 %s235, %s236
      %s238 = smul.addr %s237, 4
      %s239 = scalar_lea.vmem %s0, %s238
      %p240 = pneg %p65
      %p241 = pneg %p62
      %s242 = smul.u32 64, %s23
      %s243 = smul.u32 2, %s22
      %p244 = scmp.lt.s32.totalorder %s20, 0
      %s245 = scalar_select %p244, %s20, 0
      %p246 = scmp.lt.s32.totalorder %s242, 447
      %s247 = scalar_select %p246, %s242, 447
      %p248 = scmp.lt.s32.totalorder %s243, 1
      %s249 = scalar_select %p248, %s243, 1
      %s250 = smul.addr %s247, 2
      %s251 = sadd.s32 %s249, %s250
      %s252 = smul.addr %s245, 896
      %s253 = sadd.s32 %s251, %s252
      %s254 = smul.addr %s253, 4
      %s255 = scalar_lea.vmem %s1, %s254
      %p256 = pneg %p95
      %p257 = pneg %p92
      %s258 = smul.u32 2, %s22
      %p259 = scmp.lt.s32.totalorder %s20, 0
      %s260 = scalar_select %p259, %s20, 0
      %p261 = scmp.lt.s32.totalorder %s258, 1
      %s262 = scalar_select %p261, %s258, 1
      %s263 = smul.addr %s260, 2
      %s264 = sadd.s32 %s262, %s263
      %s265 = scalar_lea.vmem %s2, %s264
      %p266 = pneg %p123
      %p267 = pneg %p120
      %p268 = pneg %p153
      %p269 = pneg %p150
      %s270 = smul.u32 2, %s22
      %p271 = scmp.lt.s32.totalorder %s20, 0
      %s272 = scalar_select %p271, %s20, 0
      %p273 = scmp.lt.s32.totalorder %s21, 0
      %s274 = scalar_select %p273, %s21, 0
      %p275 = scmp.lt.s32.totalorder %s270, 1
      %s276 = scalar_select %p275, %s270, 1
      %s277 = smul.addr %s274, 2
      %s278 = sadd.s32 %s276, %s277
      %s279 = smul.addr %s272, 2
      %s280 = sadd.s32 %s278, %s279
      %s281 = smul.addr %s280, 8
      %s282 = scalar_lea.vmem %s3, %s281
      %s283 = smul.u32 4, %s23
      %p284 = scmp.lt.s32.totalorder %s20, 0
      %s285 = scalar_select %p284, %s20, 0
      %p286 = scmp.lt.s32.totalorder %s21, 0
      %s287 = scalar_select %p286, %s21, 0
      %p288 = scmp.lt.s32.totalorder %s283, 27
      %s289 = scalar_select %p288, %s283, 27
      %s290 = smul.addr %s287, 28
      %s291 = sadd.s32 %s289, %s290
      %s292 = smul.addr %s285, 28
      %s293 = sadd.s32 %s291, %s292
      %s294 = smul.addr %s293, 4
      %s295 = scalar_lea.vmem %s0, %s294
      %s296 = smul.u32 4, %s23
      %s297 = smul.u32 64, %s23
      %s298 = smul.u32 2, %s22
      %p299 = scmp.lt.s32.totalorder %s20, 0
      %s300 = scalar_select %p299, %s20, 0
      %p301 = scmp.lt.s32.totalorder %s297, 447
      %s302 = scalar_select %p301, %s297, 447
      %p303 = scmp.lt.s32.totalorder %s298, 1
      %s304 = scalar_select %p303, %s298, 1
      %s305 = smul.addr %s302, 2
      %s306 = sadd.s32 %s304, %s305
      %s307 = smul.addr %s300, 896
      %s308 = sadd.s32 %s306, %s307
      %s309 = smul.addr %s308, 4
      %s310 = scalar_lea.vmem %s1, %s309
      %s311 = smul.u32 64, %s23
      %s312 = smul.u32 2, %s22
      %s313 = smul.u32 2, %s22
      %p314 = scmp.lt.s32.totalorder %s20, 0
      %s315 = scalar_select %p314, %s20, 0
      %p316 = scmp.lt.s32.totalorder %s313, 1
      %s317 = scalar_select %p316, %s313, 1
      %s318 = smul.addr %s315, 2
      %s319 = sadd.s32 %s317, %s318
      %s320 = scalar_lea.vmem %s2, %s319
      %s321 = smul.u32 2, %s22
      %s322 = smul.u32 2, %s22
      %p323 = scmp.lt.s32.totalorder %s20, 0
      %s324 = scalar_select %p323, %s20, 0
      %p325 = scmp.lt.s32.totalorder %s21, 0
      %s326 = scalar_select %p325, %s21, 0
      %p327 = scmp.lt.s32.totalorder %s322, 1
      %s328 = scalar_select %p327, %s322, 1
      %s329 = smul.addr %s326, 2
      %s330 = sadd.s32 %s328, %s329
      %s331 = smul.addr %s324, 2
      %s332 = sadd.s32 %s330, %s331
      %s333 = smul.addr %s332, 8
      %s334 = scalar_lea.vmem %s3, %s333
      %s335 = smul.u32 2, %s22
      %p336 = scmp.eq.s32.totalorder %s23, 0
      // Predicated region
      $region33: #{cain_forward.2} parent=31 // pred_check
        %p337 = pneg %p336
      $region34: #{cain_forward.2} parent=31 // pred_check_branch
        %339 = sbr.rel (%p337) target = $region36
      $region35: #{cain_forward.2} parent=31 // pred_region
        %340 = vst [vmem:[#allocation2] sm:$0xff] 0.0
        %341 = vst [vmem:[#allocation2 + $0x8] sm:$0xff] 0.0
      $region36: #{cain_forward.2} parent=31 // pred_fallthru
        _
      %v342 = vld [vmem:[#allocation2] sm:$0xff]
      %v343 = vld [vmem:[#allocation2 + $0x8] sm:$0xff]
      %v344 = vld [vmem:[%s295] sm:$0xff]
      %v345 = vld [vmem:[%s295 + $0x8] sm:$0xff]
      %v346 = vld [vmem:[%s310] sm:$0xff]
      %v347 = vld [vmem:[%s310 + $0x8] sm:$0xff]
      %v348 = vld [vmem:[%s310 + $0x10] sm:$0xff]
      %v349 = vld [vmem:[%s310 + $0x18] sm:$0xff]
      %v350 = vld [vmem:[%s310 + $0x20] sm:$0xff]
      %v351 = vld [vmem:[%s310 + $0x28] sm:$0xff]
      %v352 = vld [vmem:[%s310 + $0x30] sm:$0xff]
      %v353 = vld [vmem:[%s310 + $0x38] sm:$0xff]
      %v354 = vld [vmem:[%s310 + $0x40] sm:$0xff]
      %v355 = vld [vmem:[%s310 + $0x48] sm:$0xff]
      %v356 = vld [vmem:[%s310 + $0x50] sm:$0xff]
      %v357 = vld [vmem:[%s310 + $0x58] sm:$0xff]
      %v358 = vld [vmem:[%s310 + $0x60] sm:$0xff]
      %v359 = vld [vmem:[%s310 + $0x68] sm:$0xff]
      %v360 = vld [vmem:[%s310 + $0x70] sm:$0xff]
      %v361 = vld [vmem:[%s310 + $0x78] sm:$0xff]
      %v362 = vld [vmem:[%s310 + $0x80] sm:$0xff]
      %v363 = vld [vmem:[%s310 + $0x88] sm:$0xff]
      %v364 = vld [vmem:[%s310 + $0x90] sm:$0xff]
      %v365 = vld [vmem:[%s310 + $0x98] sm:$0xff]
      %v366 = vld [vmem:[%s310 + $0xa0] sm:$0xff]
      %v367 = vld [vmem:[%s310 + $0xa8] sm:$0xff]
      %v368 = vld [vmem:[%s310 + $0xb0] sm:$0xff]
      %v369 = vld [vmem:[%s310 + $0xb8] sm:$0xff]
      %v370 = vld [vmem:[%s310 + $0xc0] sm:$0xff]
      %v371 = vld [vmem:[%s310 + $0xc8] sm:$0xff]
      %v372 = vld [vmem:[%s310 + $0xd0] sm:$0xff]
      %v373 = vld [vmem:[%s310 + $0xd8] sm:$0xff]
      %v374 = vld [vmem:[%s310 + $0xe0] sm:$0xff]
      %v375 = vld [vmem:[%s310 + $0xe8] sm:$0xff]
      %v376 = vld [vmem:[%s310 + $0xf0] sm:$0xff]
      %v377 = vld [vmem:[%s310 + $0xf8] sm:$0xff]
      %v378 = vld [vmem:[%s310 + $0x100] sm:$0xff]
      %v379 = vld [vmem:[%s310 + $0x108] sm:$0xff]
      %v380 = vld [vmem:[%s310 + $0x110] sm:$0xff]
      %v381 = vld [vmem:[%s310 + $0x118] sm:$0xff]
      %v382 = vld [vmem:[%s310 + $0x120] sm:$0xff]
      %v383 = vld [vmem:[%s310 + $0x128] sm:$0xff]
      %v384 = vld [vmem:[%s310 + $0x130] sm:$0xff]
      %v385 = vld [vmem:[%s310 + $0x138] sm:$0xff]
      %v386 = vld [vmem:[%s310 + $0x140] sm:$0xff]
      %v387 = vld [vmem:[%s310 + $0x148] sm:$0xff]
      %v388 = vld [vmem:[%s310 + $0x150] sm:$0xff]
      %v389 = vld [vmem:[%s310 + $0x158] sm:$0xff]
      %v390 = vld [vmem:[%s310 + $0x160] sm:$0xff]
      %v391 = vld [vmem:[%s310 + $0x168] sm:$0xff]
      %v392 = vld [vmem:[%s310 + $0x170] sm:$0xff]
      %v393 = vld [vmem:[%s310 + $0x178] sm:$0xff]
      %v394 = vld [vmem:[%s310 + $0x180] sm:$0xff]
      %v395 = vld [vmem:[%s310 + $0x188] sm:$0xff]
      %v396 = vld [vmem:[%s310 + $0x190] sm:$0xff]
      %v397 = vld [vmem:[%s310 + $0x198] sm:$0xff]
      %v398 = vld [vmem:[%s310 + $0x1a0] sm:$0xff]
      %v399 = vld [vmem:[%s310 + $0x1a8] sm:$0xff]
      %v400 = vld [vmem:[%s310 + $0x1b0] sm:$0xff]
      %v401 = vld [vmem:[%s310 + $0x1b8] sm:$0xff]
      %v402 = vld [vmem:[%s310 + $0x1c0] sm:$0xff]
      %v403 = vld [vmem:[%s310 + $0x1c8] sm:$0xff]
      %v404 = vld [vmem:[%s310 + $0x1d0] sm:$0xff]
      %v405 = vld [vmem:[%s310 + $0x1d8] sm:$0xff]
      %v406 = vld [vmem:[%s310 + $0x1e0] sm:$0xff]
      %v407 = vld [vmem:[%s310 + $0x1e8] sm:$0xff]
      %v408 = vld [vmem:[%s310 + $0x1f0] sm:$0xff]
      %v409 = vld [vmem:[%s310 + $0x1f8] sm:$0xff]
      %v412 = vunpack.c.l.b16 %v344
      %v413 = vunpack.c.h.b16 %v344
      %v414 = vunpack.c.l.b16 %v345
      %v415 = vunpack.c.h.b16 %v345
      %v416 = vpack.c.b16 %v412, %v412
      %v417 = vpack.c.b16 %v413, %v413
      %v418 = vpack.c.b16 %v414, %v414
      %v419 = vpack.c.b16 %v415, %v415
      %v488 = vunpack.c.l.b16 %v346
      %v489 = vunpack.c.h.b16 %v346
      %v490 = vunpack.c.l.b16 %v347
      %v491 = vunpack.c.h.b16 %v347
      %v492 = vunpack.c.l.b16 %v348
      %v493 = vunpack.c.h.b16 %v348
      %v494 = vunpack.c.l.b16 %v349
      %v495 = vunpack.c.h.b16 %v349
      %v496 = vunpack.c.l.b16 %v350
      %v497 = vunpack.c.h.b16 %v350
      %v498 = vunpack.c.l.b16 %v351
      %v499 = vunpack.c.h.b16 %v351
      %v500 = vunpack.c.l.b16 %v352
      %v501 = vunpack.c.h.b16 %v352
      %v502 = vunpack.c.l.b16 %v353
      %v503 = vunpack.c.h.b16 %v353
      %v504 = vunpack.c.l.b16 %v354
      %v505 = vunpack.c.h.b16 %v354
      %v506 = vunpack.c.l.b16 %v355
      %v507 = vunpack.c.h.b16 %v355
      %v508 = vunpack.c.l.b16 %v356
      %v509 = vunpack.c.h.b16 %v356
      %v510 = vunpack.c.l.b16 %v357
      %v511 = vunpack.c.h.b16 %v357
      %v512 = vunpack.c.l.b16 %v358
      %v513 = vunpack.c.h.b16 %v358
      %v514 = vunpack.c.l.b16 %v359
      %v515 = vunpack.c.h.b16 %v359
      %v516 = vunpack.c.l.b16 %v360
      %v517 = vunpack.c.h.b16 %v360
      %v518 = vunpack.c.l.b16 %v361
      %v519 = vunpack.c.h.b16 %v361
      %v520 = vunpack.c.l.b16 %v362
      %v521 = vunpack.c.h.b16 %v362
      %v522 = vunpack.c.l.b16 %v363
      %v523 = vunpack.c.h.b16 %v363
      %v524 = vunpack.c.l.b16 %v364
      %v525 = vunpack.c.h.b16 %v364
      %v526 = vunpack.c.l.b16 %v365
      %v527 = vunpack.c.h.b16 %v365
      %v528 = vunpack.c.l.b16 %v366
      %v529 = vunpack.c.h.b16 %v366
      %v530 = vunpack.c.l.b16 %v367
      %v531 = vunpack.c.h.b16 %v367
      %v532 = vunpack.c.l.b16 %v368
      %v533 = vunpack.c.h.b16 %v368
      %v534 = vunpack.c.l.b16 %v369
      %v535 = vunpack.c.h.b16 %v369
      %v536 = vunpack.c.l.b16 %v370
      %v537 = vunpack.c.h.b16 %v370
      %v538 = vunpack.c.l.b16 %v371
      %v539 = vunpack.c.h.b16 %v371
      %v540 = vunpack.c.l.b16 %v372
      %v541 = vunpack.c.h.b16 %v372
      %v542 = vunpack.c.l.b16 %v373
      %v543 = vunpack.c.h.b16 %v373
      %v544 = vunpack.c.l.b16 %v374
      %v545 = vunpack.c.h.b16 %v374
      %v546 = vunpack.c.l.b16 %v375
      %v547 = vunpack.c.h.b16 %v375
      %v548 = vunpack.c.l.b16 %v376
      %v549 = vunpack.c.h.b16 %v376
      %v550 = vunpack.c.l.b16 %v377
      %v551 = vunpack.c.h.b16 %v377
      %v552 = vunpack.c.l.b16 %v378
      %v553 = vunpack.c.h.b16 %v378
      %v554 = vunpack.c.l.b16 %v379
      %v555 = vunpack.c.h.b16 %v379
      %v556 = vunpack.c.l.b16 %v380
      %v557 = vunpack.c.h.b16 %v380
      %v558 = vunpack.c.l.b16 %v381
      %v559 = vunpack.c.h.b16 %v381
      %v560 = vunpack.c.l.b16 %v382
      %v561 = vunpack.c.h.b16 %v382
      %v562 = vunpack.c.l.b16 %v383
      %v563 = vunpack.c.h.b16 %v383
      %v564 = vunpack.c.l.b16 %v384
      %v565 = vunpack.c.h.b16 %v384
      %v566 = vunpack.c.l.b16 %v385
      %v567 = vunpack.c.h.b16 %v385
      %v568 = vunpack.c.l.b16 %v386
      %v569 = vunpack.c.h.b16 %v386
      %v570 = vunpack.c.l.b16 %v387
      %v571 = vunpack.c.h.b16 %v387
      %v572 = vunpack.c.l.b16 %v388
      %v573 = vunpack.c.h.b16 %v388
      %v574 = vunpack.c.l.b16 %v389
      %v575 = vunpack.c.h.b16 %v389
      %v576 = vunpack.c.l.b16 %v390
      %v577 = vunpack.c.h.b16 %v390
      %v578 = vunpack.c.l.b16 %v391
      %v579 = vunpack.c.h.b16 %v391
      %v580 = vunpack.c.l.b16 %v392
      %v581 = vunpack.c.h.b16 %v392
      %v582 = vunpack.c.l.b16 %v393
      %v583 = vunpack.c.h.b16 %v393
      %v584 = vunpack.c.l.b16 %v394
      %v585 = vunpack.c.h.b16 %v394
      %v586 = vunpack.c.l.b16 %v395
      %v587 = vunpack.c.h.b16 %v395
      %v588 = vunpack.c.l.b16 %v396
      %v589 = vunpack.c.h.b16 %v396
      %v590 = vunpack.c.l.b16 %v397
      %v591 = vunpack.c.h.b16 %v397
      %v592 = vunpack.c.l.b16 %v398
      %v593 = vunpack.c.h.b16 %v398
      %v594 = vunpack.c.l.b16 %v399
      %v595 = vunpack.c.h.b16 %v399
      %v596 = vunpack.c.l.b16 %v400
      %v597 = vunpack.c.h.b16 %v400
      %v598 = vunpack.c.l.b16 %v401
      %v599 = vunpack.c.h.b16 %v401
      %v600 = vunpack.c.l.b16 %v402
      %v601 = vunpack.c.h.b16 %v402
      %v602 = vunpack.c.l.b16 %v403
      %v603 = vunpack.c.h.b16 %v403
      %v604 = vunpack.c.l.b16 %v404
      %v605 = vunpack.c.h.b16 %v404
      %v606 = vunpack.c.l.b16 %v405
      %v607 = vunpack.c.h.b16 %v405
      %v608 = vunpack.c.l.b16 %v406
      %v609 = vunpack.c.h.b16 %v406
      %v610 = vunpack.c.l.b16 %v407
      %v611 = vunpack.c.h.b16 %v407
      %v612 = vunpack.c.l.b16 %v408
      %v613 = vunpack.c.h.b16 %v408
      %v614 = vunpack.c.l.b16 %v409
      %v615 = vunpack.c.h.b16 %v409
      %v616 = vpack.c.b16 %v490, %v488
      %v617 = vpack.c.b16 %v491, %v489
      %v618 = vpack.c.b16 %v494, %v492
      %v619 = vpack.c.b16 %v495, %v493
      %v620 = vpack.c.b16 %v498, %v496
      %v621 = vpack.c.b16 %v499, %v497
      %v622 = vpack.c.b16 %v502, %v500
      %v623 = vpack.c.b16 %v503, %v501
      %v624 = vpack.c.b16 %v506, %v504
      %v625 = vpack.c.b16 %v507, %v505
      %v626 = vpack.c.b16 %v510, %v508
      %v627 = vpack.c.b16 %v511, %v509
      %v628 = vpack.c.b16 %v514, %v512
      %v629 = vpack.c.b16 %v515, %v513
      %v630 = vpack.c.b16 %v518, %v516
      %v631 = vpack.c.b16 %v519, %v517
      %v632 = vpack.c.b16 %v522, %v520
      %v633 = vpack.c.b16 %v523, %v521
      %v634 = vpack.c.b16 %v526, %v524
      %v635 = vpack.c.b16 %v527, %v525
      %v636 = vpack.c.b16 %v530, %v528
      %v637 = vpack.c.b16 %v531, %v529
      %v638 = vpack.c.b16 %v534, %v532
      %v639 = vpack.c.b16 %v535, %v533
      %v640 = vpack.c.b16 %v538, %v536
      %v641 = vpack.c.b16 %v539, %v537
      %v642 = vpack.c.b16 %v542, %v540
      %v643 = vpack.c.b16 %v543, %v541
      %v644 = vpack.c.b16 %v546, %v544
      %v645 = vpack.c.b16 %v547, %v545
      %v646 = vpack.c.b16 %v550, %v548
      %v647 = vpack.c.b16 %v551, %v549
      %v648 = vpack.c.b16 %v554, %v552
      %v649 = vpack.c.b16 %v555, %v553
      %v650 = vpack.c.b16 %v558, %v556
      %v651 = vpack.c.b16 %v559, %v557
      %v652 = vpack.c.b16 %v562, %v560
      %v653 = vpack.c.b16 %v563, %v561
      %v654 = vpack.c.b16 %v566, %v564
      %v655 = vpack.c.b16 %v567, %v565
      %v656 = vpack.c.b16 %v570, %v568
      %v657 = vpack.c.b16 %v571, %v569
      %v658 = vpack.c.b16 %v574, %v572
      %v659 = vpack.c.b16 %v575, %v573
      %v660 = vpack.c.b16 %v578, %v576
      %v661 = vpack.c.b16 %v579, %v577
      %v662 = vpack.c.b16 %v582, %v580
      %v663 = vpack.c.b16 %v583, %v581
      %v664 = vpack.c.b16 %v586, %v584
      %v665 = vpack.c.b16 %v587, %v585
      %v666 = vpack.c.b16 %v590, %v588
      %v667 = vpack.c.b16 %v591, %v589
      %v668 = vpack.c.b16 %v594, %v592
      %v669 = vpack.c.b16 %v595, %v593
      %v670 = vpack.c.b16 %v598, %v596
      %v671 = vpack.c.b16 %v599, %v597
      %v672 = vpack.c.b16 %v602, %v600
      %v673 = vpack.c.b16 %v603, %v601
      %v674 = vpack.c.b16 %v606, %v604
      %v675 = vpack.c.b16 %v607, %v605
      %v676 = vpack.c.b16 %v610, %v608
      %v677 = vpack.c.b16 %v611, %v609
      %v678 = vpack.c.b16 %v614, %v612
      %v679 = vpack.c.b16 %v615, %v613
      %744 = vmatpush.bf16.msra.mxu0 %v630
      %745 = vmatpush.bf16.msra.mxu0 %v628
      %746 = vmatpush.bf16.msra.mxu0 %v626
      %747 = vmatpush.bf16.msra.mxu0 %v624
      %748 = vmatpush.bf16.msra.mxu0 %v622
      %749 = vmatpush.bf16.msra.mxu0 %v620
      %750 = vmatpush.bf16.msra.mxu0 %v618
      %751 = vmatpush.bf16.msra.mxu0 %v616
      %752 = vmatmul.bf16.gmra.mxu0 %v416
      %v753 = vpop.f32.mrf.mxu0
      %v754 = vadd.f32 0.0, %v753
      %v755 = vpop.f32.mrf.mxu0
      %756 = vdwg.mxu0
      %757 = vmatpush.bf16.msra.mxu0 %v646
      %758 = vmatpush.bf16.msra.mxu0 %v644
      %759 = vmatpush.bf16.msra.mxu0 %v642
      %760 = vmatpush.bf16.msra.mxu0 %v640
      %761 = vmatpush.bf16.msra.mxu0 %v638
      %762 = vmatpush.bf16.msra.mxu0 %v636
      %763 = vmatpush.bf16.msra.mxu0 %v634
      %764 = vmatpush.bf16.msra.mxu0 %v632
      %765 = vmatmul.bf16.gmra.mxu0 %v417
      %v766 = vpop.f32.mrf.mxu0
      %v767 = vadd.f32 %v754, %v766
      %v768 = vpop.f32.mrf.mxu0
      %769 = vdwg.mxu0
      %770 = vmatpush.bf16.msra.mxu0 %v662
      %771 = vmatpush.bf16.msra.mxu0 %v660
      %772 = vmatpush.bf16.msra.mxu0 %v658
      %773 = vmatpush.bf16.msra.mxu0 %v656
      %774 = vmatpush.bf16.msra.mxu0 %v654
      %775 = vmatpush.bf16.msra.mxu0 %v652
      %776 = vmatpush.bf16.msra.mxu0 %v650
      %777 = vmatpush.bf16.msra.mxu0 %v648
      %778 = vmatmul.bf16.gmra.mxu0 %v418
      %v779 = vpop.f32.mrf.mxu0
      %v780 = vadd.f32 %v767, %v779
      %v781 = vpop.f32.mrf.mxu0
      %782 = vdwg.mxu0
      %783 = vmatpush.bf16.msra.mxu0 %v678
      %784 = vmatpush.bf16.msra.mxu0 %v676
      %785 = vmatpush.bf16.msra.mxu0 %v674
      %786 = vmatpush.bf16.msra.mxu0 %v672
      %787 = vmatpush.bf16.msra.mxu0 %v670
      %788 = vmatpush.bf16.msra.mxu0 %v668
      %789 = vmatpush.bf16.msra.mxu0 %v666
      %790 = vmatpush.bf16.msra.mxu0 %v664
      %791 = vmatmul.bf16.gmra.mxu0 %v419
      %v792 = vpop.f32.mrf.mxu0
      %v793 = vadd.f32 %v780, %v792
      %v794 = vpop.f32.mrf.mxu0
      %795 = vdwg.mxu0
      %796 = vmatpush.bf16.msra.mxu0 %v631
      %797 = vmatpush.bf16.msra.mxu0 %v629
      %798 = vmatpush.bf16.msra.mxu0 %v627
      %799 = vmatpush.bf16.msra.mxu0 %v625
      %800 = vmatpush.bf16.msra.mxu0 %v623
      %801 = vmatpush.bf16.msra.mxu0 %v621
      %802 = vmatpush.bf16.msra.mxu0 %v619
      %803 = vmatpush.bf16.msra.mxu0 %v617
      %804 = vmatmul.bf16.gmra.mxu0 %v416
      %v805 = vpop.f32.mrf.mxu0
      %v806 = vadd.f32 0.0, %v805
      %v807 = vpop.f32.mrf.mxu0
      %808 = vdwg.mxu0
      %809 = vmatpush.bf16.msra.mxu0 %v647
      %810 = vmatpush.bf16.msra.mxu0 %v645
      %811 = vmatpush.bf16.msra.mxu0 %v643
      %812 = vmatpush.bf16.msra.mxu0 %v641
      %813 = vmatpush.bf16.msra.mxu0 %v639
      %814 = vmatpush.bf16.msra.mxu0 %v637
      %815 = vmatpush.bf16.msra.mxu0 %v635
      %816 = vmatpush.bf16.msra.mxu0 %v633
      %817 = vmatmul.bf16.gmra.mxu0 %v417
      %v818 = vpop.f32.mrf.mxu0
      %v819 = vadd.f32 %v806, %v818
      %v820 = vpop.f32.mrf.mxu0
      %821 = vdwg.mxu0
      %822 = vmatpush.bf16.msra.mxu0 %v663
      %823 = vmatpush.bf16.msra.mxu0 %v661
      %824 = vmatpush.bf16.msra.mxu0 %v659
      %825 = vmatpush.bf16.msra.mxu0 %v657
      %826 = vmatpush.bf16.msra.mxu0 %v655
      %827 = vmatpush.bf16.msra.mxu0 %v653
      %828 = vmatpush.bf16.msra.mxu0 %v651
      %829 = vmatpush.bf16.msra.mxu0 %v649
      %830 = vmatmul.bf16.gmra.mxu0 %v418
      %v831 = vpop.f32.mrf.mxu0
      %v832 = vadd.f32 %v819, %v831
      %v833 = vpop.f32.mrf.mxu0
      %834 = vdwg.mxu0
      %835 = vmatpush.bf16.msra.mxu0 %v679
      %836 = vmatpush.bf16.msra.mxu0 %v677
      %837 = vmatpush.bf16.msra.mxu0 %v675
      %838 = vmatpush.bf16.msra.mxu0 %v673
      %839 = vmatpush.bf16.msra.mxu0 %v671
      %840 = vmatpush.bf16.msra.mxu0 %v669
      %841 = vmatpush.bf16.msra.mxu0 %v667
      %842 = vmatpush.bf16.msra.mxu0 %v665
      %843 = vmatmul.bf16.gmra.mxu0 %v419
      %v844 = vpop.f32.mrf.mxu0
      %v845 = vadd.f32 %v832, %v844
      %v846 = vpop.f32.mrf.mxu0
      %847 = vdwg.mxu0
      %v848 = vadd.f32 %v342, %v793
      %v849 = vadd.f32 %v343, %v845
      %850 = vst [vmem:[#allocation2] sm:$0xff] %v848
      %851 = vst [vmem:[#allocation2 + $0x8] sm:$0xff] %v849
      %p852 = scmp.eq.s32.totalorder %s23, 6
      // Predicated region
      $region37: #{cain_forward.2} parent=31 // pred_check
        %p853 = pneg %p852
      $region38: #{cain_forward.2} parent=31 // pred_check_branch
        %855 = sbr.rel (%p853) target = $region40
      $region39: #{cain_forward.2} parent=31 // pred_region
        %v856 = vld [vmem:[#allocation2] sm:$0xff]
        %v857 = vld [vmem:[#allocation2 + $0x8] sm:$0xff]
        %v858 = vld [vmem:[%s320] sm:$0x3]
        %v860 = vperm.slane %v858, 0
        %v861 = vperm.slane %v858, 1
        %v864 = vadd.f32 %v856, %v860
        %v865 = vadd.f32 %v857, %v861
        %866 = vst [vmem:[%s334] sm:$0xff] %v864
        %867 = vst [vmem:[%s334 + $0x8] sm:$0xff] %v865
      $region40: #{cain_forward.2} parent=31 // pred_fallthru
        _
      %s868 = smul.u32 2, %s22
      %p869 = scmp.lt.s32.totalorder %s20, 0
      %s870 = scalar_select %p869, %s20, 0
      %p871 = scmp.lt.s32.totalorder %s21, 0
      %s872 = scalar_select %p871, %s21, 0
      %p873 = scmp.lt.s32.totalorder %s868, 1
      %s874 = scalar_select %p873, %s868, 1
      %s875 = smul.addr %s872, 2
      %s876 = sadd.s32 %s874, %s875
      %s877 = smul.addr %s870, 2
      %s878 = sadd.s32 %s876, %s877
      %s879 = smul.addr %s878, 8
      %s880 = scalar_lea.vmem %s3, %s879
      // Predicated region
      $region41: #{cain_forward.2} parent=31 // pred_check
        %p881 = pneg %p150
      $region42: #{cain_forward.2} parent=31 // pred_check_branch
        %883 = sbr.rel (%p881) target = $region44
      $region43: #{cain_forward.2} parent=31 // pred_region
        %s884 = smul.u32 2, %s22
      $region44: #{cain_forward.2} parent=31 // pred_fallthru
        _
      // Predicated region
      $region45: #{cain_forward.2} parent=31 // pred_check
        %p885 = pneg %p150
      $region46: #{cain_forward.2} parent=31 // pred_check_branch
        %887 = sbr.rel (%p885) target = $region48
      $region47: #{cain_forward.2} parent=31 // pred_region
        %s888 = smul.u32 2, %s22
        %p889 = scmp.lt.s32.totalorder %s20, 0
        %s890 = scalar_select %p889, %s20, 0
        %p891 = scmp.lt.s32.totalorder %s21, 0
        %s892 = scalar_select %p891, %s21, 0
        %p893 = scmp.lt.s32.totalorder %s888, 1
        %s894 = scalar_select %p893, %s888, 1
        %s895 = smul.addr %s892, 2
        %s896 = sadd.s32 %s894, %s895
        %s897 = smul.addr %s890, 2
        %s898 = sadd.s32 %s896, %s897
        %s899 = smul.addr %s898, 8
        %s900 = scalar_lea.vmem %s3, %s899
      $region48: #{cain_forward.2} parent=31 // pred_fallthru
        _
    $region32: #{cain_forward.2} parent=5 // pred_fallthru
      _
    %p901 = scmp.le.s32.totalorder 2, %s9
    // Predicated region
    $region49: #{cain_forward.2} parent=5 // pred_check
      %p902 = pneg %p901
    $region50: #{cain_forward.2} parent=5 // pred_check_branch
      %904 = sbr.rel (%p902) target = $region52
    $region51: #{cain_forward.2} parent=5 // pred_region
      %s905 = ssub.s32 %s9, 2
    $region52: #{cain_forward.2} parent=5 // pred_fallthru
      _
  $region6: #{cain_forward.2} parent=0 // loop_footer
    %s13 = sadd.s32 1, %s9
  $region7: #{cain_forward.2} parent=0 // loop_footer_branch
    %8 = sbr.rel target = $region3
  $region8: #{cain_forward.2} parent=0 // loop_exit
    _

// kernel: closed_call.250
$region0: #{closed_call.250}
  #allocation0 [shape = 'u32[]', space=smem, size = 0x4, offset = 0x4, fixed_abs, tag = 'smem constant byte address 0x4 - core index']
  #allocation1 [shape = 'u32[72,128]{1,0:T(1,128)}', space=vmem, size = 0x9000, scoped, tag = 'internal scratch']
  #allocation2 [shape = 'f32[8,256]{1,0:T(8,128)}', space=vmem, size = 0x2000, scoped, tag = 'scratch operand']
  %s0 = inlined_call_operand.vmem [shape: bf16[1,8,1792], index: 0, kind: input, shape index: {}]
  %s1 = inlined_call_operand.vmem [shape: bf16[1,1792,256], index: 1, kind: input, shape index: {}]
  %s2 = inlined_call_operand.vmem [shape: f32[1,1,256], index: 2, kind: input, shape index: {}]
  %s3 = inlined_call_operand.vmem [shape: f32[1,8,256], index: 3, kind: output, shape index: {}]
  %s4 = sld [smem:[#allocation0]]
  $region53: #{closed_call.250} parent=0
    _
  %s6 = ssub.s32 1, %s4
  %s7 = scalar_select 0, %s6, %s4
  loop: start=0, step=1, limit=9
  $region2: #{closed_call.250} parent=0 // loop_pre_header
    _
  $region3: #{closed_call.250} parent=0 // loop_header
    %s9 = sphi 0, %s13
    %p10 = scmp.ge.s32.totalorder %s9, 9
    %s16 = sphi 0, %s42
    %s17 = sphi 0, %s38
    %s18 = sphi 0, %s34
    %s19 = sphi 0, %s30
    %s20 = sphi 0, %s16
    %s21 = sphi 0, %s17
    %s22 = sphi 0, %s18
    %s23 = sphi 0, %s19
    %s24 = sphi 0, %s20
    %s25 = sphi 0, %s21
    %s26 = sphi 0, %s22
    %s27 = sphi 0, %s23
    %s49 = sphi 0, %s51
    %s52 = sphi 0, %s49
    %s53 = sphi 0, %s52
    %s69 = sphi 0, %s53
    %s79 = sphi 0, %s81
    %s82 = sphi 0, %s79
    %s83 = sphi 0, %s82
    %s99 = sphi 0, %s83
    %s107 = sphi 0, %s109
    %s110 = sphi 0, %s107
    %s111 = sphi 0, %s110
    %s127 = sphi 0, %s111
    %s137 = sphi 0, %s139
    %s140 = sphi 0, %s137
    %s141 = sphi 0, %s140
    %s157 = sphi 0, %s141
  $region4: #{closed_call.250} parent=0 // loop_header_branch
    %12 = sbr.rel (%p10) target = $region8
  $region5: #{closed_call.250} parent=0 // loop_body
    %s14 = ssub.s32 %s9, 1
    %s15 = ssub.s32 %s9, 2
    %s28 = sadd.s32 1, %s19
    %p29 = scmp.ge.s32.totalorder %s28, 7
    %s30 = scalar_select %p29, 0, %s28
    %s31 = sadd.s32 1, %s18
    %s32 = scalar_select %p29, %s31, %s18
    %p33 = scmp.ge.s32.totalorder %s32, 1
    %s34 = scalar_select %p33, 0, %s32
    %s35 = sadd.s32 1, %s17
    %s36 = scalar_select %p33, %s35, %s17
    %p37 = scmp.ge.s32.totalorder %s36, 1
    %s38 = scalar_select %p37, 0, %s36
    %s39 = sadd.s32 1, %s16
    %s40 = scalar_select %p37, %s39, %s16
    %p41 = scmp.ge.s32.totalorder %s40, 1
    %s42 = scalar_select %p41, 0, %s40
    %s43 = ssub.s32 %s16, %s42
    %s44 = ssub.s32 %s17, %s38
    %s45 = sor.u32 %s43, %s44
    %s46 = ssub.s32 %s19, %s30
    %s47 = sor.u32 %s45, %s46
    %p48 = scmp.eq.s32.totalorder %s47, 0
    %s50 = sadd.s32 %s49, 1
    %s51 = scalar_select %p48, %s49, %s50
    %p54 = pneg %p48
    %p55 = scmp.eq.s32.totalorder %s9, 6
    %p56 = por %p54, %p55
    %p57 = scmp.ne.s32.totalorder %s49, %s52
    %p58 = scmp.eq.s32.totalorder %s9, 0
    %p59 = por %p57, %p58
    %p60 = scmp.ne.s32.totalorder %s49, %s52
    %p61 = scmp.eq.s32.totalorder %s14, 6
    %p62 = por %p60, %p61
    %p63 = scmp.ne.s32.totalorder %s52, %s53
    %p64 = scmp.eq.s32.totalorder %s14, 0
    %p65 = por %p63, %p64
    %p66 = scmp.ne.s32.totalorder %s52, %s53
    %p67 = scmp.eq.s32.totalorder %s15, 6
    %p68 = por %p66, %p67
    %p70 = scmp.ne.s32.totalorder %s53, %s69
    %p71 = scmp.eq.s32.totalorder %s15, 0
    %p72 = por %p70, %p71
    %s73 = ssub.s32 %s16, %s42
    %s74 = ssub.s32 %s19, %s30
    %s75 = sor.u32 %s73, %s74
    %s76 = ssub.s32 %s18, %s34
    %s77 = sor.u32 %s75, %s76
    %p78 = scmp.eq.s32.totalorder %s77, 0
    %s80 = sadd.s32 %s79, 1
    %s81 = scalar_select %p78, %s79, %s80
    %p84 = pneg %p78
    %p85 = scmp.eq.s32.totalorder %s9, 6
    %p86 = por %p84, %p85
    %p87 = scmp.ne.s32.totalorder %s79, %s82
    %p88 = scmp.eq.s32.totalorder %s9, 0
    %p89 = por %p87, %p88
    %p90 = scmp.ne.s32.totalorder %s79, %s82
    %p91 = scmp.eq.s32.totalorder %s14, 6
    %p92 = por %p90, %p91
    %p93 = scmp.ne.s32.totalorder %s82, %s83
    %p94 = scmp.eq.s32.totalorder %s14, 0
    %p95 = por %p93, %p94
    %p96 = scmp.ne.s32.totalorder %s82, %s83
    %p97 = scmp.eq.s32.totalorder %s15, 6
    %p98 = por %p96, %p97
    %p100 = scmp.ne.s32.totalorder %s83, %s99
    %p101 = scmp.eq.s32.totalorder %s15, 0
    %p102 = por %p100, %p101
    %s103 = ssub.s32 %s16, %s42
    %s104 = ssub.s32 %s18, %s34
    %s105 = sor.u32 %s103, %s104
    %p106 = scmp.eq.s32.totalorder %s105, 0
    %s108 = sadd.s32 %s107, 1
    %s109 = scalar_select %p106, %s107, %s108
    %p112 = pneg %p106
    %p113 = scmp.eq.s32.totalorder %s9, 6
    %p114 = por %p112, %p113
    %p115 = scmp.ne.s32.totalorder %s107, %s110
    %p116 = scmp.eq.s32.totalorder %s9, 0
    %p117 = por %p115, %p116
    %p118 = scmp.ne.s32.totalorder %s107, %s110
    %p119 = scmp.eq.s32.totalorder %s14, 6
    %p120 = por %p118, %p119
    %p121 = scmp.ne.s32.totalorder %s110, %s111
    %p122 = scmp.eq.s32.totalorder %s14, 0
    %p123 = por %p121, %p122
    %p124 = scmp.ne.s32.totalorder %s110, %s111
    %p125 = scmp.eq.s32.totalorder %s15, 6
    %p126 = por %p124, %p125
    %p128 = scmp.ne.s32.totalorder %s111, %s127
    %p129 = scmp.eq.s32.totalorder %s15, 0
    %p130 = por %p128, %p129
    %s131 = ssub.s32 %s16, %s42
    %s132 = ssub.s32 %s17, %s38
    %s133 = sor.u32 %s131, %s132
    %s134 = ssub.s32 %s18, %s34
    %s135 = sor.u32 %s133, %s134
    %p136 = scmp.eq.s32.totalorder %s135, 0
    %s138 = sadd.s32 %s137, 1
    %s139 = scalar_select %p136, %s137, %s138
    %p142 = pneg %p136
    %p143 = scmp.eq.s32.totalorder %s9, 6
    %p144 = por %p142, %p143
    %p145 = scmp.ne.s32.totalorder %s137, %s140
    %p146 = scmp.eq.s32.totalorder %s9, 0
    %p147 = por %p145, %p146
    %p148 = scmp.ne.s32.totalorder %s137, %s140
    %p149 = scmp.eq.s32.totalorder %s14, 6
    %p150 = por %p148, %p149
    %p151 = scmp.ne.s32.totalorder %s140, %s141
    %p152 = scmp.eq.s32.totalorder %s14, 0
    %p153 = por %p151, %p152
    %p154 = scmp.ne.s32.totalorder %s140, %s141
    %p155 = scmp.eq.s32.totalorder %s15, 6
    %p156 = por %p154, %p155
    %p158 = scmp.ne.s32.totalorder %s141, %s157
    %p159 = scmp.eq.s32.totalorder %s15, 0
    %p160 = por %p158, %p159
    %p161 = scmp.le.s32.totalorder 1, %s9
    %p162 = scmp.lt.s32.totalorder %s9, 8
    %p163 = pnand %p161, %p162
    %p164 = pneg %p163
    // Predicated region
    $region9: #{closed_call.250} parent=5 // pred_check
      _
    $region10: #{closed_call.250} parent=5 // pred_check_branch
      %166 = sbr.rel (%p163) target = $region12
    $region11: #{closed_call.250} parent=5 // pred_region
      %s167 = ssub.s32 %s9, 1
      // Predicated region
      $region13: #{closed_call.250} parent=11 // pred_check
        %p168 = pneg %p123
      $region14: #{closed_call.250} parent=11 // pred_check_branch
        %170 = sbr.rel (%p168) target = $region16
      $region15: #{closed_call.250} parent=11 // pred_region
        %s171 = smul.u32 2, %s22
        %p172 = scmp.lt.s32.totalorder %s20, 0
        %s173 = scalar_select %p172, %s20, 0
        %p174 = scmp.lt.s32.totalorder %s171, 1
        %s175 = scalar_select %p174, %s171, 1
        %s176 = smul.addr %s173, 2
        %s177 = sadd.s32 %s175, %s176
        %s178 = scalar_lea.vmem %s2, %s177
        %s179 = smul.u32 2, %s22
      $region16: #{closed_call.250} parent=11 // pred_fallthru
        _
    $region12: #{closed_call.250} parent=5 // pred_fallthru
      _
    %p180 = scmp.lt.s32.totalorder %s9, 7
    // Predicated region
    $region17: #{closed_call.250} parent=5 // pred_check
      %p181 = pneg %p180
    $region18: #{closed_call.250} parent=5 // pred_check_branch
      %183 = sbr.rel (%p181) target = $region20
    $region19: #{closed_call.250} parent=5 // pred_region
      // Predicated region
      $region21: #{closed_call.250} parent=19 // pred_check
        %p184 = pneg %p59
      $region22: #{closed_call.250} parent=19 // pred_check_branch
        %186 = sbr.rel (%p184) target = $region24
      $region23: #{closed_call.250} parent=19 // pred_region
        %s187 = smul.u32 2, %s19
        %p188 = scmp.lt.s32.totalorder %s16, 0
        %s189 = scalar_select %p188, %s16, 0
        %p190 = scmp.lt.s32.totalorder %s17, 0
        %s191 = scalar_select %p190, %s17, 0
        %p192 = scmp.lt.s32.totalorder %s187, 13
        %s193 = scalar_select %p192, %s187, 13
        %s194 = smul.addr %s191, 14
        %s195 = sadd.s32 %s193, %s194
        %s196 = smul.addr %s189, 14
        %s197 = sadd.s32 %s195, %s196
        %s198 = smul.addr %s197, 4
        %s199 = scalar_lea.vmem %s0, %s198
        %s200 = smul.u32 2, %s19
      $region24: #{closed_call.250} parent=19 // pred_fallthru
        _
      // Predicated region
      $region25: #{closed_call.250} parent=19 // pred_check
        %p201 = pneg %p89
      $region26: #{closed_call.250} parent=19 // pred_check_branch
        %203 = sbr.rel (%p201) target = $region28
      $region27: #{closed_call.250} parent=19 // pred_region
        %s204 = smul.u32 32, %s19
        %s205 = smul.u32 2, %s18
        %p206 = scmp.lt.s32.totalorder %s16, 0
        %s207 = scalar_select %p206, %s16, 0
        %p208 = scmp.lt.s32.totalorder %s204, 223
        %s209 = scalar_select %p208, %s204, 223
        %p210 = scmp.lt.s32.totalorder %s205, 1
        %s211 = scalar_select %p210, %s205, 1
        %s212 = smul.addr %s209, 2
        %s213 = sadd.s32 %s211, %s212
        %s214 = smul.addr %s207, 448
        %s215 = sadd.s32 %s213, %s214
        %s216 = smul.addr %s215, 4
        %s217 = scalar_lea.vmem %s1, %s216
        %s218 = smul.u32 32, %s19
        %s219 = smul.u32 2, %s18
      $region28: #{closed_call.250} parent=19 // pred_fallthru
        _
    $region20: #{closed_call.250} parent=5 // pred_fallthru
      _
    %p220 = scmp.le.s32.totalorder 1, %s9
    %p221 = scmp.lt.s32.totalorder %s9, 8
    %p222 = pnand %p220, %p221
    %p223 = pneg %p222
    // Predicated region
    $region29: #{closed_call.250} parent=5 // pred_check
      _
    $region30: #{closed_call.250} parent=5 // pred_check_branch
      %225 = sbr.rel (%p222) target = $region32
    $region31: #{closed_call.250} parent=5 // pred_region
      %s226 = ssub.s32 %s9, 1
      %s227 = smul.u32 2, %s23
      %p228 = scmp.lt.s32.totalorder %s20, 0
      %s229 = scalar_select %p228, %s20, 0
      %p230 = scmp.lt.s32.totalorder %s21, 0
      %s231 = scalar_select %p230, %s21, 0
      %p232 = scmp.lt.s32.totalorder %s227, 13
      %s233 = scalar_select %p232, %s227, 13
      %s234 = smul.addr %s231, 14
      %s235 = sadd.s32 %s233, %s234
      %s236 = smul.addr %s229, 14
      %s237 = sadd.s32 %s235, %s236
      %s238 = smul.addr %s237, 4
      %s239 = scalar_lea.vmem %s0, %s238
      %p240 = pneg %p65
      %p241 = pneg %p62
      %s242 = smul.u32 32, %s23
      %s243 = smul.u32 2, %s22
      %p244 = scmp.lt.s32.totalorder %s20, 0
      %s245 = scalar_select %p244, %s20, 0
      %p246 = scmp.lt.s32.totalorder %s242, 223
      %s247 = scalar_select %p246, %s242, 223
      %p248 = scmp.lt.s32.totalorder %s243, 1
      %s249 = scalar_select %p248, %s243, 1
      %s250 = smul.addr %s247, 2
      %s251 = sadd.s32 %s249, %s250
      %s252 = smul.addr %s245, 448
      %s253 = sadd.s32 %s251, %s252
      %s254 = smul.addr %s253, 4
      %s255 = scalar_lea.vmem %s1, %s254
      %p256 = pneg %p95
      %p257 = pneg %p92
      %s258 = smul.u32 2, %s22
      %p259 = scmp.lt.s32.totalorder %s20, 0
      %s260 = scalar_select %p259, %s20, 0
      %p261 = scmp.lt.s32.totalorder %s258, 1
      %s262 = scalar_select %p261, %s258, 1
      %s263 = smul.addr %s260, 2
      %s264 = sadd.s32 %s262, %s263
      %s265 = scalar_lea.vmem %s2, %s264
      %p266 = pneg %p123
      %p267 = pneg %p120
      %p268 = pneg %p153
      %p269 = pneg %p150
      %s270 = smul.u32 2, %s22
      %p271 = scmp.lt.s32.totalorder %s20, 0
      %s272 = scalar_select %p271, %s20, 0
      %p273 = scmp.lt.s32.totalorder %s21, 0
      %s274 = scalar_select %p273, %s21, 0
      %p275 = scmp.lt.s32.totalorder %s270, 1
      %s276 = scalar_select %p275, %s270, 1
      %s277 = smul.addr %s274, 2
      %s278 = sadd.s32 %s276, %s277
      %s279 = smul.addr %s272, 2
      %s280 = sadd.s32 %s278, %s279
      %s281 = smul.addr %s280, 8
      %s282 = scalar_lea.vmem %s3, %s281
      %s283 = smul.u32 2, %s23
      %p284 = scmp.lt.s32.totalorder %s20, 0
      %s285 = scalar_select %p284, %s20, 0
      %p286 = scmp.lt.s32.totalorder %s21, 0
      %s287 = scalar_select %p286, %s21, 0
      %p288 = scmp.lt.s32.totalorder %s283, 13
      %s289 = scalar_select %p288, %s283, 13
      %s290 = smul.addr %s287, 14
      %s291 = sadd.s32 %s289, %s290
      %s292 = smul.addr %s285, 14
      %s293 = sadd.s32 %s291, %s292
      %s294 = smul.addr %s293, 4
      %s295 = scalar_lea.vmem %s0, %s294
      %s296 = smul.u32 2, %s23
      %s297 = smul.u32 32, %s23
      %s298 = smul.u32 2, %s22
      %p299 = scmp.lt.s32.totalorder %s20, 0
      %s300 = scalar_select %p299, %s20, 0
      %p301 = scmp.lt.s32.totalorder %s297, 223
      %s302 = scalar_select %p301, %s297, 223
      %p303 = scmp.lt.s32.totalorder %s298, 1
      %s304 = scalar_select %p303, %s298, 1
      %s305 = smul.addr %s302, 2
      %s306 = sadd.s32 %s304, %s305
      %s307 = smul.addr %s300, 448
      %s308 = sadd.s32 %s306, %s307
      %s309 = smul.addr %s308, 4
      %s310 = scalar_lea.vmem %s1, %s309
      %s311 = smul.u32 32, %s23
      %s312 = smul.u32 2, %s22
      %s313 = smul.u32 2, %s22
      %p314 = scmp.lt.s32.totalorder %s20, 0
      %s315 = scalar_select %p314, %s20, 0
      %p316 = scmp.lt.s32.totalorder %s313, 1
      %s317 = scalar_select %p316, %s313, 1
      %s318 = smul.addr %s315, 2
      %s319 = sadd.s32 %s317, %s318
      %s320 = scalar_lea.vmem %s2, %s319
      %s321 = smul.u32 2, %s22
      %s322 = smul.u32 2, %s22
      %p323 = scmp.lt.s32.totalorder %s20, 0
      %s324 = scalar_select %p323, %s20, 0
      %p325 = scmp.lt.s32.totalorder %s21, 0
      %s326 = scalar_select %p325, %s21, 0
      %p327 = scmp.lt.s32.totalorder %s322, 1
      %s328 = scalar_select %p327, %s322, 1
      %s329 = smul.addr %s326, 2
      %s330 = sadd.s32 %s328, %s329
      %s331 = smul.addr %s324, 2
      %s332 = sadd.s32 %s330, %s331
      %s333 = smul.addr %s332, 8
      %s334 = scalar_lea.vmem %s3, %s333
      %s335 = smul.u32 2, %s22
      %p336 = scmp.eq.s32.totalorder %s23, 0
      // Predicated region
      $region33: #{closed_call.250} parent=31 // pred_check
        %p337 = pneg %p336
      $region34: #{closed_call.250} parent=31 // pred_check_branch
        %339 = sbr.rel (%p337) target = $region36
      $region35: #{closed_call.250} parent=31 // pred_region
        %340 = vst [vmem:[#allocation2] sm:$0xff] 0.0
        %341 = vst [vmem:[#allocation2 + $0x8] sm:$0xff] 0.0
      $region36: #{closed_call.250} parent=31 // pred_fallthru
        _
      %v342 = vld [vmem:[#allocation2] sm:$0xff]
      %v343 = vld [vmem:[#allocation2 + $0x8] sm:$0xff]
      %v344 = vld [vmem:[%s295] sm:$0xff]
      %v345 = vld [vmem:[%s310] sm:$0xff]
      %v346 = vld [vmem:[%s310 + $0x8] sm:$0xff]
      %v347 = vld [vmem:[%s310 + $0x10] sm:$0xff]
      %v348 = vld [vmem:[%s310 + $0x18] sm:$0xff]
      %v349 = vld [vmem:[%s310 + $0x20] sm:$0xff]
      %v350 = vld [vmem:[%s310 + $0x28] sm:$0xff]
      %v351 = vld [vmem:[%s310 + $0x30] sm:$0xff]
      %v352 = vld [vmem:[%s310 + $0x38] sm:$0xff]
      %v353 = vld [vmem:[%s310 + $0x40] sm:$0xff]
      %v354 = vld [vmem:[%s310 + $0x48] sm:$0xff]
      %v355 = vld [vmem:[%s310 + $0x50] sm:$0xff]
      %v356 = vld [vmem:[%s310 + $0x58] sm:$0xff]
      %v357 = vld [vmem:[%s310 + $0x60] sm:$0xff]
      %v358 = vld [vmem:[%s310 + $0x68] sm:$0xff]
      %v359 = vld [vmem:[%s310 + $0x70] sm:$0xff]
      %v360 = vld [vmem:[%s310 + $0x78] sm:$0xff]
      %v361 = vld [vmem:[%s310 + $0x80] sm:$0xff]
      %v362 = vld [vmem:[%s310 + $0x88] sm:$0xff]
      %v363 = vld [vmem:[%s310 + $0x90] sm:$0xff]
      %v364 = vld [vmem:[%s310 + $0x98] sm:$0xff]
      %v365 = vld [vmem:[%s310 + $0xa0] sm:$0xff]
      %v366 = vld [vmem:[%s310 + $0xa8] sm:$0xff]
      %v367 = vld [vmem:[%s310 + $0xb0] sm:$0xff]
      %v368 = vld [vmem:[%s310 + $0xb8] sm:$0xff]
      %v369 = vld [vmem:[%s310 + $0xc0] sm:$0xff]
      %v370 = vld [vmem:[%s310 + $0xc8] sm:$0xff]
      %v371 = vld [vmem:[%s310 + $0xd0] sm:$0xff]
      %v372 = vld [vmem:[%s310 + $0xd8] sm:$0xff]
      %v373 = vld [vmem:[%s310 + $0xe0] sm:$0xff]
      %v374 = vld [vmem:[%s310 + $0xe8] sm:$0xff]
      %v375 = vld [vmem:[%s310 + $0xf0] sm:$0xff]
      %v376 = vld [vmem:[%s310 + $0xf8] sm:$0xff]
      %v378 = vunpack.c.l.b16 %v344
      %v379 = vunpack.c.h.b16 %v344
      %v380 = vpack.c.b16 %v378, %v378
      %v381 = vpack.c.b16 %v379, %v379
      %v416 = vunpack.c.l.b16 %v345
      %v417 = vunpack.c.h.b16 %v345
      %v418 = vunpack.c.l.b16 %v346
      %v419 = vunpack.c.h.b16 %v346
      %v420 = vunpack.c.l.b16 %v347
      %v421 = vunpack.c.h.b16 %v347
      %v422 = vunpack.c.l.b16 %v348
      %v423 = vunpack.c.h.b16 %v348
      %v424 = vunpack.c.l.b16 %v349
      %v425 = vunpack.c.h.b16 %v349
      %v426 = vunpack.c.l.b16 %v350
      %v427 = vunpack.c.h.b16 %v350
      %v428 = vunpack.c.l.b16 %v351
      %v429 = vunpack.c.h.b16 %v351
      %v430 = vunpack.c.l.b16 %v352
      %v431 = vunpack.c.h.b16 %v352
      %v432 = vunpack.c.l.b16 %v353
      %v433 = vunpack.c.h.b16 %v353
      %v434 = vunpack.c.l.b16 %v354
      %v435 = vunpack.c.h.b16 %v354
      %v436 = vunpack.c.l.b16 %v355
      %v437 = vunpack.c.h.b16 %v355
      %v438 = vunpack.c.l.b16 %v356
      %v439 = vunpack.c.h.b16 %v356
      %v440 = vunpack.c.l.b16 %v357
      %v441 = vunpack.c.h.b16 %v357
      %v442 = vunpack.c.l.b16 %v358
      %v443 = vunpack.c.h.b16 %v358
      %v444 = vunpack.c.l.b16 %v359
      %v445 = vunpack.c.h.b16 %v359
      %v446 = vunpack.c.l.b16 %v360
      %v447 = vunpack.c.h.b16 %v360
      %v448 = vunpack.c.l.b16 %v361
      %v449 = vunpack.c.h.b16 %v361
      %v450 = vunpack.c.l.b16 %v362
      %v451 = vunpack.c.h.b16 %v362
      %v452 = vunpack.c.l.b16 %v363
      %v453 = vunpack.c.h.b16 %v363
      %v454 = vunpack.c.l.b16 %v364
      %v455 = vunpack.c.h.b16 %v364
      %v456 = vunpack.c.l.b16 %v365
      %v457 = vunpack.c.h.b16 %v365
      %v458 = vunpack.c.l.b16 %v366
      %v459 = vunpack.c.h.b16 %v366
      %v460 = vunpack.c.l.b16 %v367
      %v461 = vunpack.c.h.b16 %v367
      %v462 = vunpack.c.l.b16 %v368
      %v463 = vunpack.c.h.b16 %v368
      %v464 = vunpack.c.l.b16 %v369
      %v465 = vunpack.c.h.b16 %v369
      %v466 = vunpack.c.l.b16 %v370
      %v467 = vunpack.c.h.b16 %v370
      %v468 = vunpack.c.l.b16 %v371
      %v469 = vunpack.c.h.b16 %v371
      %v470 = vunpack.c.l.b16 %v372
      %v471 = vunpack.c.h.b16 %v372
      %v472 = vunpack.c.l.b16 %v373
      %v473 = vunpack.c.h.b16 %v373
      %v474 = vunpack.c.l.b16 %v374
      %v475 = vunpack.c.h.b16 %v374
      %v476 = vunpack.c.l.b16 %v375
      %v477 = vunpack.c.h.b16 %v375
      %v478 = vunpack.c.l.b16 %v376
      %v479 = vunpack.c.h.b16 %v376
      %v480 = vpack.c.b16 %v418, %v416
      %v481 = vpack.c.b16 %v419, %v417
      %v482 = vpack.c.b16 %v422, %v420
      %v483 = vpack.c.b16 %v423, %v421
      %v484 = vpack.c.b16 %v426, %v424
      %v485 = vpack.c.b16 %v427, %v425
      %v486 = vpack.c.b16 %v430, %v428
      %v487 = vpack.c.b16 %v431, %v429
      %v488 = vpack.c.b16 %v434, %v432
      %v489 = vpack.c.b16 %v435, %v433
      %v490 = vpack.c.b16 %v438, %v436
      %v491 = vpack.c.b16 %v439, %v437
      %v492 = vpack.c.b16 %v442, %v440
      %v493 = vpack.c.b16 %v443, %v441
      %v494 = vpack.c.b16 %v446, %v444
      %v495 = vpack.c.b16 %v447, %v445
      %v496 = vpack.c.b16 %v450, %v448
      %v497 = vpack.c.b16 %v451, %v449
      %v498 = vpack.c.b16 %v454, %v452
      %v499 = vpack.c.b16 %v455, %v453
      %v500 = vpack.c.b16 %v458, %v456
      %v501 = vpack.c.b16 %v459, %v457
      %v502 = vpack.c.b16 %v462, %v460
      %v503 = vpack.c.b16 %v463, %v461
      %v504 = vpack.c.b16 %v466, %v464
      %v505 = vpack.c.b16 %v467, %v465
      %v506 = vpack.c.b16 %v470, %v468
      %v507 = vpack.c.b16 %v471, %v469
      %v508 = vpack.c.b16 %v474, %v472
      %v509 = vpack.c.b16 %v475, %v473
      %v510 = vpack.c.b16 %v478, %v476
      %v511 = vpack.c.b16 %v479, %v477
      %544 = vmatpush.bf16.msra.mxu0 %v494
      %545 = vmatpush.bf16.msra.mxu0 %v492
      %546 = vmatpush.bf16.msra.mxu0 %v490
      %547 = vmatpush.bf16.msra.mxu0 %v488
      %548 = vmatpush.bf16.msra.mxu0 %v486
      %549 = vmatpush.bf16.msra.mxu0 %v484
      %550 = vmatpush.bf16.msra.mxu0 %v482
      %551 = vmatpush.bf16.msra.mxu0 %v480
      %552 = vmatmul.bf16.gmra.mxu0 %v380
      %v553 = vpop.f32.mrf.mxu0
      %v554 = vadd.f32 0.0, %v553
      %v555 = vpop.f32.mrf.mxu0
      %556 = vdwg.mxu0
      %557 = vmatpush.bf16.msra.mxu0 %v510
      %558 = vmatpush.bf16.msra.mxu0 %v508
      %559 = vmatpush.bf16.msra.mxu0 %v506
      %560 = vmatpush.bf16.msra.mxu0 %v504
      %561 = vmatpush.bf16.msra.mxu0 %v502
      %562 = vmatpush.bf16.msra.mxu0 %v500
      %563 = vmatpush.bf16.msra.mxu0 %v498
      %564 = vmatpush.bf16.msra.mxu0 %v496
      %565 = vmatmul.bf16.gmra.mxu0 %v381
      %v566 = vpop.f32.mrf.mxu0
      %v567 = vadd.f32 %v554, %v566
      %v568 = vpop.f32.mrf.mxu0
      %569 = vdwg.mxu0
      %570 = vmatpush.bf16.msra.mxu0 %v495
      %571 = vmatpush.bf16.msra.mxu0 %v493
      %572 = vmatpush.bf16.msra.mxu0 %v491
      %573 = vmatpush.bf16.msra.mxu0 %v489
      %574 = vmatpush.bf16.msra.mxu0 %v487
      %575 = vmatpush.bf16.msra.mxu0 %v485
      %576 = vmatpush.bf16.msra.mxu0 %v483
      %577 = vmatpush.bf16.msra.mxu0 %v481
      %578 = vmatmul.bf16.gmra.mxu0 %v380
      %v579 = vpop.f32.mrf.mxu0
      %v580 = vadd.f32 0.0, %v579
      %v581 = vpop.f32.mrf.mxu0
      %582 = vdwg.mxu0
      %583 = vmatpush.bf16.msra.mxu0 %v511
      %584 = vmatpush.bf16.msra.mxu0 %v509
      %585 = vmatpush.bf16.msra.mxu0 %v507
      %586 = vmatpush.bf16.msra.mxu0 %v505
      %587 = vmatpush.bf16.msra.mxu0 %v503
      %588 = vmatpush.bf16.msra.mxu0 %v501
      %589 = vmatpush.bf16.msra.mxu0 %v499
      %590 = vmatpush.bf16.msra.mxu0 %v497
      %591 = vmatmul.bf16.gmra.mxu0 %v381
      %v592 = vpop.f32.mrf.mxu0
      %v593 = vadd.f32 %v580, %v592
      %v594 = vpop.f32.mrf.mxu0
      %595 = vdwg.mxu0
      %v596 = vadd.f32 %v342, %v567
      %v597 = vadd.f32 %v343, %v593
      %598 = vst [vmem:[#allocation2] sm:$0xff] %v596
      %599 = vst [vmem:[#allocation2 + $0x8] sm:$0xff] %v597
      %p600 = scmp.eq.s32.totalorder %s23, 6
      // Predicated region
      $region37: #{closed_call.250} parent=31 // pred_check
        %p601 = pneg %p600
      $region38: #{closed_call.250} parent=31 // pred_check_branch
        %603 = sbr.rel (%p601) target = $region40
      $region39: #{closed_call.250} parent=31 // pred_region
        %v604 = vld [vmem:[#allocation2] sm:$0xff]
        %v605 = vld [vmem:[#allocation2 + $0x8] sm:$0xff]
        %v606 = vld [vmem:[%s320] sm:$0x3]
        %v608 = vperm.slane %v606, 0
        %v609 = vperm.slane %v606, 1
        %v612 = vadd.f32 %v604, %v608
        %v613 = vadd.f32 %v605, %v609
        %vm614 = vcmp.gt.f32.partialorder %v612, 0.0
        %vm615 = vcmp.gt.f32.partialorder %v613, 0.0
        %v616 = vmul.f32 %v612, 0.2
        %v617 = vmul.f32 %v613, 0.2
        %v618 = vsel %vm614, %v612, %v616
        %v619 = vsel %vm615, %v613, %v617
        %620 = vst [vmem:[%s334] sm:$0xff] %v618
        %621 = vst [vmem:[%s334 + $0x8] sm:$0xff] %v619
      $region40: #{closed_call.250} parent=31 // pred_fallthru
        _
      %s622 = smul.u32 2, %s22
      %p623 = scmp.lt.s32.totalorder %s20, 0
      %s624 = scalar_select %p623, %s20, 0
      %p625 = scmp.lt.s32.totalorder %s21, 0
      %s626 = scalar_select %p625, %s21, 0
      %p627 = scmp.lt.s32.totalorder %s622, 1
      %s628 = scalar_select %p627, %s622, 1
      %s629 = smul.addr %s626, 2
      %s630 = sadd.s32 %s628, %s629
      %s631 = smul.addr %s624, 2
      %s632 = sadd.s32 %s630, %s631
      %s633 = smul.addr %s632, 8
      %s634 = scalar_lea.vmem %s3, %s633
      // Predicated region
      $region41: #{closed_call.250} parent=31 // pred_check
        %p635 = pneg %p150
      $region42: #{closed_call.250} parent=31 // pred_check_branch
        %637 = sbr.rel (%p635) target = $region44
      $region43: #{closed_call.250} parent=31 // pred_region
        %s638 = smul.u32 2, %s22
      $region44: #{closed_call.250} parent=31 // pred_fallthru
        _
      // Predicated region
      $region45: #{closed_call.250} parent=31 // pred_check
        %p639 = pneg %p150
      $region46: #{closed_call.250} parent=31 // pred_check_branch
        %641 = sbr.rel (%p639) target = $region48
      $region47: #{closed_call.250} parent=31 // pred_region
        %s642 = smul.u32 2, %s22
        %p643 = scmp.lt.s32.totalorder %s20, 0
        %s644 = scalar_select %p643, %s20, 0
        %p645 = scmp.lt.s32.totalorder %s21, 0
        %s646 = scalar_select %p645, %s21, 0
        %p647 = scmp.lt.s32.totalorder %s642, 1
        %s648 = scalar_select %p647, %s642, 1
        %s649 = smul.addr %s646, 2
        %s650 = sadd.s32 %s648, %s649
        %s651 = smul.addr %s644, 2
        %s652 = sadd.s32 %s650, %s651
        %s653 = smul.addr %s652, 8
        %s654 = scalar_lea.vmem %s3, %s653
      $region48: #{closed_call.250} parent=31 // pred_fallthru
        _
    $region32: #{closed_call.250} parent=5 // pred_fallthru
      _
    %p655 = scmp.le.s32.totalorder 2, %s9
    // Predicated region
    $region49: #{closed_call.250} parent=5 // pred_check
      %p656 = pneg %p655
    $region50: #{closed_call.250} parent=5 // pred_check_branch
      %658 = sbr.rel (%p656) target = $region52
    $region51: #{closed_call.250} parent=5 // pred_region
      %s659 = ssub.s32 %s9, 2
    $region52: #{closed_call.250} parent=5 // pred_fallthru
      _
  $region6: #{closed_call.250} parent=0 // loop_footer
    %s13 = sadd.s32 1, %s9
  $region7: #{closed_call.250} parent=0 // loop_footer_branch
    %8 = sbr.rel target = $region3
  $region8: #{closed_call.250} parent=0 // loop_exit
    _

// kernel: closed_call.251
$region0: #{closed_call.251}
  #allocation0 [shape = 'u32[]', space=smem, size = 0x4, offset = 0x4, fixed_abs, tag = 'smem constant byte address 0x4 - core index']
  #allocation1 [shape = 'u32[72,128]{1,0:T(1,128)}', space=vmem, size = 0x9000, scoped, tag = 'internal scratch']
  #allocation2 [shape = 'f32[8,256]{1,0:T(8,128)}', space=vmem, size = 0x2000, scoped, tag = 'scratch operand']
  %s0 = inlined_call_operand.vmem [shape: bf16[1,8,1792], index: 0, kind: input, shape index: {}]
  %s1 = inlined_call_operand.vmem [shape: bf16[1,1792,256], index: 1, kind: input, shape index: {}]
  %s2 = inlined_call_operand.vmem [shape: f32[1,1,256], index: 2, kind: input, shape index: {}]
  %s3 = inlined_call_operand.vmem [shape: f32[1,8,256], index: 3, kind: output, shape index: {}]
  %s4 = sld [smem:[#allocation0]]
  $region53: #{closed_call.251} parent=0
    _
  %s6 = ssub.s32 1, %s4
  %s7 = scalar_select 0, %s6, %s4
  loop: start=0, step=1, limit=9
  $region2: #{closed_call.251} parent=0 // loop_pre_header
    _
  $region3: #{closed_call.251} parent=0 // loop_header
    %s9 = sphi 0, %s13
    %p10 = scmp.ge.s32.totalorder %s9, 9
    %s16 = sphi 0, %s42
    %s17 = sphi 0, %s38
    %s18 = sphi 0, %s34
    %s19 = sphi 0, %s30
    %s20 = sphi 0, %s16
    %s21 = sphi 0, %s17
    %s22 = sphi 0, %s18
    %s23 = sphi 0, %s19
    %s24 = sphi 0, %s20
    %s25 = sphi 0, %s21
    %s26 = sphi 0, %s22
    %s27 = sphi 0, %s23
    %s49 = sphi 0, %s51
    %s52 = sphi 0, %s49
    %s53 = sphi 0, %s52
    %s69 = sphi 0, %s53
    %s79 = sphi 0, %s81
    %s82 = sphi 0, %s79
    %s83 = sphi 0, %s82
    %s99 = sphi 0, %s83
    %s107 = sphi 0, %s109
    %s110 = sphi 0, %s107
    %s111 = sphi 0, %s110
    %s127 = sphi 0, %s111
    %s137 = sphi 0, %s139
    %s140 = sphi 0, %s137
    %s141 = sphi 0, %s140
    %s157 = sphi 0, %s141
  $region4: #{closed_call.251} parent=0 // loop_header_branch
    %12 = sbr.rel (%p10) target = $region8
  $region5: #{closed_call.251} parent=0 // loop_body
    %s14 = ssub.s32 %s9, 1
    %s15 = ssub.s32 %s9, 2
    %s28 = sadd.s32 1, %s19
    %p29 = scmp.ge.s32.totalorder %s28, 7
    %s30 = scalar_select %p29, 0, %s28
    %s31 = sadd.s32 1, %s18
    %s32 = scalar_select %p29, %s31, %s18
    %p33 = scmp.ge.s32.totalorder %s32, 1
    %s34 = scalar_select %p33, 0, %s32
    %s35 = sadd.s32 1, %s17
    %s36 = scalar_select %p33, %s35, %s17
    %p37 = scmp.ge.s32.totalorder %s36, 1
    %s38 = scalar_select %p37, 0, %s36
    %s39 = sadd.s32 1, %s16
    %s40 = scalar_select %p37, %s39, %s16
    %p41 = scmp.ge.s32.totalorder %s40, 1
    %s42 = scalar_select %p41, 0, %s40
    %s43 = ssub.s32 %s16, %s42
    %s44 = ssub.s32 %s17, %s38
    %s45 = sor.u32 %s43, %s44
    %s46 = ssub.s32 %s19, %s30
    %s47 = sor.u32 %s45, %s46
    %p48 = scmp.eq.s32.totalorder %s47, 0
    %s50 = sadd.s32 %s49, 1
    %s51 = scalar_select %p48, %s49, %s50
    %p54 = pneg %p48
    %p55 = scmp.eq.s32.totalorder %s9, 6
    %p56 = por %p54, %p55
    %p57 = scmp.ne.s32.totalorder %s49, %s52
    %p58 = scmp.eq.s32.totalorder %s9, 0
    %p59 = por %p57, %p58
    %p60 = scmp.ne.s32.totalorder %s49, %s52
    %p61 = scmp.eq.s32.totalorder %s14, 6
    %p62 = por %p60, %p61
    %p63 = scmp.ne.s32.totalorder %s52, %s53
    %p64 = scmp.eq.s32.totalorder %s14, 0
    %p65 = por %p63, %p64
    %p66 = scmp.ne.s32.totalorder %s52, %s53
    %p67 = scmp.eq.s32.totalorder %s15, 6
    %p68 = por %p66, %p67
    %p70 = scmp.ne.s32.totalorder %s53, %s69
    %p71 = scmp.eq.s32.totalorder %s15, 0
    %p72 = por %p70, %p71
    %s73 = ssub.s32 %s16, %s42
    %s74 = ssub.s32 %s19, %s30
    %s75 = sor.u32 %s73, %s74
    %s76 = ssub.s32 %s18, %s34
    %s77 = sor.u32 %s75, %s76
    %p78 = scmp.eq.s32.totalorder %s77, 0
    %s80 = sadd.s32 %s79, 1
    %s81 = scalar_select %p78, %s79, %s80
    %p84 = pneg %p78
    %p85 = scmp.eq.s32.totalorder %s9, 6
    %p86 = por %p84, %p85
    %p87 = scmp.ne.s32.totalorder %s79, %s82
    %p88 = scmp.eq.s32.totalorder %s9, 0
    %p89 = por %p87, %p88
    %p90 = scmp.ne.s32.totalorder %s79, %s82
    %p91 = scmp.eq.s32.totalorder %s14, 6
    %p92 = por %p90, %p91
    %p93 = scmp.ne.s32.totalorder %s82, %s83
    %p94 = scmp.eq.s32.totalorder %s14, 0
    %p95 = por %p93, %p94
    %p96 = scmp.ne.s32.totalorder %s82, %s83
    %p97 = scmp.eq.s32.totalorder %s15, 6
    %p98 = por %p96, %p97
    %p100 = scmp.ne.s32.totalorder %s83, %s99
    %p101 = scmp.eq.s32.totalorder %s15, 0
    %p102 = por %p100, %p101
    %s103 = ssub.s32 %s16, %s42
    %s104 = ssub.s32 %s18, %s34
    %s105 = sor.u32 %s103, %s104
    %p106 = scmp.eq.s32.totalorder %s105, 0
    %s108 = sadd.s32 %s107, 1
    %s109 = scalar_select %p106, %s107, %s108
    %p112 = pneg %p106
    %p113 = scmp.eq.s32.totalorder %s9, 6
    %p114 = por %p112, %p113
    %p115 = scmp.ne.s32.totalorder %s107, %s110
    %p116 = scmp.eq.s32.totalorder %s9, 0
    %p117 = por %p115, %p116
    %p118 = scmp.ne.s32.totalorder %s107, %s110
    %p119 = scmp.eq.s32.totalorder %s14, 6
    %p120 = por %p118, %p119
    %p121 = scmp.ne.s32.totalorder %s110, %s111
    %p122 = scmp.eq.s32.totalorder %s14, 0
    %p123 = por %p121, %p122
    %p124 = scmp.ne.s32.totalorder %s110, %s111
    %p125 = scmp.eq.s32.totalorder %s15, 6
    %p126 = por %p124, %p125
    %p128 = scmp.ne.s32.totalorder %s111, %s127
    %p129 = scmp.eq.s32.totalorder %s15, 0
    %p130 = por %p128, %p129
    %s131 = ssub.s32 %s16, %s42
    %s132 = ssub.s32 %s17, %s38
    %s133 = sor.u32 %s131, %s132
    %s134 = ssub.s32 %s18, %s34
    %s135 = sor.u32 %s133, %s134
    %p136 = scmp.eq.s32.totalorder %s135, 0
    %s138 = sadd.s32 %s137, 1
    %s139 = scalar_select %p136, %s137, %s138
    %p142 = pneg %p136
    %p143 = scmp.eq.s32.totalorder %s9, 6
    %p144 = por %p142, %p143
    %p145 = scmp.ne.s32.totalorder %s137, %s140
    %p146 = scmp.eq.s32.totalorder %s9, 0
    %p147 = por %p145, %p146
    %p148 = scmp.ne.s32.totalorder %s137, %s140
    %p149 = scmp.eq.s32.totalorder %s14, 6
    %p150 = por %p148, %p149
    %p151 = scmp.ne.s32.totalorder %s140, %s141
    %p152 = scmp.eq.s32.totalorder %s14, 0
    %p153 = por %p151, %p152
    %p154 = scmp.ne.s32.totalorder %s140, %s141
    %p155 = scmp.eq.s32.totalorder %s15, 6
    %p156 = por %p154, %p155
    %p158 = scmp.ne.s32.totalorder %s141, %s157
    %p159 = scmp.eq.s32.totalorder %s15, 0
    %p160 = por %p158, %p159
    %p161 = scmp.le.s32.totalorder 1, %s9
    %p162 = scmp.lt.s32.totalorder %s9, 8
    %p163 = pnand %p161, %p162
    %p164 = pneg %p163
    // Predicated region
    $region9: #{closed_call.251} parent=5 // pred_check
      _
    $region10: #{closed_call.251} parent=5 // pred_check_branch
      %166 = sbr.rel (%p163) target = $region12
    $region11: #{closed_call.251} parent=5 // pred_region
      %s167 = ssub.s32 %s9, 1
      // Predicated region
      $region13: #{closed_call.251} parent=11 // pred_check
        %p168 = pneg %p123
      $region14: #{closed_call.251} parent=11 // pred_check_branch
        %170 = sbr.rel (%p168) target = $region16
      $region15: #{closed_call.251} parent=11 // pred_region
        %s171 = smul.u32 2, %s22
        %p172 = scmp.lt.s32.totalorder %s20, 0
        %s173 = scalar_select %p172, %s20, 0
        %p174 = scmp.lt.s32.totalorder %s171, 1
        %s175 = scalar_select %p174, %s171, 1
        %s176 = smul.addr %s173, 2
        %s177 = sadd.s32 %s175, %s176
        %s178 = scalar_lea.vmem %s2, %s177
        %s179 = smul.u32 2, %s22
      $region16: #{closed_call.251} parent=11 // pred_fallthru
        _
    $region12: #{closed_call.251} parent=5 // pred_fallthru
      _
    %p180 = scmp.lt.s32.totalorder %s9, 7
    // Predicated region
    $region17: #{closed_call.251} parent=5 // pred_check
      %p181 = pneg %p180
    $region18: #{closed_call.251} parent=5 // pred_check_branch
      %183 = sbr.rel (%p181) target = $region20
    $region19: #{closed_call.251} parent=5 // pred_region
      // Predicated region
      $region21: #{closed_call.251} parent=19 // pred_check
        %p184 = pneg %p59
      $region22: #{closed_call.251} parent=19 // pred_check_branch
        %186 = sbr.rel (%p184) target = $region24
      $region23: #{closed_call.251} parent=19 // pred_region
        %s187 = smul.u32 2, %s19
        %p188 = scmp.lt.s32.totalorder %s16, 0
        %s189 = scalar_select %p188, %s16, 0
        %p190 = scmp.lt.s32.totalorder %s17, 0
        %s191 = scalar_select %p190, %s17, 0
        %p192 = scmp.lt.s32.totalorder %s187, 13
        %s193 = scalar_select %p192, %s187, 13
        %s194 = smul.addr %s191, 14
        %s195 = sadd.s32 %s193, %s194
        %s196 = smul.addr %s189, 14
        %s197 = sadd.s32 %s195, %s196
        %s198 = smul.addr %s197, 4
        %s199 = scalar_lea.vmem %s0, %s198
        %s200 = smul.u32 2, %s19
      $region24: #{closed_call.251} parent=19 // pred_fallthru
        _
      // Predicated region
      $region25: #{closed_call.251} parent=19 // pred_check
        %p201 = pneg %p89
      $region26: #{closed_call.251} parent=19 // pred_check_branch
        %203 = sbr.rel (%p201) target = $region28
      $region27: #{closed_call.251} parent=19 // pred_region
        %s204 = smul.u32 32, %s19
        %s205 = smul.u32 2, %s18
        %p206 = scmp.lt.s32.totalorder %s16, 0
        %s207 = scalar_select %p206, %s16, 0
        %p208 = scmp.lt.s32.totalorder %s204, 223
        %s209 = scalar_select %p208, %s204, 223
        %p210 = scmp.lt.s32.totalorder %s205, 1
        %s211 = scalar_select %p210, %s205, 1
        %s212 = smul.addr %s209, 2
        %s213 = sadd.s32 %s211, %s212
        %s214 = smul.addr %s207, 448
        %s215 = sadd.s32 %s213, %s214
        %s216 = smul.addr %s215, 4
        %s217 = scalar_lea.vmem %s1, %s216
        %s218 = smul.u32 32, %s19
        %s219 = smul.u32 2, %s18
      $region28: #{closed_call.251} parent=19 // pred_fallthru
        _
    $region20: #{closed_call.251} parent=5 // pred_fallthru
      _
    %p220 = scmp.le.s32.totalorder 1, %s9
    %p221 = scmp.lt.s32.totalorder %s9, 8
    %p222 = pnand %p220, %p221
    %p223 = pneg %p222
    // Predicated region
    $region29: #{closed_call.251} parent=5 // pred_check
      _
    $region30: #{closed_call.251} parent=5 // pred_check_branch
      %225 = sbr.rel (%p222) target = $region32
    $region31: #{closed_call.251} parent=5 // pred_region
      %s226 = ssub.s32 %s9, 1
      %s227 = smul.u32 2, %s23
      %p228 = scmp.lt.s32.totalorder %s20, 0
      %s229 = scalar_select %p228, %s20, 0
      %p230 = scmp.lt.s32.totalorder %s21, 0
      %s231 = scalar_select %p230, %s21, 0
      %p232 = scmp.lt.s32.totalorder %s227, 13
      %s233 = scalar_select %p232, %s227, 13
      %s234 = smul.addr %s231, 14
      %s235 = sadd.s32 %s233, %s234
      %s236 = smul.addr %s229, 14
      %s237 = sadd.s32 %s235, %s236
      %s238 = smul.addr %s237, 4
      %s239 = scalar_lea.vmem %s0, %s238
      %p240 = pneg %p65
      %p241 = pneg %p62
      %s242 = smul.u32 32, %s23
      %s243 = smul.u32 2, %s22
      %p244 = scmp.lt.s32.totalorder %s20, 0
      %s245 = scalar_select %p244, %s20, 0
      %p246 = scmp.lt.s32.totalorder %s242, 223
      %s247 = scalar_select %p246, %s242, 223
      %p248 = scmp.lt.s32.totalorder %s243, 1
      %s249 = scalar_select %p248, %s243, 1
      %s250 = smul.addr %s247, 2
      %s251 = sadd.s32 %s249, %s250
      %s252 = smul.addr %s245, 448
      %s253 = sadd.s32 %s251, %s252
      %s254 = smul.addr %s253, 4
      %s255 = scalar_lea.vmem %s1, %s254
      %p256 = pneg %p95
      %p257 = pneg %p92
      %s258 = smul.u32 2, %s22
      %p259 = scmp.lt.s32.totalorder %s20, 0
      %s260 = scalar_select %p259, %s20, 0
      %p261 = scmp.lt.s32.totalorder %s258, 1
      %s262 = scalar_select %p261, %s258, 1
      %s263 = smul.addr %s260, 2
      %s264 = sadd.s32 %s262, %s263
      %s265 = scalar_lea.vmem %s2, %s264
      %p266 = pneg %p123
      %p267 = pneg %p120
      %p268 = pneg %p153
      %p269 = pneg %p150
      %s270 = smul.u32 2, %s22
      %p271 = scmp.lt.s32.totalorder %s20, 0
      %s272 = scalar_select %p271, %s20, 0
      %p273 = scmp.lt.s32.totalorder %s21, 0
      %s274 = scalar_select %p273, %s21, 0
      %p275 = scmp.lt.s32.totalorder %s270, 1
      %s276 = scalar_select %p275, %s270, 1
      %s277 = smul.addr %s274, 2
      %s278 = sadd.s32 %s276, %s277
      %s279 = smul.addr %s272, 2
      %s280 = sadd.s32 %s278, %s279
      %s281 = smul.addr %s280, 8
      %s282 = scalar_lea.vmem %s3, %s281
      %s283 = smul.u32 2, %s23
      %p284 = scmp.lt.s32.totalorder %s20, 0
      %s285 = scalar_select %p284, %s20, 0
      %p286 = scmp.lt.s32.totalorder %s21, 0
      %s287 = scalar_select %p286, %s21, 0
      %p288 = scmp.lt.s32.totalorder %s283, 13
      %s289 = scalar_select %p288, %s283, 13
      %s290 = smul.addr %s287, 14
      %s291 = sadd.s32 %s289, %s290
      %s292 = smul.addr %s285, 14
      %s293 = sadd.s32 %s291, %s292
      %s294 = smul.addr %s293, 4
      %s295 = scalar_lea.vmem %s0, %s294
      %s296 = smul.u32 2, %s23
      %s297 = smul.u32 32, %s23
      %s298 = smul.u32 2, %s22
      %p299 = scmp.lt.s32.totalorder %s20, 0
      %s300 = scalar_select %p299, %s20, 0
      %p301 = scmp.lt.s32.totalorder %s297, 223
      %s302 = scalar_select %p301, %s297, 223
      %p303 = scmp.lt.s32.totalorder %s298, 1
      %s304 = scalar_select %p303, %s298, 1
      %s305 = smul.addr %s302, 2
      %s306 = sadd.s32 %s304, %s305
      %s307 = smul.addr %s300, 448
      %s308 = sadd.s32 %s306, %s307
      %s309 = smul.addr %s308, 4
      %s310 = scalar_lea.vmem %s1, %s309
      %s311 = smul.u32 32, %s23
      %s312 = smul.u32 2, %s22
      %s313 = smul.u32 2, %s22
      %p314 = scmp.lt.s32.totalorder %s20, 0
      %s315 = scalar_select %p314, %s20, 0
      %p316 = scmp.lt.s32.totalorder %s313, 1
      %s317 = scalar_select %p316, %s313, 1
      %s318 = smul.addr %s315, 2
      %s319 = sadd.s32 %s317, %s318
      %s320 = scalar_lea.vmem %s2, %s319
      %s321 = smul.u32 2, %s22
      %s322 = smul.u32 2, %s22
      %p323 = scmp.lt.s32.totalorder %s20, 0
      %s324 = scalar_select %p323, %s20, 0
      %p325 = scmp.lt.s32.totalorder %s21, 0
      %s326 = scalar_select %p325, %s21, 0
      %p327 = scmp.lt.s32.totalorder %s322, 1
      %s328 = scalar_select %p327, %s322, 1
      %s329 = smul.addr %s326, 2
      %s330 = sadd.s32 %s328, %s329
      %s331 = smul.addr %s324, 2
      %s332 = sadd.s32 %s330, %s331
      %s333 = smul.addr %s332, 8
      %s334 = scalar_lea.vmem %s3, %s333
      %s335 = smul.u32 2, %s22
      %p336 = scmp.eq.s32.totalorder %s23, 0
      // Predicated region
      $region33: #{closed_call.251} parent=31 // pred_check
        %p337 = pneg %p336
      $region34: #{closed_call.251} parent=31 // pred_check_branch
        %339 = sbr.rel (%p337) target = $region36
      $region35: #{closed_call.251} parent=31 // pred_region
        %340 = vst [vmem:[#allocation2] sm:$0xff] 0.0
        %341 = vst [vmem:[#allocation2 + $0x8] sm:$0xff] 0.0
      $region36: #{closed_call.251} parent=31 // pred_fallthru
        _
      %v342 = vld [vmem:[#allocation2] sm:$0xff]
      %v343 = vld [vmem:[#allocation2 + $0x8] sm:$0xff]
      %v344 = vld [vmem:[%s295] sm:$0xff]
      %v345 = vld [vmem:[%s310] sm:$0xff]
      %v346 = vld [vmem:[%s310 + $0x8] sm:$0xff]
      %v347 = vld [vmem:[%s310 + $0x10] sm:$0xff]
      %v348 = vld [vmem:[%s310 + $0x18] sm:$0xff]
      %v349 = vld [vmem:[%s310 + $0x20] sm:$0xff]
      %v350 = vld [vmem:[%s310 + $0x28] sm:$0xff]
      %v351 = vld [vmem:[%s310 + $0x30] sm:$0xff]
      %v352 = vld [vmem:[%s310 + $0x38] sm:$0xff]
      %v353 = vld [vmem:[%s310 + $0x40] sm:$0xff]
      %v354 = vld [vmem:[%s310 + $0x48] sm:$0xff]
      %v355 = vld [vmem:[%s310 + $0x50] sm:$0xff]
      %v356 = vld [vmem:[%s310 + $0x58] sm:$0xff]
      %v357 = vld [vmem:[%s310 + $0x60] sm:$0xff]
      %v358 = vld [vmem:[%s310 + $0x68] sm:$0xff]
      %v359 = vld [vmem:[%s310 + $0x70] sm:$0xff]
      %v360 = vld [vmem:[%s310 + $0x78] sm:$0xff]
      %v361 = vld [vmem:[%s310 + $0x80] sm:$0xff]
      %v362 = vld [vmem:[%s310 + $0x88] sm:$0xff]
      %v363 = vld [vmem:[%s310 + $0x90] sm:$0xff]
      %v364 = vld [vmem:[%s310 + $0x98] sm:$0xff]
      %v365 = vld [vmem:[%s310 + $0xa0] sm:$0xff]
      %v366 = vld [vmem:[%s310 + $0xa8] sm:$0xff]
      %v367 = vld [vmem:[%s310 + $0xb0] sm:$0xff]
      %v368 = vld [vmem:[%s310 + $0xb8] sm:$0xff]
      %v369 = vld [vmem:[%s310 + $0xc0] sm:$0xff]
      %v370 = vld [vmem:[%s310 + $0xc8] sm:$0xff]
      %v371 = vld [vmem:[%s310 + $0xd0] sm:$0xff]
      %v372 = vld [vmem:[%s310 + $0xd8] sm:$0xff]
      %v373 = vld [vmem:[%s310 + $0xe0] sm:$0xff]
      %v374 = vld [vmem:[%s310 + $0xe8] sm:$0xff]
      %v375 = vld [vmem:[%s310 + $0xf0] sm:$0xff]
      %v376 = vld [vmem:[%s310 + $0xf8] sm:$0xff]
      %v378 = vunpack.c.l.b16 %v344
      %v379 = vunpack.c.h.b16 %v344
      %v380 = vpack.c.b16 %v378, %v378
      %v381 = vpack.c.b16 %v379, %v379
      %v416 = vunpack.c.l.b16 %v345
      %v417 = vunpack.c.h.b16 %v345
      %v418 = vunpack.c.l.b16 %v346
      %v419 = vunpack.c.h.b16 %v346
      %v420 = vunpack.c.l.b16 %v347
      %v421 = vunpack.c.h.b16 %v347
      %v422 = vunpack.c.l.b16 %v348
      %v423 = vunpack.c.h.b16 %v348
      %v424 = vunpack.c.l.b16 %v349
      %v425 = vunpack.c.h.b16 %v349
      %v426 = vunpack.c.l.b16 %v350
      %v427 = vunpack.c.h.b16 %v350
      %v428 = vunpack.c.l.b16 %v351
      %v429 = vunpack.c.h.b16 %v351
      %v430 = vunpack.c.l.b16 %v352
      %v431 = vunpack.c.h.b16 %v352
      %v432 = vunpack.c.l.b16 %v353
      %v433 = vunpack.c.h.b16 %v353
      %v434 = vunpack.c.l.b16 %v354
      %v435 = vunpack.c.h.b16 %v354
      %v436 = vunpack.c.l.b16 %v355
      %v437 = vunpack.c.h.b16 %v355
      %v438 = vunpack.c.l.b16 %v356
      %v439 = vunpack.c.h.b16 %v356
      %v440 = vunpack.c.l.b16 %v357
      %v441 = vunpack.c.h.b16 %v357
      %v442 = vunpack.c.l.b16 %v358
      %v443 = vunpack.c.h.b16 %v358
      %v444 = vunpack.c.l.b16 %v359
      %v445 = vunpack.c.h.b16 %v359
      %v446 = vunpack.c.l.b16 %v360
      %v447 = vunpack.c.h.b16 %v360
      %v448 = vunpack.c.l.b16 %v361
      %v449 = vunpack.c.h.b16 %v361
      %v450 = vunpack.c.l.b16 %v362
      %v451 = vunpack.c.h.b16 %v362
      %v452 = vunpack.c.l.b16 %v363
      %v453 = vunpack.c.h.b16 %v363
      %v454 = vunpack.c.l.b16 %v364
      %v455 = vunpack.c.h.b16 %v364
      %v456 = vunpack.c.l.b16 %v365
      %v457 = vunpack.c.h.b16 %v365
      %v458 = vunpack.c.l.b16 %v366
      %v459 = vunpack.c.h.b16 %v366
      %v460 = vunpack.c.l.b16 %v367
      %v461 = vunpack.c.h.b16 %v367
      %v462 = vunpack.c.l.b16 %v368
      %v463 = vunpack.c.h.b16 %v368
      %v464 = vunpack.c.l.b16 %v369
      %v465 = vunpack.c.h.b16 %v369
      %v466 = vunpack.c.l.b16 %v370
      %v467 = vunpack.c.h.b16 %v370
      %v468 = vunpack.c.l.b16 %v371
      %v469 = vunpack.c.h.b16 %v371
      %v470 = vunpack.c.l.b16 %v372
      %v471 = vunpack.c.h.b16 %v372
      %v472 = vunpack.c.l.b16 %v373
      %v473 = vunpack.c.h.b16 %v373
      %v474 = vunpack.c.l.b16 %v374
      %v475 = vunpack.c.h.b16 %v374
      %v476 = vunpack.c.l.b16 %v375
      %v477 = vunpack.c.h.b16 %v375
      %v478 = vunpack.c.l.b16 %v376
      %v479 = vunpack.c.h.b16 %v376
      %v480 = vpack.c.b16 %v418, %v416
      %v481 = vpack.c.b16 %v419, %v417
      %v482 = vpack.c.b16 %v422, %v420
      %v483 = vpack.c.b16 %v423, %v421
      %v484 = vpack.c.b16 %v426, %v424
      %v485 = vpack.c.b16 %v427, %v425
      %v486 = vpack.c.b16 %v430, %v428
      %v487 = vpack.c.b16 %v431, %v429
      %v488 = vpack.c.b16 %v434, %v432
      %v489 = vpack.c.b16 %v435, %v433
      %v490 = vpack.c.b16 %v438, %v436
      %v491 = vpack.c.b16 %v439, %v437
      %v492 = vpack.c.b16 %v442, %v440
      %v493 = vpack.c.b16 %v443, %v441
      %v494 = vpack.c.b16 %v446, %v444
      %v495 = vpack.c.b16 %v447, %v445
      %v496 = vpack.c.b16 %v450, %v448
      %v497 = vpack.c.b16 %v451, %v449
      %v498 = vpack.c.b16 %v454, %v452
      %v499 = vpack.c.b16 %v455, %v453
      %v500 = vpack.c.b16 %v458, %v456
      %v501 = vpack.c.b16 %v459, %v457
      %v502 = vpack.c.b16 %v462, %v460
      %v503 = vpack.c.b16 %v463, %v461
      %v504 = vpack.c.b16 %v466, %v464
      %v505 = vpack.c.b16 %v467, %v465
      %v506 = vpack.c.b16 %v470, %v468
      %v507 = vpack.c.b16 %v471, %v469
      %v508 = vpack.c.b16 %v474, %v472
      %v509 = vpack.c.b16 %v475, %v473
      %v510 = vpack.c.b16 %v478, %v476
      %v511 = vpack.c.b16 %v479, %v477
      %544 = vmatpush.bf16.msra.mxu0 %v494
      %545 = vmatpush.bf16.msra.mxu0 %v492
      %546 = vmatpush.bf16.msra.mxu0 %v490
      %547 = vmatpush.bf16.msra.mxu0 %v488
      %548 = vmatpush.bf16.msra.mxu0 %v486
      %549 = vmatpush.bf16.msra.mxu0 %v484
      %550 = vmatpush.bf16.msra.mxu0 %v482
      %551 = vmatpush.bf16.msra.mxu0 %v480
      %552 = vmatmul.bf16.gmra.mxu0 %v380
      %v553 = vpop.f32.mrf.mxu0
      %v554 = vadd.f32 0.0, %v553
      %v555 = vpop.f32.mrf.mxu0
      %556 = vdwg.mxu0
      %557 = vmatpush.bf16.msra.mxu0 %v510
      %558 = vmatpush.bf16.msra.mxu0 %v508
      %559 = vmatpush.bf16.msra.mxu0 %v506
      %560 = vmatpush.bf16.msra.mxu0 %v504
      %561 = vmatpush.bf16.msra.mxu0 %v502
      %562 = vmatpush.bf16.msra.mxu0 %v500
      %563 = vmatpush.bf16.msra.mxu0 %v498
      %564 = vmatpush.bf16.msra.mxu0 %v496
      %565 = vmatmul.bf16.gmra.mxu0 %v381
      %v566 = vpop.f32.mrf.mxu0
      %v567 = vadd.f32 %v554, %v566
      %v568 = vpop.f32.mrf.mxu0
      %569 = vdwg.mxu0
      %570 = vmatpush.bf16.msra.mxu0 %v495
      %571 = vmatpush.bf16.msra.mxu0 %v493
      %572 = vmatpush.bf16.msra.mxu0 %v491
      %573 = vmatpush.bf16.msra.mxu0 %v489
      %574 = vmatpush.bf16.msra.mxu0 %v487
      %575 = vmatpush.bf16.msra.mxu0 %v485
      %576 = vmatpush.bf16.msra.mxu0 %v483
      %577 = vmatpush.bf16.msra.mxu0 %v481
      %578 = vmatmul.bf16.gmra.mxu0 %v380
      %v579 = vpop.f32.mrf.mxu0
      %v580 = vadd.f32 0.0, %v579
      %v581 = vpop.f32.mrf.mxu0
      %582 = vdwg.mxu0
      %583 = vmatpush.bf16.msra.mxu0 %v511
      %584 = vmatpush.bf16.msra.mxu0 %v509
      %585 = vmatpush.bf16.msra.mxu0 %v507
      %586 = vmatpush.bf16.msra.mxu0 %v505
      %587 = vmatpush.bf16.msra.mxu0 %v503
      %588 = vmatpush.bf16.msra.mxu0 %v501
      %589 = vmatpush.bf16.msra.mxu0 %v499
      %590 = vmatpush.bf16.msra.mxu0 %v497
      %591 = vmatmul.bf16.gmra.mxu0 %v381
      %v592 = vpop.f32.mrf.mxu0
      %v593 = vadd.f32 %v580, %v592
      %v594 = vpop.f32.mrf.mxu0
      %595 = vdwg.mxu0
      %v596 = vadd.f32 %v342, %v567
      %v597 = vadd.f32 %v343, %v593
      %598 = vst [vmem:[#allocation2] sm:$0xff] %v596
      %599 = vst [vmem:[#allocation2 + $0x8] sm:$0xff] %v597
      %p600 = scmp.eq.s32.totalorder %s23, 6
      // Predicated region
      $region37: #{closed_call.251} parent=31 // pred_check
        %p601 = pneg %p600
      $region38: #{closed_call.251} parent=31 // pred_check_branch
        %603 = sbr.rel (%p601) target = $region40
      $region39: #{closed_call.251} parent=31 // pred_region
        %v604 = vld [vmem:[#allocation2] sm:$0xff]
        %v605 = vld [vmem:[#allocation2 + $0x8] sm:$0xff]
        %v606 = vld [vmem:[%s320] sm:$0x3]
        %v608 = vperm.slane %v606, 0
        %v609 = vperm.slane %v606, 1
        %v612 = vadd.f32 %v604, %v608
        %v613 = vadd.f32 %v605, %v609
        %614 = vst [vmem:[%s334] sm:$0xff] %v612
        %615 = vst [vmem:[%s334 + $0x8] sm:$0xff] %v613
      $region40: #{closed_call.251} parent=31 // pred_fallthru
        _
      %s616 = smul.u32 2, %s22
      %p617 = scmp.lt.s32.totalorder %s20, 0
      %s618 = scalar_select %p617, %s20, 0
      %p619 = scmp.lt.s32.totalorder %s21, 0
      %s620 = scalar_select %p619, %s21, 0
      %p621 = scmp.lt.s32.totalorder %s616, 1
      %s622 = scalar_select %p621, %s616, 1
      %s623 = smul.addr %s620, 2
      %s624 = sadd.s32 %s622, %s623
      %s625 = smul.addr %s618, 2
      %s626 = sadd.s32 %s624, %s625
      %s627 = smul.addr %s626, 8
      %s628 = scalar_lea.vmem %s3, %s627
      // Predicated region
      $region41: #{closed_call.251} parent=31 // pred_check
        %p629 = pneg %p150
      $region42: #{closed_call.251} parent=31 // pred_check_branch
        %631 = sbr.rel (%p629) target = $region44
      $region43: #{closed_call.251} parent=31 // pred_region
        %s632 = smul.u32 2, %s22
      $region44: #{closed_call.251} parent=31 // pred_fallthru
        _
      // Predicated region
      $region45: #{closed_call.251} parent=31 // pred_check
        %p633 = pneg %p150
      $region46: #{closed_call.251} parent=31 // pred_check_branch
        %635 = sbr.rel (%p633) target = $region48
      $region47: #{closed_call.251} parent=31 // pred_region
        %s636 = smul.u32 2, %s22
        %p637 = scmp.lt.s32.totalorder %s20, 0
        %s638 = scalar_select %p637, %s20, 0
        %p639 = scmp.lt.s32.totalorder %s21, 0
        %s640 = scalar_select %p639, %s21, 0
        %p641 = scmp.lt.s32.totalorder %s636, 1
        %s642 = scalar_select %p641, %s636, 1
        %s643 = smul.addr %s640, 2
        %s644 = sadd.s32 %s642, %s643
        %s645 = smul.addr %s638, 2
        %s646 = sadd.s32 %s644, %s645
        %s647 = smul.addr %s646, 8
        %s648 = scalar_lea.vmem %s3, %s647
      $region48: #{closed_call.251} parent=31 // pred_fallthru
        _
    $region32: #{closed_call.251} parent=5 // pred_fallthru
      _
    %p649 = scmp.le.s32.totalorder 2, %s9
    // Predicated region
    $region49: #{closed_call.251} parent=5 // pred_check
      %p650 = pneg %p649
    $region50: #{closed_call.251} parent=5 // pred_check_branch
      %652 = sbr.rel (%p650) target = $region52
    $region51: #{closed_call.251} parent=5 // pred_region
      %s653 = ssub.s32 %s9, 2
    $region52: #{closed_call.251} parent=5 // pred_fallthru
      _
  $region6: #{closed_call.251} parent=0 // loop_footer
    %s13 = sadd.s32 1, %s9
  $region7: #{closed_call.251} parent=0 // loop_footer_branch
    %8 = sbr.rel target = $region3
  $region8: #{closed_call.251} parent=0 // loop_exit
    _

// kernel: closed_call.253
$region0: #{closed_call.253}
  #allocation0 [shape = 'u32[]', space=smem, size = 0x4, offset = 0x4, fixed_abs, tag = 'smem constant byte address 0x4 - core index']
  #allocation1 [shape = 'u32[72,128]{1,0:T(1,128)}', space=vmem, size = 0x9000, scoped, tag = 'internal scratch']
  #allocation2 [shape = 'f32[8,256]{1,0:T(8,128)}', space=vmem, size = 0x2000, scoped, tag = 'scratch operand']
  %s0 = inlined_call_operand.vmem [shape: bf16[1,8,256], index: 0, kind: input, shape index: {}]
  %s1 = inlined_call_operand.vmem [shape: bf16[1,256,256], index: 1, kind: input, shape index: {}]
  %s2 = inlined_call_operand.vmem [shape: f32[1,1,256], index: 2, kind: input, shape index: {}]
  %s3 = inlined_call_operand.vmem [shape: f32[1,8,256], index: 3, kind: output, shape index: {}]
  %s4 = sld [smem:[#allocation0]]
  $region30: #{closed_call.253} parent=0
    _
  %s6 = ssub.s32 1, %s4
  %s7 = scalar_select 0, %s6, %s4
  // Predicated region
  $region2: #{closed_call.253} parent=0 // pred_check
    _
  $region3: #{closed_call.253} parent=0 // pred_check_branch
    %9 = sbr.rel (0) target = $region5
  $region4: #{closed_call.253} parent=0 // pred_region
    _
  $region5: #{closed_call.253} parent=0 // pred_fallthru
    _
  // Predicated region
  $region6: #{closed_call.253} parent=0 // pred_check
    _
  $region7: #{closed_call.253} parent=0 // pred_check_branch
    %11 = sbr.rel (0) target = $region9
  $region8: #{closed_call.253} parent=0 // pred_region
    _
  $region9: #{closed_call.253} parent=0 // pred_fallthru
    _
  // Predicated region
  $region10: #{closed_call.253} parent=0 // pred_check
    _
  $region11: #{closed_call.253} parent=0 // pred_check_branch
    %13 = sbr.rel (0) target = $region13
  $region12: #{closed_call.253} parent=0 // pred_region
    _
  $region13: #{closed_call.253} parent=0 // pred_fallthru
    _
  %p14 = scmp.eq.s32.totalorder 0, 0
  // Predicated region
  $region14: #{closed_call.253} parent=0 // pred_check
    %p15 = pneg %p14
  $region15: #{closed_call.253} parent=0 // pred_check_branch
    %17 = sbr.rel (%p15) target = $region17
  $region16: #{closed_call.253} parent=0 // pred_region
    %18 = vst [vmem:[#allocation2] sm:$0xff] 0.0
    %19 = vst [vmem:[#allocation2 + $0x8] sm:$0xff] 0.0
  $region17: #{closed_call.253} parent=0 // pred_fallthru
    _
  %v20 = vld [vmem:[#allocation2] sm:$0xff]
  %v21 = vld [vmem:[#allocation2 + $0x8] sm:$0xff]
  %v22 = vld [vmem:[%s0] sm:$0xff]
  %v23 = vld [vmem:[%s1] sm:$0xff]
  %v24 = vld [vmem:[%s1 + $0x8] sm:$0xff]
  %v25 = vld [vmem:[%s1 + $0x10] sm:$0xff]
  %v26 = vld [vmem:[%s1 + $0x18] sm:$0xff]
  %v27 = vld [vmem:[%s1 + $0x20] sm:$0xff]
  %v28 = vld [vmem:[%s1 + $0x28] sm:$0xff]
  %v29 = vld [vmem:[%s1 + $0x30] sm:$0xff]
  %v30 = vld [vmem:[%s1 + $0x38] sm:$0xff]
  %v31 = vld [vmem:[%s1 + $0x40] sm:$0xff]
  %v32 = vld [vmem:[%s1 + $0x48] sm:$0xff]
  %v33 = vld [vmem:[%s1 + $0x50] sm:$0xff]
  %v34 = vld [vmem:[%s1 + $0x58] sm:$0xff]
  %v35 = vld [vmem:[%s1 + $0x60] sm:$0xff]
  %v36 = vld [vmem:[%s1 + $0x68] sm:$0xff]
  %v37 = vld [vmem:[%s1 + $0x70] sm:$0xff]
  %v38 = vld [vmem:[%s1 + $0x78] sm:$0xff]
  %v39 = vld [vmem:[%s1 + $0x80] sm:$0xff]
  %v40 = vld [vmem:[%s1 + $0x88] sm:$0xff]
  %v41 = vld [vmem:[%s1 + $0x90] sm:$0xff]
  %v42 = vld [vmem:[%s1 + $0x98] sm:$0xff]
  %v43 = vld [vmem:[%s1 + $0xa0] sm:$0xff]
  %v44 = vld [vmem:[%s1 + $0xa8] sm:$0xff]
  %v45 = vld [vmem:[%s1 + $0xb0] sm:$0xff]
  %v46 = vld [vmem:[%s1 + $0xb8] sm:$0xff]
  %v47 = vld [vmem:[%s1 + $0xc0] sm:$0xff]
  %v48 = vld [vmem:[%s1 + $0xc8] sm:$0xff]
  %v49 = vld [vmem:[%s1 + $0xd0] sm:$0xff]
  %v50 = vld [vmem:[%s1 + $0xd8] sm:$0xff]
  %v51 = vld [vmem:[%s1 + $0xe0] sm:$0xff]
  %v52 = vld [vmem:[%s1 + $0xe8] sm:$0xff]
  %v53 = vld [vmem:[%s1 + $0xf0] sm:$0xff]
  %v54 = vld [vmem:[%s1 + $0xf8] sm:$0xff]
  %v56 = vunpack.c.l.b16 %v22
  %v57 = vunpack.c.h.b16 %v22
  %v58 = vpack.c.b16 %v56, %v56
  %v59 = vpack.c.b16 %v57, %v57
  %v94 = vunpack.c.l.b16 %v23
  %v95 = vunpack.c.h.b16 %v23
  %v96 = vunpack.c.l.b16 %v24
  %v97 = vunpack.c.h.b16 %v24
  %v98 = vunpack.c.l.b16 %v25
  %v99 = vunpack.c.h.b16 %v25
  %v100 = vunpack.c.l.b16 %v26
  %v101 = vunpack.c.h.b16 %v26
  %v102 = vunpack.c.l.b16 %v27
  %v103 = vunpack.c.h.b16 %v27
  %v104 = vunpack.c.l.b16 %v28
  %v105 = vunpack.c.h.b16 %v28
  %v106 = vunpack.c.l.b16 %v29
  %v107 = vunpack.c.h.b16 %v29
  %v108 = vunpack.c.l.b16 %v30
  %v109 = vunpack.c.h.b16 %v30
  %v110 = vunpack.c.l.b16 %v31
  %v111 = vunpack.c.h.b16 %v31
  %v112 = vunpack.c.l.b16 %v32
  %v113 = vunpack.c.h.b16 %v32
  %v114 = vunpack.c.l.b16 %v33
  %v115 = vunpack.c.h.b16 %v33
  %v116 = vunpack.c.l.b16 %v34
  %v117 = vunpack.c.h.b16 %v34
  %v118 = vunpack.c.l.b16 %v35
  %v119 = vunpack.c.h.b16 %v35
  %v120 = vunpack.c.l.b16 %v36
  %v121 = vunpack.c.h.b16 %v36
  %v122 = vunpack.c.l.b16 %v37
  %v123 = vunpack.c.h.b16 %v37
  %v124 = vunpack.c.l.b16 %v38
  %v125 = vunpack.c.h.b16 %v38
  %v126 = vunpack.c.l.b16 %v39
  %v127 = vunpack.c.h.b16 %v39
  %v128 = vunpack.c.l.b16 %v40
  %v129 = vunpack.c.h.b16 %v40
  %v130 = vunpack.c.l.b16 %v41
  %v131 = vunpack.c.h.b16 %v41
  %v132 = vunpack.c.l.b16 %v42
  %v133 = vunpack.c.h.b16 %v42
  %v134 = vunpack.c.l.b16 %v43
  %v135 = vunpack.c.h.b16 %v43
  %v136 = vunpack.c.l.b16 %v44
  %v137 = vunpack.c.h.b16 %v44
  %v138 = vunpack.c.l.b16 %v45
  %v139 = vunpack.c.h.b16 %v45
  %v140 = vunpack.c.l.b16 %v46
  %v141 = vunpack.c.h.b16 %v46
  %v142 = vunpack.c.l.b16 %v47
  %v143 = vunpack.c.h.b16 %v47
  %v144 = vunpack.c.l.b16 %v48
  %v145 = vunpack.c.h.b16 %v48
  %v146 = vunpack.c.l.b16 %v49
  %v147 = vunpack.c.h.b16 %v49
  %v148 = vunpack.c.l.b16 %v50
  %v149 = vunpack.c.h.b16 %v50
  %v150 = vunpack.c.l.b16 %v51
  %v151 = vunpack.c.h.b16 %v51
  %v152 = vunpack.c.l.b16 %v52
  %v153 = vunpack.c.h.b16 %v52
  %v154 = vunpack.c.l.b16 %v53
  %v155 = vunpack.c.h.b16 %v53
  %v156 = vunpack.c.l.b16 %v54
  %v157 = vunpack.c.h.b16 %v54
  %v158 = vpack.c.b16 %v96, %v94
  %v159 = vpack.c.b16 %v97, %v95
  %v160 = vpack.c.b16 %v100, %v98
  %v161 = vpack.c.b16 %v101, %v99
  %v162 = vpack.c.b16 %v104, %v102
  %v163 = vpack.c.b16 %v105, %v103
  %v164 = vpack.c.b16 %v108, %v106
  %v165 = vpack.c.b16 %v109, %v107
  %v166 = vpack.c.b16 %v112, %v110
  %v167 = vpack.c.b16 %v113, %v111
  %v168 = vpack.c.b16 %v116, %v114
  %v169 = vpack.c.b16 %v117, %v115
  %v170 = vpack.c.b16 %v120, %v118
  %v171 = vpack.c.b16 %v121, %v119
  %v172 = vpack.c.b16 %v124, %v122
  %v173 = vpack.c.b16 %v125, %v123
  %v174 = vpack.c.b16 %v128, %v126
  %v175 = vpack.c.b16 %v129, %v127
  %v176 = vpack.c.b16 %v132, %v130
  %v177 = vpack.c.b16 %v133, %v131
  %v178 = vpack.c.b16 %v136, %v134
  %v179 = vpack.c.b16 %v137, %v135
  %v180 = vpack.c.b16 %v140, %v138
  %v181 = vpack.c.b16 %v141, %v139
  %v182 = vpack.c.b16 %v144, %v142
  %v183 = vpack.c.b16 %v145, %v143
  %v184 = vpack.c.b16 %v148, %v146
  %v185 = vpack.c.b16 %v149, %v147
  %v186 = vpack.c.b16 %v152, %v150
  %v187 = vpack.c.b16 %v153, %v151
  %v188 = vpack.c.b16 %v156, %v154
  %v189 = vpack.c.b16 %v157, %v155
  %222 = vmatpush.bf16.msra.mxu0 %v172
  %223 = vmatpush.bf16.msra.mxu0 %v170
  %224 = vmatpush.bf16.msra.mxu0 %v168
  %225 = vmatpush.bf16.msra.mxu0 %v166
  %226 = vmatpush.bf16.msra.mxu0 %v164
  %227 = vmatpush.bf16.msra.mxu0 %v162
  %228 = vmatpush.bf16.msra.mxu0 %v160
  %229 = vmatpush.bf16.msra.mxu0 %v158
  %230 = vmatmul.bf16.gmra.mxu0 %v58
  %v231 = vpop.f32.mrf.mxu0
  %v232 = vadd.f32 0.0, %v231
  %v233 = vpop.f32.mrf.mxu0
  %234 = vdwg.mxu0
  %235 = vmatpush.bf16.msra.mxu0 %v188
  %236 = vmatpush.bf16.msra.mxu0 %v186
  %237 = vmatpush.bf16.msra.mxu0 %v184
  %238 = vmatpush.bf16.msra.mxu0 %v182
  %239 = vmatpush.bf16.msra.mxu0 %v180
  %240 = vmatpush.bf16.msra.mxu0 %v178
  %241 = vmatpush.bf16.msra.mxu0 %v176
  %242 = vmatpush.bf16.msra.mxu0 %v174
  %243 = vmatmul.bf16.gmra.mxu0 %v59
  %v244 = vpop.f32.mrf.mxu0
  %v245 = vadd.f32 %v232, %v244
  %v246 = vpop.f32.mrf.mxu0
  %247 = vdwg.mxu0
  %248 = vmatpush.bf16.msra.mxu0 %v173
  %249 = vmatpush.bf16.msra.mxu0 %v171
  %250 = vmatpush.bf16.msra.mxu0 %v169
  %251 = vmatpush.bf16.msra.mxu0 %v167
  %252 = vmatpush.bf16.msra.mxu0 %v165
  %253 = vmatpush.bf16.msra.mxu0 %v163
  %254 = vmatpush.bf16.msra.mxu0 %v161
  %255 = vmatpush.bf16.msra.mxu0 %v159
  %256 = vmatmul.bf16.gmra.mxu0 %v58
  %v257 = vpop.f32.mrf.mxu0
  %v258 = vadd.f32 0.0, %v257
  %v259 = vpop.f32.mrf.mxu0
  %260 = vdwg.mxu0
  %261 = vmatpush.bf16.msra.mxu0 %v189
  %262 = vmatpush.bf16.msra.mxu0 %v187
  %263 = vmatpush.bf16.msra.mxu0 %v185
  %264 = vmatpush.bf16.msra.mxu0 %v183
  %265 = vmatpush.bf16.msra.mxu0 %v181
  %266 = vmatpush.bf16.msra.mxu0 %v179
  %267 = vmatpush.bf16.msra.mxu0 %v177
  %268 = vmatpush.bf16.msra.mxu0 %v175
  %269 = vmatmul.bf16.gmra.mxu0 %v59
  %v270 = vpop.f32.mrf.mxu0
  %v271 = vadd.f32 %v258, %v270
  %v272 = vpop.f32.mrf.mxu0
  %273 = vdwg.mxu0
  %v274 = vadd.f32 %v20, %v245
  %v275 = vadd.f32 %v21, %v271
  %276 = vst [vmem:[#allocation2] sm:$0xff] %v274
  %277 = vst [vmem:[#allocation2 + $0x8] sm:$0xff] %v275
  // Predicated region
  $region18: #{closed_call.253} parent=0 // pred_check
    %p278 = pneg %p14
  $region19: #{closed_call.253} parent=0 // pred_check_branch
    %280 = sbr.rel (%p278) target = $region21
  $region20: #{closed_call.253} parent=0 // pred_region
    %v281 = vld [vmem:[#allocation2] sm:$0xff]
    %v282 = vld [vmem:[#allocation2 + $0x8] sm:$0xff]
    %v283 = vld [vmem:[%s2] sm:$0x3]
    %v285 = vperm.slane %v283, 0
    %v286 = vperm.slane %v283, 1
    %v289 = vadd.f32 %v281, %v285
    %v290 = vadd.f32 %v282, %v286
    %v291 = vxor.u32 %v289, 2147483648
    %v292 = vxor.u32 %v290, 2147483648
    %v293 = vmul.f32 %v291, 1.442695
    %v294 = vpow.pop %v293
    %v295 = vmul.f32 %v292, 1.442695
    %v296 = vpow.pop %v295
    %v297 = vadd.f32 %v294, 1.0
    %v298 = vadd.f32 %v296, 1.0
    %v299 = vrcp.pop %v297
    %v300 = vmul.f32 %v297, %v299
    %v301 = vsub.f32 1.0, %v300
    %v302 = vmul.f32 %v299, %v301
    %v303 = vadd.f32 %v299, %v302
    %vm304 = vweird.f32 %v297
    %vm305 = vweird.f32 %v299
    %vm306 = vmor %vm304, %vm305
    %v307 = vsel %vm306, %v299, %v303
    %v308 = vand.u32 2147483647, %v297
    %vm309 = vcmp.eq.f32.partialorder %v308, 8.507059e+37
    %v310 = vand.u32 %v297, 2147483648
    %v311 = vor.u32 1.1754944e-38, %v310
    %v312 = vsel %vm309, %v311, %v307
    %v313 = vmul.f32 1.0, %v312
    %v314 = vrcp.pop %v298
    %v315 = vmul.f32 %v298, %v314
    %v316 = vsub.f32 1.0, %v315
    %v317 = vmul.f32 %v314, %v316
    %v318 = vadd.f32 %v314, %v317
    %vm319 = vweird.f32 %v298
    %vm320 = vweird.f32 %v314
    %vm321 = vmor %vm319, %vm320
    %v322 = vsel %vm321, %v314, %v318
    %v323 = vand.u32 2147483647, %v298
    %vm324 = vcmp.eq.f32.partialorder %v323, 8.507059e+37
    %v325 = vand.u32 %v298, 2147483648
    %v326 = vor.u32 1.1754944e-38, %v325
    %v327 = vsel %vm324, %v326, %v322
    %v328 = vmul.f32 1.0, %v327
    %329 = vst [vmem:[%s3] sm:$0xff] %v313
    %330 = vst [vmem:[%s3 + $0x8] sm:$0xff] %v328
  $region21: #{closed_call.253} parent=0 // pred_fallthru
    _
  // Predicated region
  $region22: #{closed_call.253} parent=0 // pred_check
    _
  $region23: #{closed_call.253} parent=0 // pred_check_branch
    %332 = sbr.rel (0) target = $region25
  $region24: #{closed_call.253} parent=0 // pred_region
    _
  $region25: #{closed_call.253} parent=0 // pred_fallthru
    _
  // Predicated region
  $region26: #{closed_call.253} parent=0 // pred_check
    _
  $region27: #{closed_call.253} parent=0 // pred_check_branch
    %334 = sbr.rel (0) target = $region29
  $region28: #{closed_call.253} parent=0 // pred_region
    _
  $region29: #{closed_call.253} parent=0 // pred_fallthru
    _

// kernel: closed_call.252
$region0: #{closed_call.252}
  #allocation0 [shape = 'u32[]', space=smem, size = 0x4, offset = 0x4, fixed_abs, tag = 'smem constant byte address 0x4 - core index']
  #allocation1 [shape = 'u32[72,128]{1,0:T(1,128)}', space=vmem, size = 0x9000, scoped, tag = 'internal scratch']
  #allocation2 [shape = 'f32[8,128]{1,0:T(8,128)}', space=vmem, size = 0x1000, scoped, tag = 'scratch operand']
  %s0 = inlined_call_operand.vmem [shape: bf16[1,8,256], index: 0, kind: input, shape index: {}]
  %s1 = inlined_call_operand.vmem [shape: bf16[1,256,128], index: 1, kind: input, shape index: {}]
  %s2 = inlined_call_operand.vmem [shape: f32[1,1,128], index: 2, kind: input, shape index: {}]
  %s3 = inlined_call_operand.vmem [shape: f32[1,8,128], index: 3, kind: output, shape index: {}]
  %s4 = sld [smem:[#allocation0]]
  $region30: #{closed_call.252} parent=0
    _
  %s6 = ssub.s32 1, %s4
  %s7 = scalar_select 0, %s6, %s4
  // Predicated region
  $region2: #{closed_call.252} parent=0 // pred_check
    _
  $region3: #{closed_call.252} parent=0 // pred_check_branch
    %9 = sbr.rel (0) target = $region5
  $region4: #{closed_call.252} parent=0 // pred_region
    _
  $region5: #{closed_call.252} parent=0 // pred_fallthru
    _
  // Predicated region
  $region6: #{closed_call.252} parent=0 // pred_check
    _
  $region7: #{closed_call.252} parent=0 // pred_check_branch
    %11 = sbr.rel (0) target = $region9
  $region8: #{closed_call.252} parent=0 // pred_region
    _
  $region9: #{closed_call.252} parent=0 // pred_fallthru
    _
  // Predicated region
  $region10: #{closed_call.252} parent=0 // pred_check
    _
  $region11: #{closed_call.252} parent=0 // pred_check_branch
    %13 = sbr.rel (0) target = $region13
  $region12: #{closed_call.252} parent=0 // pred_region
    _
  $region13: #{closed_call.252} parent=0 // pred_fallthru
    _
  %p14 = scmp.eq.s32.totalorder 0, 0
  // Predicated region
  $region14: #{closed_call.252} parent=0 // pred_check
    %p15 = pneg %p14
  $region15: #{closed_call.252} parent=0 // pred_check_branch
    %17 = sbr.rel (%p15) target = $region17
  $region16: #{closed_call.252} parent=0 // pred_region
    %18 = vst [vmem:[#allocation2] sm:$0xff] 0.0
  $region17: #{closed_call.252} parent=0 // pred_fallthru
    _
  %v19 = vld [vmem:[#allocation2] sm:$0xff]
  %v20 = vld [vmem:[%s0] sm:$0xff]
  %v21 = vld [vmem:[%s1] sm:$0xf]
  %v22 = vld [vmem:[%s1 + $0x4] sm:$0xf]
  %v23 = vld [vmem:[%s1 + $0x8] sm:$0xf]
  %v24 = vld [vmem:[%s1 + $0xc] sm:$0xf]
  %v25 = vld [vmem:[%s1 + $0x10] sm:$0xf]
  %v26 = vld [vmem:[%s1 + $0x14] sm:$0xf]
  %v27 = vld [vmem:[%s1 + $0x18] sm:$0xf]
  %v28 = vld [vmem:[%s1 + $0x1c] sm:$0xf]
  %v29 = vld [vmem:[%s1 + $0x20] sm:$0xf]
  %v30 = vld [vmem:[%s1 + $0x24] sm:$0xf]
  %v31 = vld [vmem:[%s1 + $0x28] sm:$0xf]
  %v32 = vld [vmem:[%s1 + $0x2c] sm:$0xf]
  %v33 = vld [vmem:[%s1 + $0x30] sm:$0xf]
  %v34 = vld [vmem:[%s1 + $0x34] sm:$0xf]
  %v35 = vld [vmem:[%s1 + $0x38] sm:$0xf]
  %v36 = vld [vmem:[%s1 + $0x3c] sm:$0xf]
  %v37 = vld [vmem:[%s1 + $0x40] sm:$0xf]
  %v38 = vld [vmem:[%s1 + $0x44] sm:$0xf]
  %v39 = vld [vmem:[%s1 + $0x48] sm:$0xf]
  %v40 = vld [vmem:[%s1 + $0x4c] sm:$0xf]
  %v41 = vld [vmem:[%s1 + $0x50] sm:$0xf]
  %v42 = vld [vmem:[%s1 + $0x54] sm:$0xf]
  %v43 = vld [vmem:[%s1 + $0x58] sm:$0xf]
  %v44 = vld [vmem:[%s1 + $0x5c] sm:$0xf]
  %v45 = vld [vmem:[%s1 + $0x60] sm:$0xf]
  %v46 = vld [vmem:[%s1 + $0x64] sm:$0xf]
  %v47 = vld [vmem:[%s1 + $0x68] sm:$0xf]
  %v48 = vld [vmem:[%s1 + $0x6c] sm:$0xf]
  %v49 = vld [vmem:[%s1 + $0x70] sm:$0xf]
  %v50 = vld [vmem:[%s1 + $0x74] sm:$0xf]
  %v51 = vld [vmem:[%s1 + $0x78] sm:$0xf]
  %v52 = vld [vmem:[%s1 + $0x7c] sm:$0xf]
  %v54 = vunpack.c.l.b16 %v20
  %v55 = vunpack.c.h.b16 %v20
  %v56 = vpack.c.b16 %v54, %v54
  %v57 = vpack.c.b16 %v55, %v55
  %v92 = vunpack.c.l.b16 %v21
  %v93 = vunpack.c.l.b16 %v22
  %v94 = vunpack.c.l.b16 %v23
  %v95 = vunpack.c.l.b16 %v24
  %v96 = vunpack.c.l.b16 %v25
  %v97 = vunpack.c.l.b16 %v26
  %v98 = vunpack.c.l.b16 %v27
  %v99 = vunpack.c.l.b16 %v28
  %v100 = vunpack.c.l.b16 %v29
  %v101 = vunpack.c.l.b16 %v30
  %v102 = vunpack.c.l.b16 %v31
  %v103 = vunpack.c.l.b16 %v32
  %v104 = vunpack.c.l.b16 %v33
  %v105 = vunpack.c.l.b16 %v34
  %v106 = vunpack.c.l.b16 %v35
  %v107 = vunpack.c.l.b16 %v36
  %v108 = vunpack.c.l.b16 %v37
  %v109 = vunpack.c.l.b16 %v38
  %v110 = vunpack.c.l.b16 %v39
  %v111 = vunpack.c.l.b16 %v40
  %v112 = vunpack.c.l.b16 %v41
  %v113 = vunpack.c.l.b16 %v42
  %v114 = vunpack.c.l.b16 %v43
  %v115 = vunpack.c.l.b16 %v44
  %v116 = vunpack.c.l.b16 %v45
  %v117 = vunpack.c.l.b16 %v46
  %v118 = vunpack.c.l.b16 %v47
  %v119 = vunpack.c.l.b16 %v48
  %v120 = vunpack.c.l.b16 %v49
  %v121 = vunpack.c.l.b16 %v50
  %v122 = vunpack.c.l.b16 %v51
  %v123 = vunpack.c.l.b16 %v52
  %v124 = vpack.c.b16 %v93, %v92
  %v125 = vpack.c.b16 %v95, %v94
  %v126 = vpack.c.b16 %v97, %v96
  %v127 = vpack.c.b16 %v99, %v98
  %v128 = vpack.c.b16 %v101, %v100
  %v129 = vpack.c.b16 %v103, %v102
  %v130 = vpack.c.b16 %v105, %v104
  %v131 = vpack.c.b16 %v107, %v106
  %v132 = vpack.c.b16 %v109, %v108
  %v133 = vpack.c.b16 %v111, %v110
  %v134 = vpack.c.b16 %v113, %v112
  %v135 = vpack.c.b16 %v115, %v114
  %v136 = vpack.c.b16 %v117, %v116
  %v137 = vpack.c.b16 %v119, %v118
  %v138 = vpack.c.b16 %v121, %v120
  %v139 = vpack.c.b16 %v123, %v122
  %156 = vmatpush.bf16.msra.mxu0 %v131
  %157 = vmatpush.bf16.msra.mxu0 %v130
  %158 = vmatpush.bf16.msra.mxu0 %v129
  %159 = vmatpush.bf16.msra.mxu0 %v128
  %160 = vmatpush.bf16.msra.mxu0 %v127
  %161 = vmatpush.bf16.msra.mxu0 %v126
  %162 = vmatpush.bf16.msra.mxu0 %v125
  %163 = vmatpush.bf16.msra.mxu0 %v124
  %164 = vmatmul.bf16.gmra.mxu0 %v56
  %v165 = vpop.f32.mrf.mxu0
  %v166 = vadd.f32 0.0, %v165
  %v167 = vpop.f32.mrf.mxu0
  %168 = vdwg.mxu0
  %169 = vmatpush.bf16.msra.mxu0 %v139
  %170 = vmatpush.bf16.msra.mxu0 %v138
  %171 = vmatpush.bf16.msra.mxu0 %v137
  %172 = vmatpush.bf16.msra.mxu0 %v136
  %173 = vmatpush.bf16.msra.mxu0 %v135
  %174 = vmatpush.bf16.msra.mxu0 %v134
  %175 = vmatpush.bf16.msra.mxu0 %v133
  %176 = vmatpush.bf16.msra.mxu0 %v132
  %177 = vmatmul.bf16.gmra.mxu0 %v57
  %v178 = vpop.f32.mrf.mxu0
  %v179 = vadd.f32 %v166, %v178
  %v180 = vpop.f32.mrf.mxu0
  %181 = vdwg.mxu0
  %v182 = vadd.f32 %v19, %v179
  %183 = vst [vmem:[#allocation2] sm:$0xff] %v182
  // Predicated region
  $region18: #{closed_call.252} parent=0 // pred_check
    %p184 = pneg %p14
  $region19: #{closed_call.252} parent=0 // pred_check_branch
    %186 = sbr.rel (%p184) target = $region21
  $region20: #{closed_call.252} parent=0 // pred_region
    %v187 = vld [vmem:[#allocation2] sm:$0xff]
    %v188 = vld [vmem:[%s2] sm:$0x1]
    %v190 = vperm.slane %v188, 0
    %v192 = vadd.f32 %v187, %v190
    %v193 = vmax.f32 %v192, 0.0
    %194 = vst [vmem:[%s3] sm:$0xff] %v193
  $region21: #{closed_call.252} parent=0 // pred_fallthru
    _
  // Predicated region
  $region22: #{closed_call.252} parent=0 // pred_check
    _
  $region23: #{closed_call.252} parent=0 // pred_check_branch
    %196 = sbr.rel (0) target = $region25
  $region24: #{closed_call.252} parent=0 // pred_region
    _
  $region25: #{closed_call.252} parent=0 // pred_fallthru
    _
  // Predicated region
  $region26: #{closed_call.252} parent=0 // pred_check
    _
  $region27: #{closed_call.252} parent=0 // pred_check_branch
    %198 = sbr.rel (0) target = $region29
  $region28: #{closed_call.252} parent=0 // pred_region
    _
  $region29: #{closed_call.252} parent=0 // pred_fallthru
    _

</llo_original>
